<compile_context>
chip_gen: v6e
topology: v6e:2x2x1
jax: 0.10.0
libtpu: 0.0.40
codegen_flags: <defaults>
</compile_context>

<pallas_src>
import math

import numpy as np

import jax
import jax.numpy as jnp
from jax.experimental import pallas as pl
from jax.experimental.pallas import tpu as pltpu


# ----------------------------------------------------------------------------
# helpers
# ----------------------------------------------------------------------------
def _round_up(x, m):
    return (x + m - 1) // m * m


def _vmem_capacity_bytes():
    """Physical VMEM capacity of the local TPU generation (conservative fallback)."""
    try:
        return int(pltpu.get_tpu_info().vmem_capacity_bytes)
    except Exception:
        return 64 * 1024 * 1024          # v7x-sized worst case


def _convT1d_schedule(L, K, stride, pad, opad):
    """Static gather schedule for a 1-D transposed conv.

    Returns (Lo, schedule) where schedule[o] is the tuple of (input_row, tap)
    pairs contributing to output row o (computed at trace time, all static)."""
    Lo = (L - 1) * stride - 2 * pad + (K - 1) + 1 + opad
    sched = []
    for o in range(Lo):
        pairs = []
        for t in range(K):
            num = o + pad - t
            if num % stride == 0:
                i = num // stride
                if 0 <= i < L:
                    pairs.append((i, t))
        sched.append(tuple(pairs))
    return Lo, tuple(sched)


def _choose_tile_m(M, L, Lo, cin, cout, in_dtype, out_dtype):
    """Pick the lane tile (multiple of 128) and a matching vmem limit.

    Generation-aware VMEM budget, dtype-aware sublane packing, and a guarantee of
    >= 2 grid steps (when possible) so v7x's two TensorCores both get work."""
    LANE = 128
    MAX_TILE = 2048
    in_item = jnp.dtype(in_dtype).itemsize
    out_item = jnp.dtype(out_dtype).itemsize

    def pad_sub(c, itemsize):
        # sublane packing: f32 -> 8, bf16 -> 16, int8 -> 32
        return _round_up(c, 8 * max(1, 4 // itemsize))

    def vmem_need(t):
        x_in = in_item * L * pad_sub(cin, in_item) * t
        x_out = out_item * Lo * pad_sub(cout, out_item) * t
        return 2 * (x_in + x_out)        # double-buffered input + output blocks

    cap = _vmem_capacity_bytes()
    if cap >= 96 * 1024 * 1024:          # v5e / v6e: 128 MiB physical VMEM
        budget, base_limit = 48 * 1024 * 1024, 64 * 1024 * 1024
    else:                                # v7x: 64 MiB physical VMEM
        budget, base_limit = 22 * 1024 * 1024, 32 * 1024 * 1024

    n_lanes = _round_up(M, LANE) // LANE
    max_lanes = min(MAX_TILE // LANE, n_lanes)
    if n_lanes >= 2:
        # keep at least two grid steps on the "parallel" axis (v7x megacore)
        max_lanes = min(max_lanes, (n_lanes + 1) // 2)
    k = max(1, max_lanes)
    while k > 1 and vmem_need(k * LANE) > budget:
        k -= 1
    tile_m = k * LANE
    # Fail-safe limit: cover the chosen working set (plus headroom) but never exceed
    # ~75% of physical VMEM.  TODO(synk): L-axis (halo) tiling for the extreme case
    # where even a single 128-lane tile would not fit.
    vmem_limit = min(int(cap * 3 // 4),
                     max(base_limit, vmem_need(tile_m) + (4 << 20)))
    return tile_m, vmem_limit


# ----------------------------------------------------------------------------
# Pallas kernel: gather-form 1-D transposed conv on a (L, C, TILE_M) block
# ----------------------------------------------------------------------------
def _make_convT_kernel(schedule, K, cout, tile_m, has_bias, out_dtype):
    def kernel(*refs):
        if has_bias:
            x_ref, w_ref, b_ref, o_ref = refs
            # hoisted: one broadcast per tile (JAX does not CSE broadcast_in_dim)
            bias_b = jnp.broadcast_to(b_ref[...].astype(jnp.float32), (cout, tile_m))
        else:
            x_ref, w_ref, o_ref = refs
            bias_b = None

        # hoist the tiny tap weights out of the unrolled loop
        w_taps = [w_ref[t] for t in range(K)]              # each (Cout, Cin)

        # NOTE: with tiny Cin these matmuls under-fill the MXU, but the kernel is
        # HBM-bandwidth bound so the MXU slack is free; DEFAULT matmul precision.
        for o, pairs in enumerate(schedule):               # static unroll over output rows
            acc = None
            for (i, t) in pairs:                           # <= ceil(K/stride) taps per row
                d = jax.lax.dot_general(
                    w_taps[t], x_ref[i],                   # (Cout,Cin) @ (Cin,TILE_M)
                    dimension_numbers=(((1,), (0,)), ((), ())),
                    preferred_element_type=jnp.float32)
                acc = d if acc is None else acc + d
            if acc is None:
                acc = jnp.zeros((cout, tile_m), jnp.float32)
            if bias_b is not None:
                acc = acc + bias_b
            o_ref[o] = acc.astype(out_dtype)
    return kernel


# ----------------------------------------------------------------------------
# 1-D transposed conv along the leading axis of an (L, Cin, M) slab.
# ----------------------------------------------------------------------------
def _convT1d(x_lcm, w_iok, stride, pad, opad, bias=None, out_dtype=None):
    """x_lcm: (L, Cin, M); w_iok: (Cin, Cout, K) ConvTranspose weight.
    Returns (Lo, Cout, M) with Lo = (L-1)*stride - 2*pad + (K-1) + 1 + opad."""
    L, Cin, M = x_lcm.shape
    cin_w, Cout, K = w_iok.shape
    assert cin_w == Cin
    out_dtype = x_lcm.dtype if out_dtype is None else out_dtype
    Lo, schedule = _convT1d_schedule(L, K, stride, pad, opad)

    tile_m, vmem_limit = _choose_tile_m(M, L, Lo, Cin, Cout, x_lcm.dtype, out_dtype)
    Mp = _round_up(M, tile_m)                               # always lane-dense (x128)

    x_in = x_lcm if Mp == M else jnp.pad(x_lcm, ((0, 0), (0, 0), (0, Mp - M)))
    w_tco = jnp.transpose(w_iok, (2, 1, 0)).astype(x_lcm.dtype)      # (K, Cout, Cin)

    inputs = [x_in, w_tco]
    in_specs = [
        pl.BlockSpec((L, Cin, tile_m), lambda j: (0, 0, j)),
        pl.BlockSpec((K, Cout, Cin), lambda j: (0, 0, 0)),           # resident weights
    ]
    has_bias = bias is not None
    if has_bias:
        inputs.append(jnp.asarray(bias).reshape(Cout, 1).astype(jnp.float32))
        in_specs.append(pl.BlockSpec((Cout, 1), lambda j: (0, 0)))

    out = pl.pallas_call(
        _make_convT_kernel(schedule, K, Cout, tile_m, has_bias, out_dtype),
        out_shape=jax.ShapeDtypeStruct((Lo, Cout, Mp), out_dtype),
        grid=(Mp // tile_m,),
        in_specs=in_specs,
        out_specs=pl.BlockSpec((Lo, Cout, tile_m), lambda j: (0, 0, j)),
        compiler_params=pltpu.CompilerParams(
            dimension_semantics=("parallel",),
            vmem_limit_bytes=vmem_limit),
    )(*inputs)

    return out if Mp == M else out[:, :, :M]


# ----------------------------------------------------------------------------
# Module equivalent
# ----------------------------------------------------------------------------
class SpatialSepConvTranspose2d:
    def __init__(self, key, in_channels, out_channels, kernel_size, stride,
                 padding, output_padding, bias=True, dtype=jnp.float32):
        kh, kw = kernel_size
        smaller = min(in_channels, out_channels)

        # same advantage check as the PyTorch module
        n_parameters = in_channels * out_channels * kh * kw
        n_sep = smaller ** 2 * kh + in_channels * out_channels * kw
        if n_parameters < n_sep:
            raise ValueError("No advantage to spatial separable convolution")

        self.in_channels = in_channels
        self.out_channels = out_channels
        self.smaller = smaller
        self.kernel_size = (kh, kw)
        self.stride = tuple(stride)
        self.padding = tuple(padding)
        self.output_padding = tuple(output_padding)
        assert self.output_padding[0] == 0, "H output_padding must be 0 (stride-1 axis)"
        # inter-pass intermediate dtype: bf16 halves the dominant HBM traffic term;
        # f32 accumulation is kept inside the kernels.
        self.inter_dtype = jnp.bfloat16

        k1, k2, k3 = jax.random.split(key, 3)
        # ConvTranspose weights: (C_in, C_out, k) along the respective axis
        bnd1 = 1.0 / math.sqrt(in_channels * kh)
        self.w1 = jax.random.uniform(k1, (in_channels, smaller, kh), dtype, -bnd1, bnd1)
        bnd2 = 1.0 / math.sqrt(smaller * kw)
        self.w2 = jax.random.uniform(k2, (smaller, out_channels, kw), dtype, -bnd2, bnd2)
        if bias:
            # 'uniform' bias initializer branch of _SepConvNd.reset_parameters
            fan_in = in_channels * kh * kw
            bbnd = 1.0 / math.sqrt(fan_in)
            self.bias = jax.random.uniform(k3, (out_channels,), dtype, -bbnd, bbnd)
        else:
            self.bias = None

    def __call__(self, x):
        # x: NCHW  (N, Cin, H, W)
        N, Ci, H, W = x.shape
        sh, sw = self.stride
        ph, pw = self.padding
        opw = self.output_padding[1]
        S, Co = self.smaller, self.out_channels

        # ---- transposed conv along H: kernel (kh,1), stride (sh,1), pad (ph,0) ----
        xh = jnp.transpose(x, (2, 1, 0, 3)).reshape(H, Ci, N * W)    # (H, Cin, N*W)
        o1 = _convT1d(xh, self.w1, sh, ph, 0, bias=None,
                      out_dtype=self.inter_dtype)                    # (H1, S, N*W) bf16
        H1 = o1.shape[0]

        # ---- transposed conv along W: kernel (1,kw), stride (1,sw), pad (0,pw) ----
        # TODO(synk): remaining inter-pass relayout; a fused two-pass kernel with the
        #             intermediate in VMEM would remove this HBM round trip.
        xw = jnp.transpose(o1.reshape(H1, S, N, W), (3, 1, 2, 0)).reshape(W, S, N * H1)
        o2 = _convT1d(xw, self.w2, sw, pw, opw, bias=self.bias,
                      out_dtype=x.dtype)                             # (W2, Cout, N*H1)
        W2 = o2.shape[0]

        # back to NCHW
        return jnp.transpose(o2.reshape(W2, Co, N, H1), (2, 1, 3, 0))  # (N, Cout, H1, W2)


# ----------------------------------------------------------------------------
# Pure-numpy reference (direct transposed-conv scatter) for verification
# ----------------------------------------------------------------------------
def _ref_forward(x, w1, w2, bias, stride, pad, opad):
    x = np.asarray(x, np.float64)
    w1 = np.asarray(w1, np.float64)
    w2 = np.asarray(w2, np.float64)
    bias = np.asarray(bias, np.float64)

    def convT_h(x, w, s, p, op):
        N, Ci, H, W = x.shape
        _, Co, K = w.shape
        Ho = (H - 1) * s - 2 * p + (K - 1) + 1 + op
        out = np.zeros((N, Co, Ho, W))
        for ih in range(H):
            for t in range(K):
                oh = ih * s - p + t
                if 0 <= oh < Ho:
                    out[:, :, oh, :] += np.einsum('ncw,cd->ndw', x[:, :, ih, :], w[:, :, t])
        return out

    def convT_w(x, w, s, p, op):
        N, Ci, H, W = x.shape
        _, Co, K = w.shape
        Wo = (W - 1) * s - 2 * p + (K - 1) + 1 + op
        out = np.zeros((N, Co, H, Wo))
        for iw in range(W):
            for t in range(K):
                ow = iw * s - p + t
                if 0 <= ow < Wo:
                    out[:, :, :, ow] += np.einsum('nch,cd->ndh', x[:, :, :, iw], w[:, :, t])
        return out

    o = convT_h(x, w1, stride[0], pad[0], 0)
    o = convT_w(o, w2, stride[1], pad[1], opad[1])
    return o + bias.reshape(1, -1, 1, 1)


if __name__ == "__main__":
    key = jax.random.PRNGKey(0)
    kx, kp = jax.random.split(key)

    # small deterministic example
    x = jax.random.normal(kx, (2, 4, 16, 16), jnp.float32)   # NCHW
    mod = SpatialSepConvTranspose2d(
        kp, in_channels=4, out_channels=6,
        kernel_size=(3, 3), stride=(2, 2),
        padding=(1, 1), output_padding=(0, 1), bias=True)

    fwd = jax.jit(mod.__call__)
    out = jax.block_until_ready(fwd(x))

    # expected output spatial size: H1 = (16-1)*2 - 2 + 3 = 31, W2 = 31 + 1 = 32
    assert out.shape == (2, 6, 31, 32), out.shape

    ref = _ref_forward(x, mod.w1, mod.w2, mod.bias,
                       mod.stride, mod.padding, mod.output_padding)
    np.testing.assert_allclose(np.asarray(out), ref, rtol=2e-2, atol=2e-2)

    print("KERNEL_OK")
</pallas_src>

<mosaic_0001>
module attributes {stable_mosaic.version = 11 : i64} {
  func.func @kernel(%arg0: i32, %arg1: memref<16x4x128xf32, #tpu.memory_space<vmem>>, %arg2: memref<3x4x4xf32, #tpu.memory_space<vmem>>, %arg3: memref<31x4x128xbf16, #tpu.memory_space<vmem>>) attributes {dimension_semantics = [#tpu.dimension_semantics<parallel>], iteration_bounds = array<i64: 1>, scalar_prefetch = 0 : i64, scratch_operands = 0 : i64, tpu.core_type = #tpu.core_type<tc>, window_params = [{transform_indices = @transform_0, window_bounds = array<i64: 16, 4, 128>}, {pipeline_mode = #tpu.pipeline_mode<synchronous>, transform_indices = @transform_1, window_bounds = array<i64: 3, 4, 4>}, {transform_indices = @transform_2, window_bounds = array<i64: 31, 4, 128>}]} {
    %c0 = arith.constant 0 : index
    %c0_0 = arith.constant 0 : index
    %c0_1 = arith.constant 0 : index
    %0 = vector.load %arg2[%c0, %c0_0, %c0_1] : memref<3x4x4xf32, #tpu.memory_space<vmem>>, vector<1x4x4xf32>
    %1 = vector.shape_cast %0 : vector<1x4x4xf32> to vector<4x4xf32>
    %c1 = arith.constant 1 : index
    %c0_2 = arith.constant 0 : index
    %c0_3 = arith.constant 0 : index
    %2 = vector.load %arg2[%c1, %c0_2, %c0_3] : memref<3x4x4xf32, #tpu.memory_space<vmem>>, vector<1x4x4xf32>
    %3 = vector.shape_cast %2 : vector<1x4x4xf32> to vector<4x4xf32>
    %c2 = arith.constant 2 : index
    %c0_4 = arith.constant 0 : index
    %c0_5 = arith.constant 0 : index
    %4 = vector.load %arg2[%c2, %c0_4, %c0_5] : memref<3x4x4xf32, #tpu.memory_space<vmem>>, vector<1x4x4xf32>
    %5 = vector.shape_cast %4 : vector<1x4x4xf32> to vector<4x4xf32>
    %c0_6 = arith.constant 0 : index
    %c0_7 = arith.constant 0 : index
    %c0_8 = arith.constant 0 : index
    %6 = vector.load %arg1[%c0_6, %c0_7, %c0_8] : memref<16x4x128xf32, #tpu.memory_space<vmem>>, vector<1x4x128xf32>
    %7 = vector.shape_cast %6 : vector<1x4x128xf32> to vector<4x128xf32>
    %cst = arith.constant dense<0.000000e+00> : vector<4x128xf32>
    %8 = tpu.matmul %3, %7, %cst {dimension_numbers = #tpu.dot_dimension_numbers<[1], [0], [0], [1], [0, 0, 1, 1], [], []>} : vector<4x4xf32>, vector<4x128xf32>, vector<4x128xf32> -> vector<4x128xf32>
    %9 = arith.truncf %8 : vector<4x128xf32> to vector<4x128xbf16>
    %c0_9 = arith.constant 0 : index
    %c0_10 = arith.constant 0 : index
    %c0_11 = arith.constant 0 : index
    %10 = vector.load %arg3[%c0_9, %c0_10, %c0_11] : memref<31x4x128xbf16, #tpu.memory_space<vmem>>, vector<1x4x128xbf16>
    %11 = vector.shape_cast %10 : vector<1x4x128xbf16> to vector<4x128xbf16>
    %12 = vector.shape_cast %9 : vector<4x128xbf16> to vector<1x4x128xbf16>
    tpu.vector_store %arg3[%c0_9, %c0_10, %c0_11], %12 {strides = array<i32>} : memref<31x4x128xbf16, #tpu.memory_space<vmem>>, vector<1x4x128xbf16>,
    %c1_12 = arith.constant 1 : index
    %c0_13 = arith.constant 0 : index
    %c0_14 = arith.constant 0 : index
    %13 = vector.load %arg1[%c1_12, %c0_13, %c0_14] : memref<16x4x128xf32, #tpu.memory_space<vmem>>, vector<1x4x128xf32>
    %14 = vector.shape_cast %13 : vector<1x4x128xf32> to vector<4x128xf32>
    %cst_15 = arith.constant dense<0.000000e+00> : vector<4x128xf32>
    %15 = tpu.matmul %1, %14, %cst_15 {dimension_numbers = #tpu.dot_dimension_numbers<[1], [0], [0], [1], [0, 0, 1, 1], [], []>} : vector<4x4xf32>, vector<4x128xf32>, vector<4x128xf32> -> vector<4x128xf32>
    %c0_16 = arith.constant 0 : index
    %c0_17 = arith.constant 0 : index
    %c0_18 = arith.constant 0 : index
    %16 = vector.load %arg1[%c0_16, %c0_17, %c0_18] : memref<16x4x128xf32, #tpu.memory_space<vmem>>, vector<1x4x128xf32>
    %17 = vector.shape_cast %16 : vector<1x4x128xf32> to vector<4x128xf32>
    %cst_19 = arith.constant dense<0.000000e+00> : vector<4x128xf32>
    %18 = tpu.matmul %5, %17, %cst_19 {dimension_numbers = #tpu.dot_dimension_numbers<[1], [0], [0], [1], [0, 0, 1, 1], [], []>} : vector<4x4xf32>, vector<4x128xf32>, vector<4x128xf32> -> vector<4x128xf32>
    %19 = arith.addf %15, %18 : vector<4x128xf32>
    %20 = arith.truncf %19 : vector<4x128xf32> to vector<4x128xbf16>
    %c1_20 = arith.constant 1 : index
    %c0_21 = arith.constant 0 : index
    %c0_22 = arith.constant 0 : index
    %21 = vector.load %arg3[%c1_20, %c0_21, %c0_22] : memref<31x4x128xbf16, #tpu.memory_space<vmem>>, vector<1x4x128xbf16>
    %22 = vector.shape_cast %21 : vector<1x4x128xbf16> to vector<4x128xbf16>
    %23 = vector.shape_cast %20 : vector<4x128xbf16> to vector<1x4x128xbf16>
    tpu.vector_store %arg3[%c1_20, %c0_21, %c0_22], %23 {strides = array<i32>} : memref<31x4x128xbf16, #tpu.memory_space<vmem>>, vector<1x4x128xbf16>,
    %c1_23 = arith.constant 1 : index
    %c0_24 = arith.constant 0 : index
    %c0_25 = arith.constant 0 : index
    %24 = vector.load %arg1[%c1_23, %c0_24, %c0_25] : memref<16x4x128xf32, #tpu.memory_space<vmem>>, vector<1x4x128xf32>
    %25 = vector.shape_cast %24 : vector<1x4x128xf32> to vector<4x128xf32>
    %cst_26 = arith.constant dense<0.000000e+00> : vector<4x128xf32>
    %26 = tpu.matmul %3, %25, %cst_26 {dimension_numbers = #tpu.dot_dimension_numbers<[1], [0], [0], [1], [0, 0, 1, 1], [], []>} : vector<4x4xf32>, vector<4x128xf32>, vector<4x128xf32> -> vector<4x128xf32>
    %27 = arith.truncf %26 : vector<4x128xf32> to vector<4x128xbf16>
    %c2_27 = arith.constant 2 : index
    %c0_28 = arith.constant 0 : index
    %c0_29 = arith.constant 0 : index
    %28 = vector.load %arg3[%c2_27, %c0_28, %c0_29] : memref<31x4x128xbf16, #tpu.memory_space<vmem>>, vector<1x4x128xbf16>
    %29 = vector.shape_cast %28 : vector<1x4x128xbf16> to vector<4x128xbf16>
    %30 = vector.shape_cast %27 : vector<4x128xbf16> to vector<1x4x128xbf16>
    tpu.vector_store %arg3[%c2_27, %c0_28, %c0_29], %30 {strides = array<i32>} : memref<31x4x128xbf16, #tpu.memory_space<vmem>>, vector<1x4x128xbf16>,
    %c2_30 = arith.constant 2 : index
    %c0_31 = arith.constant 0 : index
    %c0_32 = arith.constant 0 : index
    %31 = vector.load %arg1[%c2_30, %c0_31, %c0_32] : memref<16x4x128xf32, #tpu.memory_space<vmem>>, vector<1x4x128xf32>
    %32 = vector.shape_cast %31 : vector<1x4x128xf32> to vector<4x128xf32>
    %cst_33 = arith.constant dense<0.000000e+00> : vector<4x128xf32>
    %33 = tpu.matmul %1, %32, %cst_33 {dimension_numbers = #tpu.dot_dimension_numbers<[1], [0], [0], [1], [0, 0, 1, 1], [], []>} : vector<4x4xf32>, vector<4x128xf32>, vector<4x128xf32> -> vector<4x128xf32>
    %c1_34 = arith.constant 1 : index
    %c0_35 = arith.constant 0 : index
    %c0_36 = arith.constant 0 : index
    %34 = vector.load %arg1[%c1_34, %c0_35, %c0_36] : memref<16x4x128xf32, #tpu.memory_space<vmem>>, vector<1x4x128xf32>
    %35 = vector.shape_cast %34 : vector<1x4x128xf32> to vector<4x128xf32>
    %cst_37 = arith.constant dense<0.000000e+00> : vector<4x128xf32>
    %36 = tpu.matmul %5, %35, %cst_37 {dimension_numbers = #tpu.dot_dimension_numbers<[1], [0], [0], [1], [0, 0, 1, 1], [], []>} : vector<4x4xf32>, vector<4x128xf32>, vector<4x128xf32> -> vector<4x128xf32>
    %37 = arith.addf %33, %36 : vector<4x128xf32>
    %38 = arith.truncf %37 : vector<4x128xf32> to vector<4x128xbf16>
    %c3 = arith.constant 3 : index
    %c0_38 = arith.constant 0 : index
    %c0_39 = arith.constant 0 : index
    %39 = vector.load %arg3[%c3, %c0_38, %c0_39] : memref<31x4x128xbf16, #tpu.memory_space<vmem>>, vector<1x4x128xbf16>
    %40 = vector.shape_cast %39 : vector<1x4x128xbf16> to vector<4x128xbf16>
    %41 = vector.shape_cast %38 : vector<4x128xbf16> to vector<1x4x128xbf16>
    tpu.vector_store %arg3[%c3, %c0_38, %c0_39], %41 {strides = array<i32>} : memref<31x4x128xbf16, #tpu.memory_space<vmem>>, vector<1x4x128xbf16>,
    %c2_40 = arith.constant 2 : index
    %c0_41 = arith.constant 0 : index
    %c0_42 = arith.constant 0 : index
    %42 = vector.load %arg1[%c2_40, %c0_41, %c0_42] : memref<16x4x128xf32, #tpu.memory_space<vmem>>, vector<1x4x128xf32>
    %43 = vector.shape_cast %42 : vector<1x4x128xf32> to vector<4x128xf32>
    %cst_43 = arith.constant dense<0.000000e+00> : vector<4x128xf32>
    %44 = tpu.matmul %3, %43, %cst_43 {dimension_numbers = #tpu.dot_dimension_numbers<[1], [0], [0], [1], [0, 0, 1, 1], [], []>} : vector<4x4xf32>, vector<4x128xf32>, vector<4x128xf32> -> vector<4x128xf32>
    %45 = arith.truncf %44 : vector<4x128xf32> to vector<4x128xbf16>
    %c4 = arith.constant 4 : index
    %c0_44 = arith.constant 0 : index
    %c0_45 = arith.constant 0 : index
    %46 = vector.load %arg3[%c4, %c0_44, %c0_45] : memref<31x4x128xbf16, #tpu.memory_space<vmem>>, vector<1x4x128xbf16>
    %47 = vector.shape_cast %46 : vector<1x4x128xbf16> to vector<4x128xbf16>
    %48 = vector.shape_cast %45 : vector<4x128xbf16> to vector<1x4x128xbf16>
    tpu.vector_store %arg3[%c4, %c0_44, %c0_45], %48 {strides = array<i32>} : memref<31x4x128xbf16, #tpu.memory_space<vmem>>, vector<1x4x128xbf16>,
    %c3_46 = arith.constant 3 : index
    %c0_47 = arith.constant 0 : index
    %c0_48 = arith.constant 0 : index
    %49 = vector.load %arg1[%c3_46, %c0_47, %c0_48] : memref<16x4x128xf32, #tpu.memory_space<vmem>>, vector<1x4x128xf32>
    %50 = vector.shape_cast %49 : vector<1x4x128xf32> to vector<4x128xf32>
    %cst_49 = arith.constant dense<0.000000e+00> : vector<4x128xf32>
    %51 = tpu.matmul %1, %50, %cst_49 {dimension_numbers = #tpu.dot_dimension_numbers<[1], [0], [0], [1], [0, 0, 1, 1], [], []>} : vector<4x4xf32>, vector<4x128xf32>, vector<4x128xf32> -> vector<4x128xf32>
    %c2_50 = arith.constant 2 : index
    %c0_51 = arith.constant 0 : index
    %c0_52 = arith.constant 0 : index
    %52 = vector.load %arg1[%c2_50, %c0_51, %c0_52] : memref<16x4x128xf32, #tpu.memory_space<vmem>>, vector<1x4x128xf32>
    %53 = vector.shape_cast %52 : vector<1x4x128xf32> to vector<4x128xf32>
    %cst_53 = arith.constant dense<0.000000e+00> : vector<4x128xf32>
    %54 = tpu.matmul %5, %53, %cst_53 {dimension_numbers = #tpu.dot_dimension_numbers<[1], [0], [0], [1], [0, 0, 1, 1], [], []>} : vector<4x4xf32>, vector<4x128xf32>, vector<4x128xf32> -> vector<4x128xf32>
    %55 = arith.addf %51, %54 : vector<4x128xf32>
    %56 = arith.truncf %55 : vector<4x128xf32> to vector<4x128xbf16>
    %c5 = arith.constant 5 : index
    %c0_54 = arith.constant 0 : index
    %c0_55 = arith.constant 0 : index
    %57 = vector.load %arg3[%c5, %c0_54, %c0_55] : memref<31x4x128xbf16, #tpu.memory_space<vmem>>, vector<1x4x128xbf16>
    %58 = vector.shape_cast %57 : vector<1x4x128xbf16> to vector<4x128xbf16>
    %59 = vector.shape_cast %56 : vector<4x128xbf16> to vector<1x4x128xbf16>
    tpu.vector_store %arg3[%c5, %c0_54, %c0_55], %59 {strides = array<i32>} : memref<31x4x128xbf16, #tpu.memory_space<vmem>>, vector<1x4x128xbf16>,
    %c3_56 = arith.constant 3 : index
    %c0_57 = arith.constant 0 : index
    %c0_58 = arith.constant 0 : index
    %60 = vector.load %arg1[%c3_56, %c0_57, %c0_58] : memref<16x4x128xf32, #tpu.memory_space<vmem>>, vector<1x4x128xf32>
    %61 = vector.shape_cast %60 : vector<1x4x128xf32> to vector<4x128xf32>
    %cst_59 = arith.constant dense<0.000000e+00> : vector<4x128xf32>
    %62 = tpu.matmul %3, %61, %cst_59 {dimension_numbers = #tpu.dot_dimension_numbers<[1], [0], [0], [1], [0, 0, 1, 1], [], []>} : vector<4x4xf32>, vector<4x128xf32>, vector<4x128xf32> -> vector<4x128xf32>
    %63 = arith.truncf %62 : vector<4x128xf32> to vector<4x128xbf16>
    %c6 = arith.constant 6 : index
    %c0_60 = arith.constant 0 : index
    %c0_61 = arith.constant 0 : index
    %64 = vector.load %arg3[%c6, %c0_60, %c0_61] : memref<31x4x128xbf16, #tpu.memory_space<vmem>>, vector<1x4x128xbf16>
    %65 = vector.shape_cast %64 : vector<1x4x128xbf16> to vector<4x128xbf16>
    %66 = vector.shape_cast %63 : vector<4x128xbf16> to vector<1x4x128xbf16>
    tpu.vector_store %arg3[%c6, %c0_60, %c0_61], %66 {strides = array<i32>} : memref<31x4x128xbf16, #tpu.memory_space<vmem>>, vector<1x4x128xbf16>,
    %c4_62 = arith.constant 4 : index
    %c0_63 = arith.constant 0 : index
    %c0_64 = arith.constant 0 : index
    %67 = vector.load %arg1[%c4_62, %c0_63, %c0_64] : memref<16x4x128xf32, #tpu.memory_space<vmem>>, vector<1x4x128xf32>
    %68 = vector.shape_cast %67 : vector<1x4x128xf32> to vector<4x128xf32>
    %cst_65 = arith.constant dense<0.000000e+00> : vector<4x128xf32>
    %69 = tpu.matmul %1, %68, %cst_65 {dimension_numbers = #tpu.dot_dimension_numbers<[1], [0], [0], [1], [0, 0, 1, 1], [], []>} : vector<4x4xf32>, vector<4x128xf32>, vector<4x128xf32> -> vector<4x128xf32>
    %c3_66 = arith.constant 3 : index
    %c0_67 = arith.constant 0 : index
    %c0_68 = arith.constant 0 : index
    %70 = vector.load %arg1[%c3_66, %c0_67, %c0_68] : memref<16x4x128xf32, #tpu.memory_space<vmem>>, vector<1x4x128xf32>
    %71 = vector.shape_cast %70 : vector<1x4x128xf32> to vector<4x128xf32>
    %cst_69 = arith.constant dense<0.000000e+00> : vector<4x128xf32>
    %72 = tpu.matmul %5, %71, %cst_69 {dimension_numbers = #tpu.dot_dimension_numbers<[1], [0], [0], [1], [0, 0, 1, 1], [], []>} : vector<4x4xf32>, vector<4x128xf32>, vector<4x128xf32> -> vector<4x128xf32>
    %73 = arith.addf %69, %72 : vector<4x128xf32>
    %74 = arith.truncf %73 : vector<4x128xf32> to vector<4x128xbf16>
    %c7 = arith.constant 7 : index
    %c0_70 = arith.constant 0 : index
    %c0_71 = arith.constant 0 : index
    %75 = vector.load %arg3[%c7, %c0_70, %c0_71] : memref<31x4x128xbf16, #tpu.memory_space<vmem>>, vector<1x4x128xbf16>
    %76 = vector.shape_cast %75 : vector<1x4x128xbf16> to vector<4x128xbf16>
    %77 = vector.shape_cast %74 : vector<4x128xbf16> to vector<1x4x128xbf16>
    tpu.vector_store %arg3[%c7, %c0_70, %c0_71], %77 {strides = array<i32>} : memref<31x4x128xbf16, #tpu.memory_space<vmem>>, vector<1x4x128xbf16>,
    %c4_72 = arith.constant 4 : index
    %c0_73 = arith.constant 0 : index
    %c0_74 = arith.constant 0 : index
    %78 = vector.load %arg1[%c4_72, %c0_73, %c0_74] : memref<16x4x128xf32, #tpu.memory_space<vmem>>, vector<1x4x128xf32>
    %79 = vector.shape_cast %78 : vector<1x4x128xf32> to vector<4x128xf32>
    %cst_75 = arith.constant dense<0.000000e+00> : vector<4x128xf32>
    %80 = tpu.matmul %3, %79, %cst_75 {dimension_numbers = #tpu.dot_dimension_numbers<[1], [0], [0], [1], [0, 0, 1, 1], [], []>} : vector<4x4xf32>, vector<4x128xf32>, vector<4x128xf32> -> vector<4x128xf32>
    %81 = arith.truncf %80 : vector<4x128xf32> to vector<4x128xbf16>
    %c8 = arith.constant 8 : index
    %c0_76 = arith.constant 0 : index
    %c0_77 = arith.constant 0 : index
    %82 = vector.load %arg3[%c8, %c0_76, %c0_77] : memref<31x4x128xbf16, #tpu.memory_space<vmem>>, vector<1x4x128xbf16>
    %83 = vector.shape_cast %82 : vector<1x4x128xbf16> to vector<4x128xbf16>
    %84 = vector.shape_cast %81 : vector<4x128xbf16> to vector<1x4x128xbf16>
    tpu.vector_store %arg3[%c8, %c0_76, %c0_77], %84 {strides = array<i32>} : memref<31x4x128xbf16, #tpu.memory_space<vmem>>, vector<1x4x128xbf16>,
    %c5_78 = arith.constant 5 : index
    %c0_79 = arith.constant 0 : index
    %c0_80 = arith.constant 0 : index
    %85 = vector.load %arg1[%c5_78, %c0_79, %c0_80] : memref<16x4x128xf32, #tpu.memory_space<vmem>>, vector<1x4x128xf32>
    %86 = vector.shape_cast %85 : vector<1x4x128xf32> to vector<4x128xf32>
    %cst_81 = arith.constant dense<0.000000e+00> : vector<4x128xf32>
    %87 = tpu.matmul %1, %86, %cst_81 {dimension_numbers = #tpu.dot_dimension_numbers<[1], [0], [0], [1], [0, 0, 1, 1], [], []>} : vector<4x4xf32>, vector<4x128xf32>, vector<4x128xf32> -> vector<4x128xf32>
    %c4_82 = arith.constant 4 : index
    %c0_83 = arith.constant 0 : index
    %c0_84 = arith.constant 0 : index
    %88 = vector.load %arg1[%c4_82, %c0_83, %c0_84] : memref<16x4x128xf32, #tpu.memory_space<vmem>>, vector<1x4x128xf32>
    %89 = vector.shape_cast %88 : vector<1x4x128xf32> to vector<4x128xf32>
    %cst_85 = arith.constant dense<0.000000e+00> : vector<4x128xf32>
    %90 = tpu.matmul %5, %89, %cst_85 {dimension_numbers = #tpu.dot_dimension_numbers<[1], [0], [0], [1], [0, 0, 1, 1], [], []>} : vector<4x4xf32>, vector<4x128xf32>, vector<4x128xf32> -> vector<4x128xf32>
    %91 = arith.addf %87, %90 : vector<4x128xf32>
    %92 = arith.truncf %91 : vector<4x128xf32> to vector<4x128xbf16>
    %c9 = arith.constant 9 : index
    %c0_86 = arith.constant 0 : index
    %c0_87 = arith.constant 0 : index
    %93 = vector.load %arg3[%c9, %c0_86, %c0_87] : memref<31x4x128xbf16, #tpu.memory_space<vmem>>, vector<1x4x128xbf16>
    %94 = vector.shape_cast %93 : vector<1x4x128xbf16> to vector<4x128xbf16>
    %95 = vector.shape_cast %92 : vector<4x128xbf16> to vector<1x4x128xbf16>
    tpu.vector_store %arg3[%c9, %c0_86, %c0_87], %95 {strides = array<i32>} : memref<31x4x128xbf16, #tpu.memory_space<vmem>>, vector<1x4x128xbf16>,
    %c5_88 = arith.constant 5 : index
    %c0_89 = arith.constant 0 : index
    %c0_90 = arith.constant 0 : index
    %96 = vector.load %arg1[%c5_88, %c0_89, %c0_90] : memref<16x4x128xf32, #tpu.memory_space<vmem>>, vector<1x4x128xf32>
    %97 = vector.shape_cast %96 : vector<1x4x128xf32> to vector<4x128xf32>
    %cst_91 = arith.constant dense<0.000000e+00> : vector<4x128xf32>
    %98 = tpu.matmul %3, %97, %cst_91 {dimension_numbers = #tpu.dot_dimension_numbers<[1], [0], [0], [1], [0, 0, 1, 1], [], []>} : vector<4x4xf32>, vector<4x128xf32>, vector<4x128xf32> -> vector<4x128xf32>
    %99 = arith.truncf %98 : vector<4x128xf32> to vector<4x128xbf16>
    %c10 = arith.constant 10 : index
    %c0_92 = arith.constant 0 : index
    %c0_93 = arith.constant 0 : index
    %100 = vector.load %arg3[%c10, %c0_92, %c0_93] : memref<31x4x128xbf16, #tpu.memory_space<vmem>>, vector<1x4x128xbf16>
    %101 = vector.shape_cast %100 : vector<1x4x128xbf16> to vector<4x128xbf16>
    %102 = vector.shape_cast %99 : vector<4x128xbf16> to vector<1x4x128xbf16>
    tpu.vector_store %arg3[%c10, %c0_92, %c0_93], %102 {strides = array<i32>} : memref<31x4x128xbf16, #tpu.memory_space<vmem>>, vector<1x4x128xbf16>,
    %c6_94 = arith.constant 6 : index
    %c0_95 = arith.constant 0 : index
    %c0_96 = arith.constant 0 : index
    %103 = vector.load %arg1[%c6_94, %c0_95, %c0_96] : memref<16x4x128xf32, #tpu.memory_space<vmem>>, vector<1x4x128xf32>
    %104 = vector.shape_cast %103 : vector<1x4x128xf32> to vector<4x128xf32>
    %cst_97 = arith.constant dense<0.000000e+00> : vector<4x128xf32>
    %105 = tpu.matmul %1, %104, %cst_97 {dimension_numbers = #tpu.dot_dimension_numbers<[1], [0], [0], [1], [0, 0, 1, 1], [], []>} : vector<4x4xf32>, vector<4x128xf32>, vector<4x128xf32> -> vector<4x128xf32>
    %c5_98 = arith.constant 5 : index
    %c0_99 = arith.constant 0 : index
    %c0_100 = arith.constant 0 : index
    %106 = vector.load %arg1[%c5_98, %c0_99, %c0_100] : memref<16x4x128xf32, #tpu.memory_space<vmem>>, vector<1x4x128xf32>
    %107 = vector.shape_cast %106 : vector<1x4x128xf32> to vector<4x128xf32>
    %cst_101 = arith.constant dense<0.000000e+00> : vector<4x128xf32>
    %108 = tpu.matmul %5, %107, %cst_101 {dimension_numbers = #tpu.dot_dimension_numbers<[1], [0], [0], [1], [0, 0, 1, 1], [], []>} : vector<4x4xf32>, vector<4x128xf32>, vector<4x128xf32> -> vector<4x128xf32>
    %109 = arith.addf %105, %108 : vector<4x128xf32>
    %110 = arith.truncf %109 : vector<4x128xf32> to vector<4x128xbf16>
    %c11 = arith.constant 11 : index
    %c0_102 = arith.constant 0 : index
    %c0_103 = arith.constant 0 : index
    %111 = vector.load %arg3[%c11, %c0_102, %c0_103] : memref<31x4x128xbf16, #tpu.memory_space<vmem>>, vector<1x4x128xbf16>
    %112 = vector.shape_cast %111 : vector<1x4x128xbf16> to vector<4x128xbf16>
    %113 = vector.shape_cast %110 : vector<4x128xbf16> to vector<1x4x128xbf16>
    tpu.vector_store %arg3[%c11, %c0_102, %c0_103], %113 {strides = array<i32>} : memref<31x4x128xbf16, #tpu.memory_space<vmem>>, vector<1x4x128xbf16>,
    %c6_104 = arith.constant 6 : index
    %c0_105 = arith.constant 0 : index
    %c0_106 = arith.constant 0 : index
    %114 = vector.load %arg1[%c6_104, %c0_105, %c0_106] : memref<16x4x128xf32, #tpu.memory_space<vmem>>, vector<1x4x128xf32>
    %115 = vector.shape_cast %114 : vector<1x4x128xf32> to vector<4x128xf32>
    %cst_107 = arith.constant dense<0.000000e+00> : vector<4x128xf32>
    %116 = tpu.matmul %3, %115, %cst_107 {dimension_numbers = #tpu.dot_dimension_numbers<[1], [0], [0], [1], [0, 0, 1, 1], [], []>} : vector<4x4xf32>, vector<4x128xf32>, vector<4x128xf32> -> vector<4x128xf32>
    %117 = arith.truncf %116 : vector<4x128xf32> to vector<4x128xbf16>
    %c12 = arith.constant 12 : index
    %c0_108 = arith.constant 0 : index
    %c0_109 = arith.constant 0 : index
    %118 = vector.load %arg3[%c12, %c0_108, %c0_109] : memref<31x4x128xbf16, #tpu.memory_space<vmem>>, vector<1x4x128xbf16>
    %119 = vector.shape_cast %118 : vector<1x4x128xbf16> to vector<4x128xbf16>
    %120 = vector.shape_cast %117 : vector<4x128xbf16> to vector<1x4x128xbf16>
    tpu.vector_store %arg3[%c12, %c0_108, %c0_109], %120 {strides = array<i32>} : memref<31x4x128xbf16, #tpu.memory_space<vmem>>, vector<1x4x128xbf16>,
    %c7_110 = arith.constant 7 : index
    %c0_111 = arith.constant 0 : index
    %c0_112 = arith.constant 0 : index
    %121 = vector.load %arg1[%c7_110, %c0_111, %c0_112] : memref<16x4x128xf32, #tpu.memory_space<vmem>>, vector<1x4x128xf32>
    %122 = vector.shape_cast %121 : vector<1x4x128xf32> to vector<4x128xf32>
    %cst_113 = arith.constant dense<0.000000e+00> : vector<4x128xf32>
    %123 = tpu.matmul %1, %122, %cst_113 {dimension_numbers = #tpu.dot_dimension_numbers<[1], [0], [0], [1], [0, 0, 1, 1], [], []>} : vector<4x4xf32>, vector<4x128xf32>, vector<4x128xf32> -> vector<4x128xf32>
    %c6_114 = arith.constant 6 : index
    %c0_115 = arith.constant 0 : index
    %c0_116 = arith.constant 0 : index
    %124 = vector.load %arg1[%c6_114, %c0_115, %c0_116] : memref<16x4x128xf32, #tpu.memory_space<vmem>>, vector<1x4x128xf32>
    %125 = vector.shape_cast %124 : vector<1x4x128xf32> to vector<4x128xf32>
    %cst_117 = arith.constant dense<0.000000e+00> : vector<4x128xf32>
    %126 = tpu.matmul %5, %125, %cst_117 {dimension_numbers = #tpu.dot_dimension_numbers<[1], [0], [0], [1], [0, 0, 1, 1], [], []>} : vector<4x4xf32>, vector<4x128xf32>, vector<4x128xf32> -> vector<4x128xf32>
    %127 = arith.addf %123, %126 : vector<4x128xf32>
    %128 = arith.truncf %127 : vector<4x128xf32> to vector<4x128xbf16>
    %c13 = arith.constant 13 : index
    %c0_118 = arith.constant 0 : index
    %c0_119 = arith.constant 0 : index
    %129 = vector.load %arg3[%c13, %c0_118, %c0_119] : memref<31x4x128xbf16, #tpu.memory_space<vmem>>, vector<1x4x128xbf16>
    %130 = vector.shape_cast %129 : vector<1x4x128xbf16> to vector<4x128xbf16>
    %131 = vector.shape_cast %128 : vector<4x128xbf16> to vector<1x4x128xbf16>
    tpu.vector_store %arg3[%c13, %c0_118, %c0_119], %131 {strides = array<i32>} : memref<31x4x128xbf16, #tpu.memory_space<vmem>>, vector<1x4x128xbf16>,
    %c7_120 = arith.constant 7 : index
    %c0_121 = arith.constant 0 : index
    %c0_122 = arith.constant 0 : index
    %132 = vector.load %arg1[%c7_120, %c0_121, %c0_122] : memref<16x4x128xf32, #tpu.memory_space<vmem>>, vector<1x4x128xf32>
    %133 = vector.shape_cast %132 : vector<1x4x128xf32> to vector<4x128xf32>
    %cst_123 = arith.constant dense<0.000000e+00> : vector<4x128xf32>
    %134 = tpu.matmul %3, %133, %cst_123 {dimension_numbers = #tpu.dot_dimension_numbers<[1], [0], [0], [1], [0, 0, 1, 1], [], []>} : vector<4x4xf32>, vector<4x128xf32>, vector<4x128xf32> -> vector<4x128xf32>
    %135 = arith.truncf %134 : vector<4x128xf32> to vector<4x128xbf16>
    %c14 = arith.constant 14 : index
    %c0_124 = arith.constant 0 : index
    %c0_125 = arith.constant 0 : index
    %136 = vector.load %arg3[%c14, %c0_124, %c0_125] : memref<31x4x128xbf16, #tpu.memory_space<vmem>>, vector<1x4x128xbf16>
    %137 = vector.shape_cast %136 : vector<1x4x128xbf16> to vector<4x128xbf16>
    %138 = vector.shape_cast %135 : vector<4x128xbf16> to vector<1x4x128xbf16>
    tpu.vector_store %arg3[%c14, %c0_124, %c0_125], %138 {strides = array<i32>} : memref<31x4x128xbf16, #tpu.memory_space<vmem>>, vector<1x4x128xbf16>,
    %c8_126 = arith.constant 8 : index
    %c0_127 = arith.constant 0 : index
    %c0_128 = arith.constant 0 : index
    %139 = vector.load %arg1[%c8_126, %c0_127, %c0_128] : memref<16x4x128xf32, #tpu.memory_space<vmem>>, vector<1x4x128xf32>
    %140 = vector.shape_cast %139 : vector<1x4x128xf32> to vector<4x128xf32>
    %cst_129 = arith.constant dense<0.000000e+00> : vector<4x128xf32>
    %141 = tpu.matmul %1, %140, %cst_129 {dimension_numbers = #tpu.dot_dimension_numbers<[1], [0], [0], [1], [0, 0, 1, 1], [], []>} : vector<4x4xf32>, vector<4x128xf32>, vector<4x128xf32> -> vector<4x128xf32>
    %c7_130 = arith.constant 7 : index
    %c0_131 = arith.constant 0 : index
    %c0_132 = arith.constant 0 : index
    %142 = vector.load %arg1[%c7_130, %c0_131, %c0_132] : memref<16x4x128xf32, #tpu.memory_space<vmem>>, vector<1x4x128xf32>
    %143 = vector.shape_cast %142 : vector<1x4x128xf32> to vector<4x128xf32>
    %cst_133 = arith.constant dense<0.000000e+00> : vector<4x128xf32>
    %144 = tpu.matmul %5, %143, %cst_133 {dimension_numbers = #tpu.dot_dimension_numbers<[1], [0], [0], [1], [0, 0, 1, 1], [], []>} : vector<4x4xf32>, vector<4x128xf32>, vector<4x128xf32> -> vector<4x128xf32>
    %145 = arith.addf %141, %144 : vector<4x128xf32>
    %146 = arith.truncf %145 : vector<4x128xf32> to vector<4x128xbf16>
    %c15 = arith.constant 15 : index
    %c0_134 = arith.constant 0 : index
    %c0_135 = arith.constant 0 : index
    %147 = vector.load %arg3[%c15, %c0_134, %c0_135] : memref<31x4x128xbf16, #tpu.memory_space<vmem>>, vector<1x4x128xbf16>
    %148 = vector.shape_cast %147 : vector<1x4x128xbf16> to vector<4x128xbf16>
    %149 = vector.shape_cast %146 : vector<4x128xbf16> to vector<1x4x128xbf16>
    tpu.vector_store %arg3[%c15, %c0_134, %c0_135], %149 {strides = array<i32>} : memref<31x4x128xbf16, #tpu.memory_space<vmem>>, vector<1x4x128xbf16>,
    %c8_136 = arith.constant 8 : index
    %c0_137 = arith.constant 0 : index
    %c0_138 = arith.constant 0 : index
    %150 = vector.load %arg1[%c8_136, %c0_137, %c0_138] : memref<16x4x128xf32, #tpu.memory_space<vmem>>, vector<1x4x128xf32>
    %151 = vector.shape_cast %150 : vector<1x4x128xf32> to vector<4x128xf32>
    %cst_139 = arith.constant dense<0.000000e+00> : vector<4x128xf32>
    %152 = tpu.matmul %3, %151, %cst_139 {dimension_numbers = #tpu.dot_dimension_numbers<[1], [0], [0], [1], [0, 0, 1, 1], [], []>} : vector<4x4xf32>, vector<4x128xf32>, vector<4x128xf32> -> vector<4x128xf32>
    %153 = arith.truncf %152 : vector<4x128xf32> to vector<4x128xbf16>
    %c16 = arith.constant 16 : index
    %c0_140 = arith.constant 0 : index
    %c0_141 = arith.constant 0 : index
    %154 = vector.load %arg3[%c16, %c0_140, %c0_141] : memref<31x4x128xbf16, #tpu.memory_space<vmem>>, vector<1x4x128xbf16>
    %155 = vector.shape_cast %154 : vector<1x4x128xbf16> to vector<4x128xbf16>
    %156 = vector.shape_cast %153 : vector<4x128xbf16> to vector<1x4x128xbf16>
    tpu.vector_store %arg3[%c16, %c0_140, %c0_141], %156 {strides = array<i32>} : memref<31x4x128xbf16, #tpu.memory_space<vmem>>, vector<1x4x128xbf16>,
    %c9_142 = arith.constant 9 : index
    %c0_143 = arith.constant 0 : index
    %c0_144 = arith.constant 0 : index
    %157 = vector.load %arg1[%c9_142, %c0_143, %c0_144] : memref<16x4x128xf32, #tpu.memory_space<vmem>>, vector<1x4x128xf32>
    %158 = vector.shape_cast %157 : vector<1x4x128xf32> to vector<4x128xf32>
    %cst_145 = arith.constant dense<0.000000e+00> : vector<4x128xf32>
    %159 = tpu.matmul %1, %158, %cst_145 {dimension_numbers = #tpu.dot_dimension_numbers<[1], [0], [0], [1], [0, 0, 1, 1], [], []>} : vector<4x4xf32>, vector<4x128xf32>, vector<4x128xf32> -> vector<4x128xf32>
    %c8_146 = arith.constant 8 : index
    %c0_147 = arith.constant 0 : index
    %c0_148 = arith.constant 0 : index
    %160 = vector.load %arg1[%c8_146, %c0_147, %c0_148] : memref<16x4x128xf32, #tpu.memory_space<vmem>>, vector<1x4x128xf32>
    %161 = vector.shape_cast %160 : vector<1x4x128xf32> to vector<4x128xf32>
    %cst_149 = arith.constant dense<0.000000e+00> : vector<4x128xf32>
    %162 = tpu.matmul %5, %161, %cst_149 {dimension_numbers = #tpu.dot_dimension_numbers<[1], [0], [0], [1], [0, 0, 1, 1], [], []>} : vector<4x4xf32>, vector<4x128xf32>, vector<4x128xf32> -> vector<4x128xf32>
    %163 = arith.addf %159, %162 : vector<4x128xf32>
    %164 = arith.truncf %163 : vector<4x128xf32> to vector<4x128xbf16>
    %c17 = arith.constant 17 : index
    %c0_150 = arith.constant 0 : index
    %c0_151 = arith.constant 0 : index
    %165 = vector.load %arg3[%c17, %c0_150, %c0_151] : memref<31x4x128xbf16, #tpu.memory_space<vmem>>, vector<1x4x128xbf16>
    %166 = vector.shape_cast %165 : vector<1x4x128xbf16> to vector<4x128xbf16>
    %167 = vector.shape_cast %164 : vector<4x128xbf16> to vector<1x4x128xbf16>
    tpu.vector_store %arg3[%c17, %c0_150, %c0_151], %167 {strides = array<i32>} : memref<31x4x128xbf16, #tpu.memory_space<vmem>>, vector<1x4x128xbf16>,
    %c9_152 = arith.constant 9 : index
    %c0_153 = arith.constant 0 : index
    %c0_154 = arith.constant 0 : index
    %168 = vector.load %arg1[%c9_152, %c0_153, %c0_154] : memref<16x4x128xf32, #tpu.memory_space<vmem>>, vector<1x4x128xf32>
    %169 = vector.shape_cast %168 : vector<1x4x128xf32> to vector<4x128xf32>
    %cst_155 = arith.constant dense<0.000000e+00> : vector<4x128xf32>
    %170 = tpu.matmul %3, %169, %cst_155 {dimension_numbers = #tpu.dot_dimension_numbers<[1], [0], [0], [1], [0, 0, 1, 1], [], []>} : vector<4x4xf32>, vector<4x128xf32>, vector<4x128xf32> -> vector<4x128xf32>
    %171 = arith.truncf %170 : vector<4x128xf32> to vector<4x128xbf16>
    %c18 = arith.constant 18 : index
    %c0_156 = arith.constant 0 : index
    %c0_157 = arith.constant 0 : index
    %172 = vector.load %arg3[%c18, %c0_156, %c0_157] : memref<31x4x128xbf16, #tpu.memory_space<vmem>>, vector<1x4x128xbf16>
    %173 = vector.shape_cast %172 : vector<1x4x128xbf16> to vector<4x128xbf16>
    %174 = vector.shape_cast %171 : vector<4x128xbf16> to vector<1x4x128xbf16>
    tpu.vector_store %arg3[%c18, %c0_156, %c0_157], %174 {strides = array<i32>} : memref<31x4x128xbf16, #tpu.memory_space<vmem>>, vector<1x4x128xbf16>,
    %c10_158 = arith.constant 10 : index
    %c0_159 = arith.constant 0 : index
    %c0_160 = arith.constant 0 : index
    %175 = vector.load %arg1[%c10_158, %c0_159, %c0_160] : memref<16x4x128xf32, #tpu.memory_space<vmem>>, vector<1x4x128xf32>
    %176 = vector.shape_cast %175 : vector<1x4x128xf32> to vector<4x128xf32>
    %cst_161 = arith.constant dense<0.000000e+00> : vector<4x128xf32>
    %177 = tpu.matmul %1, %176, %cst_161 {dimension_numbers = #tpu.dot_dimension_numbers<[1], [0], [0], [1], [0, 0, 1, 1], [], []>} : vector<4x4xf32>, vector<4x128xf32>, vector<4x128xf32> -> vector<4x128xf32>
    %c9_162 = arith.constant 9 : index
    %c0_163 = arith.constant 0 : index
    %c0_164 = arith.constant 0 : index
    %178 = vector.load %arg1[%c9_162, %c0_163, %c0_164] : memref<16x4x128xf32, #tpu.memory_space<vmem>>, vector<1x4x128xf32>
    %179 = vector.shape_cast %178 : vector<1x4x128xf32> to vector<4x128xf32>
    %cst_165 = arith.constant dense<0.000000e+00> : vector<4x128xf32>
    %180 = tpu.matmul %5, %179, %cst_165 {dimension_numbers = #tpu.dot_dimension_numbers<[1], [0], [0], [1], [0, 0, 1, 1], [], []>} : vector<4x4xf32>, vector<4x128xf32>, vector<4x128xf32> -> vector<4x128xf32>
    %181 = arith.addf %177, %180 : vector<4x128xf32>
    %182 = arith.truncf %181 : vector<4x128xf32> to vector<4x128xbf16>
    %c19 = arith.constant 19 : index
    %c0_166 = arith.constant 0 : index
    %c0_167 = arith.constant 0 : index
    %183 = vector.load %arg3[%c19, %c0_166, %c0_167] : memref<31x4x128xbf16, #tpu.memory_space<vmem>>, vector<1x4x128xbf16>
    %184 = vector.shape_cast %183 : vector<1x4x128xbf16> to vector<4x128xbf16>
    %185 = vector.shape_cast %182 : vector<4x128xbf16> to vector<1x4x128xbf16>
    tpu.vector_store %arg3[%c19, %c0_166, %c0_167], %185 {strides = array<i32>} : memref<31x4x128xbf16, #tpu.memory_space<vmem>>, vector<1x4x128xbf16>,
    %c10_168 = arith.constant 10 : index
    %c0_169 = arith.constant 0 : index
    %c0_170 = arith.constant 0 : index
    %186 = vector.load %arg1[%c10_168, %c0_169, %c0_170] : memref<16x4x128xf32, #tpu.memory_space<vmem>>, vector<1x4x128xf32>
    %187 = vector.shape_cast %186 : vector<1x4x128xf32> to vector<4x128xf32>
    %cst_171 = arith.constant dense<0.000000e+00> : vector<4x128xf32>
    %188 = tpu.matmul %3, %187, %cst_171 {dimension_numbers = #tpu.dot_dimension_numbers<[1], [0], [0], [1], [0, 0, 1, 1], [], []>} : vector<4x4xf32>, vector<4x128xf32>, vector<4x128xf32> -> vector<4x128xf32>
    %189 = arith.truncf %188 : vector<4x128xf32> to vector<4x128xbf16>
    %c20 = arith.constant 20 : index
    %c0_172 = arith.constant 0 : index
    %c0_173 = arith.constant 0 : index
    %190 = vector.load %arg3[%c20, %c0_172, %c0_173] : memref<31x4x128xbf16, #tpu.memory_space<vmem>>, vector<1x4x128xbf16>
    %191 = vector.shape_cast %190 : vector<1x4x128xbf16> to vector<4x128xbf16>
    %192 = vector.shape_cast %189 : vector<4x128xbf16> to vector<1x4x128xbf16>
    tpu.vector_store %arg3[%c20, %c0_172, %c0_173], %192 {strides = array<i32>} : memref<31x4x128xbf16, #tpu.memory_space<vmem>>, vector<1x4x128xbf16>,
    %c11_174 = arith.constant 11 : index
    %c0_175 = arith.constant 0 : index
    %c0_176 = arith.constant 0 : index
    %193 = vector.load %arg1[%c11_174, %c0_175, %c0_176] : memref<16x4x128xf32, #tpu.memory_space<vmem>>, vector<1x4x128xf32>
    %194 = vector.shape_cast %193 : vector<1x4x128xf32> to vector<4x128xf32>
    %cst_177 = arith.constant dense<0.000000e+00> : vector<4x128xf32>
    %195 = tpu.matmul %1, %194, %cst_177 {dimension_numbers = #tpu.dot_dimension_numbers<[1], [0], [0], [1], [0, 0, 1, 1], [], []>} : vector<4x4xf32>, vector<4x128xf32>, vector<4x128xf32> -> vector<4x128xf32>
    %c10_178 = arith.constant 10 : index
    %c0_179 = arith.constant 0 : index
    %c0_180 = arith.constant 0 : index
    %196 = vector.load %arg1[%c10_178, %c0_179, %c0_180] : memref<16x4x128xf32, #tpu.memory_space<vmem>>, vector<1x4x128xf32>
    %197 = vector.shape_cast %196 : vector<1x4x128xf32> to vector<4x128xf32>
    %cst_181 = arith.constant dense<0.000000e+00> : vector<4x128xf32>
    %198 = tpu.matmul %5, %197, %cst_181 {dimension_numbers = #tpu.dot_dimension_numbers<[1], [0], [0], [1], [0, 0, 1, 1], [], []>} : vector<4x4xf32>, vector<4x128xf32>, vector<4x128xf32> -> vector<4x128xf32>
    %199 = arith.addf %195, %198 : vector<4x128xf32>
    %200 = arith.truncf %199 : vector<4x128xf32> to vector<4x128xbf16>
    %c21 = arith.constant 21 : index
    %c0_182 = arith.constant 0 : index
    %c0_183 = arith.constant 0 : index
    %201 = vector.load %arg3[%c21, %c0_182, %c0_183] : memref<31x4x128xbf16, #tpu.memory_space<vmem>>, vector<1x4x128xbf16>
    %202 = vector.shape_cast %201 : vector<1x4x128xbf16> to vector<4x128xbf16>
    %203 = vector.shape_cast %200 : vector<4x128xbf16> to vector<1x4x128xbf16>
    tpu.vector_store %arg3[%c21, %c0_182, %c0_183], %203 {strides = array<i32>} : memref<31x4x128xbf16, #tpu.memory_space<vmem>>, vector<1x4x128xbf16>,
    %c11_184 = arith.constant 11 : index
    %c0_185 = arith.constant 0 : index
    %c0_186 = arith.constant 0 : index
    %204 = vector.load %arg1[%c11_184, %c0_185, %c0_186] : memref<16x4x128xf32, #tpu.memory_space<vmem>>, vector<1x4x128xf32>
    %205 = vector.shape_cast %204 : vector<1x4x128xf32> to vector<4x128xf32>
    %cst_187 = arith.constant dense<0.000000e+00> : vector<4x128xf32>
    %206 = tpu.matmul %3, %205, %cst_187 {dimension_numbers = #tpu.dot_dimension_numbers<[1], [0], [0], [1], [0, 0, 1, 1], [], []>} : vector<4x4xf32>, vector<4x128xf32>, vector<4x128xf32> -> vector<4x128xf32>
    %207 = arith.truncf %206 : vector<4x128xf32> to vector<4x128xbf16>
    %c22 = arith.constant 22 : index
    %c0_188 = arith.constant 0 : index
    %c0_189 = arith.constant 0 : index
    %208 = vector.load %arg3[%c22, %c0_188, %c0_189] : memref<31x4x128xbf16, #tpu.memory_space<vmem>>, vector<1x4x128xbf16>
    %209 = vector.shape_cast %208 : vector<1x4x128xbf16> to vector<4x128xbf16>
    %210 = vector.shape_cast %207 : vector<4x128xbf16> to vector<1x4x128xbf16>
    tpu.vector_store %arg3[%c22, %c0_188, %c0_189], %210 {strides = array<i32>} : memref<31x4x128xbf16, #tpu.memory_space<vmem>>, vector<1x4x128xbf16>,
    %c12_190 = arith.constant 12 : index
    %c0_191 = arith.constant 0 : index
    %c0_192 = arith.constant 0 : index
    %211 = vector.load %arg1[%c12_190, %c0_191, %c0_192] : memref<16x4x128xf32, #tpu.memory_space<vmem>>, vector<1x4x128xf32>
    %212 = vector.shape_cast %211 : vector<1x4x128xf32> to vector<4x128xf32>
    %cst_193 = arith.constant dense<0.000000e+00> : vector<4x128xf32>
    %213 = tpu.matmul %1, %212, %cst_193 {dimension_numbers = #tpu.dot_dimension_numbers<[1], [0], [0], [1], [0, 0, 1, 1], [], []>} : vector<4x4xf32>, vector<4x128xf32>, vector<4x128xf32> -> vector<4x128xf32>
    %c11_194 = arith.constant 11 : index
    %c0_195 = arith.constant 0 : index
    %c0_196 = arith.constant 0 : index
    %214 = vector.load %arg1[%c11_194, %c0_195, %c0_196] : memref<16x4x128xf32, #tpu.memory_space<vmem>>, vector<1x4x128xf32>
    %215 = vector.shape_cast %214 : vector<1x4x128xf32> to vector<4x128xf32>
    %cst_197 = arith.constant dense<0.000000e+00> : vector<4x128xf32>
    %216 = tpu.matmul %5, %215, %cst_197 {dimension_numbers = #tpu.dot_dimension_numbers<[1], [0], [0], [1], [0, 0, 1, 1], [], []>} : vector<4x4xf32>, vector<4x128xf32>, vector<4x128xf32> -> vector<4x128xf32>
    %217 = arith.addf %213, %216 : vector<4x128xf32>
    %218 = arith.truncf %217 : vector<4x128xf32> to vector<4x128xbf16>
    %c23 = arith.constant 23 : index
    %c0_198 = arith.constant 0 : index
    %c0_199 = arith.constant 0 : index
    %219 = vector.load %arg3[%c23, %c0_198, %c0_199] : memref<31x4x128xbf16, #tpu.memory_space<vmem>>, vector<1x4x128xbf16>
    %220 = vector.shape_cast %219 : vector<1x4x128xbf16> to vector<4x128xbf16>
    %221 = vector.shape_cast %218 : vector<4x128xbf16> to vector<1x4x128xbf16>
    tpu.vector_store %arg3[%c23, %c0_198, %c0_199], %221 {strides = array<i32>} : memref<31x4x128xbf16, #tpu.memory_space<vmem>>, vector<1x4x128xbf16>,
    %c12_200 = arith.constant 12 : index
    %c0_201 = arith.constant 0 : index
    %c0_202 = arith.constant 0 : index
    %222 = vector.load %arg1[%c12_200, %c0_201, %c0_202] : memref<16x4x128xf32, #tpu.memory_space<vmem>>, vector<1x4x128xf32>
    %223 = vector.shape_cast %222 : vector<1x4x128xf32> to vector<4x128xf32>
    %cst_203 = arith.constant dense<0.000000e+00> : vector<4x128xf32>
    %224 = tpu.matmul %3, %223, %cst_203 {dimension_numbers = #tpu.dot_dimension_numbers<[1], [0], [0], [1], [0, 0, 1, 1], [], []>} : vector<4x4xf32>, vector<4x128xf32>, vector<4x128xf32> -> vector<4x128xf32>
    %225 = arith.truncf %224 : vector<4x128xf32> to vector<4x128xbf16>
    %c24 = arith.constant 24 : index
    %c0_204 = arith.constant 0 : index
    %c0_205 = arith.constant 0 : index
    %226 = vector.load %arg3[%c24, %c0_204, %c0_205] : memref<31x4x128xbf16, #tpu.memory_space<vmem>>, vector<1x4x128xbf16>
    %227 = vector.shape_cast %226 : vector<1x4x128xbf16> to vector<4x128xbf16>
    %228 = vector.shape_cast %225 : vector<4x128xbf16> to vector<1x4x128xbf16>
    tpu.vector_store %arg3[%c24, %c0_204, %c0_205], %228 {strides = array<i32>} : memref<31x4x128xbf16, #tpu.memory_space<vmem>>, vector<1x4x128xbf16>,
    %c13_206 = arith.constant 13 : index
    %c0_207 = arith.constant 0 : index
    %c0_208 = arith.constant 0 : index
    %229 = vector.load %arg1[%c13_206, %c0_207, %c0_208] : memref<16x4x128xf32, #tpu.memory_space<vmem>>, vector<1x4x128xf32>
    %230 = vector.shape_cast %229 : vector<1x4x128xf32> to vector<4x128xf32>
    %cst_209 = arith.constant dense<0.000000e+00> : vector<4x128xf32>
    %231 = tpu.matmul %1, %230, %cst_209 {dimension_numbers = #tpu.dot_dimension_numbers<[1], [0], [0], [1], [0, 0, 1, 1], [], []>} : vector<4x4xf32>, vector<4x128xf32>, vector<4x128xf32> -> vector<4x128xf32>
    %c12_210 = arith.constant 12 : index
    %c0_211 = arith.constant 0 : index
    %c0_212 = arith.constant 0 : index
    %232 = vector.load %arg1[%c12_210, %c0_211, %c0_212] : memref<16x4x128xf32, #tpu.memory_space<vmem>>, vector<1x4x128xf32>
    %233 = vector.shape_cast %232 : vector<1x4x128xf32> to vector<4x128xf32>
    %cst_213 = arith.constant dense<0.000000e+00> : vector<4x128xf32>
    %234 = tpu.matmul %5, %233, %cst_213 {dimension_numbers = #tpu.dot_dimension_numbers<[1], [0], [0], [1], [0, 0, 1, 1], [], []>} : vector<4x4xf32>, vector<4x128xf32>, vector<4x128xf32> -> vector<4x128xf32>
    %235 = arith.addf %231, %234 : vector<4x128xf32>
    %236 = arith.truncf %235 : vector<4x128xf32> to vector<4x128xbf16>
    %c25 = arith.constant 25 : index
    %c0_214 = arith.constant 0 : index
    %c0_215 = arith.constant 0 : index
    %237 = vector.load %arg3[%c25, %c0_214, %c0_215] : memref<31x4x128xbf16, #tpu.memory_space<vmem>>, vector<1x4x128xbf16>
    %238 = vector.shape_cast %237 : vector<1x4x128xbf16> to vector<4x128xbf16>
    %239 = vector.shape_cast %236 : vector<4x128xbf16> to vector<1x4x128xbf16>
    tpu.vector_store %arg3[%c25, %c0_214, %c0_215], %239 {strides = array<i32>} : memref<31x4x128xbf16, #tpu.memory_space<vmem>>, vector<1x4x128xbf16>,
    %c13_216 = arith.constant 13 : index
    %c0_217 = arith.constant 0 : index
    %c0_218 = arith.constant 0 : index
    %240 = vector.load %arg1[%c13_216, %c0_217, %c0_218] : memref<16x4x128xf32, #tpu.memory_space<vmem>>, vector<1x4x128xf32>
    %241 = vector.shape_cast %240 : vector<1x4x128xf32> to vector<4x128xf32>
    %cst_219 = arith.constant dense<0.000000e+00> : vector<4x128xf32>
    %242 = tpu.matmul %3, %241, %cst_219 {dimension_numbers = #tpu.dot_dimension_numbers<[1], [0], [0], [1], [0, 0, 1, 1], [], []>} : vector<4x4xf32>, vector<4x128xf32>, vector<4x128xf32> -> vector<4x128xf32>
    %243 = arith.truncf %242 : vector<4x128xf32> to vector<4x128xbf16>
    %c26 = arith.constant 26 : index
    %c0_220 = arith.constant 0 : index
    %c0_221 = arith.constant 0 : index
    %244 = vector.load %arg3[%c26, %c0_220, %c0_221] : memref<31x4x128xbf16, #tpu.memory_space<vmem>>, vector<1x4x128xbf16>
    %245 = vector.shape_cast %244 : vector<1x4x128xbf16> to vector<4x128xbf16>
    %246 = vector.shape_cast %243 : vector<4x128xbf16> to vector<1x4x128xbf16>
    tpu.vector_store %arg3[%c26, %c0_220, %c0_221], %246 {strides = array<i32>} : memref<31x4x128xbf16, #tpu.memory_space<vmem>>, vector<1x4x128xbf16>,
    %c14_222 = arith.constant 14 : index
    %c0_223 = arith.constant 0 : index
    %c0_224 = arith.constant 0 : index
    %247 = vector.load %arg1[%c14_222, %c0_223, %c0_224] : memref<16x4x128xf32, #tpu.memory_space<vmem>>, vector<1x4x128xf32>
    %248 = vector.shape_cast %247 : vector<1x4x128xf32> to vector<4x128xf32>
    %cst_225 = arith.constant dense<0.000000e+00> : vector<4x128xf32>
    %249 = tpu.matmul %1, %248, %cst_225 {dimension_numbers = #tpu.dot_dimension_numbers<[1], [0], [0], [1], [0, 0, 1, 1], [], []>} : vector<4x4xf32>, vector<4x128xf32>, vector<4x128xf32> -> vector<4x128xf32>
    %c13_226 = arith.constant 13 : index
    %c0_227 = arith.constant 0 : index
    %c0_228 = arith.constant 0 : index
    %250 = vector.load %arg1[%c13_226, %c0_227, %c0_228] : memref<16x4x128xf32, #tpu.memory_space<vmem>>, vector<1x4x128xf32>
    %251 = vector.shape_cast %250 : vector<1x4x128xf32> to vector<4x128xf32>
    %cst_229 = arith.constant dense<0.000000e+00> : vector<4x128xf32>
    %252 = tpu.matmul %5, %251, %cst_229 {dimension_numbers = #tpu.dot_dimension_numbers<[1], [0], [0], [1], [0, 0, 1, 1], [], []>} : vector<4x4xf32>, vector<4x128xf32>, vector<4x128xf32> -> vector<4x128xf32>
    %253 = arith.addf %249, %252 : vector<4x128xf32>
    %254 = arith.truncf %253 : vector<4x128xf32> to vector<4x128xbf16>
    %c27 = arith.constant 27 : index
    %c0_230 = arith.constant 0 : index
    %c0_231 = arith.constant 0 : index
    %255 = vector.load %arg3[%c27, %c0_230, %c0_231] : memref<31x4x128xbf16, #tpu.memory_space<vmem>>, vector<1x4x128xbf16>
    %256 = vector.shape_cast %255 : vector<1x4x128xbf16> to vector<4x128xbf16>
    %257 = vector.shape_cast %254 : vector<4x128xbf16> to vector<1x4x128xbf16>
    tpu.vector_store %arg3[%c27, %c0_230, %c0_231], %257 {strides = array<i32>} : memref<31x4x128xbf16, #tpu.memory_space<vmem>>, vector<1x4x128xbf16>,
    %c14_232 = arith.constant 14 : index
    %c0_233 = arith.constant 0 : index
    %c0_234 = arith.constant 0 : index
    %258 = vector.load %arg1[%c14_232, %c0_233, %c0_234] : memref<16x4x128xf32, #tpu.memory_space<vmem>>, vector<1x4x128xf32>
    %259 = vector.shape_cast %258 : vector<1x4x128xf32> to vector<4x128xf32>
    %cst_235 = arith.constant dense<0.000000e+00> : vector<4x128xf32>
    %260 = tpu.matmul %3, %259, %cst_235 {dimension_numbers = #tpu.dot_dimension_numbers<[1], [0], [0], [1], [0, 0, 1, 1], [], []>} : vector<4x4xf32>, vector<4x128xf32>, vector<4x128xf32> -> vector<4x128xf32>
    %261 = arith.truncf %260 : vector<4x128xf32> to vector<4x128xbf16>
    %c28 = arith.constant 28 : index
    %c0_236 = arith.constant 0 : index
    %c0_237 = arith.constant 0 : index
    %262 = vector.load %arg3[%c28, %c0_236, %c0_237] : memref<31x4x128xbf16, #tpu.memory_space<vmem>>, vector<1x4x128xbf16>
    %263 = vector.shape_cast %262 : vector<1x4x128xbf16> to vector<4x128xbf16>
    %264 = vector.shape_cast %261 : vector<4x128xbf16> to vector<1x4x128xbf16>
    tpu.vector_store %arg3[%c28, %c0_236, %c0_237], %264 {strides = array<i32>} : memref<31x4x128xbf16, #tpu.memory_space<vmem>>, vector<1x4x128xbf16>,
    %c15_238 = arith.constant 15 : index
    %c0_239 = arith.constant 0 : index
    %c0_240 = arith.constant 0 : index
    %265 = vector.load %arg1[%c15_238, %c0_239, %c0_240] : memref<16x4x128xf32, #tpu.memory_space<vmem>>, vector<1x4x128xf32>
    %266 = vector.shape_cast %265 : vector<1x4x128xf32> to vector<4x128xf32>
    %cst_241 = arith.constant dense<0.000000e+00> : vector<4x128xf32>
    %267 = tpu.matmul %1, %266, %cst_241 {dimension_numbers = #tpu.dot_dimension_numbers<[1], [0], [0], [1], [0, 0, 1, 1], [], []>} : vector<4x4xf32>, vector<4x128xf32>, vector<4x128xf32> -> vector<4x128xf32>
    %c14_242 = arith.constant 14 : index
    %c0_243 = arith.constant 0 : index
    %c0_244 = arith.constant 0 : index
    %268 = vector.load %arg1[%c14_242, %c0_243, %c0_244] : memref<16x4x128xf32, #tpu.memory_space<vmem>>, vector<1x4x128xf32>
    %269 = vector.shape_cast %268 : vector<1x4x128xf32> to vector<4x128xf32>
    %cst_245 = arith.constant dense<0.000000e+00> : vector<4x128xf32>
    %270 = tpu.matmul %5, %269, %cst_245 {dimension_numbers = #tpu.dot_dimension_numbers<[1], [0], [0], [1], [0, 0, 1, 1], [], []>} : vector<4x4xf32>, vector<4x128xf32>, vector<4x128xf32> -> vector<4x128xf32>
    %271 = arith.addf %267, %270 : vector<4x128xf32>
    %272 = arith.truncf %271 : vector<4x128xf32> to vector<4x128xbf16>
    %c29 = arith.constant 29 : index
    %c0_246 = arith.constant 0 : index
    %c0_247 = arith.constant 0 : index
    %273 = vector.load %arg3[%c29, %c0_246, %c0_247] : memref<31x4x128xbf16, #tpu.memory_space<vmem>>, vector<1x4x128xbf16>
    %274 = vector.shape_cast %273 : vector<1x4x128xbf16> to vector<4x128xbf16>
    %275 = vector.shape_cast %272 : vector<4x128xbf16> to vector<1x4x128xbf16>
    tpu.vector_store %arg3[%c29, %c0_246, %c0_247], %275 {strides = array<i32>} : memref<31x4x128xbf16, #tpu.memory_space<vmem>>, vector<1x4x128xbf16>,
    %c15_248 = arith.constant 15 : index
    %c0_249 = arith.constant 0 : index
    %c0_250 = arith.constant 0 : index
    %276 = vector.load %arg1[%c15_248, %c0_249, %c0_250] : memref<16x4x128xf32, #tpu.memory_space<vmem>>, vector<1x4x128xf32>
    %277 = vector.shape_cast %276 : vector<1x4x128xf32> to vector<4x128xf32>
    %cst_251 = arith.constant dense<0.000000e+00> : vector<4x128xf32>
    %278 = tpu.matmul %3, %277, %cst_251 {dimension_numbers = #tpu.dot_dimension_numbers<[1], [0], [0], [1], [0, 0, 1, 1], [], []>} : vector<4x4xf32>, vector<4x128xf32>, vector<4x128xf32> -> vector<4x128xf32>
    %279 = arith.truncf %278 : vector<4x128xf32> to vector<4x128xbf16>
    %c30 = arith.constant 30 : index
    %c0_252 = arith.constant 0 : index
    %c0_253 = arith.constant 0 : index
    %280 = vector.load %arg3[%c30, %c0_252, %c0_253] : memref<31x4x128xbf16, #tpu.memory_space<vmem>>, vector<1x4x128xbf16>
    %281 = vector.shape_cast %280 : vector<1x4x128xbf16> to vector<4x128xbf16>
    %282 = vector.shape_cast %279 : vector<4x128xbf16> to vector<1x4x128xbf16>
    tpu.vector_store %arg3[%c30, %c0_252, %c0_253], %282 {strides = array<i32>} : memref<31x4x128xbf16, #tpu.memory_space<vmem>>, vector<1x4x128xbf16>,
    return
  }
  func.func @transform_0(%arg0: i32) -> (i32, i32, i32) {
    %c0_i32 = arith.constant 0 : i32
    %c0_i32_0 = arith.constant 0 : i32
    %c0_i32_1 = arith.constant 0 : i32
    return %c0_i32, %c0_i32_0, %arg0 : i32, i32, i32
  }
  func.func @transform_1(%arg0: i32) -> (i32, i32, i32) {
    %c0_i32 = arith.constant 0 : i32
    %c0_i32_0 = arith.constant 0 : i32
    %c0_i32_1 = arith.constant 0 : i32
    %c0_i32_2 = arith.constant 0 : i32
    return %c0_i32, %c0_i32_0, %c0_i32_1 : i32, i32, i32
  }
  func.func @transform_2(%arg0: i32) -> (i32, i32, i32) {
    %c0_i32 = arith.constant 0 : i32
    %c0_i32_0 = arith.constant 0 : i32
    %c0_i32_1 = arith.constant 0 : i32
    return %c0_i32, %c0_i32_0, %arg0 : i32, i32, i32
  }
}

module attributes {stable_mosaic.version = 11 : i64} {
  func.func @kernel(%arg0: i32, %arg1: memref<16x4x128xbf16, #tpu.memory_space<vmem>>, %arg2: memref<3x6x4xbf16, #tpu.memory_space<vmem>>, %arg3: memref<6x1xf32, #tpu.memory_space<vmem>>, %arg4: memref<32x6x128xf32, #tpu.memory_space<vmem>>) attributes {dimension_semantics = [#tpu.dimension_semantics<parallel>], iteration_bounds = array<i64: 1>, scalar_prefetch = 0 : i64, scratch_operands = 0 : i64, tpu.core_type = #tpu.core_type<tc>, window_params = [{transform_indices = @transform_0, window_bounds = array<i64: 16, 4, 128>}, {pipeline_mode = #tpu.pipeline_mode<synchronous>, transform_indices = @transform_1, window_bounds = array<i64: 3, 6, 4>}, {pipeline_mode = #tpu.pipeline_mode<synchronous>, transform_indices = @transform_2, window_bounds = array<i64: 6, 1>}, {transform_indices = @transform_3, window_bounds = array<i64: 32, 6, 128>}]} {
    %c0 = arith.constant 0 : index
    %c0_0 = arith.constant 0 : index
    %0 = vector.load %arg3[%c0, %c0_0] : memref<6x1xf32, #tpu.memory_space<vmem>>, vector<6x1xf32>
    %1 = vector.shape_cast %0 : vector<6x1xf32> to vector<6x1xf32>
    %2 = vector.broadcast %1 : vector<6x1xf32> to vector<6x128xf32>
    %c0_1 = arith.constant 0 : index
    %c0_2 = arith.constant 0 : index
    %c0_3 = arith.constant 0 : index
    %3 = vector.load %arg2[%c0_1, %c0_2, %c0_3] : memref<3x6x4xbf16, #tpu.memory_space<vmem>>, vector<1x6x4xbf16>
    %4 = vector.shape_cast %3 : vector<1x6x4xbf16> to vector<6x4xbf16>
    %c1 = arith.constant 1 : index
    %c0_4 = arith.constant 0 : index
    %c0_5 = arith.constant 0 : index
    %5 = vector.load %arg2[%c1, %c0_4, %c0_5] : memref<3x6x4xbf16, #tpu.memory_space<vmem>>, vector<1x6x4xbf16>
    %6 = vector.shape_cast %5 : vector<1x6x4xbf16> to vector<6x4xbf16>
    %c2 = arith.constant 2 : index
    %c0_6 = arith.constant 0 : index
    %c0_7 = arith.constant 0 : index
    %7 = vector.load %arg2[%c2, %c0_6, %c0_7] : memref<3x6x4xbf16, #tpu.memory_space<vmem>>, vector<1x6x4xbf16>
    %8 = vector.shape_cast %7 : vector<1x6x4xbf16> to vector<6x4xbf16>
    %c0_8 = arith.constant 0 : index
    %c0_9 = arith.constant 0 : index
    %c0_10 = arith.constant 0 : index
    %9 = vector.load %arg1[%c0_8, %c0_9, %c0_10] : memref<16x4x128xbf16, #tpu.memory_space<vmem>>, vector<1x4x128xbf16>
    %10 = vector.shape_cast %9 : vector<1x4x128xbf16> to vector<4x128xbf16>
    %cst = arith.constant dense<0.000000e+00> : vector<6x128xf32>
    %11 = tpu.matmul %6, %10, %cst {dimension_numbers = #tpu.dot_dimension_numbers<[1], [0], [0], [1], [0, 0, 1, 1], [], []>} : vector<6x4xbf16>, vector<4x128xbf16>, vector<6x128xf32> -> vector<6x128xf32>
    %12 = arith.addf %11, %2 : vector<6x128xf32>
    %c0_11 = arith.constant 0 : index
    %c0_12 = arith.constant 0 : index
    %c0_13 = arith.constant 0 : index
    %13 = vector.load %arg4[%c0_11, %c0_12, %c0_13] : memref<32x6x128xf32, #tpu.memory_space<vmem>>, vector<1x6x128xf32>
    %14 = vector.shape_cast %13 : vector<1x6x128xf32> to vector<6x128xf32>
    %15 = vector.shape_cast %12 : vector<6x128xf32> to vector<1x6x128xf32>
    tpu.vector_store %arg4[%c0_11, %c0_12, %c0_13], %15 {strides = array<i32>} : memref<32x6x128xf32, #tpu.memory_space<vmem>>, vector<1x6x128xf32>,
    %c1_14 = arith.constant 1 : index
    %c0_15 = arith.constant 0 : index
    %c0_16 = arith.constant 0 : index
    %16 = vector.load %arg1[%c1_14, %c0_15, %c0_16] : memref<16x4x128xbf16, #tpu.memory_space<vmem>>, vector<1x4x128xbf16>
    %17 = vector.shape_cast %16 : vector<1x4x128xbf16> to vector<4x128xbf16>
    %cst_17 = arith.constant dense<0.000000e+00> : vector<6x128xf32>
    %18 = tpu.matmul %4, %17, %cst_17 {dimension_numbers = #tpu.dot_dimension_numbers<[1], [0], [0], [1], [0, 0, 1, 1], [], []>} : vector<6x4xbf16>, vector<4x128xbf16>, vector<6x128xf32> -> vector<6x128xf32>
    %c0_18 = arith.constant 0 : index
    %c0_19 = arith.constant 0 : index
    %c0_20 = arith.constant 0 : index
    %19 = vector.load %arg1[%c0_18, %c0_19, %c0_20] : memref<16x4x128xbf16, #tpu.memory_space<vmem>>, vector<1x4x128xbf16>
    %20 = vector.shape_cast %19 : vector<1x4x128xbf16> to vector<4x128xbf16>
    %cst_21 = arith.constant dense<0.000000e+00> : vector<6x128xf32>
    %21 = tpu.matmul %8, %20, %cst_21 {dimension_numbers = #tpu.dot_dimension_numbers<[1], [0], [0], [1], [0, 0, 1, 1], [], []>} : vector<6x4xbf16>, vector<4x128xbf16>, vector<6x128xf32> -> vector<6x128xf32>
    %22 = arith.addf %18, %21 : vector<6x128xf32>
    %23 = arith.addf %22, %2 : vector<6x128xf32>
    %c1_22 = arith.constant 1 : index
    %c0_23 = arith.constant 0 : index
    %c0_24 = arith.constant 0 : index
    %24 = vector.load %arg4[%c1_22, %c0_23, %c0_24] : memref<32x6x128xf32, #tpu.memory_space<vmem>>, vector<1x6x128xf32>
    %25 = vector.shape_cast %24 : vector<1x6x128xf32> to vector<6x128xf32>
    %26 = vector.shape_cast %23 : vector<6x128xf32> to vector<1x6x128xf32>
    tpu.vector_store %arg4[%c1_22, %c0_23, %c0_24], %26 {strides = array<i32>} : memref<32x6x128xf32, #tpu.memory_space<vmem>>, vector<1x6x128xf32>,
    %c1_25 = arith.constant 1 : index
    %c0_26 = arith.constant 0 : index
    %c0_27 = arith.constant 0 : index
    %27 = vector.load %arg1[%c1_25, %c0_26, %c0_27] : memref<16x4x128xbf16, #tpu.memory_space<vmem>>, vector<1x4x128xbf16>
    %28 = vector.shape_cast %27 : vector<1x4x128xbf16> to vector<4x128xbf16>
    %cst_28 = arith.constant dense<0.000000e+00> : vector<6x128xf32>
    %29 = tpu.matmul %6, %28, %cst_28 {dimension_numbers = #tpu.dot_dimension_numbers<[1], [0], [0], [1], [0, 0, 1, 1], [], []>} : vector<6x4xbf16>, vector<4x128xbf16>, vector<6x128xf32> -> vector<6x128xf32>
    %30 = arith.addf %29, %2 : vector<6x128xf32>
    %c2_29 = arith.constant 2 : index
    %c0_30 = arith.constant 0 : index
    %c0_31 = arith.constant 0 : index
    %31 = vector.load %arg4[%c2_29, %c0_30, %c0_31] : memref<32x6x128xf32, #tpu.memory_space<vmem>>, vector<1x6x128xf32>
    %32 = vector.shape_cast %31 : vector<1x6x128xf32> to vector<6x128xf32>
    %33 = vector.shape_cast %30 : vector<6x128xf32> to vector<1x6x128xf32>
    tpu.vector_store %arg4[%c2_29, %c0_30, %c0_31], %33 {strides = array<i32>} : memref<32x6x128xf32, #tpu.memory_space<vmem>>, vector<1x6x128xf32>,
    %c2_32 = arith.constant 2 : index
    %c0_33 = arith.constant 0 : index
    %c0_34 = arith.constant 0 : index
    %34 = vector.load %arg1[%c2_32, %c0_33, %c0_34] : memref<16x4x128xbf16, #tpu.memory_space<vmem>>, vector<1x4x128xbf16>
    %35 = vector.shape_cast %34 : vector<1x4x128xbf16> to vector<4x128xbf16>
    %cst_35 = arith.constant dense<0.000000e+00> : vector<6x128xf32>
    %36 = tpu.matmul %4, %35, %cst_35 {dimension_numbers = #tpu.dot_dimension_numbers<[1], [0], [0], [1], [0, 0, 1, 1], [], []>} : vector<6x4xbf16>, vector<4x128xbf16>, vector<6x128xf32> -> vector<6x128xf32>
    %c1_36 = arith.constant 1 : index
    %c0_37 = arith.constant 0 : index
    %c0_38 = arith.constant 0 : index
    %37 = vector.load %arg1[%c1_36, %c0_37, %c0_38] : memref<16x4x128xbf16, #tpu.memory_space<vmem>>, vector<1x4x128xbf16>
    %38 = vector.shape_cast %37 : vector<1x4x128xbf16> to vector<4x128xbf16>
    %cst_39 = arith.constant dense<0.000000e+00> : vector<6x128xf32>
    %39 = tpu.matmul %8, %38, %cst_39 {dimension_numbers = #tpu.dot_dimension_numbers<[1], [0], [0], [1], [0, 0, 1, 1], [], []>} : vector<6x4xbf16>, vector<4x128xbf16>, vector<6x128xf32> -> vector<6x128xf32>
    %40 = arith.addf %36, %39 : vector<6x128xf32>
    %41 = arith.addf %40, %2 : vector<6x128xf32>
    %c3 = arith.constant 3 : index
    %c0_40 = arith.constant 0 : index
    %c0_41 = arith.constant 0 : index
    %42 = vector.load %arg4[%c3, %c0_40, %c0_41] : memref<32x6x128xf32, #tpu.memory_space<vmem>>, vector<1x6x128xf32>
    %43 = vector.shape_cast %42 : vector<1x6x128xf32> to vector<6x128xf32>
    %44 = vector.shape_cast %41 : vector<6x128xf32> to vector<1x6x128xf32>
    tpu.vector_store %arg4[%c3, %c0_40, %c0_41], %44 {strides = array<i32>} : memref<32x6x128xf32, #tpu.memory_space<vmem>>, vector<1x6x128xf32>,
    %c2_42 = arith.constant 2 : index
    %c0_43 = arith.constant 0 : index
    %c0_44 = arith.constant 0 : index
    %45 = vector.load %arg1[%c2_42, %c0_43, %c0_44] : memref<16x4x128xbf16, #tpu.memory_space<vmem>>, vector<1x4x128xbf16>
    %46 = vector.shape_cast %45 : vector<1x4x128xbf16> to vector<4x128xbf16>
    %cst_45 = arith.constant dense<0.000000e+00> : vector<6x128xf32>
    %47 = tpu.matmul %6, %46, %cst_45 {dimension_numbers = #tpu.dot_dimension_numbers<[1], [0], [0], [1], [0, 0, 1, 1], [], []>} : vector<6x4xbf16>, vector<4x128xbf16>, vector<6x128xf32> -> vector<6x128xf32>
    %48 = arith.addf %47, %2 : vector<6x128xf32>
    %c4 = arith.constant 4 : index
    %c0_46 = arith.constant 0 : index
    %c0_47 = arith.constant 0 : index
    %49 = vector.load %arg4[%c4, %c0_46, %c0_47] : memref<32x6x128xf32, #tpu.memory_space<vmem>>, vector<1x6x128xf32>
    %50 = vector.shape_cast %49 : vector<1x6x128xf32> to vector<6x128xf32>
    %51 = vector.shape_cast %48 : vector<6x128xf32> to vector<1x6x128xf32>
    tpu.vector_store %arg4[%c4, %c0_46, %c0_47], %51 {strides = array<i32>} : memref<32x6x128xf32, #tpu.memory_space<vmem>>, vector<1x6x128xf32>,
    %c3_48 = arith.constant 3 : index
    %c0_49 = arith.constant 0 : index
    %c0_50 = arith.constant 0 : index
    %52 = vector.load %arg1[%c3_48, %c0_49, %c0_50] : memref<16x4x128xbf16, #tpu.memory_space<vmem>>, vector<1x4x128xbf16>
    %53 = vector.shape_cast %52 : vector<1x4x128xbf16> to vector<4x128xbf16>
    %cst_51 = arith.constant dense<0.000000e+00> : vector<6x128xf32>
    %54 = tpu.matmul %4, %53, %cst_51 {dimension_numbers = #tpu.dot_dimension_numbers<[1], [0], [0], [1], [0, 0, 1, 1], [], []>} : vector<6x4xbf16>, vector<4x128xbf16>, vector<6x128xf32> -> vector<6x128xf32>
    %c2_52 = arith.constant 2 : index
    %c0_53 = arith.constant 0 : index
    %c0_54 = arith.constant 0 : index
    %55 = vector.load %arg1[%c2_52, %c0_53, %c0_54] : memref<16x4x128xbf16, #tpu.memory_space<vmem>>, vector<1x4x128xbf16>
    %56 = vector.shape_cast %55 : vector<1x4x128xbf16> to vector<4x128xbf16>
    %cst_55 = arith.constant dense<0.000000e+00> : vector<6x128xf32>
    %57 = tpu.matmul %8, %56, %cst_55 {dimension_numbers = #tpu.dot_dimension_numbers<[1], [0], [0], [1], [0, 0, 1, 1], [], []>} : vector<6x4xbf16>, vector<4x128xbf16>, vector<6x128xf32> -> vector<6x128xf32>
    %58 = arith.addf %54, %57 : vector<6x128xf32>
    %59 = arith.addf %58, %2 : vector<6x128xf32>
    %c5 = arith.constant 5 : index
    %c0_56 = arith.constant 0 : index
    %c0_57 = arith.constant 0 : index
    %60 = vector.load %arg4[%c5, %c0_56, %c0_57] : memref<32x6x128xf32, #tpu.memory_space<vmem>>, vector<1x6x128xf32>
    %61 = vector.shape_cast %60 : vector<1x6x128xf32> to vector<6x128xf32>
    %62 = vector.shape_cast %59 : vector<6x128xf32> to vector<1x6x128xf32>
    tpu.vector_store %arg4[%c5, %c0_56, %c0_57], %62 {strides = array<i32>} : memref<32x6x128xf32, #tpu.memory_space<vmem>>, vector<1x6x128xf32>,
    %c3_58 = arith.constant 3 : index
    %c0_59 = arith.constant 0 : index
    %c0_60 = arith.constant 0 : index
    %63 = vector.load %arg1[%c3_58, %c0_59, %c0_60] : memref<16x4x128xbf16, #tpu.memory_space<vmem>>, vector<1x4x128xbf16>
    %64 = vector.shape_cast %63 : vector<1x4x128xbf16> to vector<4x128xbf16>
    %cst_61 = arith.constant dense<0.000000e+00> : vector<6x128xf32>
    %65 = tpu.matmul %6, %64, %cst_61 {dimension_numbers = #tpu.dot_dimension_numbers<[1], [0], [0], [1], [0, 0, 1, 1], [], []>} : vector<6x4xbf16>, vector<4x128xbf16>, vector<6x128xf32> -> vector<6x128xf32>
    %66 = arith.addf %65, %2 : vector<6x128xf32>
    %c6 = arith.constant 6 : index
    %c0_62 = arith.constant 0 : index
    %c0_63 = arith.constant 0 : index
    %67 = vector.load %arg4[%c6, %c0_62, %c0_63] : memref<32x6x128xf32, #tpu.memory_space<vmem>>, vector<1x6x128xf32>
    %68 = vector.shape_cast %67 : vector<1x6x128xf32> to vector<6x128xf32>
    %69 = vector.shape_cast %66 : vector<6x128xf32> to vector<1x6x128xf32>
    tpu.vector_store %arg4[%c6, %c0_62, %c0_63], %69 {strides = array<i32>} : memref<32x6x128xf32, #tpu.memory_space<vmem>>, vector<1x6x128xf32>,
    %c4_64 = arith.constant 4 : index
    %c0_65 = arith.constant 0 : index
    %c0_66 = arith.constant 0 : index
    %70 = vector.load %arg1[%c4_64, %c0_65, %c0_66] : memref<16x4x128xbf16, #tpu.memory_space<vmem>>, vector<1x4x128xbf16>
    %71 = vector.shape_cast %70 : vector<1x4x128xbf16> to vector<4x128xbf16>
    %cst_67 = arith.constant dense<0.000000e+00> : vector<6x128xf32>
    %72 = tpu.matmul %4, %71, %cst_67 {dimension_numbers = #tpu.dot_dimension_numbers<[1], [0], [0], [1], [0, 0, 1, 1], [], []>} : vector<6x4xbf16>, vector<4x128xbf16>, vector<6x128xf32> -> vector<6x128xf32>
    %c3_68 = arith.constant 3 : index
    %c0_69 = arith.constant 0 : index
    %c0_70 = arith.constant 0 : index
    %73 = vector.load %arg1[%c3_68, %c0_69, %c0_70] : memref<16x4x128xbf16, #tpu.memory_space<vmem>>, vector<1x4x128xbf16>
    %74 = vector.shape_cast %73 : vector<1x4x128xbf16> to vector<4x128xbf16>
    %cst_71 = arith.constant dense<0.000000e+00> : vector<6x128xf32>
    %75 = tpu.matmul %8, %74, %cst_71 {dimension_numbers = #tpu.dot_dimension_numbers<[1], [0], [0], [1], [0, 0, 1, 1], [], []>} : vector<6x4xbf16>, vector<4x128xbf16>, vector<6x128xf32> -> vector<6x128xf32>
    %76 = arith.addf %72, %75 : vector<6x128xf32>
    %77 = arith.addf %76, %2 : vector<6x128xf32>
    %c7 = arith.constant 7 : index
    %c0_72 = arith.constant 0 : index
    %c0_73 = arith.constant 0 : index
    %78 = vector.load %arg4[%c7, %c0_72, %c0_73] : memref<32x6x128xf32, #tpu.memory_space<vmem>>, vector<1x6x128xf32>
    %79 = vector.shape_cast %78 : vector<1x6x128xf32> to vector<6x128xf32>
    %80 = vector.shape_cast %77 : vector<6x128xf32> to vector<1x6x128xf32>
    tpu.vector_store %arg4[%c7, %c0_72, %c0_73], %80 {strides = array<i32>} : memref<32x6x128xf32, #tpu.memory_space<vmem>>, vector<1x6x128xf32>,
    %c4_74 = arith.constant 4 : index
    %c0_75 = arith.constant 0 : index
    %c0_76 = arith.constant 0 : index
    %81 = vector.load %arg1[%c4_74, %c0_75, %c0_76] : memref<16x4x128xbf16, #tpu.memory_space<vmem>>, vector<1x4x128xbf16>
    %82 = vector.shape_cast %81 : vector<1x4x128xbf16> to vector<4x128xbf16>
    %cst_77 = arith.constant dense<0.000000e+00> : vector<6x128xf32>
    %83 = tpu.matmul %6, %82, %cst_77 {dimension_numbers = #tpu.dot_dimension_numbers<[1], [0], [0], [1], [0, 0, 1, 1], [], []>} : vector<6x4xbf16>, vector<4x128xbf16>, vector<6x128xf32> -> vector<6x128xf32>
    %84 = arith.addf %83, %2 : vector<6x128xf32>
    %c8 = arith.constant 8 : index
    %c0_78 = arith.constant 0 : index
    %c0_79 = arith.constant 0 : index
    %85 = vector.load %arg4[%c8, %c0_78, %c0_79] : memref<32x6x128xf32, #tpu.memory_space<vmem>>, vector<1x6x128xf32>
    %86 = vector.shape_cast %85 : vector<1x6x128xf32> to vector<6x128xf32>
    %87 = vector.shape_cast %84 : vector<6x128xf32> to vector<1x6x128xf32>
    tpu.vector_store %arg4[%c8, %c0_78, %c0_79], %87 {strides = array<i32>} : memref<32x6x128xf32, #tpu.memory_space<vmem>>, vector<1x6x128xf32>,
    %c5_80 = arith.constant 5 : index
    %c0_81 = arith.constant 0 : index
    %c0_82 = arith.constant 0 : index
    %88 = vector.load %arg1[%c5_80, %c0_81, %c0_82] : memref<16x4x128xbf16, #tpu.memory_space<vmem>>, vector<1x4x128xbf16>
    %89 = vector.shape_cast %88 : vector<1x4x128xbf16> to vector<4x128xbf16>
    %cst_83 = arith.constant dense<0.000000e+00> : vector<6x128xf32>
    %90 = tpu.matmul %4, %89, %cst_83 {dimension_numbers = #tpu.dot_dimension_numbers<[1], [0], [0], [1], [0, 0, 1, 1], [], []>} : vector<6x4xbf16>, vector<4x128xbf16>, vector<6x128xf32> -> vector<6x128xf32>
    %c4_84 = arith.constant 4 : index
    %c0_85 = arith.constant 0 : index
    %c0_86 = arith.constant 0 : index
    %91 = vector.load %arg1[%c4_84, %c0_85, %c0_86] : memref<16x4x128xbf16, #tpu.memory_space<vmem>>, vector<1x4x128xbf16>
    %92 = vector.shape_cast %91 : vector<1x4x128xbf16> to vector<4x128xbf16>
    %cst_87 = arith.constant dense<0.000000e+00> : vector<6x128xf32>
    %93 = tpu.matmul %8, %92, %cst_87 {dimension_numbers = #tpu.dot_dimension_numbers<[1], [0], [0], [1], [0, 0, 1, 1], [], []>} : vector<6x4xbf16>, vector<4x128xbf16>, vector<6x128xf32> -> vector<6x128xf32>
    %94 = arith.addf %90, %93 : vector<6x128xf32>
    %95 = arith.addf %94, %2 : vector<6x128xf32>
    %c9 = arith.constant 9 : index
    %c0_88 = arith.constant 0 : index
    %c0_89 = arith.constant 0 : index
    %96 = vector.load %arg4[%c9, %c0_88, %c0_89] : memref<32x6x128xf32, #tpu.memory_space<vmem>>, vector<1x6x128xf32>
    %97 = vector.shape_cast %96 : vector<1x6x128xf32> to vector<6x128xf32>
    %98 = vector.shape_cast %95 : vector<6x128xf32> to vector<1x6x128xf32>
    tpu.vector_store %arg4[%c9, %c0_88, %c0_89], %98 {strides = array<i32>} : memref<32x6x128xf32, #tpu.memory_space<vmem>>, vector<1x6x128xf32>,
    %c5_90 = arith.constant 5 : index
    %c0_91 = arith.constant 0 : index
    %c0_92 = arith.constant 0 : index
    %99 = vector.load %arg1[%c5_90, %c0_91, %c0_92] : memref<16x4x128xbf16, #tpu.memory_space<vmem>>, vector<1x4x128xbf16>
    %100 = vector.shape_cast %99 : vector<1x4x128xbf16> to vector<4x128xbf16>
    %cst_93 = arith.constant dense<0.000000e+00> : vector<6x128xf32>
    %101 = tpu.matmul %6, %100, %cst_93 {dimension_numbers = #tpu.dot_dimension_numbers<[1], [0], [0], [1], [0, 0, 1, 1], [], []>} : vector<6x4xbf16>, vector<4x128xbf16>, vector<6x128xf32> -> vector<6x128xf32>
    %102 = arith.addf %101, %2 : vector<6x128xf32>
    %c10 = arith.constant 10 : index
    %c0_94 = arith.constant 0 : index
    %c0_95 = arith.constant 0 : index
    %103 = vector.load %arg4[%c10, %c0_94, %c0_95] : memref<32x6x128xf32, #tpu.memory_space<vmem>>, vector<1x6x128xf32>
    %104 = vector.shape_cast %103 : vector<1x6x128xf32> to vector<6x128xf32>
    %105 = vector.shape_cast %102 : vector<6x128xf32> to vector<1x6x128xf32>
    tpu.vector_store %arg4[%c10, %c0_94, %c0_95], %105 {strides = array<i32>} : memref<32x6x128xf32, #tpu.memory_space<vmem>>, vector<1x6x128xf32>,
    %c6_96 = arith.constant 6 : index
    %c0_97 = arith.constant 0 : index
    %c0_98 = arith.constant 0 : index
    %106 = vector.load %arg1[%c6_96, %c0_97, %c0_98] : memref<16x4x128xbf16, #tpu.memory_space<vmem>>, vector<1x4x128xbf16>
    %107 = vector.shape_cast %106 : vector<1x4x128xbf16> to vector<4x128xbf16>
    %cst_99 = arith.constant dense<0.000000e+00> : vector<6x128xf32>
    %108 = tpu.matmul %4, %107, %cst_99 {dimension_numbers = #tpu.dot_dimension_numbers<[1], [0], [0], [1], [0, 0, 1, 1], [], []>} : vector<6x4xbf16>, vector<4x128xbf16>, vector<6x128xf32> -> vector<6x128xf32>
    %c5_100 = arith.constant 5 : index
    %c0_101 = arith.constant 0 : index
    %c0_102 = arith.constant 0 : index
    %109 = vector.load %arg1[%c5_100, %c0_101, %c0_102] : memref<16x4x128xbf16, #tpu.memory_space<vmem>>, vector<1x4x128xbf16>
    %110 = vector.shape_cast %109 : vector<1x4x128xbf16> to vector<4x128xbf16>
    %cst_103 = arith.constant dense<0.000000e+00> : vector<6x128xf32>
    %111 = tpu.matmul %8, %110, %cst_103 {dimension_numbers = #tpu.dot_dimension_numbers<[1], [0], [0], [1], [0, 0, 1, 1], [], []>} : vector<6x4xbf16>, vector<4x128xbf16>, vector<6x128xf32> -> vector<6x128xf32>
    %112 = arith.addf %108, %111 : vector<6x128xf32>
    %113 = arith.addf %112, %2 : vector<6x128xf32>
    %c11 = arith.constant 11 : index
    %c0_104 = arith.constant 0 : index
    %c0_105 = arith.constant 0 : index
    %114 = vector.load %arg4[%c11, %c0_104, %c0_105] : memref<32x6x128xf32, #tpu.memory_space<vmem>>, vector<1x6x128xf32>
    %115 = vector.shape_cast %114 : vector<1x6x128xf32> to vector<6x128xf32>
    %116 = vector.shape_cast %113 : vector<6x128xf32> to vector<1x6x128xf32>
    tpu.vector_store %arg4[%c11, %c0_104, %c0_105], %116 {strides = array<i32>} : memref<32x6x128xf32, #tpu.memory_space<vmem>>, vector<1x6x128xf32>,
    %c6_106 = arith.constant 6 : index
    %c0_107 = arith.constant 0 : index
    %c0_108 = arith.constant 0 : index
    %117 = vector.load %arg1[%c6_106, %c0_107, %c0_108] : memref<16x4x128xbf16, #tpu.memory_space<vmem>>, vector<1x4x128xbf16>
    %118 = vector.shape_cast %117 : vector<1x4x128xbf16> to vector<4x128xbf16>
    %cst_109 = arith.constant dense<0.000000e+00> : vector<6x128xf32>
    %119 = tpu.matmul %6, %118, %cst_109 {dimension_numbers = #tpu.dot_dimension_numbers<[1], [0], [0], [1], [0, 0, 1, 1], [], []>} : vector<6x4xbf16>, vector<4x128xbf16>, vector<6x128xf32> -> vector<6x128xf32>
    %120 = arith.addf %119, %2 : vector<6x128xf32>
    %c12 = arith.constant 12 : index
    %c0_110 = arith.constant 0 : index
    %c0_111 = arith.constant 0 : index
    %121 = vector.load %arg4[%c12, %c0_110, %c0_111] : memref<32x6x128xf32, #tpu.memory_space<vmem>>, vector<1x6x128xf32>
    %122 = vector.shape_cast %121 : vector<1x6x128xf32> to vector<6x128xf32>
    %123 = vector.shape_cast %120 : vector<6x128xf32> to vector<1x6x128xf32>
    tpu.vector_store %arg4[%c12, %c0_110, %c0_111], %123 {strides = array<i32>} : memref<32x6x128xf32, #tpu.memory_space<vmem>>, vector<1x6x128xf32>,
    %c7_112 = arith.constant 7 : index
    %c0_113 = arith.constant 0 : index
    %c0_114 = arith.constant 0 : index
    %124 = vector.load %arg1[%c7_112, %c0_113, %c0_114] : memref<16x4x128xbf16, #tpu.memory_space<vmem>>, vector<1x4x128xbf16>
    %125 = vector.shape_cast %124 : vector<1x4x128xbf16> to vector<4x128xbf16>
    %cst_115 = arith.constant dense<0.000000e+00> : vector<6x128xf32>
    %126 = tpu.matmul %4, %125, %cst_115 {dimension_numbers = #tpu.dot_dimension_numbers<[1], [0], [0], [1], [0, 0, 1, 1], [], []>} : vector<6x4xbf16>, vector<4x128xbf16>, vector<6x128xf32> -> vector<6x128xf32>
    %c6_116 = arith.constant 6 : index
    %c0_117 = arith.constant 0 : index
    %c0_118 = arith.constant 0 : index
    %127 = vector.load %arg1[%c6_116, %c0_117, %c0_118] : memref<16x4x128xbf16, #tpu.memory_space<vmem>>, vector<1x4x128xbf16>
    %128 = vector.shape_cast %127 : vector<1x4x128xbf16> to vector<4x128xbf16>
    %cst_119 = arith.constant dense<0.000000e+00> : vector<6x128xf32>
    %129 = tpu.matmul %8, %128, %cst_119 {dimension_numbers = #tpu.dot_dimension_numbers<[1], [0], [0], [1], [0, 0, 1, 1], [], []>} : vector<6x4xbf16>, vector<4x128xbf16>, vector<6x128xf32> -> vector<6x128xf32>
    %130 = arith.addf %126, %129 : vector<6x128xf32>
    %131 = arith.addf %130, %2 : vector<6x128xf32>
    %c13 = arith.constant 13 : index
    %c0_120 = arith.constant 0 : index
    %c0_121 = arith.constant 0 : index
    %132 = vector.load %arg4[%c13, %c0_120, %c0_121] : memref<32x6x128xf32, #tpu.memory_space<vmem>>, vector<1x6x128xf32>
    %133 = vector.shape_cast %132 : vector<1x6x128xf32> to vector<6x128xf32>
    %134 = vector.shape_cast %131 : vector<6x128xf32> to vector<1x6x128xf32>
    tpu.vector_store %arg4[%c13, %c0_120, %c0_121], %134 {strides = array<i32>} : memref<32x6x128xf32, #tpu.memory_space<vmem>>, vector<1x6x128xf32>,
    %c7_122 = arith.constant 7 : index
    %c0_123 = arith.constant 0 : index
    %c0_124 = arith.constant 0 : index
    %135 = vector.load %arg1[%c7_122, %c0_123, %c0_124] : memref<16x4x128xbf16, #tpu.memory_space<vmem>>, vector<1x4x128xbf16>
    %136 = vector.shape_cast %135 : vector<1x4x128xbf16> to vector<4x128xbf16>
    %cst_125 = arith.constant dense<0.000000e+00> : vector<6x128xf32>
    %137 = tpu.matmul %6, %136, %cst_125 {dimension_numbers = #tpu.dot_dimension_numbers<[1], [0], [0], [1], [0, 0, 1, 1], [], []>} : vector<6x4xbf16>, vector<4x128xbf16>, vector<6x128xf32> -> vector<6x128xf32>
    %138 = arith.addf %137, %2 : vector<6x128xf32>
    %c14 = arith.constant 14 : index
    %c0_126 = arith.constant 0 : index
    %c0_127 = arith.constant 0 : index
    %139 = vector.load %arg4[%c14, %c0_126, %c0_127] : memref<32x6x128xf32, #tpu.memory_space<vmem>>, vector<1x6x128xf32>
    %140 = vector.shape_cast %139 : vector<1x6x128xf32> to vector<6x128xf32>
    %141 = vector.shape_cast %138 : vector<6x128xf32> to vector<1x6x128xf32>
    tpu.vector_store %arg4[%c14, %c0_126, %c0_127], %141 {strides = array<i32>} : memref<32x6x128xf32, #tpu.memory_space<vmem>>, vector<1x6x128xf32>,
    %c8_128 = arith.constant 8 : index
    %c0_129 = arith.constant 0 : index
    %c0_130 = arith.constant 0 : index
    %142 = vector.load %arg1[%c8_128, %c0_129, %c0_130] : memref<16x4x128xbf16, #tpu.memory_space<vmem>>, vector<1x4x128xbf16>
    %143 = vector.shape_cast %142 : vector<1x4x128xbf16> to vector<4x128xbf16>
    %cst_131 = arith.constant dense<0.000000e+00> : vector<6x128xf32>
    %144 = tpu.matmul %4, %143, %cst_131 {dimension_numbers = #tpu.dot_dimension_numbers<[1], [0], [0], [1], [0, 0, 1, 1], [], []>} : vector<6x4xbf16>, vector<4x128xbf16>, vector<6x128xf32> -> vector<6x128xf32>
    %c7_132 = arith.constant 7 : index
    %c0_133 = arith.constant 0 : index
    %c0_134 = arith.constant 0 : index
    %145 = vector.load %arg1[%c7_132, %c0_133, %c0_134] : memref<16x4x128xbf16, #tpu.memory_space<vmem>>, vector<1x4x128xbf16>
    %146 = vector.shape_cast %145 : vector<1x4x128xbf16> to vector<4x128xbf16>
    %cst_135 = arith.constant dense<0.000000e+00> : vector<6x128xf32>
    %147 = tpu.matmul %8, %146, %cst_135 {dimension_numbers = #tpu.dot_dimension_numbers<[1], [0], [0], [1], [0, 0, 1, 1], [], []>} : vector<6x4xbf16>, vector<4x128xbf16>, vector<6x128xf32> -> vector<6x128xf32>
    %148 = arith.addf %144, %147 : vector<6x128xf32>
    %149 = arith.addf %148, %2 : vector<6x128xf32>
    %c15 = arith.constant 15 : index
    %c0_136 = arith.constant 0 : index
    %c0_137 = arith.constant 0 : index
    %150 = vector.load %arg4[%c15, %c0_136, %c0_137] : memref<32x6x128xf32, #tpu.memory_space<vmem>>, vector<1x6x128xf32>
    %151 = vector.shape_cast %150 : vector<1x6x128xf32> to vector<6x128xf32>
    %152 = vector.shape_cast %149 : vector<6x128xf32> to vector<1x6x128xf32>
    tpu.vector_store %arg4[%c15, %c0_136, %c0_137], %152 {strides = array<i32>} : memref<32x6x128xf32, #tpu.memory_space<vmem>>, vector<1x6x128xf32>,
    %c8_138 = arith.constant 8 : index
    %c0_139 = arith.constant 0 : index
    %c0_140 = arith.constant 0 : index
    %153 = vector.load %arg1[%c8_138, %c0_139, %c0_140] : memref<16x4x128xbf16, #tpu.memory_space<vmem>>, vector<1x4x128xbf16>
    %154 = vector.shape_cast %153 : vector<1x4x128xbf16> to vector<4x128xbf16>
    %cst_141 = arith.constant dense<0.000000e+00> : vector<6x128xf32>
    %155 = tpu.matmul %6, %154, %cst_141 {dimension_numbers = #tpu.dot_dimension_numbers<[1], [0], [0], [1], [0, 0, 1, 1], [], []>} : vector<6x4xbf16>, vector<4x128xbf16>, vector<6x128xf32> -> vector<6x128xf32>
    %156 = arith.addf %155, %2 : vector<6x128xf32>
    %c16 = arith.constant 16 : index
    %c0_142 = arith.constant 0 : index
    %c0_143 = arith.constant 0 : index
    %157 = vector.load %arg4[%c16, %c0_142, %c0_143] : memref<32x6x128xf32, #tpu.memory_space<vmem>>, vector<1x6x128xf32>
    %158 = vector.shape_cast %157 : vector<1x6x128xf32> to vector<6x128xf32>
    %159 = vector.shape_cast %156 : vector<6x128xf32> to vector<1x6x128xf32>
    tpu.vector_store %arg4[%c16, %c0_142, %c0_143], %159 {strides = array<i32>} : memref<32x6x128xf32, #tpu.memory_space<vmem>>, vector<1x6x128xf32>,
    %c9_144 = arith.constant 9 : index
    %c0_145 = arith.constant 0 : index
    %c0_146 = arith.constant 0 : index
    %160 = vector.load %arg1[%c9_144, %c0_145, %c0_146] : memref<16x4x128xbf16, #tpu.memory_space<vmem>>, vector<1x4x128xbf16>
    %161 = vector.shape_cast %160 : vector<1x4x128xbf16> to vector<4x128xbf16>
    %cst_147 = arith.constant dense<0.000000e+00> : vector<6x128xf32>
    %162 = tpu.matmul %4, %161, %cst_147 {dimension_numbers = #tpu.dot_dimension_numbers<[1], [0], [0], [1], [0, 0, 1, 1], [], []>} : vector<6x4xbf16>, vector<4x128xbf16>, vector<6x128xf32> -> vector<6x128xf32>
    %c8_148 = arith.constant 8 : index
    %c0_149 = arith.constant 0 : index
    %c0_150 = arith.constant 0 : index
    %163 = vector.load %arg1[%c8_148, %c0_149, %c0_150] : memref<16x4x128xbf16, #tpu.memory_space<vmem>>, vector<1x4x128xbf16>
    %164 = vector.shape_cast %163 : vector<1x4x128xbf16> to vector<4x128xbf16>
    %cst_151 = arith.constant dense<0.000000e+00> : vector<6x128xf32>
    %165 = tpu.matmul %8, %164, %cst_151 {dimension_numbers = #tpu.dot_dimension_numbers<[1], [0], [0], [1], [0, 0, 1, 1], [], []>} : vector<6x4xbf16>, vector<4x128xbf16>, vector<6x128xf32> -> vector<6x128xf32>
    %166 = arith.addf %162, %165 : vector<6x128xf32>
    %167 = arith.addf %166, %2 : vector<6x128xf32>
    %c17 = arith.constant 17 : index
    %c0_152 = arith.constant 0 : index
    %c0_153 = arith.constant 0 : index
    %168 = vector.load %arg4[%c17, %c0_152, %c0_153] : memref<32x6x128xf32, #tpu.memory_space<vmem>>, vector<1x6x128xf32>
    %169 = vector.shape_cast %168 : vector<1x6x128xf32> to vector<6x128xf32>
    %170 = vector.shape_cast %167 : vector<6x128xf32> to vector<1x6x128xf32>
    tpu.vector_store %arg4[%c17, %c0_152, %c0_153], %170 {strides = array<i32>} : memref<32x6x128xf32, #tpu.memory_space<vmem>>, vector<1x6x128xf32>,
    %c9_154 = arith.constant 9 : index
    %c0_155 = arith.constant 0 : index
    %c0_156 = arith.constant 0 : index
    %171 = vector.load %arg1[%c9_154, %c0_155, %c0_156] : memref<16x4x128xbf16, #tpu.memory_space<vmem>>, vector<1x4x128xbf16>
    %172 = vector.shape_cast %171 : vector<1x4x128xbf16> to vector<4x128xbf16>
    %cst_157 = arith.constant dense<0.000000e+00> : vector<6x128xf32>
    %173 = tpu.matmul %6, %172, %cst_157 {dimension_numbers = #tpu.dot_dimension_numbers<[1], [0], [0], [1], [0, 0, 1, 1], [], []>} : vector<6x4xbf16>, vector<4x128xbf16>, vector<6x128xf32> -> vector<6x128xf32>
    %174 = arith.addf %173, %2 : vector<6x128xf32>
    %c18 = arith.constant 18 : index
    %c0_158 = arith.constant 0 : index
    %c0_159 = arith.constant 0 : index
    %175 = vector.load %arg4[%c18, %c0_158, %c0_159] : memref<32x6x128xf32, #tpu.memory_space<vmem>>, vector<1x6x128xf32>
    %176 = vector.shape_cast %175 : vector<1x6x128xf32> to vector<6x128xf32>
    %177 = vector.shape_cast %174 : vector<6x128xf32> to vector<1x6x128xf32>
    tpu.vector_store %arg4[%c18, %c0_158, %c0_159], %177 {strides = array<i32>} : memref<32x6x128xf32, #tpu.memory_space<vmem>>, vector<1x6x128xf32>,
    %c10_160 = arith.constant 10 : index
    %c0_161 = arith.constant 0 : index
    %c0_162 = arith.constant 0 : index
    %178 = vector.load %arg1[%c10_160, %c0_161, %c0_162] : memref<16x4x128xbf16, #tpu.memory_space<vmem>>, vector<1x4x128xbf16>
    %179 = vector.shape_cast %178 : vector<1x4x128xbf16> to vector<4x128xbf16>
    %cst_163 = arith.constant dense<0.000000e+00> : vector<6x128xf32>
    %180 = tpu.matmul %4, %179, %cst_163 {dimension_numbers = #tpu.dot_dimension_numbers<[1], [0], [0], [1], [0, 0, 1, 1], [], []>} : vector<6x4xbf16>, vector<4x128xbf16>, vector<6x128xf32> -> vector<6x128xf32>
    %c9_164 = arith.constant 9 : index
    %c0_165 = arith.constant 0 : index
    %c0_166 = arith.constant 0 : index
    %181 = vector.load %arg1[%c9_164, %c0_165, %c0_166] : memref<16x4x128xbf16, #tpu.memory_space<vmem>>, vector<1x4x128xbf16>
    %182 = vector.shape_cast %181 : vector<1x4x128xbf16> to vector<4x128xbf16>
    %cst_167 = arith.constant dense<0.000000e+00> : vector<6x128xf32>
    %183 = tpu.matmul %8, %182, %cst_167 {dimension_numbers = #tpu.dot_dimension_numbers<[1], [0], [0], [1], [0, 0, 1, 1], [], []>} : vector<6x4xbf16>, vector<4x128xbf16>, vector<6x128xf32> -> vector<6x128xf32>
    %184 = arith.addf %180, %183 : vector<6x128xf32>
    %185 = arith.addf %184, %2 : vector<6x128xf32>
    %c19 = arith.constant 19 : index
    %c0_168 = arith.constant 0 : index
    %c0_169 = arith.constant 0 : index
    %186 = vector.load %arg4[%c19, %c0_168, %c0_169] : memref<32x6x128xf32, #tpu.memory_space<vmem>>, vector<1x6x128xf32>
    %187 = vector.shape_cast %186 : vector<1x6x128xf32> to vector<6x128xf32>
    %188 = vector.shape_cast %185 : vector<6x128xf32> to vector<1x6x128xf32>
    tpu.vector_store %arg4[%c19, %c0_168, %c0_169], %188 {strides = array<i32>} : memref<32x6x128xf32, #tpu.memory_space<vmem>>, vector<1x6x128xf32>,
    %c10_170 = arith.constant 10 : index
    %c0_171 = arith.constant 0 : index
    %c0_172 = arith.constant 0 : index
    %189 = vector.load %arg1[%c10_170, %c0_171, %c0_172] : memref<16x4x128xbf16, #tpu.memory_space<vmem>>, vector<1x4x128xbf16>
    %190 = vector.shape_cast %189 : vector<1x4x128xbf16> to vector<4x128xbf16>
    %cst_173 = arith.constant dense<0.000000e+00> : vector<6x128xf32>
    %191 = tpu.matmul %6, %190, %cst_173 {dimension_numbers = #tpu.dot_dimension_numbers<[1], [0], [0], [1], [0, 0, 1, 1], [], []>} : vector<6x4xbf16>, vector<4x128xbf16>, vector<6x128xf32> -> vector<6x128xf32>
    %192 = arith.addf %191, %2 : vector<6x128xf32>
    %c20 = arith.constant 20 : index
    %c0_174 = arith.constant 0 : index
    %c0_175 = arith.constant 0 : index
    %193 = vector.load %arg4[%c20, %c0_174, %c0_175] : memref<32x6x128xf32, #tpu.memory_space<vmem>>, vector<1x6x128xf32>
    %194 = vector.shape_cast %193 : vector<1x6x128xf32> to vector<6x128xf32>
    %195 = vector.shape_cast %192 : vector<6x128xf32> to vector<1x6x128xf32>
    tpu.vector_store %arg4[%c20, %c0_174, %c0_175], %195 {strides = array<i32>} : memref<32x6x128xf32, #tpu.memory_space<vmem>>, vector<1x6x128xf32>,
    %c11_176 = arith.constant 11 : index
    %c0_177 = arith.constant 0 : index
    %c0_178 = arith.constant 0 : index
    %196 = vector.load %arg1[%c11_176, %c0_177, %c0_178] : memref<16x4x128xbf16, #tpu.memory_space<vmem>>, vector<1x4x128xbf16>
    %197 = vector.shape_cast %196 : vector<1x4x128xbf16> to vector<4x128xbf16>
    %cst_179 = arith.constant dense<0.000000e+00> : vector<6x128xf32>
    %198 = tpu.matmul %4, %197, %cst_179 {dimension_numbers = #tpu.dot_dimension_numbers<[1], [0], [0], [1], [0, 0, 1, 1], [], []>} : vector<6x4xbf16>, vector<4x128xbf16>, vector<6x128xf32> -> vector<6x128xf32>
    %c10_180 = arith.constant 10 : index
    %c0_181 = arith.constant 0 : index
    %c0_182 = arith.constant 0 : index
    %199 = vector.load %arg1[%c10_180, %c0_181, %c0_182] : memref<16x4x128xbf16, #tpu.memory_space<vmem>>, vector<1x4x128xbf16>
    %200 = vector.shape_cast %199 : vector<1x4x128xbf16> to vector<4x128xbf16>
    %cst_183 = arith.constant dense<0.000000e+00> : vector<6x128xf32>
    %201 = tpu.matmul %8, %200, %cst_183 {dimension_numbers = #tpu.dot_dimension_numbers<[1], [0], [0], [1], [0, 0, 1, 1], [], []>} : vector<6x4xbf16>, vector<4x128xbf16>, vector<6x128xf32> -> vector<6x128xf32>
    %202 = arith.addf %198, %201 : vector<6x128xf32>
    %203 = arith.addf %202, %2 : vector<6x128xf32>
    %c21 = arith.constant 21 : index
    %c0_184 = arith.constant 0 : index
    %c0_185 = arith.constant 0 : index
    %204 = vector.load %arg4[%c21, %c0_184, %c0_185] : memref<32x6x128xf32, #tpu.memory_space<vmem>>, vector<1x6x128xf32>
    %205 = vector.shape_cast %204 : vector<1x6x128xf32> to vector<6x128xf32>
    %206 = vector.shape_cast %203 : vector<6x128xf32> to vector<1x6x128xf32>
    tpu.vector_store %arg4[%c21, %c0_184, %c0_185], %206 {strides = array<i32>} : memref<32x6x128xf32, #tpu.memory_space<vmem>>, vector<1x6x128xf32>,
    %c11_186 = arith.constant 11 : index
    %c0_187 = arith.constant 0 : index
    %c0_188 = arith.constant 0 : index
    %207 = vector.load %arg1[%c11_186, %c0_187, %c0_188] : memref<16x4x128xbf16, #tpu.memory_space<vmem>>, vector<1x4x128xbf16>
    %208 = vector.shape_cast %207 : vector<1x4x128xbf16> to vector<4x128xbf16>
    %cst_189 = arith.constant dense<0.000000e+00> : vector<6x128xf32>
    %209 = tpu.matmul %6, %208, %cst_189 {dimension_numbers = #tpu.dot_dimension_numbers<[1], [0], [0], [1], [0, 0, 1, 1], [], []>} : vector<6x4xbf16>, vector<4x128xbf16>, vector<6x128xf32> -> vector<6x128xf32>
    %210 = arith.addf %209, %2 : vector<6x128xf32>
    %c22 = arith.constant 22 : index
    %c0_190 = arith.constant 0 : index
    %c0_191 = arith.constant 0 : index
    %211 = vector.load %arg4[%c22, %c0_190, %c0_191] : memref<32x6x128xf32, #tpu.memory_space<vmem>>, vector<1x6x128xf32>
    %212 = vector.shape_cast %211 : vector<1x6x128xf32> to vector<6x128xf32>
    %213 = vector.shape_cast %210 : vector<6x128xf32> to vector<1x6x128xf32>
    tpu.vector_store %arg4[%c22, %c0_190, %c0_191], %213 {strides = array<i32>} : memref<32x6x128xf32, #tpu.memory_space<vmem>>, vector<1x6x128xf32>,
    %c12_192 = arith.constant 12 : index
    %c0_193 = arith.constant 0 : index
    %c0_194 = arith.constant 0 : index
    %214 = vector.load %arg1[%c12_192, %c0_193, %c0_194] : memref<16x4x128xbf16, #tpu.memory_space<vmem>>, vector<1x4x128xbf16>
    %215 = vector.shape_cast %214 : vector<1x4x128xbf16> to vector<4x128xbf16>
    %cst_195 = arith.constant dense<0.000000e+00> : vector<6x128xf32>
    %216 = tpu.matmul %4, %215, %cst_195 {dimension_numbers = #tpu.dot_dimension_numbers<[1], [0], [0], [1], [0, 0, 1, 1], [], []>} : vector<6x4xbf16>, vector<4x128xbf16>, vector<6x128xf32> -> vector<6x128xf32>
    %c11_196 = arith.constant 11 : index
    %c0_197 = arith.constant 0 : index
    %c0_198 = arith.constant 0 : index
    %217 = vector.load %arg1[%c11_196, %c0_197, %c0_198] : memref<16x4x128xbf16, #tpu.memory_space<vmem>>, vector<1x4x128xbf16>
    %218 = vector.shape_cast %217 : vector<1x4x128xbf16> to vector<4x128xbf16>
    %cst_199 = arith.constant dense<0.000000e+00> : vector<6x128xf32>
    %219 = tpu.matmul %8, %218, %cst_199 {dimension_numbers = #tpu.dot_dimension_numbers<[1], [0], [0], [1], [0, 0, 1, 1], [], []>} : vector<6x4xbf16>, vector<4x128xbf16>, vector<6x128xf32> -> vector<6x128xf32>
    %220 = arith.addf %216, %219 : vector<6x128xf32>
    %221 = arith.addf %220, %2 : vector<6x128xf32>
    %c23 = arith.constant 23 : index
    %c0_200 = arith.constant 0 : index
    %c0_201 = arith.constant 0 : index
    %222 = vector.load %arg4[%c23, %c0_200, %c0_201] : memref<32x6x128xf32, #tpu.memory_space<vmem>>, vector<1x6x128xf32>
    %223 = vector.shape_cast %222 : vector<1x6x128xf32> to vector<6x128xf32>
    %224 = vector.shape_cast %221 : vector<6x128xf32> to vector<1x6x128xf32>
    tpu.vector_store %arg4[%c23, %c0_200, %c0_201], %224 {strides = array<i32>} : memref<32x6x128xf32, #tpu.memory_space<vmem>>, vector<1x6x128xf32>,
    %c12_202 = arith.constant 12 : index
    %c0_203 = arith.constant 0 : index
    %c0_204 = arith.constant 0 : index
    %225 = vector.load %arg1[%c12_202, %c0_203, %c0_204] : memref<16x4x128xbf16, #tpu.memory_space<vmem>>, vector<1x4x128xbf16>
    %226 = vector.shape_cast %225 : vector<1x4x128xbf16> to vector<4x128xbf16>
    %cst_205 = arith.constant dense<0.000000e+00> : vector<6x128xf32>
    %227 = tpu.matmul %6, %226, %cst_205 {dimension_numbers = #tpu.dot_dimension_numbers<[1], [0], [0], [1], [0, 0, 1, 1], [], []>} : vector<6x4xbf16>, vector<4x128xbf16>, vector<6x128xf32> -> vector<6x128xf32>
    %228 = arith.addf %227, %2 : vector<6x128xf32>
    %c24 = arith.constant 24 : index
    %c0_206 = arith.constant 0 : index
    %c0_207 = arith.constant 0 : index
    %229 = vector.load %arg4[%c24, %c0_206, %c0_207] : memref<32x6x128xf32, #tpu.memory_space<vmem>>, vector<1x6x128xf32>
    %230 = vector.shape_cast %229 : vector<1x6x128xf32> to vector<6x128xf32>
    %231 = vector.shape_cast %228 : vector<6x128xf32> to vector<1x6x128xf32>
    tpu.vector_store %arg4[%c24, %c0_206, %c0_207], %231 {strides = array<i32>} : memref<32x6x128xf32, #tpu.memory_space<vmem>>, vector<1x6x128xf32>,
    %c13_208 = arith.constant 13 : index
    %c0_209 = arith.constant 0 : index
    %c0_210 = arith.constant 0 : index
    %232 = vector.load %arg1[%c13_208, %c0_209, %c0_210] : memref<16x4x128xbf16, #tpu.memory_space<vmem>>, vector<1x4x128xbf16>
    %233 = vector.shape_cast %232 : vector<1x4x128xbf16> to vector<4x128xbf16>
    %cst_211 = arith.constant dense<0.000000e+00> : vector<6x128xf32>
    %234 = tpu.matmul %4, %233, %cst_211 {dimension_numbers = #tpu.dot_dimension_numbers<[1], [0], [0], [1], [0, 0, 1, 1], [], []>} : vector<6x4xbf16>, vector<4x128xbf16>, vector<6x128xf32> -> vector<6x128xf32>
    %c12_212 = arith.constant 12 : index
    %c0_213 = arith.constant 0 : index
    %c0_214 = arith.constant 0 : index
    %235 = vector.load %arg1[%c12_212, %c0_213, %c0_214] : memref<16x4x128xbf16, #tpu.memory_space<vmem>>, vector<1x4x128xbf16>
    %236 = vector.shape_cast %235 : vector<1x4x128xbf16> to vector<4x128xbf16>
    %cst_215 = arith.constant dense<0.000000e+00> : vector<6x128xf32>
    %237 = tpu.matmul %8, %236, %cst_215 {dimension_numbers = #tpu.dot_dimension_numbers<[1], [0], [0], [1], [0, 0, 1, 1], [], []>} : vector<6x4xbf16>, vector<4x128xbf16>, vector<6x128xf32> -> vector<6x128xf32>
    %238 = arith.addf %234, %237 : vector<6x128xf32>
    %239 = arith.addf %238, %2 : vector<6x128xf32>
    %c25 = arith.constant 25 : index
    %c0_216 = arith.constant 0 : index
    %c0_217 = arith.constant 0 : index
    %240 = vector.load %arg4[%c25, %c0_216, %c0_217] : memref<32x6x128xf32, #tpu.memory_space<vmem>>, vector<1x6x128xf32>
    %241 = vector.shape_cast %240 : vector<1x6x128xf32> to vector<6x128xf32>
    %242 = vector.shape_cast %239 : vector<6x128xf32> to vector<1x6x128xf32>
    tpu.vector_store %arg4[%c25, %c0_216, %c0_217], %242 {strides = array<i32>} : memref<32x6x128xf32, #tpu.memory_space<vmem>>, vector<1x6x128xf32>,
    %c13_218 = arith.constant 13 : index
    %c0_219 = arith.constant 0 : index
    %c0_220 = arith.constant 0 : index
    %243 = vector.load %arg1[%c13_218, %c0_219, %c0_220] : memref<16x4x128xbf16, #tpu.memory_space<vmem>>, vector<1x4x128xbf16>
    %244 = vector.shape_cast %243 : vector<1x4x128xbf16> to vector<4x128xbf16>
    %cst_221 = arith.constant dense<0.000000e+00> : vector<6x128xf32>
    %245 = tpu.matmul %6, %244, %cst_221 {dimension_numbers = #tpu.dot_dimension_numbers<[1], [0], [0], [1], [0, 0, 1, 1], [], []>} : vector<6x4xbf16>, vector<4x128xbf16>, vector<6x128xf32> -> vector<6x128xf32>
    %246 = arith.addf %245, %2 : vector<6x128xf32>
    %c26 = arith.constant 26 : index
    %c0_222 = arith.constant 0 : index
    %c0_223 = arith.constant 0 : index
    %247 = vector.load %arg4[%c26, %c0_222, %c0_223] : memref<32x6x128xf32, #tpu.memory_space<vmem>>, vector<1x6x128xf32>
    %248 = vector.shape_cast %247 : vector<1x6x128xf32> to vector<6x128xf32>
    %249 = vector.shape_cast %246 : vector<6x128xf32> to vector<1x6x128xf32>
    tpu.vector_store %arg4[%c26, %c0_222, %c0_223], %249 {strides = array<i32>} : memref<32x6x128xf32, #tpu.memory_space<vmem>>, vector<1x6x128xf32>,
    %c14_224 = arith.constant 14 : index
    %c0_225 = arith.constant 0 : index
    %c0_226 = arith.constant 0 : index
    %250 = vector.load %arg1[%c14_224, %c0_225, %c0_226] : memref<16x4x128xbf16, #tpu.memory_space<vmem>>, vector<1x4x128xbf16>
    %251 = vector.shape_cast %250 : vector<1x4x128xbf16> to vector<4x128xbf16>
    %cst_227 = arith.constant dense<0.000000e+00> : vector<6x128xf32>
    %252 = tpu.matmul %4, %251, %cst_227 {dimension_numbers = #tpu.dot_dimension_numbers<[1], [0], [0], [1], [0, 0, 1, 1], [], []>} : vector<6x4xbf16>, vector<4x128xbf16>, vector<6x128xf32> -> vector<6x128xf32>
    %c13_228 = arith.constant 13 : index
    %c0_229 = arith.constant 0 : index
    %c0_230 = arith.constant 0 : index
    %253 = vector.load %arg1[%c13_228, %c0_229, %c0_230] : memref<16x4x128xbf16, #tpu.memory_space<vmem>>, vector<1x4x128xbf16>
    %254 = vector.shape_cast %253 : vector<1x4x128xbf16> to vector<4x128xbf16>
    %cst_231 = arith.constant dense<0.000000e+00> : vector<6x128xf32>
    %255 = tpu.matmul %8, %254, %cst_231 {dimension_numbers = #tpu.dot_dimension_numbers<[1], [0], [0], [1], [0, 0, 1, 1], [], []>} : vector<6x4xbf16>, vector<4x128xbf16>, vector<6x128xf32> -> vector<6x128xf32>
    %256 = arith.addf %252, %255 : vector<6x128xf32>
    %257 = arith.addf %256, %2 : vector<6x128xf32>
    %c27 = arith.constant 27 : index
    %c0_232 = arith.constant 0 : index
    %c0_233 = arith.constant 0 : index
    %258 = vector.load %arg4[%c27, %c0_232, %c0_233] : memref<32x6x128xf32, #tpu.memory_space<vmem>>, vector<1x6x128xf32>
    %259 = vector.shape_cast %258 : vector<1x6x128xf32> to vector<6x128xf32>
    %260 = vector.shape_cast %257 : vector<6x128xf32> to vector<1x6x128xf32>
    tpu.vector_store %arg4[%c27, %c0_232, %c0_233], %260 {strides = array<i32>} : memref<32x6x128xf32, #tpu.memory_space<vmem>>, vector<1x6x128xf32>,
    %c14_234 = arith.constant 14 : index
    %c0_235 = arith.constant 0 : index
    %c0_236 = arith.constant 0 : index
    %261 = vector.load %arg1[%c14_234, %c0_235, %c0_236] : memref<16x4x128xbf16, #tpu.memory_space<vmem>>, vector<1x4x128xbf16>
    %262 = vector.shape_cast %261 : vector<1x4x128xbf16> to vector<4x128xbf16>
    %cst_237 = arith.constant dense<0.000000e+00> : vector<6x128xf32>
    %263 = tpu.matmul %6, %262, %cst_237 {dimension_numbers = #tpu.dot_dimension_numbers<[1], [0], [0], [1], [0, 0, 1, 1], [], []>} : vector<6x4xbf16>, vector<4x128xbf16>, vector<6x128xf32> -> vector<6x128xf32>
    %264 = arith.addf %263, %2 : vector<6x128xf32>
    %c28 = arith.constant 28 : index
    %c0_238 = arith.constant 0 : index
    %c0_239 = arith.constant 0 : index
    %265 = vector.load %arg4[%c28, %c0_238, %c0_239] : memref<32x6x128xf32, #tpu.memory_space<vmem>>, vector<1x6x128xf32>
    %266 = vector.shape_cast %265 : vector<1x6x128xf32> to vector<6x128xf32>
    %267 = vector.shape_cast %264 : vector<6x128xf32> to vector<1x6x128xf32>
    tpu.vector_store %arg4[%c28, %c0_238, %c0_239], %267 {strides = array<i32>} : memref<32x6x128xf32, #tpu.memory_space<vmem>>, vector<1x6x128xf32>,
    %c15_240 = arith.constant 15 : index
    %c0_241 = arith.constant 0 : index
    %c0_242 = arith.constant 0 : index
    %268 = vector.load %arg1[%c15_240, %c0_241, %c0_242] : memref<16x4x128xbf16, #tpu.memory_space<vmem>>, vector<1x4x128xbf16>
    %269 = vector.shape_cast %268 : vector<1x4x128xbf16> to vector<4x128xbf16>
    %cst_243 = arith.constant dense<0.000000e+00> : vector<6x128xf32>
    %270 = tpu.matmul %4, %269, %cst_243 {dimension_numbers = #tpu.dot_dimension_numbers<[1], [0], [0], [1], [0, 0, 1, 1], [], []>} : vector<6x4xbf16>, vector<4x128xbf16>, vector<6x128xf32> -> vector<6x128xf32>
    %c14_244 = arith.constant 14 : index
    %c0_245 = arith.constant 0 : index
    %c0_246 = arith.constant 0 : index
    %271 = vector.load %arg1[%c14_244, %c0_245, %c0_246] : memref<16x4x128xbf16, #tpu.memory_space<vmem>>, vector<1x4x128xbf16>
    %272 = vector.shape_cast %271 : vector<1x4x128xbf16> to vector<4x128xbf16>
    %cst_247 = arith.constant dense<0.000000e+00> : vector<6x128xf32>
    %273 = tpu.matmul %8, %272, %cst_247 {dimension_numbers = #tpu.dot_dimension_numbers<[1], [0], [0], [1], [0, 0, 1, 1], [], []>} : vector<6x4xbf16>, vector<4x128xbf16>, vector<6x128xf32> -> vector<6x128xf32>
    %274 = arith.addf %270, %273 : vector<6x128xf32>
    %275 = arith.addf %274, %2 : vector<6x128xf32>
    %c29 = arith.constant 29 : index
    %c0_248 = arith.constant 0 : index
    %c0_249 = arith.constant 0 : index
    %276 = vector.load %arg4[%c29, %c0_248, %c0_249] : memref<32x6x128xf32, #tpu.memory_space<vmem>>, vector<1x6x128xf32>
    %277 = vector.shape_cast %276 : vector<1x6x128xf32> to vector<6x128xf32>
    %278 = vector.shape_cast %275 : vector<6x128xf32> to vector<1x6x128xf32>
    tpu.vector_store %arg4[%c29, %c0_248, %c0_249], %278 {strides = array<i32>} : memref<32x6x128xf32, #tpu.memory_space<vmem>>, vector<1x6x128xf32>,
    %c15_250 = arith.constant 15 : index
    %c0_251 = arith.constant 0 : index
    %c0_252 = arith.constant 0 : index
    %279 = vector.load %arg1[%c15_250, %c0_251, %c0_252] : memref<16x4x128xbf16, #tpu.memory_space<vmem>>, vector<1x4x128xbf16>
    %280 = vector.shape_cast %279 : vector<1x4x128xbf16> to vector<4x128xbf16>
    %cst_253 = arith.constant dense<0.000000e+00> : vector<6x128xf32>
    %281 = tpu.matmul %6, %280, %cst_253 {dimension_numbers = #tpu.dot_dimension_numbers<[1], [0], [0], [1], [0, 0, 1, 1], [], []>} : vector<6x4xbf16>, vector<4x128xbf16>, vector<6x128xf32> -> vector<6x128xf32>
    %282 = arith.addf %281, %2 : vector<6x128xf32>
    %c30 = arith.constant 30 : index
    %c0_254 = arith.constant 0 : index
    %c0_255 = arith.constant 0 : index
    %283 = vector.load %arg4[%c30, %c0_254, %c0_255] : memref<32x6x128xf32, #tpu.memory_space<vmem>>, vector<1x6x128xf32>
    %284 = vector.shape_cast %283 : vector<1x6x128xf32> to vector<6x128xf32>
    %285 = vector.shape_cast %282 : vector<6x128xf32> to vector<1x6x128xf32>
    tpu.vector_store %arg4[%c30, %c0_254, %c0_255], %285 {strides = array<i32>} : memref<32x6x128xf32, #tpu.memory_space<vmem>>, vector<1x6x128xf32>,
    %c15_256 = arith.constant 15 : index
    %c0_257 = arith.constant 0 : index
    %c0_258 = arith.constant 0 : index
    %286 = vector.load %arg1[%c15_256, %c0_257, %c0_258] : memref<16x4x128xbf16, #tpu.memory_space<vmem>>, vector<1x4x128xbf16>
    %287 = vector.shape_cast %286 : vector<1x4x128xbf16> to vector<4x128xbf16>
    %cst_259 = arith.constant dense<0.000000e+00> : vector<6x128xf32>
    %288 = tpu.matmul %8, %287, %cst_259 {dimension_numbers = #tpu.dot_dimension_numbers<[1], [0], [0], [1], [0, 0, 1, 1], [], []>} : vector<6x4xbf16>, vector<4x128xbf16>, vector<6x128xf32> -> vector<6x128xf32>
    %289 = arith.addf %288, %2 : vector<6x128xf32>
    %c31 = arith.constant 31 : index
    %c0_260 = arith.constant 0 : index
    %c0_261 = arith.constant 0 : index
    %290 = vector.load %arg4[%c31, %c0_260, %c0_261] : memref<32x6x128xf32, #tpu.memory_space<vmem>>, vector<1x6x128xf32>
    %291 = vector.shape_cast %290 : vector<1x6x128xf32> to vector<6x128xf32>
    %292 = vector.shape_cast %289 : vector<6x128xf32> to vector<1x6x128xf32>
    tpu.vector_store %arg4[%c31, %c0_260, %c0_261], %292 {strides = array<i32>} : memref<32x6x128xf32, #tpu.memory_space<vmem>>, vector<1x6x128xf32>,
    return
  }
  func.func @transform_0(%arg0: i32) -> (i32, i32, i32) {
    %c0_i32 = arith.constant 0 : i32
    %c0_i32_0 = arith.constant 0 : i32
    %c0_i32_1 = arith.constant 0 : i32
    return %c0_i32, %c0_i32_0, %arg0 : i32, i32, i32
  }
  func.func @transform_1(%arg0: i32) -> (i32, i32, i32) {
    %c0_i32 = arith.constant 0 : i32
    %c0_i32_0 = arith.constant 0 : i32
    %c0_i32_1 = arith.constant 0 : i32
    %c0_i32_2 = arith.constant 0 : i32
    return %c0_i32, %c0_i32_0, %c0_i32_1 : i32, i32, i32
  }
  func.func @transform_2(%arg0: i32) -> (i32, i32) {
    %c0_i32 = arith.constant 0 : i32
    %c0_i32_0 = arith.constant 0 : i32
    %c0_i32_1 = arith.constant 0 : i32
    return %c0_i32, %c0_i32_0 : i32, i32
  }
  func.func @transform_3(%arg0: i32) -> (i32, i32, i32) {
    %c0_i32 = arith.constant 0 : i32
    %c0_i32_0 = arith.constant 0 : i32
    %c0_i32_1 = arith.constant 0 : i32
    return %c0_i32, %c0_i32_0, %arg0 : i32, i32, i32
  }
}

</mosaic_0001>

<llo_original>
// kernel: a_call__.2
$region0: #{a_call__.2}
  #allocation0 [shape = 'u32[]', space=smem, size = 0x4, offset = 0x4, fixed_abs, tag = 'smem constant byte address 0x4 - core index']
  #allocation1 [shape = 'u32[144,128]{1,0:T(1,128)}', space=vmem, size = 0x12000, scoped, tag = 'internal scratch']
  %s0 = inlined_call_operand.vmem [shape: f32[16,4,128], index: 0, kind: input, shape index: {}]
  %s1 = inlined_call_operand.vmem [shape: f32[3,4,4], index: 1, kind: input, shape index: {}]
  %s2 = inlined_call_operand.vmem [shape: bf16[31,4,128], index: 2, kind: output, shape index: {}]
  %s3 = sld [smem:[#allocation0]]
  $region18: #{a_call__.2} parent=0
    _
  %s5 = ssub.s32 1, %s3
  %s6 = scalar_select 0, %s5, %s3
  // Predicated region
  $region2: #{a_call__.2} parent=0 // pred_check
    _
  $region3: #{a_call__.2} parent=0 // pred_check_branch
    %8 = sbr.rel (0) target = $region5
  $region4: #{a_call__.2} parent=0 // pred_region
    _
  $region5: #{a_call__.2} parent=0 // pred_fallthru
    _
  // Predicated region
  $region6: #{a_call__.2} parent=0 // pred_check
    _
  $region7: #{a_call__.2} parent=0 // pred_check_branch
    %10 = sbr.rel (0) target = $region9
  $region8: #{a_call__.2} parent=0 // pred_region
    _
  $region9: #{a_call__.2} parent=0 // pred_fallthru
    _
  %v11 = vld [vmem:[%s1] sm:$0xf]
  %s12 = scalar_lea.vmem %s1, 4
  %v13 = vld [vmem:[%s12] sm:$0xf]
  %s14 = scalar_lea.vmem %s1, 8
  %v15 = vld [vmem:[%s14] sm:$0xf]
  %v16 = vld [vmem:[%s0] sm:$0xf]
  %vm17 = vcmask 31744
  %v19 = vsel %vm17, %v13, 0
  %vm21 = vcmask 1043456
  %v23 = vsel %vm21, %v16, 0
  %25 = vmatprep.subr.mxu0 0.0
  %26 = vmatpush1.msra.mxu0 0.0
  %27 = vmatprep.subr.mxu0 0.0
  %28 = vmatpush1.msra.mxu0 0.0
  %29 = vmatprep.subr.mxu0 0.0
  %30 = vmatpush1.msra.mxu0 0.0
  %31 = vmatprep.subr.mxu0 0.0
  %32 = vmatpush1.msra.mxu0 0.0
  %33 = vmatprep.subr.mxu0 0.0
  %34 = vmatpush1.msra.mxu0 0.0
  %35 = vmatprep.subr.mxu0 0.0
  %36 = vmatpush1.msra.mxu0 0.0
  %37 = vmatprep.subr.mxu0 0.0
  %38 = vmatpush1.msra.mxu0 0.0
  %39 = vmatprep.subr.mxu0 0.0
  %40 = vmatpush1.msra.mxu0 0.0
  %41 = vmatprep.subr.mxu0 0.0
  %42 = vmatpush1.msra.mxu0 0.0
  %43 = vmatprep.subr.mxu0 0.0
  %44 = vmatpush1.msra.mxu0 0.0
  %45 = vmatprep.subr.mxu0 0.0
  %46 = vmatpush1.msra.mxu0 0.0
  %47 = vmatprep.subr.mxu0 0.0
  %48 = vmatpush1.msra.mxu0 0.0
  %49 = vmatprep.subr.mxu0 0.0
  %50 = vmatpush1.msra.mxu0 0.0
  %51 = vmatprep.subr.mxu0 0.0
  %52 = vmatpush1.msra.mxu0 0.0
  %53 = vmatprep.subr.mxu0 0.0
  %54 = vmatpush1.msra.mxu0 0.0
  %55 = vmatprep.subr.mxu0 0.0
  %56 = vmatpush1.msra.mxu0 %v23
  %57 = vmatprep.subr.mxu0 0.0
  %58 = vmatpush2.msra.mxu0 0.0
  %59 = vmatprep.subr.mxu0 0.0
  %60 = vmatpush2.msra.mxu0 0.0
  %61 = vmatprep.subr.mxu0 0.0
  %62 = vmatpush2.msra.mxu0 0.0
  %63 = vmatprep.subr.mxu0 0.0
  %64 = vmatpush2.msra.mxu0 0.0
  %65 = vmatprep.subr.mxu0 0.0
  %66 = vmatpush2.msra.mxu0 0.0
  %67 = vmatprep.subr.mxu0 0.0
  %68 = vmatpush2.msra.mxu0 0.0
  %69 = vmatprep.subr.mxu0 0.0
  %70 = vmatpush2.msra.mxu0 0.0
  %71 = vmatprep.subr.mxu0 0.0
  %72 = vmatpush2.msra.mxu0 0.0
  %73 = vmatprep.subr.mxu0 0.0
  %74 = vmatpush2.msra.mxu0 0.0
  %75 = vmatprep.subr.mxu0 0.0
  %76 = vmatpush2.msra.mxu0 0.0
  %77 = vmatprep.subr.mxu0 0.0
  %78 = vmatpush2.msra.mxu0 0.0
  %79 = vmatprep.subr.mxu0 0.0
  %80 = vmatpush2.msra.mxu0 0.0
  %81 = vmatprep.subr.mxu0 0.0
  %82 = vmatpush2.msra.mxu0 0.0
  %83 = vmatprep.subr.mxu0 0.0
  %84 = vmatpush2.msra.mxu0 0.0
  %85 = vmatprep.subr.mxu0 0.0
  %86 = vmatpush2.msra.mxu0 0.0
  %87 = vmatprep.subr.mxu0 0.0
  %88 = vmatpush2.msra.mxu0 0.0
  %89 = vmatprep.mubr.f32.mxu0 0.0
  %90 = vmatmul.mubr.f32.gmra.mxu0 %v19
  %v91 = vpop.f32.mrf.mxu0
  %v92 = vadd.f32 0.0, %v91
  %v93 = vpop.f32.mrf.mxu0
  %94 = vdwg.mxu0
  %v95 = vpack.c.bf16 %v92, %v92
  %96 = vst [vmem:[%s2] sm:$0x3] %v95
  %s97 = scalar_lea.vmem %s0, 4
  %v98 = vld [vmem:[%s97] sm:$0xf]
  %v99 = vld [vmem:[%s0] sm:$0xf]
  %v101 = vsel %vm17, %v15, 0
  %v104 = vsel %vm21, %v99, 0
  %106 = vmatprep.subr.mxu0 0.0
  %107 = vmatpush1.msra.mxu0 0.0
  %108 = vmatprep.subr.mxu0 0.0
  %109 = vmatpush1.msra.mxu0 0.0
  %110 = vmatprep.subr.mxu0 0.0
  %111 = vmatpush1.msra.mxu0 0.0
  %112 = vmatprep.subr.mxu0 0.0
  %113 = vmatpush1.msra.mxu0 0.0
  %114 = vmatprep.subr.mxu0 0.0
  %115 = vmatpush1.msra.mxu0 0.0
  %116 = vmatprep.subr.mxu0 0.0
  %117 = vmatpush1.msra.mxu0 0.0
  %118 = vmatprep.subr.mxu0 0.0
  %119 = vmatpush1.msra.mxu0 0.0
  %120 = vmatprep.subr.mxu0 0.0
  %121 = vmatpush1.msra.mxu0 0.0
  %122 = vmatprep.subr.mxu0 0.0
  %123 = vmatpush1.msra.mxu0 0.0
  %124 = vmatprep.subr.mxu0 0.0
  %125 = vmatpush1.msra.mxu0 0.0
  %126 = vmatprep.subr.mxu0 0.0
  %127 = vmatpush1.msra.mxu0 0.0
  %128 = vmatprep.subr.mxu0 0.0
  %129 = vmatpush1.msra.mxu0 0.0
  %130 = vmatprep.subr.mxu0 0.0
  %131 = vmatpush1.msra.mxu0 0.0
  %132 = vmatprep.subr.mxu0 0.0
  %133 = vmatpush1.msra.mxu0 0.0
  %134 = vmatprep.subr.mxu0 0.0
  %135 = vmatpush1.msra.mxu0 0.0
  %136 = vmatprep.subr.mxu0 0.0
  %137 = vmatpush1.msra.mxu0 %v104
  %138 = vmatprep.subr.mxu0 0.0
  %139 = vmatpush2.msra.mxu0 0.0
  %140 = vmatprep.subr.mxu0 0.0
  %141 = vmatpush2.msra.mxu0 0.0
  %142 = vmatprep.subr.mxu0 0.0
  %143 = vmatpush2.msra.mxu0 0.0
  %144 = vmatprep.subr.mxu0 0.0
  %145 = vmatpush2.msra.mxu0 0.0
  %146 = vmatprep.subr.mxu0 0.0
  %147 = vmatpush2.msra.mxu0 0.0
  %148 = vmatprep.subr.mxu0 0.0
  %149 = vmatpush2.msra.mxu0 0.0
  %150 = vmatprep.subr.mxu0 0.0
  %151 = vmatpush2.msra.mxu0 0.0
  %152 = vmatprep.subr.mxu0 0.0
  %153 = vmatpush2.msra.mxu0 0.0
  %154 = vmatprep.subr.mxu0 0.0
  %155 = vmatpush2.msra.mxu0 0.0
  %156 = vmatprep.subr.mxu0 0.0
  %157 = vmatpush2.msra.mxu0 0.0
  %158 = vmatprep.subr.mxu0 0.0
  %159 = vmatpush2.msra.mxu0 0.0
  %160 = vmatprep.subr.mxu0 0.0
  %161 = vmatpush2.msra.mxu0 0.0
  %162 = vmatprep.subr.mxu0 0.0
  %163 = vmatpush2.msra.mxu0 0.0
  %164 = vmatprep.subr.mxu0 0.0
  %165 = vmatpush2.msra.mxu0 0.0
  %166 = vmatprep.subr.mxu0 0.0
  %167 = vmatpush2.msra.mxu0 0.0
  %168 = vmatprep.subr.mxu0 0.0
  %169 = vmatpush2.msra.mxu0 0.0
  %170 = vmatprep.mubr.f32.mxu0 0.0
  %171 = vmatmul.mubr.f32.gmra.mxu0 %v101
  %v172 = vpop.f32.mrf.mxu0
  %v173 = vadd.f32 0.0, %v172
  %v174 = vpop.f32.mrf.mxu0
  %175 = vdwg.mxu0
  %v177 = vsel %vm17, %v11, 0
  %v180 = vsel %vm21, %v98, 0
  %182 = vmatprep.subr.mxu0 0.0
  %183 = vmatpush1.msra.mxu0 0.0
  %184 = vmatprep.subr.mxu0 0.0
  %185 = vmatpush1.msra.mxu0 0.0
  %186 = vmatprep.subr.mxu0 0.0
  %187 = vmatpush1.msra.mxu0 0.0
  %188 = vmatprep.subr.mxu0 0.0
  %189 = vmatpush1.msra.mxu0 0.0
  %190 = vmatprep.subr.mxu0 0.0
  %191 = vmatpush1.msra.mxu0 0.0
  %192 = vmatprep.subr.mxu0 0.0
  %193 = vmatpush1.msra.mxu0 0.0
  %194 = vmatprep.subr.mxu0 0.0
  %195 = vmatpush1.msra.mxu0 0.0
  %196 = vmatprep.subr.mxu0 0.0
  %197 = vmatpush1.msra.mxu0 0.0
  %198 = vmatprep.subr.mxu0 0.0
  %199 = vmatpush1.msra.mxu0 0.0
  %200 = vmatprep.subr.mxu0 0.0
  %201 = vmatpush1.msra.mxu0 0.0
  %202 = vmatprep.subr.mxu0 0.0
  %203 = vmatpush1.msra.mxu0 0.0
  %204 = vmatprep.subr.mxu0 0.0
  %205 = vmatpush1.msra.mxu0 0.0
  %206 = vmatprep.subr.mxu0 0.0
  %207 = vmatpush1.msra.mxu0 0.0
  %208 = vmatprep.subr.mxu0 0.0
  %209 = vmatpush1.msra.mxu0 0.0
  %210 = vmatprep.subr.mxu0 0.0
  %211 = vmatpush1.msra.mxu0 0.0
  %212 = vmatprep.subr.mxu0 0.0
  %213 = vmatpush1.msra.mxu0 %v180
  %214 = vmatprep.subr.mxu0 0.0
  %215 = vmatpush2.msra.mxu0 0.0
  %216 = vmatprep.subr.mxu0 0.0
  %217 = vmatpush2.msra.mxu0 0.0
  %218 = vmatprep.subr.mxu0 0.0
  %219 = vmatpush2.msra.mxu0 0.0
  %220 = vmatprep.subr.mxu0 0.0
  %221 = vmatpush2.msra.mxu0 0.0
  %222 = vmatprep.subr.mxu0 0.0
  %223 = vmatpush2.msra.mxu0 0.0
  %224 = vmatprep.subr.mxu0 0.0
  %225 = vmatpush2.msra.mxu0 0.0
  %226 = vmatprep.subr.mxu0 0.0
  %227 = vmatpush2.msra.mxu0 0.0
  %228 = vmatprep.subr.mxu0 0.0
  %229 = vmatpush2.msra.mxu0 0.0
  %230 = vmatprep.subr.mxu0 0.0
  %231 = vmatpush2.msra.mxu0 0.0
  %232 = vmatprep.subr.mxu0 0.0
  %233 = vmatpush2.msra.mxu0 0.0
  %234 = vmatprep.subr.mxu0 0.0
  %235 = vmatpush2.msra.mxu0 0.0
  %236 = vmatprep.subr.mxu0 0.0
  %237 = vmatpush2.msra.mxu0 0.0
  %238 = vmatprep.subr.mxu0 0.0
  %239 = vmatpush2.msra.mxu0 0.0
  %240 = vmatprep.subr.mxu0 0.0
  %241 = vmatpush2.msra.mxu0 0.0
  %242 = vmatprep.subr.mxu0 0.0
  %243 = vmatpush2.msra.mxu0 0.0
  %244 = vmatprep.subr.mxu0 0.0
  %245 = vmatpush2.msra.mxu0 0.0
  %246 = vmatprep.mubr.f32.mxu0 0.0
  %247 = vmatmul.mubr.f32.gmra.mxu0 %v177
  %v248 = vpop.f32.mrf.mxu0
  %v249 = vadd.f32 %v173, %v248
  %v250 = vpop.f32.mrf.mxu0
  %251 = vdwg.mxu0
  %v252 = vpack.c.bf16 %v249, %v249
  %s253 = scalar_lea.vmem %s2, 2
  %254 = vst [vmem:[%s253] sm:$0x3] %v252
  %v255 = vld [vmem:[%s97] sm:$0xf]
  %v257 = vsel %vm21, %v255, 0
  %259 = vmatprep.subr.mxu0 0.0
  %260 = vmatpush1.msra.mxu0 0.0
  %261 = vmatprep.subr.mxu0 0.0
  %262 = vmatpush1.msra.mxu0 0.0
  %263 = vmatprep.subr.mxu0 0.0
  %264 = vmatpush1.msra.mxu0 0.0
  %265 = vmatprep.subr.mxu0 0.0
  %266 = vmatpush1.msra.mxu0 0.0
  %267 = vmatprep.subr.mxu0 0.0
  %268 = vmatpush1.msra.mxu0 0.0
  %269 = vmatprep.subr.mxu0 0.0
  %270 = vmatpush1.msra.mxu0 0.0
  %271 = vmatprep.subr.mxu0 0.0
  %272 = vmatpush1.msra.mxu0 0.0
  %273 = vmatprep.subr.mxu0 0.0
  %274 = vmatpush1.msra.mxu0 0.0
  %275 = vmatprep.subr.mxu0 0.0
  %276 = vmatpush1.msra.mxu0 0.0
  %277 = vmatprep.subr.mxu0 0.0
  %278 = vmatpush1.msra.mxu0 0.0
  %279 = vmatprep.subr.mxu0 0.0
  %280 = vmatpush1.msra.mxu0 0.0
  %281 = vmatprep.subr.mxu0 0.0
  %282 = vmatpush1.msra.mxu0 0.0
  %283 = vmatprep.subr.mxu0 0.0
  %284 = vmatpush1.msra.mxu0 0.0
  %285 = vmatprep.subr.mxu0 0.0
  %286 = vmatpush1.msra.mxu0 0.0
  %287 = vmatprep.subr.mxu0 0.0
  %288 = vmatpush1.msra.mxu0 0.0
  %289 = vmatprep.subr.mxu0 0.0
  %290 = vmatpush1.msra.mxu0 %v257
  %291 = vmatprep.subr.mxu0 0.0
  %292 = vmatpush2.msra.mxu0 0.0
  %293 = vmatprep.subr.mxu0 0.0
  %294 = vmatpush2.msra.mxu0 0.0
  %295 = vmatprep.subr.mxu0 0.0
  %296 = vmatpush2.msra.mxu0 0.0
  %297 = vmatprep.subr.mxu0 0.0
  %298 = vmatpush2.msra.mxu0 0.0
  %299 = vmatprep.subr.mxu0 0.0
  %300 = vmatpush2.msra.mxu0 0.0
  %301 = vmatprep.subr.mxu0 0.0
  %302 = vmatpush2.msra.mxu0 0.0
  %303 = vmatprep.subr.mxu0 0.0
  %304 = vmatpush2.msra.mxu0 0.0
  %305 = vmatprep.subr.mxu0 0.0
  %306 = vmatpush2.msra.mxu0 0.0
  %307 = vmatprep.subr.mxu0 0.0
  %308 = vmatpush2.msra.mxu0 0.0
  %309 = vmatprep.subr.mxu0 0.0
  %310 = vmatpush2.msra.mxu0 0.0
  %311 = vmatprep.subr.mxu0 0.0
  %312 = vmatpush2.msra.mxu0 0.0
  %313 = vmatprep.subr.mxu0 0.0
  %314 = vmatpush2.msra.mxu0 0.0
  %315 = vmatprep.subr.mxu0 0.0
  %316 = vmatpush2.msra.mxu0 0.0
  %317 = vmatprep.subr.mxu0 0.0
  %318 = vmatpush2.msra.mxu0 0.0
  %319 = vmatprep.subr.mxu0 0.0
  %320 = vmatpush2.msra.mxu0 0.0
  %321 = vmatprep.subr.mxu0 0.0
  %322 = vmatpush2.msra.mxu0 0.0
  %323 = vmatprep.mubr.f32.mxu0 0.0
  %324 = vmatmul.mubr.f32.gmra.mxu0 %v19
  %v325 = vpop.f32.mrf.mxu0
  %v326 = vadd.f32 0.0, %v325
  %v327 = vpop.f32.mrf.mxu0
  %328 = vdwg.mxu0
  %v329 = vpack.c.bf16 %v326, %v326
  %s330 = scalar_lea.vmem %s2, 4
  %331 = vst [vmem:[%s330] sm:$0x3] %v329
  %s332 = scalar_lea.vmem %s0, 8
  %v333 = vld [vmem:[%s332] sm:$0xf]
  %v334 = vld [vmem:[%s97] sm:$0xf]
  %v336 = vsel %vm21, %v334, 0
  %338 = vmatprep.subr.mxu0 0.0
  %339 = vmatpush1.msra.mxu0 0.0
  %340 = vmatprep.subr.mxu0 0.0
  %341 = vmatpush1.msra.mxu0 0.0
  %342 = vmatprep.subr.mxu0 0.0
  %343 = vmatpush1.msra.mxu0 0.0
  %344 = vmatprep.subr.mxu0 0.0
  %345 = vmatpush1.msra.mxu0 0.0
  %346 = vmatprep.subr.mxu0 0.0
  %347 = vmatpush1.msra.mxu0 0.0
  %348 = vmatprep.subr.mxu0 0.0
  %349 = vmatpush1.msra.mxu0 0.0
  %350 = vmatprep.subr.mxu0 0.0
  %351 = vmatpush1.msra.mxu0 0.0
  %352 = vmatprep.subr.mxu0 0.0
  %353 = vmatpush1.msra.mxu0 0.0
  %354 = vmatprep.subr.mxu0 0.0
  %355 = vmatpush1.msra.mxu0 0.0
  %356 = vmatprep.subr.mxu0 0.0
  %357 = vmatpush1.msra.mxu0 0.0
  %358 = vmatprep.subr.mxu0 0.0
  %359 = vmatpush1.msra.mxu0 0.0
  %360 = vmatprep.subr.mxu0 0.0
  %361 = vmatpush1.msra.mxu0 0.0
  %362 = vmatprep.subr.mxu0 0.0
  %363 = vmatpush1.msra.mxu0 0.0
  %364 = vmatprep.subr.mxu0 0.0
  %365 = vmatpush1.msra.mxu0 0.0
  %366 = vmatprep.subr.mxu0 0.0
  %367 = vmatpush1.msra.mxu0 0.0
  %368 = vmatprep.subr.mxu0 0.0
  %369 = vmatpush1.msra.mxu0 %v336
  %370 = vmatprep.subr.mxu0 0.0
  %371 = vmatpush2.msra.mxu0 0.0
  %372 = vmatprep.subr.mxu0 0.0
  %373 = vmatpush2.msra.mxu0 0.0
  %374 = vmatprep.subr.mxu0 0.0
  %375 = vmatpush2.msra.mxu0 0.0
  %376 = vmatprep.subr.mxu0 0.0
  %377 = vmatpush2.msra.mxu0 0.0
  %378 = vmatprep.subr.mxu0 0.0
  %379 = vmatpush2.msra.mxu0 0.0
  %380 = vmatprep.subr.mxu0 0.0
  %381 = vmatpush2.msra.mxu0 0.0
  %382 = vmatprep.subr.mxu0 0.0
  %383 = vmatpush2.msra.mxu0 0.0
  %384 = vmatprep.subr.mxu0 0.0
  %385 = vmatpush2.msra.mxu0 0.0
  %386 = vmatprep.subr.mxu0 0.0
  %387 = vmatpush2.msra.mxu0 0.0
  %388 = vmatprep.subr.mxu0 0.0
  %389 = vmatpush2.msra.mxu0 0.0
  %390 = vmatprep.subr.mxu0 0.0
  %391 = vmatpush2.msra.mxu0 0.0
  %392 = vmatprep.subr.mxu0 0.0
  %393 = vmatpush2.msra.mxu0 0.0
  %394 = vmatprep.subr.mxu0 0.0
  %395 = vmatpush2.msra.mxu0 0.0
  %396 = vmatprep.subr.mxu0 0.0
  %397 = vmatpush2.msra.mxu0 0.0
  %398 = vmatprep.subr.mxu0 0.0
  %399 = vmatpush2.msra.mxu0 0.0
  %400 = vmatprep.subr.mxu0 0.0
  %401 = vmatpush2.msra.mxu0 0.0
  %402 = vmatprep.mubr.f32.mxu0 0.0
  %403 = vmatmul.mubr.f32.gmra.mxu0 %v101
  %v404 = vpop.f32.mrf.mxu0
  %v405 = vadd.f32 0.0, %v404
  %v406 = vpop.f32.mrf.mxu0
  %407 = vdwg.mxu0
  %v409 = vsel %vm21, %v333, 0
  %411 = vmatprep.subr.mxu0 0.0
  %412 = vmatpush1.msra.mxu0 0.0
  %413 = vmatprep.subr.mxu0 0.0
  %414 = vmatpush1.msra.mxu0 0.0
  %415 = vmatprep.subr.mxu0 0.0
  %416 = vmatpush1.msra.mxu0 0.0
  %417 = vmatprep.subr.mxu0 0.0
  %418 = vmatpush1.msra.mxu0 0.0
  %419 = vmatprep.subr.mxu0 0.0
  %420 = vmatpush1.msra.mxu0 0.0
  %421 = vmatprep.subr.mxu0 0.0
  %422 = vmatpush1.msra.mxu0 0.0
  %423 = vmatprep.subr.mxu0 0.0
  %424 = vmatpush1.msra.mxu0 0.0
  %425 = vmatprep.subr.mxu0 0.0
  %426 = vmatpush1.msra.mxu0 0.0
  %427 = vmatprep.subr.mxu0 0.0
  %428 = vmatpush1.msra.mxu0 0.0
  %429 = vmatprep.subr.mxu0 0.0
  %430 = vmatpush1.msra.mxu0 0.0
  %431 = vmatprep.subr.mxu0 0.0
  %432 = vmatpush1.msra.mxu0 0.0
  %433 = vmatprep.subr.mxu0 0.0
  %434 = vmatpush1.msra.mxu0 0.0
  %435 = vmatprep.subr.mxu0 0.0
  %436 = vmatpush1.msra.mxu0 0.0
  %437 = vmatprep.subr.mxu0 0.0
  %438 = vmatpush1.msra.mxu0 0.0
  %439 = vmatprep.subr.mxu0 0.0
  %440 = vmatpush1.msra.mxu0 0.0
  %441 = vmatprep.subr.mxu0 0.0
  %442 = vmatpush1.msra.mxu0 %v409
  %443 = vmatprep.subr.mxu0 0.0
  %444 = vmatpush2.msra.mxu0 0.0
  %445 = vmatprep.subr.mxu0 0.0
  %446 = vmatpush2.msra.mxu0 0.0
  %447 = vmatprep.subr.mxu0 0.0
  %448 = vmatpush2.msra.mxu0 0.0
  %449 = vmatprep.subr.mxu0 0.0
  %450 = vmatpush2.msra.mxu0 0.0
  %451 = vmatprep.subr.mxu0 0.0
  %452 = vmatpush2.msra.mxu0 0.0
  %453 = vmatprep.subr.mxu0 0.0
  %454 = vmatpush2.msra.mxu0 0.0
  %455 = vmatprep.subr.mxu0 0.0
  %456 = vmatpush2.msra.mxu0 0.0
  %457 = vmatprep.subr.mxu0 0.0
  %458 = vmatpush2.msra.mxu0 0.0
  %459 = vmatprep.subr.mxu0 0.0
  %460 = vmatpush2.msra.mxu0 0.0
  %461 = vmatprep.subr.mxu0 0.0
  %462 = vmatpush2.msra.mxu0 0.0
  %463 = vmatprep.subr.mxu0 0.0
  %464 = vmatpush2.msra.mxu0 0.0
  %465 = vmatprep.subr.mxu0 0.0
  %466 = vmatpush2.msra.mxu0 0.0
  %467 = vmatprep.subr.mxu0 0.0
  %468 = vmatpush2.msra.mxu0 0.0
  %469 = vmatprep.subr.mxu0 0.0
  %470 = vmatpush2.msra.mxu0 0.0
  %471 = vmatprep.subr.mxu0 0.0
  %472 = vmatpush2.msra.mxu0 0.0
  %473 = vmatprep.subr.mxu0 0.0
  %474 = vmatpush2.msra.mxu0 0.0
  %475 = vmatprep.mubr.f32.mxu0 0.0
  %476 = vmatmul.mubr.f32.gmra.mxu0 %v177
  %v477 = vpop.f32.mrf.mxu0
  %v478 = vadd.f32 %v405, %v477
  %v479 = vpop.f32.mrf.mxu0
  %480 = vdwg.mxu0
  %v481 = vpack.c.bf16 %v478, %v478
  %s482 = scalar_lea.vmem %s2, 6
  %483 = vst [vmem:[%s482] sm:$0x3] %v481
  %v484 = vld [vmem:[%s332] sm:$0xf]
  %v486 = vsel %vm21, %v484, 0
  %488 = vmatprep.subr.mxu0 0.0
  %489 = vmatpush1.msra.mxu0 0.0
  %490 = vmatprep.subr.mxu0 0.0
  %491 = vmatpush1.msra.mxu0 0.0
  %492 = vmatprep.subr.mxu0 0.0
  %493 = vmatpush1.msra.mxu0 0.0
  %494 = vmatprep.subr.mxu0 0.0
  %495 = vmatpush1.msra.mxu0 0.0
  %496 = vmatprep.subr.mxu0 0.0
  %497 = vmatpush1.msra.mxu0 0.0
  %498 = vmatprep.subr.mxu0 0.0
  %499 = vmatpush1.msra.mxu0 0.0
  %500 = vmatprep.subr.mxu0 0.0
  %501 = vmatpush1.msra.mxu0 0.0
  %502 = vmatprep.subr.mxu0 0.0
  %503 = vmatpush1.msra.mxu0 0.0
  %504 = vmatprep.subr.mxu0 0.0
  %505 = vmatpush1.msra.mxu0 0.0
  %506 = vmatprep.subr.mxu0 0.0
  %507 = vmatpush1.msra.mxu0 0.0
  %508 = vmatprep.subr.mxu0 0.0
  %509 = vmatpush1.msra.mxu0 0.0
  %510 = vmatprep.subr.mxu0 0.0
  %511 = vmatpush1.msra.mxu0 0.0
  %512 = vmatprep.subr.mxu0 0.0
  %513 = vmatpush1.msra.mxu0 0.0
  %514 = vmatprep.subr.mxu0 0.0
  %515 = vmatpush1.msra.mxu0 0.0
  %516 = vmatprep.subr.mxu0 0.0
  %517 = vmatpush1.msra.mxu0 0.0
  %518 = vmatprep.subr.mxu0 0.0
  %519 = vmatpush1.msra.mxu0 %v486
  %520 = vmatprep.subr.mxu0 0.0
  %521 = vmatpush2.msra.mxu0 0.0
  %522 = vmatprep.subr.mxu0 0.0
  %523 = vmatpush2.msra.mxu0 0.0
  %524 = vmatprep.subr.mxu0 0.0
  %525 = vmatpush2.msra.mxu0 0.0
  %526 = vmatprep.subr.mxu0 0.0
  %527 = vmatpush2.msra.mxu0 0.0
  %528 = vmatprep.subr.mxu0 0.0
  %529 = vmatpush2.msra.mxu0 0.0
  %530 = vmatprep.subr.mxu0 0.0
  %531 = vmatpush2.msra.mxu0 0.0
  %532 = vmatprep.subr.mxu0 0.0
  %533 = vmatpush2.msra.mxu0 0.0
  %534 = vmatprep.subr.mxu0 0.0
  %535 = vmatpush2.msra.mxu0 0.0
  %536 = vmatprep.subr.mxu0 0.0
  %537 = vmatpush2.msra.mxu0 0.0
  %538 = vmatprep.subr.mxu0 0.0
  %539 = vmatpush2.msra.mxu0 0.0
  %540 = vmatprep.subr.mxu0 0.0
  %541 = vmatpush2.msra.mxu0 0.0
  %542 = vmatprep.subr.mxu0 0.0
  %543 = vmatpush2.msra.mxu0 0.0
  %544 = vmatprep.subr.mxu0 0.0
  %545 = vmatpush2.msra.mxu0 0.0
  %546 = vmatprep.subr.mxu0 0.0
  %547 = vmatpush2.msra.mxu0 0.0
  %548 = vmatprep.subr.mxu0 0.0
  %549 = vmatpush2.msra.mxu0 0.0
  %550 = vmatprep.subr.mxu0 0.0
  %551 = vmatpush2.msra.mxu0 0.0
  %552 = vmatprep.mubr.f32.mxu0 0.0
  %553 = vmatmul.mubr.f32.gmra.mxu0 %v19
  %v554 = vpop.f32.mrf.mxu0
  %v555 = vadd.f32 0.0, %v554
  %v556 = vpop.f32.mrf.mxu0
  %557 = vdwg.mxu0
  %v558 = vpack.c.bf16 %v555, %v555
  %s559 = scalar_lea.vmem %s2, 8
  %560 = vst [vmem:[%s559] sm:$0x3] %v558
  %s561 = scalar_lea.vmem %s0, 12
  %v562 = vld [vmem:[%s561] sm:$0xf]
  %v563 = vld [vmem:[%s332] sm:$0xf]
  %v565 = vsel %vm21, %v563, 0
  %567 = vmatprep.subr.mxu0 0.0
  %568 = vmatpush1.msra.mxu0 0.0
  %569 = vmatprep.subr.mxu0 0.0
  %570 = vmatpush1.msra.mxu0 0.0
  %571 = vmatprep.subr.mxu0 0.0
  %572 = vmatpush1.msra.mxu0 0.0
  %573 = vmatprep.subr.mxu0 0.0
  %574 = vmatpush1.msra.mxu0 0.0
  %575 = vmatprep.subr.mxu0 0.0
  %576 = vmatpush1.msra.mxu0 0.0
  %577 = vmatprep.subr.mxu0 0.0
  %578 = vmatpush1.msra.mxu0 0.0
  %579 = vmatprep.subr.mxu0 0.0
  %580 = vmatpush1.msra.mxu0 0.0
  %581 = vmatprep.subr.mxu0 0.0
  %582 = vmatpush1.msra.mxu0 0.0
  %583 = vmatprep.subr.mxu0 0.0
  %584 = vmatpush1.msra.mxu0 0.0
  %585 = vmatprep.subr.mxu0 0.0
  %586 = vmatpush1.msra.mxu0 0.0
  %587 = vmatprep.subr.mxu0 0.0
  %588 = vmatpush1.msra.mxu0 0.0
  %589 = vmatprep.subr.mxu0 0.0
  %590 = vmatpush1.msra.mxu0 0.0
  %591 = vmatprep.subr.mxu0 0.0
  %592 = vmatpush1.msra.mxu0 0.0
  %593 = vmatprep.subr.mxu0 0.0
  %594 = vmatpush1.msra.mxu0 0.0
  %595 = vmatprep.subr.mxu0 0.0
  %596 = vmatpush1.msra.mxu0 0.0
  %597 = vmatprep.subr.mxu0 0.0
  %598 = vmatpush1.msra.mxu0 %v565
  %599 = vmatprep.subr.mxu0 0.0
  %600 = vmatpush2.msra.mxu0 0.0
  %601 = vmatprep.subr.mxu0 0.0
  %602 = vmatpush2.msra.mxu0 0.0
  %603 = vmatprep.subr.mxu0 0.0
  %604 = vmatpush2.msra.mxu0 0.0
  %605 = vmatprep.subr.mxu0 0.0
  %606 = vmatpush2.msra.mxu0 0.0
  %607 = vmatprep.subr.mxu0 0.0
  %608 = vmatpush2.msra.mxu0 0.0
  %609 = vmatprep.subr.mxu0 0.0
  %610 = vmatpush2.msra.mxu0 0.0
  %611 = vmatprep.subr.mxu0 0.0
  %612 = vmatpush2.msra.mxu0 0.0
  %613 = vmatprep.subr.mxu0 0.0
  %614 = vmatpush2.msra.mxu0 0.0
  %615 = vmatprep.subr.mxu0 0.0
  %616 = vmatpush2.msra.mxu0 0.0
  %617 = vmatprep.subr.mxu0 0.0
  %618 = vmatpush2.msra.mxu0 0.0
  %619 = vmatprep.subr.mxu0 0.0
  %620 = vmatpush2.msra.mxu0 0.0
  %621 = vmatprep.subr.mxu0 0.0
  %622 = vmatpush2.msra.mxu0 0.0
  %623 = vmatprep.subr.mxu0 0.0
  %624 = vmatpush2.msra.mxu0 0.0
  %625 = vmatprep.subr.mxu0 0.0
  %626 = vmatpush2.msra.mxu0 0.0
  %627 = vmatprep.subr.mxu0 0.0
  %628 = vmatpush2.msra.mxu0 0.0
  %629 = vmatprep.subr.mxu0 0.0
  %630 = vmatpush2.msra.mxu0 0.0
  %631 = vmatprep.mubr.f32.mxu0 0.0
  %632 = vmatmul.mubr.f32.gmra.mxu0 %v101
  %v633 = vpop.f32.mrf.mxu0
  %v634 = vadd.f32 0.0, %v633
  %v635 = vpop.f32.mrf.mxu0
  %636 = vdwg.mxu0
  %v638 = vsel %vm21, %v562, 0
  %640 = vmatprep.subr.mxu0 0.0
  %641 = vmatpush1.msra.mxu0 0.0
  %642 = vmatprep.subr.mxu0 0.0
  %643 = vmatpush1.msra.mxu0 0.0
  %644 = vmatprep.subr.mxu0 0.0
  %645 = vmatpush1.msra.mxu0 0.0
  %646 = vmatprep.subr.mxu0 0.0
  %647 = vmatpush1.msra.mxu0 0.0
  %648 = vmatprep.subr.mxu0 0.0
  %649 = vmatpush1.msra.mxu0 0.0
  %650 = vmatprep.subr.mxu0 0.0
  %651 = vmatpush1.msra.mxu0 0.0
  %652 = vmatprep.subr.mxu0 0.0
  %653 = vmatpush1.msra.mxu0 0.0
  %654 = vmatprep.subr.mxu0 0.0
  %655 = vmatpush1.msra.mxu0 0.0
  %656 = vmatprep.subr.mxu0 0.0
  %657 = vmatpush1.msra.mxu0 0.0
  %658 = vmatprep.subr.mxu0 0.0
  %659 = vmatpush1.msra.mxu0 0.0
  %660 = vmatprep.subr.mxu0 0.0
  %661 = vmatpush1.msra.mxu0 0.0
  %662 = vmatprep.subr.mxu0 0.0
  %663 = vmatpush1.msra.mxu0 0.0
  %664 = vmatprep.subr.mxu0 0.0
  %665 = vmatpush1.msra.mxu0 0.0
  %666 = vmatprep.subr.mxu0 0.0
  %667 = vmatpush1.msra.mxu0 0.0
  %668 = vmatprep.subr.mxu0 0.0
  %669 = vmatpush1.msra.mxu0 0.0
  %670 = vmatprep.subr.mxu0 0.0
  %671 = vmatpush1.msra.mxu0 %v638
  %672 = vmatprep.subr.mxu0 0.0
  %673 = vmatpush2.msra.mxu0 0.0
  %674 = vmatprep.subr.mxu0 0.0
  %675 = vmatpush2.msra.mxu0 0.0
  %676 = vmatprep.subr.mxu0 0.0
  %677 = vmatpush2.msra.mxu0 0.0
  %678 = vmatprep.subr.mxu0 0.0
  %679 = vmatpush2.msra.mxu0 0.0
  %680 = vmatprep.subr.mxu0 0.0
  %681 = vmatpush2.msra.mxu0 0.0
  %682 = vmatprep.subr.mxu0 0.0
  %683 = vmatpush2.msra.mxu0 0.0
  %684 = vmatprep.subr.mxu0 0.0
  %685 = vmatpush2.msra.mxu0 0.0
  %686 = vmatprep.subr.mxu0 0.0
  %687 = vmatpush2.msra.mxu0 0.0
  %688 = vmatprep.subr.mxu0 0.0
  %689 = vmatpush2.msra.mxu0 0.0
  %690 = vmatprep.subr.mxu0 0.0
  %691 = vmatpush2.msra.mxu0 0.0
  %692 = vmatprep.subr.mxu0 0.0
  %693 = vmatpush2.msra.mxu0 0.0
  %694 = vmatprep.subr.mxu0 0.0
  %695 = vmatpush2.msra.mxu0 0.0
  %696 = vmatprep.subr.mxu0 0.0
  %697 = vmatpush2.msra.mxu0 0.0
  %698 = vmatprep.subr.mxu0 0.0
  %699 = vmatpush2.msra.mxu0 0.0
  %700 = vmatprep.subr.mxu0 0.0
  %701 = vmatpush2.msra.mxu0 0.0
  %702 = vmatprep.subr.mxu0 0.0
  %703 = vmatpush2.msra.mxu0 0.0
  %704 = vmatprep.mubr.f32.mxu0 0.0
  %705 = vmatmul.mubr.f32.gmra.mxu0 %v177
  %v706 = vpop.f32.mrf.mxu0
  %v707 = vadd.f32 %v634, %v706
  %v708 = vpop.f32.mrf.mxu0
  %709 = vdwg.mxu0
  %v710 = vpack.c.bf16 %v707, %v707
  %s711 = scalar_lea.vmem %s2, 10
  %712 = vst [vmem:[%s711] sm:$0x3] %v710
  %v713 = vld [vmem:[%s561] sm:$0xf]
  %v715 = vsel %vm21, %v713, 0
  %717 = vmatprep.subr.mxu0 0.0
  %718 = vmatpush1.msra.mxu0 0.0
  %719 = vmatprep.subr.mxu0 0.0
  %720 = vmatpush1.msra.mxu0 0.0
  %721 = vmatprep.subr.mxu0 0.0
  %722 = vmatpush1.msra.mxu0 0.0
  %723 = vmatprep.subr.mxu0 0.0
  %724 = vmatpush1.msra.mxu0 0.0
  %725 = vmatprep.subr.mxu0 0.0
  %726 = vmatpush1.msra.mxu0 0.0
  %727 = vmatprep.subr.mxu0 0.0
  %728 = vmatpush1.msra.mxu0 0.0
  %729 = vmatprep.subr.mxu0 0.0
  %730 = vmatpush1.msra.mxu0 0.0
  %731 = vmatprep.subr.mxu0 0.0
  %732 = vmatpush1.msra.mxu0 0.0
  %733 = vmatprep.subr.mxu0 0.0
  %734 = vmatpush1.msra.mxu0 0.0
  %735 = vmatprep.subr.mxu0 0.0
  %736 = vmatpush1.msra.mxu0 0.0
  %737 = vmatprep.subr.mxu0 0.0
  %738 = vmatpush1.msra.mxu0 0.0
  %739 = vmatprep.subr.mxu0 0.0
  %740 = vmatpush1.msra.mxu0 0.0
  %741 = vmatprep.subr.mxu0 0.0
  %742 = vmatpush1.msra.mxu0 0.0
  %743 = vmatprep.subr.mxu0 0.0
  %744 = vmatpush1.msra.mxu0 0.0
  %745 = vmatprep.subr.mxu0 0.0
  %746 = vmatpush1.msra.mxu0 0.0
  %747 = vmatprep.subr.mxu0 0.0
  %748 = vmatpush1.msra.mxu0 %v715
  %749 = vmatprep.subr.mxu0 0.0
  %750 = vmatpush2.msra.mxu0 0.0
  %751 = vmatprep.subr.mxu0 0.0
  %752 = vmatpush2.msra.mxu0 0.0
  %753 = vmatprep.subr.mxu0 0.0
  %754 = vmatpush2.msra.mxu0 0.0
  %755 = vmatprep.subr.mxu0 0.0
  %756 = vmatpush2.msra.mxu0 0.0
  %757 = vmatprep.subr.mxu0 0.0
  %758 = vmatpush2.msra.mxu0 0.0
  %759 = vmatprep.subr.mxu0 0.0
  %760 = vmatpush2.msra.mxu0 0.0
  %761 = vmatprep.subr.mxu0 0.0
  %762 = vmatpush2.msra.mxu0 0.0
  %763 = vmatprep.subr.mxu0 0.0
  %764 = vmatpush2.msra.mxu0 0.0
  %765 = vmatprep.subr.mxu0 0.0
  %766 = vmatpush2.msra.mxu0 0.0
  %767 = vmatprep.subr.mxu0 0.0
  %768 = vmatpush2.msra.mxu0 0.0
  %769 = vmatprep.subr.mxu0 0.0
  %770 = vmatpush2.msra.mxu0 0.0
  %771 = vmatprep.subr.mxu0 0.0
  %772 = vmatpush2.msra.mxu0 0.0
  %773 = vmatprep.subr.mxu0 0.0
  %774 = vmatpush2.msra.mxu0 0.0
  %775 = vmatprep.subr.mxu0 0.0
  %776 = vmatpush2.msra.mxu0 0.0
  %777 = vmatprep.subr.mxu0 0.0
  %778 = vmatpush2.msra.mxu0 0.0
  %779 = vmatprep.subr.mxu0 0.0
  %780 = vmatpush2.msra.mxu0 0.0
  %781 = vmatprep.mubr.f32.mxu0 0.0
  %782 = vmatmul.mubr.f32.gmra.mxu0 %v19
  %v783 = vpop.f32.mrf.mxu0
  %v784 = vadd.f32 0.0, %v783
  %v785 = vpop.f32.mrf.mxu0
  %786 = vdwg.mxu0
  %v787 = vpack.c.bf16 %v784, %v784
  %s788 = scalar_lea.vmem %s2, 12
  %789 = vst [vmem:[%s788] sm:$0x3] %v787
  %s790 = scalar_lea.vmem %s0, 16
  %v791 = vld [vmem:[%s790] sm:$0xf]
  %v792 = vld [vmem:[%s561] sm:$0xf]
  %v794 = vsel %vm21, %v792, 0
  %796 = vmatprep.subr.mxu0 0.0
  %797 = vmatpush1.msra.mxu0 0.0
  %798 = vmatprep.subr.mxu0 0.0
  %799 = vmatpush1.msra.mxu0 0.0
  %800 = vmatprep.subr.mxu0 0.0
  %801 = vmatpush1.msra.mxu0 0.0
  %802 = vmatprep.subr.mxu0 0.0
  %803 = vmatpush1.msra.mxu0 0.0
  %804 = vmatprep.subr.mxu0 0.0
  %805 = vmatpush1.msra.mxu0 0.0
  %806 = vmatprep.subr.mxu0 0.0
  %807 = vmatpush1.msra.mxu0 0.0
  %808 = vmatprep.subr.mxu0 0.0
  %809 = vmatpush1.msra.mxu0 0.0
  %810 = vmatprep.subr.mxu0 0.0
  %811 = vmatpush1.msra.mxu0 0.0
  %812 = vmatprep.subr.mxu0 0.0
  %813 = vmatpush1.msra.mxu0 0.0
  %814 = vmatprep.subr.mxu0 0.0
  %815 = vmatpush1.msra.mxu0 0.0
  %816 = vmatprep.subr.mxu0 0.0
  %817 = vmatpush1.msra.mxu0 0.0
  %818 = vmatprep.subr.mxu0 0.0
  %819 = vmatpush1.msra.mxu0 0.0
  %820 = vmatprep.subr.mxu0 0.0
  %821 = vmatpush1.msra.mxu0 0.0
  %822 = vmatprep.subr.mxu0 0.0
  %823 = vmatpush1.msra.mxu0 0.0
  %824 = vmatprep.subr.mxu0 0.0
  %825 = vmatpush1.msra.mxu0 0.0
  %826 = vmatprep.subr.mxu0 0.0
  %827 = vmatpush1.msra.mxu0 %v794
  %828 = vmatprep.subr.mxu0 0.0
  %829 = vmatpush2.msra.mxu0 0.0
  %830 = vmatprep.subr.mxu0 0.0
  %831 = vmatpush2.msra.mxu0 0.0
  %832 = vmatprep.subr.mxu0 0.0
  %833 = vmatpush2.msra.mxu0 0.0
  %834 = vmatprep.subr.mxu0 0.0
  %835 = vmatpush2.msra.mxu0 0.0
  %836 = vmatprep.subr.mxu0 0.0
  %837 = vmatpush2.msra.mxu0 0.0
  %838 = vmatprep.subr.mxu0 0.0
  %839 = vmatpush2.msra.mxu0 0.0
  %840 = vmatprep.subr.mxu0 0.0
  %841 = vmatpush2.msra.mxu0 0.0
  %842 = vmatprep.subr.mxu0 0.0
  %843 = vmatpush2.msra.mxu0 0.0
  %844 = vmatprep.subr.mxu0 0.0
  %845 = vmatpush2.msra.mxu0 0.0
  %846 = vmatprep.subr.mxu0 0.0
  %847 = vmatpush2.msra.mxu0 0.0
  %848 = vmatprep.subr.mxu0 0.0
  %849 = vmatpush2.msra.mxu0 0.0
  %850 = vmatprep.subr.mxu0 0.0
  %851 = vmatpush2.msra.mxu0 0.0
  %852 = vmatprep.subr.mxu0 0.0
  %853 = vmatpush2.msra.mxu0 0.0
  %854 = vmatprep.subr.mxu0 0.0
  %855 = vmatpush2.msra.mxu0 0.0
  %856 = vmatprep.subr.mxu0 0.0
  %857 = vmatpush2.msra.mxu0 0.0
  %858 = vmatprep.subr.mxu0 0.0
  %859 = vmatpush2.msra.mxu0 0.0
  %860 = vmatprep.mubr.f32.mxu0 0.0
  %861 = vmatmul.mubr.f32.gmra.mxu0 %v101
  %v862 = vpop.f32.mrf.mxu0
  %v863 = vadd.f32 0.0, %v862
  %v864 = vpop.f32.mrf.mxu0
  %865 = vdwg.mxu0
  %v867 = vsel %vm21, %v791, 0
  %869 = vmatprep.subr.mxu0 0.0
  %870 = vmatpush1.msra.mxu0 0.0
  %871 = vmatprep.subr.mxu0 0.0
  %872 = vmatpush1.msra.mxu0 0.0
  %873 = vmatprep.subr.mxu0 0.0
  %874 = vmatpush1.msra.mxu0 0.0
  %875 = vmatprep.subr.mxu0 0.0
  %876 = vmatpush1.msra.mxu0 0.0
  %877 = vmatprep.subr.mxu0 0.0
  %878 = vmatpush1.msra.mxu0 0.0
  %879 = vmatprep.subr.mxu0 0.0
  %880 = vmatpush1.msra.mxu0 0.0
  %881 = vmatprep.subr.mxu0 0.0
  %882 = vmatpush1.msra.mxu0 0.0
  %883 = vmatprep.subr.mxu0 0.0
  %884 = vmatpush1.msra.mxu0 0.0
  %885 = vmatprep.subr.mxu0 0.0
  %886 = vmatpush1.msra.mxu0 0.0
  %887 = vmatprep.subr.mxu0 0.0
  %888 = vmatpush1.msra.mxu0 0.0
  %889 = vmatprep.subr.mxu0 0.0
  %890 = vmatpush1.msra.mxu0 0.0
  %891 = vmatprep.subr.mxu0 0.0
  %892 = vmatpush1.msra.mxu0 0.0
  %893 = vmatprep.subr.mxu0 0.0
  %894 = vmatpush1.msra.mxu0 0.0
  %895 = vmatprep.subr.mxu0 0.0
  %896 = vmatpush1.msra.mxu0 0.0
  %897 = vmatprep.subr.mxu0 0.0
  %898 = vmatpush1.msra.mxu0 0.0
  %899 = vmatprep.subr.mxu0 0.0
  %900 = vmatpush1.msra.mxu0 %v867
  %901 = vmatprep.subr.mxu0 0.0
  %902 = vmatpush2.msra.mxu0 0.0
  %903 = vmatprep.subr.mxu0 0.0
  %904 = vmatpush2.msra.mxu0 0.0
  %905 = vmatprep.subr.mxu0 0.0
  %906 = vmatpush2.msra.mxu0 0.0
  %907 = vmatprep.subr.mxu0 0.0
  %908 = vmatpush2.msra.mxu0 0.0
  %909 = vmatprep.subr.mxu0 0.0
  %910 = vmatpush2.msra.mxu0 0.0
  %911 = vmatprep.subr.mxu0 0.0
  %912 = vmatpush2.msra.mxu0 0.0
  %913 = vmatprep.subr.mxu0 0.0
  %914 = vmatpush2.msra.mxu0 0.0
  %915 = vmatprep.subr.mxu0 0.0
  %916 = vmatpush2.msra.mxu0 0.0
  %917 = vmatprep.subr.mxu0 0.0
  %918 = vmatpush2.msra.mxu0 0.0
  %919 = vmatprep.subr.mxu0 0.0
  %920 = vmatpush2.msra.mxu0 0.0
  %921 = vmatprep.subr.mxu0 0.0
  %922 = vmatpush2.msra.mxu0 0.0
  %923 = vmatprep.subr.mxu0 0.0
  %924 = vmatpush2.msra.mxu0 0.0
  %925 = vmatprep.subr.mxu0 0.0
  %926 = vmatpush2.msra.mxu0 0.0
  %927 = vmatprep.subr.mxu0 0.0
  %928 = vmatpush2.msra.mxu0 0.0
  %929 = vmatprep.subr.mxu0 0.0
  %930 = vmatpush2.msra.mxu0 0.0
  %931 = vmatprep.subr.mxu0 0.0
  %932 = vmatpush2.msra.mxu0 0.0
  %933 = vmatprep.mubr.f32.mxu0 0.0
  %934 = vmatmul.mubr.f32.gmra.mxu0 %v177
  %v935 = vpop.f32.mrf.mxu0
  %v936 = vadd.f32 %v863, %v935
  %v937 = vpop.f32.mrf.mxu0
  %938 = vdwg.mxu0
  %v939 = vpack.c.bf16 %v936, %v936
  %s940 = scalar_lea.vmem %s2, 14
  %941 = vst [vmem:[%s940] sm:$0x3] %v939
  %v942 = vld [vmem:[%s790] sm:$0xf]
  %v944 = vsel %vm21, %v942, 0
  %946 = vmatprep.subr.mxu0 0.0
  %947 = vmatpush1.msra.mxu0 0.0
  %948 = vmatprep.subr.mxu0 0.0
  %949 = vmatpush1.msra.mxu0 0.0
  %950 = vmatprep.subr.mxu0 0.0
  %951 = vmatpush1.msra.mxu0 0.0
  %952 = vmatprep.subr.mxu0 0.0
  %953 = vmatpush1.msra.mxu0 0.0
  %954 = vmatprep.subr.mxu0 0.0
  %955 = vmatpush1.msra.mxu0 0.0
  %956 = vmatprep.subr.mxu0 0.0
  %957 = vmatpush1.msra.mxu0 0.0
  %958 = vmatprep.subr.mxu0 0.0
  %959 = vmatpush1.msra.mxu0 0.0
  %960 = vmatprep.subr.mxu0 0.0
  %961 = vmatpush1.msra.mxu0 0.0
  %962 = vmatprep.subr.mxu0 0.0
  %963 = vmatpush1.msra.mxu0 0.0
  %964 = vmatprep.subr.mxu0 0.0
  %965 = vmatpush1.msra.mxu0 0.0
  %966 = vmatprep.subr.mxu0 0.0
  %967 = vmatpush1.msra.mxu0 0.0
  %968 = vmatprep.subr.mxu0 0.0
  %969 = vmatpush1.msra.mxu0 0.0
  %970 = vmatprep.subr.mxu0 0.0
  %971 = vmatpush1.msra.mxu0 0.0
  %972 = vmatprep.subr.mxu0 0.0
  %973 = vmatpush1.msra.mxu0 0.0
  %974 = vmatprep.subr.mxu0 0.0
  %975 = vmatpush1.msra.mxu0 0.0
  %976 = vmatprep.subr.mxu0 0.0
  %977 = vmatpush1.msra.mxu0 %v944
  %978 = vmatprep.subr.mxu0 0.0
  %979 = vmatpush2.msra.mxu0 0.0
  %980 = vmatprep.subr.mxu0 0.0
  %981 = vmatpush2.msra.mxu0 0.0
  %982 = vmatprep.subr.mxu0 0.0
  %983 = vmatpush2.msra.mxu0 0.0
  %984 = vmatprep.subr.mxu0 0.0
  %985 = vmatpush2.msra.mxu0 0.0
  %986 = vmatprep.subr.mxu0 0.0
  %987 = vmatpush2.msra.mxu0 0.0
  %988 = vmatprep.subr.mxu0 0.0
  %989 = vmatpush2.msra.mxu0 0.0
  %990 = vmatprep.subr.mxu0 0.0
  %991 = vmatpush2.msra.mxu0 0.0
  %992 = vmatprep.subr.mxu0 0.0
  %993 = vmatpush2.msra.mxu0 0.0
  %994 = vmatprep.subr.mxu0 0.0
  %995 = vmatpush2.msra.mxu0 0.0
  %996 = vmatprep.subr.mxu0 0.0
  %997 = vmatpush2.msra.mxu0 0.0
  %998 = vmatprep.subr.mxu0 0.0
  %999 = vmatpush2.msra.mxu0 0.0
  %1000 = vmatprep.subr.mxu0 0.0
  %1001 = vmatpush2.msra.mxu0 0.0
  %1002 = vmatprep.subr.mxu0 0.0
  %1003 = vmatpush2.msra.mxu0 0.0
  %1004 = vmatprep.subr.mxu0 0.0
  %1005 = vmatpush2.msra.mxu0 0.0
  %1006 = vmatprep.subr.mxu0 0.0
  %1007 = vmatpush2.msra.mxu0 0.0
  %1008 = vmatprep.subr.mxu0 0.0
  %1009 = vmatpush2.msra.mxu0 0.0
  %1010 = vmatprep.mubr.f32.mxu0 0.0
  %1011 = vmatmul.mubr.f32.gmra.mxu0 %v19
  %v1012 = vpop.f32.mrf.mxu0
  %v1013 = vadd.f32 0.0, %v1012
  %v1014 = vpop.f32.mrf.mxu0
  %1015 = vdwg.mxu0
  %v1016 = vpack.c.bf16 %v1013, %v1013
  %s1017 = scalar_lea.vmem %s2, 16
  %1018 = vst [vmem:[%s1017] sm:$0x3] %v1016
  %s1019 = scalar_lea.vmem %s0, 20
  %v1020 = vld [vmem:[%s1019] sm:$0xf]
  %v1021 = vld [vmem:[%s790] sm:$0xf]
  %v1023 = vsel %vm21, %v1021, 0
  %1025 = vmatprep.subr.mxu0 0.0
  %1026 = vmatpush1.msra.mxu0 0.0
  %1027 = vmatprep.subr.mxu0 0.0
  %1028 = vmatpush1.msra.mxu0 0.0
  %1029 = vmatprep.subr.mxu0 0.0
  %1030 = vmatpush1.msra.mxu0 0.0
  %1031 = vmatprep.subr.mxu0 0.0
  %1032 = vmatpush1.msra.mxu0 0.0
  %1033 = vmatprep.subr.mxu0 0.0
  %1034 = vmatpush1.msra.mxu0 0.0
  %1035 = vmatprep.subr.mxu0 0.0
  %1036 = vmatpush1.msra.mxu0 0.0
  %1037 = vmatprep.subr.mxu0 0.0
  %1038 = vmatpush1.msra.mxu0 0.0
  %1039 = vmatprep.subr.mxu0 0.0
  %1040 = vmatpush1.msra.mxu0 0.0
  %1041 = vmatprep.subr.mxu0 0.0
  %1042 = vmatpush1.msra.mxu0 0.0
  %1043 = vmatprep.subr.mxu0 0.0
  %1044 = vmatpush1.msra.mxu0 0.0
  %1045 = vmatprep.subr.mxu0 0.0
  %1046 = vmatpush1.msra.mxu0 0.0
  %1047 = vmatprep.subr.mxu0 0.0
  %1048 = vmatpush1.msra.mxu0 0.0
  %1049 = vmatprep.subr.mxu0 0.0
  %1050 = vmatpush1.msra.mxu0 0.0
  %1051 = vmatprep.subr.mxu0 0.0
  %1052 = vmatpush1.msra.mxu0 0.0
  %1053 = vmatprep.subr.mxu0 0.0
  %1054 = vmatpush1.msra.mxu0 0.0
  %1055 = vmatprep.subr.mxu0 0.0
  %1056 = vmatpush1.msra.mxu0 %v1023
  %1057 = vmatprep.subr.mxu0 0.0
  %1058 = vmatpush2.msra.mxu0 0.0
  %1059 = vmatprep.subr.mxu0 0.0
  %1060 = vmatpush2.msra.mxu0 0.0
  %1061 = vmatprep.subr.mxu0 0.0
  %1062 = vmatpush2.msra.mxu0 0.0
  %1063 = vmatprep.subr.mxu0 0.0
  %1064 = vmatpush2.msra.mxu0 0.0
  %1065 = vmatprep.subr.mxu0 0.0
  %1066 = vmatpush2.msra.mxu0 0.0
  %1067 = vmatprep.subr.mxu0 0.0
  %1068 = vmatpush2.msra.mxu0 0.0
  %1069 = vmatprep.subr.mxu0 0.0
  %1070 = vmatpush2.msra.mxu0 0.0
  %1071 = vmatprep.subr.mxu0 0.0
  %1072 = vmatpush2.msra.mxu0 0.0
  %1073 = vmatprep.subr.mxu0 0.0
  %1074 = vmatpush2.msra.mxu0 0.0
  %1075 = vmatprep.subr.mxu0 0.0
  %1076 = vmatpush2.msra.mxu0 0.0
  %1077 = vmatprep.subr.mxu0 0.0
  %1078 = vmatpush2.msra.mxu0 0.0
  %1079 = vmatprep.subr.mxu0 0.0
  %1080 = vmatpush2.msra.mxu0 0.0
  %1081 = vmatprep.subr.mxu0 0.0
  %1082 = vmatpush2.msra.mxu0 0.0
  %1083 = vmatprep.subr.mxu0 0.0
  %1084 = vmatpush2.msra.mxu0 0.0
  %1085 = vmatprep.subr.mxu0 0.0
  %1086 = vmatpush2.msra.mxu0 0.0
  %1087 = vmatprep.subr.mxu0 0.0
  %1088 = vmatpush2.msra.mxu0 0.0
  %1089 = vmatprep.mubr.f32.mxu0 0.0
  %1090 = vmatmul.mubr.f32.gmra.mxu0 %v101
  %v1091 = vpop.f32.mrf.mxu0
  %v1092 = vadd.f32 0.0, %v1091
  %v1093 = vpop.f32.mrf.mxu0
  %1094 = vdwg.mxu0
  %v1096 = vsel %vm21, %v1020, 0
  %1098 = vmatprep.subr.mxu0 0.0
  %1099 = vmatpush1.msra.mxu0 0.0
  %1100 = vmatprep.subr.mxu0 0.0
  %1101 = vmatpush1.msra.mxu0 0.0
  %1102 = vmatprep.subr.mxu0 0.0
  %1103 = vmatpush1.msra.mxu0 0.0
  %1104 = vmatprep.subr.mxu0 0.0
  %1105 = vmatpush1.msra.mxu0 0.0
  %1106 = vmatprep.subr.mxu0 0.0
  %1107 = vmatpush1.msra.mxu0 0.0
  %1108 = vmatprep.subr.mxu0 0.0
  %1109 = vmatpush1.msra.mxu0 0.0
  %1110 = vmatprep.subr.mxu0 0.0
  %1111 = vmatpush1.msra.mxu0 0.0
  %1112 = vmatprep.subr.mxu0 0.0
  %1113 = vmatpush1.msra.mxu0 0.0
  %1114 = vmatprep.subr.mxu0 0.0
  %1115 = vmatpush1.msra.mxu0 0.0
  %1116 = vmatprep.subr.mxu0 0.0
  %1117 = vmatpush1.msra.mxu0 0.0
  %1118 = vmatprep.subr.mxu0 0.0
  %1119 = vmatpush1.msra.mxu0 0.0
  %1120 = vmatprep.subr.mxu0 0.0
  %1121 = vmatpush1.msra.mxu0 0.0
  %1122 = vmatprep.subr.mxu0 0.0
  %1123 = vmatpush1.msra.mxu0 0.0
  %1124 = vmatprep.subr.mxu0 0.0
  %1125 = vmatpush1.msra.mxu0 0.0
  %1126 = vmatprep.subr.mxu0 0.0
  %1127 = vmatpush1.msra.mxu0 0.0
  %1128 = vmatprep.subr.mxu0 0.0
  %1129 = vmatpush1.msra.mxu0 %v1096
  %1130 = vmatprep.subr.mxu0 0.0
  %1131 = vmatpush2.msra.mxu0 0.0
  %1132 = vmatprep.subr.mxu0 0.0
  %1133 = vmatpush2.msra.mxu0 0.0
  %1134 = vmatprep.subr.mxu0 0.0
  %1135 = vmatpush2.msra.mxu0 0.0
  %1136 = vmatprep.subr.mxu0 0.0
  %1137 = vmatpush2.msra.mxu0 0.0
  %1138 = vmatprep.subr.mxu0 0.0
  %1139 = vmatpush2.msra.mxu0 0.0
  %1140 = vmatprep.subr.mxu0 0.0
  %1141 = vmatpush2.msra.mxu0 0.0
  %1142 = vmatprep.subr.mxu0 0.0
  %1143 = vmatpush2.msra.mxu0 0.0
  %1144 = vmatprep.subr.mxu0 0.0
  %1145 = vmatpush2.msra.mxu0 0.0
  %1146 = vmatprep.subr.mxu0 0.0
  %1147 = vmatpush2.msra.mxu0 0.0
  %1148 = vmatprep.subr.mxu0 0.0
  %1149 = vmatpush2.msra.mxu0 0.0
  %1150 = vmatprep.subr.mxu0 0.0
  %1151 = vmatpush2.msra.mxu0 0.0
  %1152 = vmatprep.subr.mxu0 0.0
  %1153 = vmatpush2.msra.mxu0 0.0
  %1154 = vmatprep.subr.mxu0 0.0
  %1155 = vmatpush2.msra.mxu0 0.0
  %1156 = vmatprep.subr.mxu0 0.0
  %1157 = vmatpush2.msra.mxu0 0.0
  %1158 = vmatprep.subr.mxu0 0.0
  %1159 = vmatpush2.msra.mxu0 0.0
  %1160 = vmatprep.subr.mxu0 0.0
  %1161 = vmatpush2.msra.mxu0 0.0
  %1162 = vmatprep.mubr.f32.mxu0 0.0
  %1163 = vmatmul.mubr.f32.gmra.mxu0 %v177
  %v1164 = vpop.f32.mrf.mxu0
  %v1165 = vadd.f32 %v1092, %v1164
  %v1166 = vpop.f32.mrf.mxu0
  %1167 = vdwg.mxu0
  %v1168 = vpack.c.bf16 %v1165, %v1165
  %s1169 = scalar_lea.vmem %s2, 18
  %1170 = vst [vmem:[%s1169] sm:$0x3] %v1168
  %v1171 = vld [vmem:[%s1019] sm:$0xf]
  %v1173 = vsel %vm21, %v1171, 0
  %1175 = vmatprep.subr.mxu0 0.0
  %1176 = vmatpush1.msra.mxu0 0.0
  %1177 = vmatprep.subr.mxu0 0.0
  %1178 = vmatpush1.msra.mxu0 0.0
  %1179 = vmatprep.subr.mxu0 0.0
  %1180 = vmatpush1.msra.mxu0 0.0
  %1181 = vmatprep.subr.mxu0 0.0
  %1182 = vmatpush1.msra.mxu0 0.0
  %1183 = vmatprep.subr.mxu0 0.0
  %1184 = vmatpush1.msra.mxu0 0.0
  %1185 = vmatprep.subr.mxu0 0.0
  %1186 = vmatpush1.msra.mxu0 0.0
  %1187 = vmatprep.subr.mxu0 0.0
  %1188 = vmatpush1.msra.mxu0 0.0
  %1189 = vmatprep.subr.mxu0 0.0
  %1190 = vmatpush1.msra.mxu0 0.0
  %1191 = vmatprep.subr.mxu0 0.0
  %1192 = vmatpush1.msra.mxu0 0.0
  %1193 = vmatprep.subr.mxu0 0.0
  %1194 = vmatpush1.msra.mxu0 0.0
  %1195 = vmatprep.subr.mxu0 0.0
  %1196 = vmatpush1.msra.mxu0 0.0
  %1197 = vmatprep.subr.mxu0 0.0
  %1198 = vmatpush1.msra.mxu0 0.0
  %1199 = vmatprep.subr.mxu0 0.0
  %1200 = vmatpush1.msra.mxu0 0.0
  %1201 = vmatprep.subr.mxu0 0.0
  %1202 = vmatpush1.msra.mxu0 0.0
  %1203 = vmatprep.subr.mxu0 0.0
  %1204 = vmatpush1.msra.mxu0 0.0
  %1205 = vmatprep.subr.mxu0 0.0
  %1206 = vmatpush1.msra.mxu0 %v1173
  %1207 = vmatprep.subr.mxu0 0.0
  %1208 = vmatpush2.msra.mxu0 0.0
  %1209 = vmatprep.subr.mxu0 0.0
  %1210 = vmatpush2.msra.mxu0 0.0
  %1211 = vmatprep.subr.mxu0 0.0
  %1212 = vmatpush2.msra.mxu0 0.0
  %1213 = vmatprep.subr.mxu0 0.0
  %1214 = vmatpush2.msra.mxu0 0.0
  %1215 = vmatprep.subr.mxu0 0.0
  %1216 = vmatpush2.msra.mxu0 0.0
  %1217 = vmatprep.subr.mxu0 0.0
  %1218 = vmatpush2.msra.mxu0 0.0
  %1219 = vmatprep.subr.mxu0 0.0
  %1220 = vmatpush2.msra.mxu0 0.0
  %1221 = vmatprep.subr.mxu0 0.0
  %1222 = vmatpush2.msra.mxu0 0.0
  %1223 = vmatprep.subr.mxu0 0.0
  %1224 = vmatpush2.msra.mxu0 0.0
  %1225 = vmatprep.subr.mxu0 0.0
  %1226 = vmatpush2.msra.mxu0 0.0
  %1227 = vmatprep.subr.mxu0 0.0
  %1228 = vmatpush2.msra.mxu0 0.0
  %1229 = vmatprep.subr.mxu0 0.0
  %1230 = vmatpush2.msra.mxu0 0.0
  %1231 = vmatprep.subr.mxu0 0.0
  %1232 = vmatpush2.msra.mxu0 0.0
  %1233 = vmatprep.subr.mxu0 0.0
  %1234 = vmatpush2.msra.mxu0 0.0
  %1235 = vmatprep.subr.mxu0 0.0
  %1236 = vmatpush2.msra.mxu0 0.0
  %1237 = vmatprep.subr.mxu0 0.0
  %1238 = vmatpush2.msra.mxu0 0.0
  %1239 = vmatprep.mubr.f32.mxu0 0.0
  %1240 = vmatmul.mubr.f32.gmra.mxu0 %v19
  %v1241 = vpop.f32.mrf.mxu0
  %v1242 = vadd.f32 0.0, %v1241
  %v1243 = vpop.f32.mrf.mxu0
  %1244 = vdwg.mxu0
  %v1245 = vpack.c.bf16 %v1242, %v1242
  %s1246 = scalar_lea.vmem %s2, 20
  %1247 = vst [vmem:[%s1246] sm:$0x3] %v1245
  %s1248 = scalar_lea.vmem %s0, 24
  %v1249 = vld [vmem:[%s1248] sm:$0xf]
  %v1250 = vld [vmem:[%s1019] sm:$0xf]
  %v1252 = vsel %vm21, %v1250, 0
  %1254 = vmatprep.subr.mxu0 0.0
  %1255 = vmatpush1.msra.mxu0 0.0
  %1256 = vmatprep.subr.mxu0 0.0
  %1257 = vmatpush1.msra.mxu0 0.0
  %1258 = vmatprep.subr.mxu0 0.0
  %1259 = vmatpush1.msra.mxu0 0.0
  %1260 = vmatprep.subr.mxu0 0.0
  %1261 = vmatpush1.msra.mxu0 0.0
  %1262 = vmatprep.subr.mxu0 0.0
  %1263 = vmatpush1.msra.mxu0 0.0
  %1264 = vmatprep.subr.mxu0 0.0
  %1265 = vmatpush1.msra.mxu0 0.0
  %1266 = vmatprep.subr.mxu0 0.0
  %1267 = vmatpush1.msra.mxu0 0.0
  %1268 = vmatprep.subr.mxu0 0.0
  %1269 = vmatpush1.msra.mxu0 0.0
  %1270 = vmatprep.subr.mxu0 0.0
  %1271 = vmatpush1.msra.mxu0 0.0
  %1272 = vmatprep.subr.mxu0 0.0
  %1273 = vmatpush1.msra.mxu0 0.0
  %1274 = vmatprep.subr.mxu0 0.0
  %1275 = vmatpush1.msra.mxu0 0.0
  %1276 = vmatprep.subr.mxu0 0.0
  %1277 = vmatpush1.msra.mxu0 0.0
  %1278 = vmatprep.subr.mxu0 0.0
  %1279 = vmatpush1.msra.mxu0 0.0
  %1280 = vmatprep.subr.mxu0 0.0
  %1281 = vmatpush1.msra.mxu0 0.0
  %1282 = vmatprep.subr.mxu0 0.0
  %1283 = vmatpush1.msra.mxu0 0.0
  %1284 = vmatprep.subr.mxu0 0.0
  %1285 = vmatpush1.msra.mxu0 %v1252
  %1286 = vmatprep.subr.mxu0 0.0
  %1287 = vmatpush2.msra.mxu0 0.0
  %1288 = vmatprep.subr.mxu0 0.0
  %1289 = vmatpush2.msra.mxu0 0.0
  %1290 = vmatprep.subr.mxu0 0.0
  %1291 = vmatpush2.msra.mxu0 0.0
  %1292 = vmatprep.subr.mxu0 0.0
  %1293 = vmatpush2.msra.mxu0 0.0
  %1294 = vmatprep.subr.mxu0 0.0
  %1295 = vmatpush2.msra.mxu0 0.0
  %1296 = vmatprep.subr.mxu0 0.0
  %1297 = vmatpush2.msra.mxu0 0.0
  %1298 = vmatprep.subr.mxu0 0.0
  %1299 = vmatpush2.msra.mxu0 0.0
  %1300 = vmatprep.subr.mxu0 0.0
  %1301 = vmatpush2.msra.mxu0 0.0
  %1302 = vmatprep.subr.mxu0 0.0
  %1303 = vmatpush2.msra.mxu0 0.0
  %1304 = vmatprep.subr.mxu0 0.0
  %1305 = vmatpush2.msra.mxu0 0.0
  %1306 = vmatprep.subr.mxu0 0.0
  %1307 = vmatpush2.msra.mxu0 0.0
  %1308 = vmatprep.subr.mxu0 0.0
  %1309 = vmatpush2.msra.mxu0 0.0
  %1310 = vmatprep.subr.mxu0 0.0
  %1311 = vmatpush2.msra.mxu0 0.0
  %1312 = vmatprep.subr.mxu0 0.0
  %1313 = vmatpush2.msra.mxu0 0.0
  %1314 = vmatprep.subr.mxu0 0.0
  %1315 = vmatpush2.msra.mxu0 0.0
  %1316 = vmatprep.subr.mxu0 0.0
  %1317 = vmatpush2.msra.mxu0 0.0
  %1318 = vmatprep.mubr.f32.mxu0 0.0
  %1319 = vmatmul.mubr.f32.gmra.mxu0 %v101
  %v1320 = vpop.f32.mrf.mxu0
  %v1321 = vadd.f32 0.0, %v1320
  %v1322 = vpop.f32.mrf.mxu0
  %1323 = vdwg.mxu0
  %v1325 = vsel %vm21, %v1249, 0
  %1327 = vmatprep.subr.mxu0 0.0
  %1328 = vmatpush1.msra.mxu0 0.0
  %1329 = vmatprep.subr.mxu0 0.0
  %1330 = vmatpush1.msra.mxu0 0.0
  %1331 = vmatprep.subr.mxu0 0.0
  %1332 = vmatpush1.msra.mxu0 0.0
  %1333 = vmatprep.subr.mxu0 0.0
  %1334 = vmatpush1.msra.mxu0 0.0
  %1335 = vmatprep.subr.mxu0 0.0
  %1336 = vmatpush1.msra.mxu0 0.0
  %1337 = vmatprep.subr.mxu0 0.0
  %1338 = vmatpush1.msra.mxu0 0.0
  %1339 = vmatprep.subr.mxu0 0.0
  %1340 = vmatpush1.msra.mxu0 0.0
  %1341 = vmatprep.subr.mxu0 0.0
  %1342 = vmatpush1.msra.mxu0 0.0
  %1343 = vmatprep.subr.mxu0 0.0
  %1344 = vmatpush1.msra.mxu0 0.0
  %1345 = vmatprep.subr.mxu0 0.0
  %1346 = vmatpush1.msra.mxu0 0.0
  %1347 = vmatprep.subr.mxu0 0.0
  %1348 = vmatpush1.msra.mxu0 0.0
  %1349 = vmatprep.subr.mxu0 0.0
  %1350 = vmatpush1.msra.mxu0 0.0
  %1351 = vmatprep.subr.mxu0 0.0
  %1352 = vmatpush1.msra.mxu0 0.0
  %1353 = vmatprep.subr.mxu0 0.0
  %1354 = vmatpush1.msra.mxu0 0.0
  %1355 = vmatprep.subr.mxu0 0.0
  %1356 = vmatpush1.msra.mxu0 0.0
  %1357 = vmatprep.subr.mxu0 0.0
  %1358 = vmatpush1.msra.mxu0 %v1325
  %1359 = vmatprep.subr.mxu0 0.0
  %1360 = vmatpush2.msra.mxu0 0.0
  %1361 = vmatprep.subr.mxu0 0.0
  %1362 = vmatpush2.msra.mxu0 0.0
  %1363 = vmatprep.subr.mxu0 0.0
  %1364 = vmatpush2.msra.mxu0 0.0
  %1365 = vmatprep.subr.mxu0 0.0
  %1366 = vmatpush2.msra.mxu0 0.0
  %1367 = vmatprep.subr.mxu0 0.0
  %1368 = vmatpush2.msra.mxu0 0.0
  %1369 = vmatprep.subr.mxu0 0.0
  %1370 = vmatpush2.msra.mxu0 0.0
  %1371 = vmatprep.subr.mxu0 0.0
  %1372 = vmatpush2.msra.mxu0 0.0
  %1373 = vmatprep.subr.mxu0 0.0
  %1374 = vmatpush2.msra.mxu0 0.0
  %1375 = vmatprep.subr.mxu0 0.0
  %1376 = vmatpush2.msra.mxu0 0.0
  %1377 = vmatprep.subr.mxu0 0.0
  %1378 = vmatpush2.msra.mxu0 0.0
  %1379 = vmatprep.subr.mxu0 0.0
  %1380 = vmatpush2.msra.mxu0 0.0
  %1381 = vmatprep.subr.mxu0 0.0
  %1382 = vmatpush2.msra.mxu0 0.0
  %1383 = vmatprep.subr.mxu0 0.0
  %1384 = vmatpush2.msra.mxu0 0.0
  %1385 = vmatprep.subr.mxu0 0.0
  %1386 = vmatpush2.msra.mxu0 0.0
  %1387 = vmatprep.subr.mxu0 0.0
  %1388 = vmatpush2.msra.mxu0 0.0
  %1389 = vmatprep.subr.mxu0 0.0
  %1390 = vmatpush2.msra.mxu0 0.0
  %1391 = vmatprep.mubr.f32.mxu0 0.0
  %1392 = vmatmul.mubr.f32.gmra.mxu0 %v177
  %v1393 = vpop.f32.mrf.mxu0
  %v1394 = vadd.f32 %v1321, %v1393
  %v1395 = vpop.f32.mrf.mxu0
  %1396 = vdwg.mxu0
  %v1397 = vpack.c.bf16 %v1394, %v1394
  %s1398 = scalar_lea.vmem %s2, 22
  %1399 = vst [vmem:[%s1398] sm:$0x3] %v1397
  %v1400 = vld [vmem:[%s1248] sm:$0xf]
  %v1402 = vsel %vm21, %v1400, 0
  %1404 = vmatprep.subr.mxu0 0.0
  %1405 = vmatpush1.msra.mxu0 0.0
  %1406 = vmatprep.subr.mxu0 0.0
  %1407 = vmatpush1.msra.mxu0 0.0
  %1408 = vmatprep.subr.mxu0 0.0
  %1409 = vmatpush1.msra.mxu0 0.0
  %1410 = vmatprep.subr.mxu0 0.0
  %1411 = vmatpush1.msra.mxu0 0.0
  %1412 = vmatprep.subr.mxu0 0.0
  %1413 = vmatpush1.msra.mxu0 0.0
  %1414 = vmatprep.subr.mxu0 0.0
  %1415 = vmatpush1.msra.mxu0 0.0
  %1416 = vmatprep.subr.mxu0 0.0
  %1417 = vmatpush1.msra.mxu0 0.0
  %1418 = vmatprep.subr.mxu0 0.0
  %1419 = vmatpush1.msra.mxu0 0.0
  %1420 = vmatprep.subr.mxu0 0.0
  %1421 = vmatpush1.msra.mxu0 0.0
  %1422 = vmatprep.subr.mxu0 0.0
  %1423 = vmatpush1.msra.mxu0 0.0
  %1424 = vmatprep.subr.mxu0 0.0
  %1425 = vmatpush1.msra.mxu0 0.0
  %1426 = vmatprep.subr.mxu0 0.0
  %1427 = vmatpush1.msra.mxu0 0.0
  %1428 = vmatprep.subr.mxu0 0.0
  %1429 = vmatpush1.msra.mxu0 0.0
  %1430 = vmatprep.subr.mxu0 0.0
  %1431 = vmatpush1.msra.mxu0 0.0
  %1432 = vmatprep.subr.mxu0 0.0
  %1433 = vmatpush1.msra.mxu0 0.0
  %1434 = vmatprep.subr.mxu0 0.0
  %1435 = vmatpush1.msra.mxu0 %v1402
  %1436 = vmatprep.subr.mxu0 0.0
  %1437 = vmatpush2.msra.mxu0 0.0
  %1438 = vmatprep.subr.mxu0 0.0
  %1439 = vmatpush2.msra.mxu0 0.0
  %1440 = vmatprep.subr.mxu0 0.0
  %1441 = vmatpush2.msra.mxu0 0.0
  %1442 = vmatprep.subr.mxu0 0.0
  %1443 = vmatpush2.msra.mxu0 0.0
  %1444 = vmatprep.subr.mxu0 0.0
  %1445 = vmatpush2.msra.mxu0 0.0
  %1446 = vmatprep.subr.mxu0 0.0
  %1447 = vmatpush2.msra.mxu0 0.0
  %1448 = vmatprep.subr.mxu0 0.0
  %1449 = vmatpush2.msra.mxu0 0.0
  %1450 = vmatprep.subr.mxu0 0.0
  %1451 = vmatpush2.msra.mxu0 0.0
  %1452 = vmatprep.subr.mxu0 0.0
  %1453 = vmatpush2.msra.mxu0 0.0
  %1454 = vmatprep.subr.mxu0 0.0
  %1455 = vmatpush2.msra.mxu0 0.0
  %1456 = vmatprep.subr.mxu0 0.0
  %1457 = vmatpush2.msra.mxu0 0.0
  %1458 = vmatprep.subr.mxu0 0.0
  %1459 = vmatpush2.msra.mxu0 0.0
  %1460 = vmatprep.subr.mxu0 0.0
  %1461 = vmatpush2.msra.mxu0 0.0
  %1462 = vmatprep.subr.mxu0 0.0
  %1463 = vmatpush2.msra.mxu0 0.0
  %1464 = vmatprep.subr.mxu0 0.0
  %1465 = vmatpush2.msra.mxu0 0.0
  %1466 = vmatprep.subr.mxu0 0.0
  %1467 = vmatpush2.msra.mxu0 0.0
  %1468 = vmatprep.mubr.f32.mxu0 0.0
  %1469 = vmatmul.mubr.f32.gmra.mxu0 %v19
  %v1470 = vpop.f32.mrf.mxu0
  %v1471 = vadd.f32 0.0, %v1470
  %v1472 = vpop.f32.mrf.mxu0
  %1473 = vdwg.mxu0
  %v1474 = vpack.c.bf16 %v1471, %v1471
  %s1475 = scalar_lea.vmem %s2, 24
  %1476 = vst [vmem:[%s1475] sm:$0x3] %v1474
  %s1477 = scalar_lea.vmem %s0, 28
  %v1478 = vld [vmem:[%s1477] sm:$0xf]
  %v1479 = vld [vmem:[%s1248] sm:$0xf]
  %v1481 = vsel %vm21, %v1479, 0
  %1483 = vmatprep.subr.mxu0 0.0
  %1484 = vmatpush1.msra.mxu0 0.0
  %1485 = vmatprep.subr.mxu0 0.0
  %1486 = vmatpush1.msra.mxu0 0.0
  %1487 = vmatprep.subr.mxu0 0.0
  %1488 = vmatpush1.msra.mxu0 0.0
  %1489 = vmatprep.subr.mxu0 0.0
  %1490 = vmatpush1.msra.mxu0 0.0
  %1491 = vmatprep.subr.mxu0 0.0
  %1492 = vmatpush1.msra.mxu0 0.0
  %1493 = vmatprep.subr.mxu0 0.0
  %1494 = vmatpush1.msra.mxu0 0.0
  %1495 = vmatprep.subr.mxu0 0.0
  %1496 = vmatpush1.msra.mxu0 0.0
  %1497 = vmatprep.subr.mxu0 0.0
  %1498 = vmatpush1.msra.mxu0 0.0
  %1499 = vmatprep.subr.mxu0 0.0
  %1500 = vmatpush1.msra.mxu0 0.0
  %1501 = vmatprep.subr.mxu0 0.0
  %1502 = vmatpush1.msra.mxu0 0.0
  %1503 = vmatprep.subr.mxu0 0.0
  %1504 = vmatpush1.msra.mxu0 0.0
  %1505 = vmatprep.subr.mxu0 0.0
  %1506 = vmatpush1.msra.mxu0 0.0
  %1507 = vmatprep.subr.mxu0 0.0
  %1508 = vmatpush1.msra.mxu0 0.0
  %1509 = vmatprep.subr.mxu0 0.0
  %1510 = vmatpush1.msra.mxu0 0.0
  %1511 = vmatprep.subr.mxu0 0.0
  %1512 = vmatpush1.msra.mxu0 0.0
  %1513 = vmatprep.subr.mxu0 0.0
  %1514 = vmatpush1.msra.mxu0 %v1481
  %1515 = vmatprep.subr.mxu0 0.0
  %1516 = vmatpush2.msra.mxu0 0.0
  %1517 = vmatprep.subr.mxu0 0.0
  %1518 = vmatpush2.msra.mxu0 0.0
  %1519 = vmatprep.subr.mxu0 0.0
  %1520 = vmatpush2.msra.mxu0 0.0
  %1521 = vmatprep.subr.mxu0 0.0
  %1522 = vmatpush2.msra.mxu0 0.0
  %1523 = vmatprep.subr.mxu0 0.0
  %1524 = vmatpush2.msra.mxu0 0.0
  %1525 = vmatprep.subr.mxu0 0.0
  %1526 = vmatpush2.msra.mxu0 0.0
  %1527 = vmatprep.subr.mxu0 0.0
  %1528 = vmatpush2.msra.mxu0 0.0
  %1529 = vmatprep.subr.mxu0 0.0
  %1530 = vmatpush2.msra.mxu0 0.0
  %1531 = vmatprep.subr.mxu0 0.0
  %1532 = vmatpush2.msra.mxu0 0.0
  %1533 = vmatprep.subr.mxu0 0.0
  %1534 = vmatpush2.msra.mxu0 0.0
  %1535 = vmatprep.subr.mxu0 0.0
  %1536 = vmatpush2.msra.mxu0 0.0
  %1537 = vmatprep.subr.mxu0 0.0
  %1538 = vmatpush2.msra.mxu0 0.0
  %1539 = vmatprep.subr.mxu0 0.0
  %1540 = vmatpush2.msra.mxu0 0.0
  %1541 = vmatprep.subr.mxu0 0.0
  %1542 = vmatpush2.msra.mxu0 0.0
  %1543 = vmatprep.subr.mxu0 0.0
  %1544 = vmatpush2.msra.mxu0 0.0
  %1545 = vmatprep.subr.mxu0 0.0
  %1546 = vmatpush2.msra.mxu0 0.0
  %1547 = vmatprep.mubr.f32.mxu0 0.0
  %1548 = vmatmul.mubr.f32.gmra.mxu0 %v101
  %v1549 = vpop.f32.mrf.mxu0
  %v1550 = vadd.f32 0.0, %v1549
  %v1551 = vpop.f32.mrf.mxu0
  %1552 = vdwg.mxu0
  %v1554 = vsel %vm21, %v1478, 0
  %1556 = vmatprep.subr.mxu0 0.0
  %1557 = vmatpush1.msra.mxu0 0.0
  %1558 = vmatprep.subr.mxu0 0.0
  %1559 = vmatpush1.msra.mxu0 0.0
  %1560 = vmatprep.subr.mxu0 0.0
  %1561 = vmatpush1.msra.mxu0 0.0
  %1562 = vmatprep.subr.mxu0 0.0
  %1563 = vmatpush1.msra.mxu0 0.0
  %1564 = vmatprep.subr.mxu0 0.0
  %1565 = vmatpush1.msra.mxu0 0.0
  %1566 = vmatprep.subr.mxu0 0.0
  %1567 = vmatpush1.msra.mxu0 0.0
  %1568 = vmatprep.subr.mxu0 0.0
  %1569 = vmatpush1.msra.mxu0 0.0
  %1570 = vmatprep.subr.mxu0 0.0
  %1571 = vmatpush1.msra.mxu0 0.0
  %1572 = vmatprep.subr.mxu0 0.0
  %1573 = vmatpush1.msra.mxu0 0.0
  %1574 = vmatprep.subr.mxu0 0.0
  %1575 = vmatpush1.msra.mxu0 0.0
  %1576 = vmatprep.subr.mxu0 0.0
  %1577 = vmatpush1.msra.mxu0 0.0
  %1578 = vmatprep.subr.mxu0 0.0
  %1579 = vmatpush1.msra.mxu0 0.0
  %1580 = vmatprep.subr.mxu0 0.0
  %1581 = vmatpush1.msra.mxu0 0.0
  %1582 = vmatprep.subr.mxu0 0.0
  %1583 = vmatpush1.msra.mxu0 0.0
  %1584 = vmatprep.subr.mxu0 0.0
  %1585 = vmatpush1.msra.mxu0 0.0
  %1586 = vmatprep.subr.mxu0 0.0
  %1587 = vmatpush1.msra.mxu0 %v1554
  %1588 = vmatprep.subr.mxu0 0.0
  %1589 = vmatpush2.msra.mxu0 0.0
  %1590 = vmatprep.subr.mxu0 0.0
  %1591 = vmatpush2.msra.mxu0 0.0
  %1592 = vmatprep.subr.mxu0 0.0
  %1593 = vmatpush2.msra.mxu0 0.0
  %1594 = vmatprep.subr.mxu0 0.0
  %1595 = vmatpush2.msra.mxu0 0.0
  %1596 = vmatprep.subr.mxu0 0.0
  %1597 = vmatpush2.msra.mxu0 0.0
  %1598 = vmatprep.subr.mxu0 0.0
  %1599 = vmatpush2.msra.mxu0 0.0
  %1600 = vmatprep.subr.mxu0 0.0
  %1601 = vmatpush2.msra.mxu0 0.0
  %1602 = vmatprep.subr.mxu0 0.0
  %1603 = vmatpush2.msra.mxu0 0.0
  %1604 = vmatprep.subr.mxu0 0.0
  %1605 = vmatpush2.msra.mxu0 0.0
  %1606 = vmatprep.subr.mxu0 0.0
  %1607 = vmatpush2.msra.mxu0 0.0
  %1608 = vmatprep.subr.mxu0 0.0
  %1609 = vmatpush2.msra.mxu0 0.0
  %1610 = vmatprep.subr.mxu0 0.0
  %1611 = vmatpush2.msra.mxu0 0.0
  %1612 = vmatprep.subr.mxu0 0.0
  %1613 = vmatpush2.msra.mxu0 0.0
  %1614 = vmatprep.subr.mxu0 0.0
  %1615 = vmatpush2.msra.mxu0 0.0
  %1616 = vmatprep.subr.mxu0 0.0
  %1617 = vmatpush2.msra.mxu0 0.0
  %1618 = vmatprep.subr.mxu0 0.0
  %1619 = vmatpush2.msra.mxu0 0.0
  %1620 = vmatprep.mubr.f32.mxu0 0.0
  %1621 = vmatmul.mubr.f32.gmra.mxu0 %v177
  %v1622 = vpop.f32.mrf.mxu0
  %v1623 = vadd.f32 %v1550, %v1622
  %v1624 = vpop.f32.mrf.mxu0
  %1625 = vdwg.mxu0
  %v1626 = vpack.c.bf16 %v1623, %v1623
  %s1627 = scalar_lea.vmem %s2, 26
  %1628 = vst [vmem:[%s1627] sm:$0x3] %v1626
  %v1629 = vld [vmem:[%s1477] sm:$0xf]
  %v1631 = vsel %vm21, %v1629, 0
  %1633 = vmatprep.subr.mxu0 0.0
  %1634 = vmatpush1.msra.mxu0 0.0
  %1635 = vmatprep.subr.mxu0 0.0
  %1636 = vmatpush1.msra.mxu0 0.0
  %1637 = vmatprep.subr.mxu0 0.0
  %1638 = vmatpush1.msra.mxu0 0.0
  %1639 = vmatprep.subr.mxu0 0.0
  %1640 = vmatpush1.msra.mxu0 0.0
  %1641 = vmatprep.subr.mxu0 0.0
  %1642 = vmatpush1.msra.mxu0 0.0
  %1643 = vmatprep.subr.mxu0 0.0
  %1644 = vmatpush1.msra.mxu0 0.0
  %1645 = vmatprep.subr.mxu0 0.0
  %1646 = vmatpush1.msra.mxu0 0.0
  %1647 = vmatprep.subr.mxu0 0.0
  %1648 = vmatpush1.msra.mxu0 0.0
  %1649 = vmatprep.subr.mxu0 0.0
  %1650 = vmatpush1.msra.mxu0 0.0
  %1651 = vmatprep.subr.mxu0 0.0
  %1652 = vmatpush1.msra.mxu0 0.0
  %1653 = vmatprep.subr.mxu0 0.0
  %1654 = vmatpush1.msra.mxu0 0.0
  %1655 = vmatprep.subr.mxu0 0.0
  %1656 = vmatpush1.msra.mxu0 0.0
  %1657 = vmatprep.subr.mxu0 0.0
  %1658 = vmatpush1.msra.mxu0 0.0
  %1659 = vmatprep.subr.mxu0 0.0
  %1660 = vmatpush1.msra.mxu0 0.0
  %1661 = vmatprep.subr.mxu0 0.0
  %1662 = vmatpush1.msra.mxu0 0.0
  %1663 = vmatprep.subr.mxu0 0.0
  %1664 = vmatpush1.msra.mxu0 %v1631
  %1665 = vmatprep.subr.mxu0 0.0
  %1666 = vmatpush2.msra.mxu0 0.0
  %1667 = vmatprep.subr.mxu0 0.0
  %1668 = vmatpush2.msra.mxu0 0.0
  %1669 = vmatprep.subr.mxu0 0.0
  %1670 = vmatpush2.msra.mxu0 0.0
  %1671 = vmatprep.subr.mxu0 0.0
  %1672 = vmatpush2.msra.mxu0 0.0
  %1673 = vmatprep.subr.mxu0 0.0
  %1674 = vmatpush2.msra.mxu0 0.0
  %1675 = vmatprep.subr.mxu0 0.0
  %1676 = vmatpush2.msra.mxu0 0.0
  %1677 = vmatprep.subr.mxu0 0.0
  %1678 = vmatpush2.msra.mxu0 0.0
  %1679 = vmatprep.subr.mxu0 0.0
  %1680 = vmatpush2.msra.mxu0 0.0
  %1681 = vmatprep.subr.mxu0 0.0
  %1682 = vmatpush2.msra.mxu0 0.0
  %1683 = vmatprep.subr.mxu0 0.0
  %1684 = vmatpush2.msra.mxu0 0.0
  %1685 = vmatprep.subr.mxu0 0.0
  %1686 = vmatpush2.msra.mxu0 0.0
  %1687 = vmatprep.subr.mxu0 0.0
  %1688 = vmatpush2.msra.mxu0 0.0
  %1689 = vmatprep.subr.mxu0 0.0
  %1690 = vmatpush2.msra.mxu0 0.0
  %1691 = vmatprep.subr.mxu0 0.0
  %1692 = vmatpush2.msra.mxu0 0.0
  %1693 = vmatprep.subr.mxu0 0.0
  %1694 = vmatpush2.msra.mxu0 0.0
  %1695 = vmatprep.subr.mxu0 0.0
  %1696 = vmatpush2.msra.mxu0 0.0
  %1697 = vmatprep.mubr.f32.mxu0 0.0
  %1698 = vmatmul.mubr.f32.gmra.mxu0 %v19
  %v1699 = vpop.f32.mrf.mxu0
  %v1700 = vadd.f32 0.0, %v1699
  %v1701 = vpop.f32.mrf.mxu0
  %1702 = vdwg.mxu0
  %v1703 = vpack.c.bf16 %v1700, %v1700
  %s1704 = scalar_lea.vmem %s2, 28
  %1705 = vst [vmem:[%s1704] sm:$0x3] %v1703
  %s1706 = scalar_lea.vmem %s0, 32
  %v1707 = vld [vmem:[%s1706] sm:$0xf]
  %v1708 = vld [vmem:[%s1477] sm:$0xf]
  %v1710 = vsel %vm21, %v1708, 0
  %1712 = vmatprep.subr.mxu0 0.0
  %1713 = vmatpush1.msra.mxu0 0.0
  %1714 = vmatprep.subr.mxu0 0.0
  %1715 = vmatpush1.msra.mxu0 0.0
  %1716 = vmatprep.subr.mxu0 0.0
  %1717 = vmatpush1.msra.mxu0 0.0
  %1718 = vmatprep.subr.mxu0 0.0
  %1719 = vmatpush1.msra.mxu0 0.0
  %1720 = vmatprep.subr.mxu0 0.0
  %1721 = vmatpush1.msra.mxu0 0.0
  %1722 = vmatprep.subr.mxu0 0.0
  %1723 = vmatpush1.msra.mxu0 0.0
  %1724 = vmatprep.subr.mxu0 0.0
  %1725 = vmatpush1.msra.mxu0 0.0
  %1726 = vmatprep.subr.mxu0 0.0
  %1727 = vmatpush1.msra.mxu0 0.0
  %1728 = vmatprep.subr.mxu0 0.0
  %1729 = vmatpush1.msra.mxu0 0.0
  %1730 = vmatprep.subr.mxu0 0.0
  %1731 = vmatpush1.msra.mxu0 0.0
  %1732 = vmatprep.subr.mxu0 0.0
  %1733 = vmatpush1.msra.mxu0 0.0
  %1734 = vmatprep.subr.mxu0 0.0
  %1735 = vmatpush1.msra.mxu0 0.0
  %1736 = vmatprep.subr.mxu0 0.0
  %1737 = vmatpush1.msra.mxu0 0.0
  %1738 = vmatprep.subr.mxu0 0.0
  %1739 = vmatpush1.msra.mxu0 0.0
  %1740 = vmatprep.subr.mxu0 0.0
  %1741 = vmatpush1.msra.mxu0 0.0
  %1742 = vmatprep.subr.mxu0 0.0
  %1743 = vmatpush1.msra.mxu0 %v1710
  %1744 = vmatprep.subr.mxu0 0.0
  %1745 = vmatpush2.msra.mxu0 0.0
  %1746 = vmatprep.subr.mxu0 0.0
  %1747 = vmatpush2.msra.mxu0 0.0
  %1748 = vmatprep.subr.mxu0 0.0
  %1749 = vmatpush2.msra.mxu0 0.0
  %1750 = vmatprep.subr.mxu0 0.0
  %1751 = vmatpush2.msra.mxu0 0.0
  %1752 = vmatprep.subr.mxu0 0.0
  %1753 = vmatpush2.msra.mxu0 0.0
  %1754 = vmatprep.subr.mxu0 0.0
  %1755 = vmatpush2.msra.mxu0 0.0
  %1756 = vmatprep.subr.mxu0 0.0
  %1757 = vmatpush2.msra.mxu0 0.0
  %1758 = vmatprep.subr.mxu0 0.0
  %1759 = vmatpush2.msra.mxu0 0.0
  %1760 = vmatprep.subr.mxu0 0.0
  %1761 = vmatpush2.msra.mxu0 0.0
  %1762 = vmatprep.subr.mxu0 0.0
  %1763 = vmatpush2.msra.mxu0 0.0
  %1764 = vmatprep.subr.mxu0 0.0
  %1765 = vmatpush2.msra.mxu0 0.0
  %1766 = vmatprep.subr.mxu0 0.0
  %1767 = vmatpush2.msra.mxu0 0.0
  %1768 = vmatprep.subr.mxu0 0.0
  %1769 = vmatpush2.msra.mxu0 0.0
  %1770 = vmatprep.subr.mxu0 0.0
  %1771 = vmatpush2.msra.mxu0 0.0
  %1772 = vmatprep.subr.mxu0 0.0
  %1773 = vmatpush2.msra.mxu0 0.0
  %1774 = vmatprep.subr.mxu0 0.0
  %1775 = vmatpush2.msra.mxu0 0.0
  %1776 = vmatprep.mubr.f32.mxu0 0.0
  %1777 = vmatmul.mubr.f32.gmra.mxu0 %v101
  %v1778 = vpop.f32.mrf.mxu0
  %v1779 = vadd.f32 0.0, %v1778
  %v1780 = vpop.f32.mrf.mxu0
  %1781 = vdwg.mxu0
  %v1783 = vsel %vm21, %v1707, 0
  %1785 = vmatprep.subr.mxu0 0.0
  %1786 = vmatpush1.msra.mxu0 0.0
  %1787 = vmatprep.subr.mxu0 0.0
  %1788 = vmatpush1.msra.mxu0 0.0
  %1789 = vmatprep.subr.mxu0 0.0
  %1790 = vmatpush1.msra.mxu0 0.0
  %1791 = vmatprep.subr.mxu0 0.0
  %1792 = vmatpush1.msra.mxu0 0.0
  %1793 = vmatprep.subr.mxu0 0.0
  %1794 = vmatpush1.msra.mxu0 0.0
  %1795 = vmatprep.subr.mxu0 0.0
  %1796 = vmatpush1.msra.mxu0 0.0
  %1797 = vmatprep.subr.mxu0 0.0
  %1798 = vmatpush1.msra.mxu0 0.0
  %1799 = vmatprep.subr.mxu0 0.0
  %1800 = vmatpush1.msra.mxu0 0.0
  %1801 = vmatprep.subr.mxu0 0.0
  %1802 = vmatpush1.msra.mxu0 0.0
  %1803 = vmatprep.subr.mxu0 0.0
  %1804 = vmatpush1.msra.mxu0 0.0
  %1805 = vmatprep.subr.mxu0 0.0
  %1806 = vmatpush1.msra.mxu0 0.0
  %1807 = vmatprep.subr.mxu0 0.0
  %1808 = vmatpush1.msra.mxu0 0.0
  %1809 = vmatprep.subr.mxu0 0.0
  %1810 = vmatpush1.msra.mxu0 0.0
  %1811 = vmatprep.subr.mxu0 0.0
  %1812 = vmatpush1.msra.mxu0 0.0
  %1813 = vmatprep.subr.mxu0 0.0
  %1814 = vmatpush1.msra.mxu0 0.0
  %1815 = vmatprep.subr.mxu0 0.0
  %1816 = vmatpush1.msra.mxu0 %v1783
  %1817 = vmatprep.subr.mxu0 0.0
  %1818 = vmatpush2.msra.mxu0 0.0
  %1819 = vmatprep.subr.mxu0 0.0
  %1820 = vmatpush2.msra.mxu0 0.0
  %1821 = vmatprep.subr.mxu0 0.0
  %1822 = vmatpush2.msra.mxu0 0.0
  %1823 = vmatprep.subr.mxu0 0.0
  %1824 = vmatpush2.msra.mxu0 0.0
  %1825 = vmatprep.subr.mxu0 0.0
  %1826 = vmatpush2.msra.mxu0 0.0
  %1827 = vmatprep.subr.mxu0 0.0
  %1828 = vmatpush2.msra.mxu0 0.0
  %1829 = vmatprep.subr.mxu0 0.0
  %1830 = vmatpush2.msra.mxu0 0.0
  %1831 = vmatprep.subr.mxu0 0.0
  %1832 = vmatpush2.msra.mxu0 0.0
  %1833 = vmatprep.subr.mxu0 0.0
  %1834 = vmatpush2.msra.mxu0 0.0
  %1835 = vmatprep.subr.mxu0 0.0
  %1836 = vmatpush2.msra.mxu0 0.0
  %1837 = vmatprep.subr.mxu0 0.0
  %1838 = vmatpush2.msra.mxu0 0.0
  %1839 = vmatprep.subr.mxu0 0.0
  %1840 = vmatpush2.msra.mxu0 0.0
  %1841 = vmatprep.subr.mxu0 0.0
  %1842 = vmatpush2.msra.mxu0 0.0
  %1843 = vmatprep.subr.mxu0 0.0
  %1844 = vmatpush2.msra.mxu0 0.0
  %1845 = vmatprep.subr.mxu0 0.0
  %1846 = vmatpush2.msra.mxu0 0.0
  %1847 = vmatprep.subr.mxu0 0.0
  %1848 = vmatpush2.msra.mxu0 0.0
  %1849 = vmatprep.mubr.f32.mxu0 0.0
  %1850 = vmatmul.mubr.f32.gmra.mxu0 %v177
  %v1851 = vpop.f32.mrf.mxu0
  %v1852 = vadd.f32 %v1779, %v1851
  %v1853 = vpop.f32.mrf.mxu0
  %1854 = vdwg.mxu0
  %v1855 = vpack.c.bf16 %v1852, %v1852
  %s1856 = scalar_lea.vmem %s2, 30
  %1857 = vst [vmem:[%s1856] sm:$0x3] %v1855
  %v1858 = vld [vmem:[%s1706] sm:$0xf]
  %v1860 = vsel %vm21, %v1858, 0
  %1862 = vmatprep.subr.mxu0 0.0
  %1863 = vmatpush1.msra.mxu0 0.0
  %1864 = vmatprep.subr.mxu0 0.0
  %1865 = vmatpush1.msra.mxu0 0.0
  %1866 = vmatprep.subr.mxu0 0.0
  %1867 = vmatpush1.msra.mxu0 0.0
  %1868 = vmatprep.subr.mxu0 0.0
  %1869 = vmatpush1.msra.mxu0 0.0
  %1870 = vmatprep.subr.mxu0 0.0
  %1871 = vmatpush1.msra.mxu0 0.0
  %1872 = vmatprep.subr.mxu0 0.0
  %1873 = vmatpush1.msra.mxu0 0.0
  %1874 = vmatprep.subr.mxu0 0.0
  %1875 = vmatpush1.msra.mxu0 0.0
  %1876 = vmatprep.subr.mxu0 0.0
  %1877 = vmatpush1.msra.mxu0 0.0
  %1878 = vmatprep.subr.mxu0 0.0
  %1879 = vmatpush1.msra.mxu0 0.0
  %1880 = vmatprep.subr.mxu0 0.0
  %1881 = vmatpush1.msra.mxu0 0.0
  %1882 = vmatprep.subr.mxu0 0.0
  %1883 = vmatpush1.msra.mxu0 0.0
  %1884 = vmatprep.subr.mxu0 0.0
  %1885 = vmatpush1.msra.mxu0 0.0
  %1886 = vmatprep.subr.mxu0 0.0
  %1887 = vmatpush1.msra.mxu0 0.0
  %1888 = vmatprep.subr.mxu0 0.0
  %1889 = vmatpush1.msra.mxu0 0.0
  %1890 = vmatprep.subr.mxu0 0.0
  %1891 = vmatpush1.msra.mxu0 0.0
  %1892 = vmatprep.subr.mxu0 0.0
  %1893 = vmatpush1.msra.mxu0 %v1860
  %1894 = vmatprep.subr.mxu0 0.0
  %1895 = vmatpush2.msra.mxu0 0.0
  %1896 = vmatprep.subr.mxu0 0.0
  %1897 = vmatpush2.msra.mxu0 0.0
  %1898 = vmatprep.subr.mxu0 0.0
  %1899 = vmatpush2.msra.mxu0 0.0
  %1900 = vmatprep.subr.mxu0 0.0
  %1901 = vmatpush2.msra.mxu0 0.0
  %1902 = vmatprep.subr.mxu0 0.0
  %1903 = vmatpush2.msra.mxu0 0.0
  %1904 = vmatprep.subr.mxu0 0.0
  %1905 = vmatpush2.msra.mxu0 0.0
  %1906 = vmatprep.subr.mxu0 0.0
  %1907 = vmatpush2.msra.mxu0 0.0
  %1908 = vmatprep.subr.mxu0 0.0
  %1909 = vmatpush2.msra.mxu0 0.0
  %1910 = vmatprep.subr.mxu0 0.0
  %1911 = vmatpush2.msra.mxu0 0.0
  %1912 = vmatprep.subr.mxu0 0.0
  %1913 = vmatpush2.msra.mxu0 0.0
  %1914 = vmatprep.subr.mxu0 0.0
  %1915 = vmatpush2.msra.mxu0 0.0
  %1916 = vmatprep.subr.mxu0 0.0
  %1917 = vmatpush2.msra.mxu0 0.0
  %1918 = vmatprep.subr.mxu0 0.0
  %1919 = vmatpush2.msra.mxu0 0.0
  %1920 = vmatprep.subr.mxu0 0.0
  %1921 = vmatpush2.msra.mxu0 0.0
  %1922 = vmatprep.subr.mxu0 0.0
  %1923 = vmatpush2.msra.mxu0 0.0
  %1924 = vmatprep.subr.mxu0 0.0
  %1925 = vmatpush2.msra.mxu0 0.0
  %1926 = vmatprep.mubr.f32.mxu0 0.0
  %1927 = vmatmul.mubr.f32.gmra.mxu0 %v19
  %v1928 = vpop.f32.mrf.mxu0
  %v1929 = vadd.f32 0.0, %v1928
  %v1930 = vpop.f32.mrf.mxu0
  %1931 = vdwg.mxu0
  %v1932 = vpack.c.bf16 %v1929, %v1929
  %s1933 = scalar_lea.vmem %s2, 32
  %1934 = vst [vmem:[%s1933] sm:$0x3] %v1932
  %s1935 = scalar_lea.vmem %s0, 36
  %v1936 = vld [vmem:[%s1935] sm:$0xf]
  %v1937 = vld [vmem:[%s1706] sm:$0xf]
  %v1939 = vsel %vm21, %v1937, 0
  %1941 = vmatprep.subr.mxu0 0.0
  %1942 = vmatpush1.msra.mxu0 0.0
  %1943 = vmatprep.subr.mxu0 0.0
  %1944 = vmatpush1.msra.mxu0 0.0
  %1945 = vmatprep.subr.mxu0 0.0
  %1946 = vmatpush1.msra.mxu0 0.0
  %1947 = vmatprep.subr.mxu0 0.0
  %1948 = vmatpush1.msra.mxu0 0.0
  %1949 = vmatprep.subr.mxu0 0.0
  %1950 = vmatpush1.msra.mxu0 0.0
  %1951 = vmatprep.subr.mxu0 0.0
  %1952 = vmatpush1.msra.mxu0 0.0
  %1953 = vmatprep.subr.mxu0 0.0
  %1954 = vmatpush1.msra.mxu0 0.0
  %1955 = vmatprep.subr.mxu0 0.0
  %1956 = vmatpush1.msra.mxu0 0.0
  %1957 = vmatprep.subr.mxu0 0.0
  %1958 = vmatpush1.msra.mxu0 0.0
  %1959 = vmatprep.subr.mxu0 0.0
  %1960 = vmatpush1.msra.mxu0 0.0
  %1961 = vmatprep.subr.mxu0 0.0
  %1962 = vmatpush1.msra.mxu0 0.0
  %1963 = vmatprep.subr.mxu0 0.0
  %1964 = vmatpush1.msra.mxu0 0.0
  %1965 = vmatprep.subr.mxu0 0.0
  %1966 = vmatpush1.msra.mxu0 0.0
  %1967 = vmatprep.subr.mxu0 0.0
  %1968 = vmatpush1.msra.mxu0 0.0
  %1969 = vmatprep.subr.mxu0 0.0
  %1970 = vmatpush1.msra.mxu0 0.0
  %1971 = vmatprep.subr.mxu0 0.0
  %1972 = vmatpush1.msra.mxu0 %v1939
  %1973 = vmatprep.subr.mxu0 0.0
  %1974 = vmatpush2.msra.mxu0 0.0
  %1975 = vmatprep.subr.mxu0 0.0
  %1976 = vmatpush2.msra.mxu0 0.0
  %1977 = vmatprep.subr.mxu0 0.0
  %1978 = vmatpush2.msra.mxu0 0.0
  %1979 = vmatprep.subr.mxu0 0.0
  %1980 = vmatpush2.msra.mxu0 0.0
  %1981 = vmatprep.subr.mxu0 0.0
  %1982 = vmatpush2.msra.mxu0 0.0
  %1983 = vmatprep.subr.mxu0 0.0
  %1984 = vmatpush2.msra.mxu0 0.0
  %1985 = vmatprep.subr.mxu0 0.0
  %1986 = vmatpush2.msra.mxu0 0.0
  %1987 = vmatprep.subr.mxu0 0.0
  %1988 = vmatpush2.msra.mxu0 0.0
  %1989 = vmatprep.subr.mxu0 0.0
  %1990 = vmatpush2.msra.mxu0 0.0
  %1991 = vmatprep.subr.mxu0 0.0
  %1992 = vmatpush2.msra.mxu0 0.0
  %1993 = vmatprep.subr.mxu0 0.0
  %1994 = vmatpush2.msra.mxu0 0.0
  %1995 = vmatprep.subr.mxu0 0.0
  %1996 = vmatpush2.msra.mxu0 0.0
  %1997 = vmatprep.subr.mxu0 0.0
  %1998 = vmatpush2.msra.mxu0 0.0
  %1999 = vmatprep.subr.mxu0 0.0
  %2000 = vmatpush2.msra.mxu0 0.0
  %2001 = vmatprep.subr.mxu0 0.0
  %2002 = vmatpush2.msra.mxu0 0.0
  %2003 = vmatprep.subr.mxu0 0.0
  %2004 = vmatpush2.msra.mxu0 0.0
  %2005 = vmatprep.mubr.f32.mxu0 0.0
  %2006 = vmatmul.mubr.f32.gmra.mxu0 %v101
  %v2007 = vpop.f32.mrf.mxu0
  %v2008 = vadd.f32 0.0, %v2007
  %v2009 = vpop.f32.mrf.mxu0
  %2010 = vdwg.mxu0
  %v2012 = vsel %vm21, %v1936, 0
  %2014 = vmatprep.subr.mxu0 0.0
  %2015 = vmatpush1.msra.mxu0 0.0
  %2016 = vmatprep.subr.mxu0 0.0
  %2017 = vmatpush1.msra.mxu0 0.0
  %2018 = vmatprep.subr.mxu0 0.0
  %2019 = vmatpush1.msra.mxu0 0.0
  %2020 = vmatprep.subr.mxu0 0.0
  %2021 = vmatpush1.msra.mxu0 0.0
  %2022 = vmatprep.subr.mxu0 0.0
  %2023 = vmatpush1.msra.mxu0 0.0
  %2024 = vmatprep.subr.mxu0 0.0
  %2025 = vmatpush1.msra.mxu0 0.0
  %2026 = vmatprep.subr.mxu0 0.0
  %2027 = vmatpush1.msra.mxu0 0.0
  %2028 = vmatprep.subr.mxu0 0.0
  %2029 = vmatpush1.msra.mxu0 0.0
  %2030 = vmatprep.subr.mxu0 0.0
  %2031 = vmatpush1.msra.mxu0 0.0
  %2032 = vmatprep.subr.mxu0 0.0
  %2033 = vmatpush1.msra.mxu0 0.0
  %2034 = vmatprep.subr.mxu0 0.0
  %2035 = vmatpush1.msra.mxu0 0.0
  %2036 = vmatprep.subr.mxu0 0.0
  %2037 = vmatpush1.msra.mxu0 0.0
  %2038 = vmatprep.subr.mxu0 0.0
  %2039 = vmatpush1.msra.mxu0 0.0
  %2040 = vmatprep.subr.mxu0 0.0
  %2041 = vmatpush1.msra.mxu0 0.0
  %2042 = vmatprep.subr.mxu0 0.0
  %2043 = vmatpush1.msra.mxu0 0.0
  %2044 = vmatprep.subr.mxu0 0.0
  %2045 = vmatpush1.msra.mxu0 %v2012
  %2046 = vmatprep.subr.mxu0 0.0
  %2047 = vmatpush2.msra.mxu0 0.0
  %2048 = vmatprep.subr.mxu0 0.0
  %2049 = vmatpush2.msra.mxu0 0.0
  %2050 = vmatprep.subr.mxu0 0.0
  %2051 = vmatpush2.msra.mxu0 0.0
  %2052 = vmatprep.subr.mxu0 0.0
  %2053 = vmatpush2.msra.mxu0 0.0
  %2054 = vmatprep.subr.mxu0 0.0
  %2055 = vmatpush2.msra.mxu0 0.0
  %2056 = vmatprep.subr.mxu0 0.0
  %2057 = vmatpush2.msra.mxu0 0.0
  %2058 = vmatprep.subr.mxu0 0.0
  %2059 = vmatpush2.msra.mxu0 0.0
  %2060 = vmatprep.subr.mxu0 0.0
  %2061 = vmatpush2.msra.mxu0 0.0
  %2062 = vmatprep.subr.mxu0 0.0
  %2063 = vmatpush2.msra.mxu0 0.0
  %2064 = vmatprep.subr.mxu0 0.0
  %2065 = vmatpush2.msra.mxu0 0.0
  %2066 = vmatprep.subr.mxu0 0.0
  %2067 = vmatpush2.msra.mxu0 0.0
  %2068 = vmatprep.subr.mxu0 0.0
  %2069 = vmatpush2.msra.mxu0 0.0
  %2070 = vmatprep.subr.mxu0 0.0
  %2071 = vmatpush2.msra.mxu0 0.0
  %2072 = vmatprep.subr.mxu0 0.0
  %2073 = vmatpush2.msra.mxu0 0.0
  %2074 = vmatprep.subr.mxu0 0.0
  %2075 = vmatpush2.msra.mxu0 0.0
  %2076 = vmatprep.subr.mxu0 0.0
  %2077 = vmatpush2.msra.mxu0 0.0
  %2078 = vmatprep.mubr.f32.mxu0 0.0
  %2079 = vmatmul.mubr.f32.gmra.mxu0 %v177
  %v2080 = vpop.f32.mrf.mxu0
  %v2081 = vadd.f32 %v2008, %v2080
  %v2082 = vpop.f32.mrf.mxu0
  %2083 = vdwg.mxu0
  %v2084 = vpack.c.bf16 %v2081, %v2081
  %s2085 = scalar_lea.vmem %s2, 34
  %2086 = vst [vmem:[%s2085] sm:$0x3] %v2084
  %v2087 = vld [vmem:[%s1935] sm:$0xf]
  %v2089 = vsel %vm21, %v2087, 0
  %2091 = vmatprep.subr.mxu0 0.0
  %2092 = vmatpush1.msra.mxu0 0.0
  %2093 = vmatprep.subr.mxu0 0.0
  %2094 = vmatpush1.msra.mxu0 0.0
  %2095 = vmatprep.subr.mxu0 0.0
  %2096 = vmatpush1.msra.mxu0 0.0
  %2097 = vmatprep.subr.mxu0 0.0
  %2098 = vmatpush1.msra.mxu0 0.0
  %2099 = vmatprep.subr.mxu0 0.0
  %2100 = vmatpush1.msra.mxu0 0.0
  %2101 = vmatprep.subr.mxu0 0.0
  %2102 = vmatpush1.msra.mxu0 0.0
  %2103 = vmatprep.subr.mxu0 0.0
  %2104 = vmatpush1.msra.mxu0 0.0
  %2105 = vmatprep.subr.mxu0 0.0
  %2106 = vmatpush1.msra.mxu0 0.0
  %2107 = vmatprep.subr.mxu0 0.0
  %2108 = vmatpush1.msra.mxu0 0.0
  %2109 = vmatprep.subr.mxu0 0.0
  %2110 = vmatpush1.msra.mxu0 0.0
  %2111 = vmatprep.subr.mxu0 0.0
  %2112 = vmatpush1.msra.mxu0 0.0
  %2113 = vmatprep.subr.mxu0 0.0
  %2114 = vmatpush1.msra.mxu0 0.0
  %2115 = vmatprep.subr.mxu0 0.0
  %2116 = vmatpush1.msra.mxu0 0.0
  %2117 = vmatprep.subr.mxu0 0.0
  %2118 = vmatpush1.msra.mxu0 0.0
  %2119 = vmatprep.subr.mxu0 0.0
  %2120 = vmatpush1.msra.mxu0 0.0
  %2121 = vmatprep.subr.mxu0 0.0
  %2122 = vmatpush1.msra.mxu0 %v2089
  %2123 = vmatprep.subr.mxu0 0.0
  %2124 = vmatpush2.msra.mxu0 0.0
  %2125 = vmatprep.subr.mxu0 0.0
  %2126 = vmatpush2.msra.mxu0 0.0
  %2127 = vmatprep.subr.mxu0 0.0
  %2128 = vmatpush2.msra.mxu0 0.0
  %2129 = vmatprep.subr.mxu0 0.0
  %2130 = vmatpush2.msra.mxu0 0.0
  %2131 = vmatprep.subr.mxu0 0.0
  %2132 = vmatpush2.msra.mxu0 0.0
  %2133 = vmatprep.subr.mxu0 0.0
  %2134 = vmatpush2.msra.mxu0 0.0
  %2135 = vmatprep.subr.mxu0 0.0
  %2136 = vmatpush2.msra.mxu0 0.0
  %2137 = vmatprep.subr.mxu0 0.0
  %2138 = vmatpush2.msra.mxu0 0.0
  %2139 = vmatprep.subr.mxu0 0.0
  %2140 = vmatpush2.msra.mxu0 0.0
  %2141 = vmatprep.subr.mxu0 0.0
  %2142 = vmatpush2.msra.mxu0 0.0
  %2143 = vmatprep.subr.mxu0 0.0
  %2144 = vmatpush2.msra.mxu0 0.0
  %2145 = vmatprep.subr.mxu0 0.0
  %2146 = vmatpush2.msra.mxu0 0.0
  %2147 = vmatprep.subr.mxu0 0.0
  %2148 = vmatpush2.msra.mxu0 0.0
  %2149 = vmatprep.subr.mxu0 0.0
  %2150 = vmatpush2.msra.mxu0 0.0
  %2151 = vmatprep.subr.mxu0 0.0
  %2152 = vmatpush2.msra.mxu0 0.0
  %2153 = vmatprep.subr.mxu0 0.0
  %2154 = vmatpush2.msra.mxu0 0.0
  %2155 = vmatprep.mubr.f32.mxu0 0.0
  %2156 = vmatmul.mubr.f32.gmra.mxu0 %v19
  %v2157 = vpop.f32.mrf.mxu0
  %v2158 = vadd.f32 0.0, %v2157
  %v2159 = vpop.f32.mrf.mxu0
  %2160 = vdwg.mxu0
  %v2161 = vpack.c.bf16 %v2158, %v2158
  %s2162 = scalar_lea.vmem %s2, 36
  %2163 = vst [vmem:[%s2162] sm:$0x3] %v2161
  %s2164 = scalar_lea.vmem %s0, 40
  %v2165 = vld [vmem:[%s2164] sm:$0xf]
  %v2166 = vld [vmem:[%s1935] sm:$0xf]
  %v2168 = vsel %vm21, %v2166, 0
  %2170 = vmatprep.subr.mxu0 0.0
  %2171 = vmatpush1.msra.mxu0 0.0
  %2172 = vmatprep.subr.mxu0 0.0
  %2173 = vmatpush1.msra.mxu0 0.0
  %2174 = vmatprep.subr.mxu0 0.0
  %2175 = vmatpush1.msra.mxu0 0.0
  %2176 = vmatprep.subr.mxu0 0.0
  %2177 = vmatpush1.msra.mxu0 0.0
  %2178 = vmatprep.subr.mxu0 0.0
  %2179 = vmatpush1.msra.mxu0 0.0
  %2180 = vmatprep.subr.mxu0 0.0
  %2181 = vmatpush1.msra.mxu0 0.0
  %2182 = vmatprep.subr.mxu0 0.0
  %2183 = vmatpush1.msra.mxu0 0.0
  %2184 = vmatprep.subr.mxu0 0.0
  %2185 = vmatpush1.msra.mxu0 0.0
  %2186 = vmatprep.subr.mxu0 0.0
  %2187 = vmatpush1.msra.mxu0 0.0
  %2188 = vmatprep.subr.mxu0 0.0
  %2189 = vmatpush1.msra.mxu0 0.0
  %2190 = vmatprep.subr.mxu0 0.0
  %2191 = vmatpush1.msra.mxu0 0.0
  %2192 = vmatprep.subr.mxu0 0.0
  %2193 = vmatpush1.msra.mxu0 0.0
  %2194 = vmatprep.subr.mxu0 0.0
  %2195 = vmatpush1.msra.mxu0 0.0
  %2196 = vmatprep.subr.mxu0 0.0
  %2197 = vmatpush1.msra.mxu0 0.0
  %2198 = vmatprep.subr.mxu0 0.0
  %2199 = vmatpush1.msra.mxu0 0.0
  %2200 = vmatprep.subr.mxu0 0.0
  %2201 = vmatpush1.msra.mxu0 %v2168
  %2202 = vmatprep.subr.mxu0 0.0
  %2203 = vmatpush2.msra.mxu0 0.0
  %2204 = vmatprep.subr.mxu0 0.0
  %2205 = vmatpush2.msra.mxu0 0.0
  %2206 = vmatprep.subr.mxu0 0.0
  %2207 = vmatpush2.msra.mxu0 0.0
  %2208 = vmatprep.subr.mxu0 0.0
  %2209 = vmatpush2.msra.mxu0 0.0
  %2210 = vmatprep.subr.mxu0 0.0
  %2211 = vmatpush2.msra.mxu0 0.0
  %2212 = vmatprep.subr.mxu0 0.0
  %2213 = vmatpush2.msra.mxu0 0.0
  %2214 = vmatprep.subr.mxu0 0.0
  %2215 = vmatpush2.msra.mxu0 0.0
  %2216 = vmatprep.subr.mxu0 0.0
  %2217 = vmatpush2.msra.mxu0 0.0
  %2218 = vmatprep.subr.mxu0 0.0
  %2219 = vmatpush2.msra.mxu0 0.0
  %2220 = vmatprep.subr.mxu0 0.0
  %2221 = vmatpush2.msra.mxu0 0.0
  %2222 = vmatprep.subr.mxu0 0.0
  %2223 = vmatpush2.msra.mxu0 0.0
  %2224 = vmatprep.subr.mxu0 0.0
  %2225 = vmatpush2.msra.mxu0 0.0
  %2226 = vmatprep.subr.mxu0 0.0
  %2227 = vmatpush2.msra.mxu0 0.0
  %2228 = vmatprep.subr.mxu0 0.0
  %2229 = vmatpush2.msra.mxu0 0.0
  %2230 = vmatprep.subr.mxu0 0.0
  %2231 = vmatpush2.msra.mxu0 0.0
  %2232 = vmatprep.subr.mxu0 0.0
  %2233 = vmatpush2.msra.mxu0 0.0
  %2234 = vmatprep.mubr.f32.mxu0 0.0
  %2235 = vmatmul.mubr.f32.gmra.mxu0 %v101
  %v2236 = vpop.f32.mrf.mxu0
  %v2237 = vadd.f32 0.0, %v2236
  %v2238 = vpop.f32.mrf.mxu0
  %2239 = vdwg.mxu0
  %v2241 = vsel %vm21, %v2165, 0
  %2243 = vmatprep.subr.mxu0 0.0
  %2244 = vmatpush1.msra.mxu0 0.0
  %2245 = vmatprep.subr.mxu0 0.0
  %2246 = vmatpush1.msra.mxu0 0.0
  %2247 = vmatprep.subr.mxu0 0.0
  %2248 = vmatpush1.msra.mxu0 0.0
  %2249 = vmatprep.subr.mxu0 0.0
  %2250 = vmatpush1.msra.mxu0 0.0
  %2251 = vmatprep.subr.mxu0 0.0
  %2252 = vmatpush1.msra.mxu0 0.0
  %2253 = vmatprep.subr.mxu0 0.0
  %2254 = vmatpush1.msra.mxu0 0.0
  %2255 = vmatprep.subr.mxu0 0.0
  %2256 = vmatpush1.msra.mxu0 0.0
  %2257 = vmatprep.subr.mxu0 0.0
  %2258 = vmatpush1.msra.mxu0 0.0
  %2259 = vmatprep.subr.mxu0 0.0
  %2260 = vmatpush1.msra.mxu0 0.0
  %2261 = vmatprep.subr.mxu0 0.0
  %2262 = vmatpush1.msra.mxu0 0.0
  %2263 = vmatprep.subr.mxu0 0.0
  %2264 = vmatpush1.msra.mxu0 0.0
  %2265 = vmatprep.subr.mxu0 0.0
  %2266 = vmatpush1.msra.mxu0 0.0
  %2267 = vmatprep.subr.mxu0 0.0
  %2268 = vmatpush1.msra.mxu0 0.0
  %2269 = vmatprep.subr.mxu0 0.0
  %2270 = vmatpush1.msra.mxu0 0.0
  %2271 = vmatprep.subr.mxu0 0.0
  %2272 = vmatpush1.msra.mxu0 0.0
  %2273 = vmatprep.subr.mxu0 0.0
  %2274 = vmatpush1.msra.mxu0 %v2241
  %2275 = vmatprep.subr.mxu0 0.0
  %2276 = vmatpush2.msra.mxu0 0.0
  %2277 = vmatprep.subr.mxu0 0.0
  %2278 = vmatpush2.msra.mxu0 0.0
  %2279 = vmatprep.subr.mxu0 0.0
  %2280 = vmatpush2.msra.mxu0 0.0
  %2281 = vmatprep.subr.mxu0 0.0
  %2282 = vmatpush2.msra.mxu0 0.0
  %2283 = vmatprep.subr.mxu0 0.0
  %2284 = vmatpush2.msra.mxu0 0.0
  %2285 = vmatprep.subr.mxu0 0.0
  %2286 = vmatpush2.msra.mxu0 0.0
  %2287 = vmatprep.subr.mxu0 0.0
  %2288 = vmatpush2.msra.mxu0 0.0
  %2289 = vmatprep.subr.mxu0 0.0
  %2290 = vmatpush2.msra.mxu0 0.0
  %2291 = vmatprep.subr.mxu0 0.0
  %2292 = vmatpush2.msra.mxu0 0.0
  %2293 = vmatprep.subr.mxu0 0.0
  %2294 = vmatpush2.msra.mxu0 0.0
  %2295 = vmatprep.subr.mxu0 0.0
  %2296 = vmatpush2.msra.mxu0 0.0
  %2297 = vmatprep.subr.mxu0 0.0
  %2298 = vmatpush2.msra.mxu0 0.0
  %2299 = vmatprep.subr.mxu0 0.0
  %2300 = vmatpush2.msra.mxu0 0.0
  %2301 = vmatprep.subr.mxu0 0.0
  %2302 = vmatpush2.msra.mxu0 0.0
  %2303 = vmatprep.subr.mxu0 0.0
  %2304 = vmatpush2.msra.mxu0 0.0
  %2305 = vmatprep.subr.mxu0 0.0
  %2306 = vmatpush2.msra.mxu0 0.0
  %2307 = vmatprep.mubr.f32.mxu0 0.0
  %2308 = vmatmul.mubr.f32.gmra.mxu0 %v177
  %v2309 = vpop.f32.mrf.mxu0
  %v2310 = vadd.f32 %v2237, %v2309
  %v2311 = vpop.f32.mrf.mxu0
  %2312 = vdwg.mxu0
  %v2313 = vpack.c.bf16 %v2310, %v2310
  %s2314 = scalar_lea.vmem %s2, 38
  %2315 = vst [vmem:[%s2314] sm:$0x3] %v2313
  %v2316 = vld [vmem:[%s2164] sm:$0xf]
  %v2318 = vsel %vm21, %v2316, 0
  %2320 = vmatprep.subr.mxu0 0.0
  %2321 = vmatpush1.msra.mxu0 0.0
  %2322 = vmatprep.subr.mxu0 0.0
  %2323 = vmatpush1.msra.mxu0 0.0
  %2324 = vmatprep.subr.mxu0 0.0
  %2325 = vmatpush1.msra.mxu0 0.0
  %2326 = vmatprep.subr.mxu0 0.0
  %2327 = vmatpush1.msra.mxu0 0.0
  %2328 = vmatprep.subr.mxu0 0.0
  %2329 = vmatpush1.msra.mxu0 0.0
  %2330 = vmatprep.subr.mxu0 0.0
  %2331 = vmatpush1.msra.mxu0 0.0
  %2332 = vmatprep.subr.mxu0 0.0
  %2333 = vmatpush1.msra.mxu0 0.0
  %2334 = vmatprep.subr.mxu0 0.0
  %2335 = vmatpush1.msra.mxu0 0.0
  %2336 = vmatprep.subr.mxu0 0.0
  %2337 = vmatpush1.msra.mxu0 0.0
  %2338 = vmatprep.subr.mxu0 0.0
  %2339 = vmatpush1.msra.mxu0 0.0
  %2340 = vmatprep.subr.mxu0 0.0
  %2341 = vmatpush1.msra.mxu0 0.0
  %2342 = vmatprep.subr.mxu0 0.0
  %2343 = vmatpush1.msra.mxu0 0.0
  %2344 = vmatprep.subr.mxu0 0.0
  %2345 = vmatpush1.msra.mxu0 0.0
  %2346 = vmatprep.subr.mxu0 0.0
  %2347 = vmatpush1.msra.mxu0 0.0
  %2348 = vmatprep.subr.mxu0 0.0
  %2349 = vmatpush1.msra.mxu0 0.0
  %2350 = vmatprep.subr.mxu0 0.0
  %2351 = vmatpush1.msra.mxu0 %v2318
  %2352 = vmatprep.subr.mxu0 0.0
  %2353 = vmatpush2.msra.mxu0 0.0
  %2354 = vmatprep.subr.mxu0 0.0
  %2355 = vmatpush2.msra.mxu0 0.0
  %2356 = vmatprep.subr.mxu0 0.0
  %2357 = vmatpush2.msra.mxu0 0.0
  %2358 = vmatprep.subr.mxu0 0.0
  %2359 = vmatpush2.msra.mxu0 0.0
  %2360 = vmatprep.subr.mxu0 0.0
  %2361 = vmatpush2.msra.mxu0 0.0
  %2362 = vmatprep.subr.mxu0 0.0
  %2363 = vmatpush2.msra.mxu0 0.0
  %2364 = vmatprep.subr.mxu0 0.0
  %2365 = vmatpush2.msra.mxu0 0.0
  %2366 = vmatprep.subr.mxu0 0.0
  %2367 = vmatpush2.msra.mxu0 0.0
  %2368 = vmatprep.subr.mxu0 0.0
  %2369 = vmatpush2.msra.mxu0 0.0
  %2370 = vmatprep.subr.mxu0 0.0
  %2371 = vmatpush2.msra.mxu0 0.0
  %2372 = vmatprep.subr.mxu0 0.0
  %2373 = vmatpush2.msra.mxu0 0.0
  %2374 = vmatprep.subr.mxu0 0.0
  %2375 = vmatpush2.msra.mxu0 0.0
  %2376 = vmatprep.subr.mxu0 0.0
  %2377 = vmatpush2.msra.mxu0 0.0
  %2378 = vmatprep.subr.mxu0 0.0
  %2379 = vmatpush2.msra.mxu0 0.0
  %2380 = vmatprep.subr.mxu0 0.0
  %2381 = vmatpush2.msra.mxu0 0.0
  %2382 = vmatprep.subr.mxu0 0.0
  %2383 = vmatpush2.msra.mxu0 0.0
  %2384 = vmatprep.mubr.f32.mxu0 0.0
  %2385 = vmatmul.mubr.f32.gmra.mxu0 %v19
  %v2386 = vpop.f32.mrf.mxu0
  %v2387 = vadd.f32 0.0, %v2386
  %v2388 = vpop.f32.mrf.mxu0
  %2389 = vdwg.mxu0
  %v2390 = vpack.c.bf16 %v2387, %v2387
  %s2391 = scalar_lea.vmem %s2, 40
  %2392 = vst [vmem:[%s2391] sm:$0x3] %v2390
  %s2393 = scalar_lea.vmem %s0, 44
  %v2394 = vld [vmem:[%s2393] sm:$0xf]
  %v2395 = vld [vmem:[%s2164] sm:$0xf]
  %v2397 = vsel %vm21, %v2395, 0
  %2399 = vmatprep.subr.mxu0 0.0
  %2400 = vmatpush1.msra.mxu0 0.0
  %2401 = vmatprep.subr.mxu0 0.0
  %2402 = vmatpush1.msra.mxu0 0.0
  %2403 = vmatprep.subr.mxu0 0.0
  %2404 = vmatpush1.msra.mxu0 0.0
  %2405 = vmatprep.subr.mxu0 0.0
  %2406 = vmatpush1.msra.mxu0 0.0
  %2407 = vmatprep.subr.mxu0 0.0
  %2408 = vmatpush1.msra.mxu0 0.0
  %2409 = vmatprep.subr.mxu0 0.0
  %2410 = vmatpush1.msra.mxu0 0.0
  %2411 = vmatprep.subr.mxu0 0.0
  %2412 = vmatpush1.msra.mxu0 0.0
  %2413 = vmatprep.subr.mxu0 0.0
  %2414 = vmatpush1.msra.mxu0 0.0
  %2415 = vmatprep.subr.mxu0 0.0
  %2416 = vmatpush1.msra.mxu0 0.0
  %2417 = vmatprep.subr.mxu0 0.0
  %2418 = vmatpush1.msra.mxu0 0.0
  %2419 = vmatprep.subr.mxu0 0.0
  %2420 = vmatpush1.msra.mxu0 0.0
  %2421 = vmatprep.subr.mxu0 0.0
  %2422 = vmatpush1.msra.mxu0 0.0
  %2423 = vmatprep.subr.mxu0 0.0
  %2424 = vmatpush1.msra.mxu0 0.0
  %2425 = vmatprep.subr.mxu0 0.0
  %2426 = vmatpush1.msra.mxu0 0.0
  %2427 = vmatprep.subr.mxu0 0.0
  %2428 = vmatpush1.msra.mxu0 0.0
  %2429 = vmatprep.subr.mxu0 0.0
  %2430 = vmatpush1.msra.mxu0 %v2397
  %2431 = vmatprep.subr.mxu0 0.0
  %2432 = vmatpush2.msra.mxu0 0.0
  %2433 = vmatprep.subr.mxu0 0.0
  %2434 = vmatpush2.msra.mxu0 0.0
  %2435 = vmatprep.subr.mxu0 0.0
  %2436 = vmatpush2.msra.mxu0 0.0
  %2437 = vmatprep.subr.mxu0 0.0
  %2438 = vmatpush2.msra.mxu0 0.0
  %2439 = vmatprep.subr.mxu0 0.0
  %2440 = vmatpush2.msra.mxu0 0.0
  %2441 = vmatprep.subr.mxu0 0.0
  %2442 = vmatpush2.msra.mxu0 0.0
  %2443 = vmatprep.subr.mxu0 0.0
  %2444 = vmatpush2.msra.mxu0 0.0
  %2445 = vmatprep.subr.mxu0 0.0
  %2446 = vmatpush2.msra.mxu0 0.0
  %2447 = vmatprep.subr.mxu0 0.0
  %2448 = vmatpush2.msra.mxu0 0.0
  %2449 = vmatprep.subr.mxu0 0.0
  %2450 = vmatpush2.msra.mxu0 0.0
  %2451 = vmatprep.subr.mxu0 0.0
  %2452 = vmatpush2.msra.mxu0 0.0
  %2453 = vmatprep.subr.mxu0 0.0
  %2454 = vmatpush2.msra.mxu0 0.0
  %2455 = vmatprep.subr.mxu0 0.0
  %2456 = vmatpush2.msra.mxu0 0.0
  %2457 = vmatprep.subr.mxu0 0.0
  %2458 = vmatpush2.msra.mxu0 0.0
  %2459 = vmatprep.subr.mxu0 0.0
  %2460 = vmatpush2.msra.mxu0 0.0
  %2461 = vmatprep.subr.mxu0 0.0
  %2462 = vmatpush2.msra.mxu0 0.0
  %2463 = vmatprep.mubr.f32.mxu0 0.0
  %2464 = vmatmul.mubr.f32.gmra.mxu0 %v101
  %v2465 = vpop.f32.mrf.mxu0
  %v2466 = vadd.f32 0.0, %v2465
  %v2467 = vpop.f32.mrf.mxu0
  %2468 = vdwg.mxu0
  %v2470 = vsel %vm21, %v2394, 0
  %2472 = vmatprep.subr.mxu0 0.0
  %2473 = vmatpush1.msra.mxu0 0.0
  %2474 = vmatprep.subr.mxu0 0.0
  %2475 = vmatpush1.msra.mxu0 0.0
  %2476 = vmatprep.subr.mxu0 0.0
  %2477 = vmatpush1.msra.mxu0 0.0
  %2478 = vmatprep.subr.mxu0 0.0
  %2479 = vmatpush1.msra.mxu0 0.0
  %2480 = vmatprep.subr.mxu0 0.0
  %2481 = vmatpush1.msra.mxu0 0.0
  %2482 = vmatprep.subr.mxu0 0.0
  %2483 = vmatpush1.msra.mxu0 0.0
  %2484 = vmatprep.subr.mxu0 0.0
  %2485 = vmatpush1.msra.mxu0 0.0
  %2486 = vmatprep.subr.mxu0 0.0
  %2487 = vmatpush1.msra.mxu0 0.0
  %2488 = vmatprep.subr.mxu0 0.0
  %2489 = vmatpush1.msra.mxu0 0.0
  %2490 = vmatprep.subr.mxu0 0.0
  %2491 = vmatpush1.msra.mxu0 0.0
  %2492 = vmatprep.subr.mxu0 0.0
  %2493 = vmatpush1.msra.mxu0 0.0
  %2494 = vmatprep.subr.mxu0 0.0
  %2495 = vmatpush1.msra.mxu0 0.0
  %2496 = vmatprep.subr.mxu0 0.0
  %2497 = vmatpush1.msra.mxu0 0.0
  %2498 = vmatprep.subr.mxu0 0.0
  %2499 = vmatpush1.msra.mxu0 0.0
  %2500 = vmatprep.subr.mxu0 0.0
  %2501 = vmatpush1.msra.mxu0 0.0
  %2502 = vmatprep.subr.mxu0 0.0
  %2503 = vmatpush1.msra.mxu0 %v2470
  %2504 = vmatprep.subr.mxu0 0.0
  %2505 = vmatpush2.msra.mxu0 0.0
  %2506 = vmatprep.subr.mxu0 0.0
  %2507 = vmatpush2.msra.mxu0 0.0
  %2508 = vmatprep.subr.mxu0 0.0
  %2509 = vmatpush2.msra.mxu0 0.0
  %2510 = vmatprep.subr.mxu0 0.0
  %2511 = vmatpush2.msra.mxu0 0.0
  %2512 = vmatprep.subr.mxu0 0.0
  %2513 = vmatpush2.msra.mxu0 0.0
  %2514 = vmatprep.subr.mxu0 0.0
  %2515 = vmatpush2.msra.mxu0 0.0
  %2516 = vmatprep.subr.mxu0 0.0
  %2517 = vmatpush2.msra.mxu0 0.0
  %2518 = vmatprep.subr.mxu0 0.0
  %2519 = vmatpush2.msra.mxu0 0.0
  %2520 = vmatprep.subr.mxu0 0.0
  %2521 = vmatpush2.msra.mxu0 0.0
  %2522 = vmatprep.subr.mxu0 0.0
  %2523 = vmatpush2.msra.mxu0 0.0
  %2524 = vmatprep.subr.mxu0 0.0
  %2525 = vmatpush2.msra.mxu0 0.0
  %2526 = vmatprep.subr.mxu0 0.0
  %2527 = vmatpush2.msra.mxu0 0.0
  %2528 = vmatprep.subr.mxu0 0.0
  %2529 = vmatpush2.msra.mxu0 0.0
  %2530 = vmatprep.subr.mxu0 0.0
  %2531 = vmatpush2.msra.mxu0 0.0
  %2532 = vmatprep.subr.mxu0 0.0
  %2533 = vmatpush2.msra.mxu0 0.0
  %2534 = vmatprep.subr.mxu0 0.0
  %2535 = vmatpush2.msra.mxu0 0.0
  %2536 = vmatprep.mubr.f32.mxu0 0.0
  %2537 = vmatmul.mubr.f32.gmra.mxu0 %v177
  %v2538 = vpop.f32.mrf.mxu0
  %v2539 = vadd.f32 %v2466, %v2538
  %v2540 = vpop.f32.mrf.mxu0
  %2541 = vdwg.mxu0
  %v2542 = vpack.c.bf16 %v2539, %v2539
  %s2543 = scalar_lea.vmem %s2, 42
  %2544 = vst [vmem:[%s2543] sm:$0x3] %v2542
  %v2545 = vld [vmem:[%s2393] sm:$0xf]
  %v2547 = vsel %vm21, %v2545, 0
  %2549 = vmatprep.subr.mxu0 0.0
  %2550 = vmatpush1.msra.mxu0 0.0
  %2551 = vmatprep.subr.mxu0 0.0
  %2552 = vmatpush1.msra.mxu0 0.0
  %2553 = vmatprep.subr.mxu0 0.0
  %2554 = vmatpush1.msra.mxu0 0.0
  %2555 = vmatprep.subr.mxu0 0.0
  %2556 = vmatpush1.msra.mxu0 0.0
  %2557 = vmatprep.subr.mxu0 0.0
  %2558 = vmatpush1.msra.mxu0 0.0
  %2559 = vmatprep.subr.mxu0 0.0
  %2560 = vmatpush1.msra.mxu0 0.0
  %2561 = vmatprep.subr.mxu0 0.0
  %2562 = vmatpush1.msra.mxu0 0.0
  %2563 = vmatprep.subr.mxu0 0.0
  %2564 = vmatpush1.msra.mxu0 0.0
  %2565 = vmatprep.subr.mxu0 0.0
  %2566 = vmatpush1.msra.mxu0 0.0
  %2567 = vmatprep.subr.mxu0 0.0
  %2568 = vmatpush1.msra.mxu0 0.0
  %2569 = vmatprep.subr.mxu0 0.0
  %2570 = vmatpush1.msra.mxu0 0.0
  %2571 = vmatprep.subr.mxu0 0.0
  %2572 = vmatpush1.msra.mxu0 0.0
  %2573 = vmatprep.subr.mxu0 0.0
  %2574 = vmatpush1.msra.mxu0 0.0
  %2575 = vmatprep.subr.mxu0 0.0
  %2576 = vmatpush1.msra.mxu0 0.0
  %2577 = vmatprep.subr.mxu0 0.0
  %2578 = vmatpush1.msra.mxu0 0.0
  %2579 = vmatprep.subr.mxu0 0.0
  %2580 = vmatpush1.msra.mxu0 %v2547
  %2581 = vmatprep.subr.mxu0 0.0
  %2582 = vmatpush2.msra.mxu0 0.0
  %2583 = vmatprep.subr.mxu0 0.0
  %2584 = vmatpush2.msra.mxu0 0.0
  %2585 = vmatprep.subr.mxu0 0.0
  %2586 = vmatpush2.msra.mxu0 0.0
  %2587 = vmatprep.subr.mxu0 0.0
  %2588 = vmatpush2.msra.mxu0 0.0
  %2589 = vmatprep.subr.mxu0 0.0
  %2590 = vmatpush2.msra.mxu0 0.0
  %2591 = vmatprep.subr.mxu0 0.0
  %2592 = vmatpush2.msra.mxu0 0.0
  %2593 = vmatprep.subr.mxu0 0.0
  %2594 = vmatpush2.msra.mxu0 0.0
  %2595 = vmatprep.subr.mxu0 0.0
  %2596 = vmatpush2.msra.mxu0 0.0
  %2597 = vmatprep.subr.mxu0 0.0
  %2598 = vmatpush2.msra.mxu0 0.0
  %2599 = vmatprep.subr.mxu0 0.0
  %2600 = vmatpush2.msra.mxu0 0.0
  %2601 = vmatprep.subr.mxu0 0.0
  %2602 = vmatpush2.msra.mxu0 0.0
  %2603 = vmatprep.subr.mxu0 0.0
  %2604 = vmatpush2.msra.mxu0 0.0
  %2605 = vmatprep.subr.mxu0 0.0
  %2606 = vmatpush2.msra.mxu0 0.0
  %2607 = vmatprep.subr.mxu0 0.0
  %2608 = vmatpush2.msra.mxu0 0.0
  %2609 = vmatprep.subr.mxu0 0.0
  %2610 = vmatpush2.msra.mxu0 0.0
  %2611 = vmatprep.subr.mxu0 0.0
  %2612 = vmatpush2.msra.mxu0 0.0
  %2613 = vmatprep.mubr.f32.mxu0 0.0
  %2614 = vmatmul.mubr.f32.gmra.mxu0 %v19
  %v2615 = vpop.f32.mrf.mxu0
  %v2616 = vadd.f32 0.0, %v2615
  %v2617 = vpop.f32.mrf.mxu0
  %2618 = vdwg.mxu0
  %v2619 = vpack.c.bf16 %v2616, %v2616
  %s2620 = scalar_lea.vmem %s2, 44
  %2621 = vst [vmem:[%s2620] sm:$0x3] %v2619
  %s2622 = scalar_lea.vmem %s0, 48
  %v2623 = vld [vmem:[%s2622] sm:$0xf]
  %v2624 = vld [vmem:[%s2393] sm:$0xf]
  %v2626 = vsel %vm21, %v2624, 0
  %2628 = vmatprep.subr.mxu0 0.0
  %2629 = vmatpush1.msra.mxu0 0.0
  %2630 = vmatprep.subr.mxu0 0.0
  %2631 = vmatpush1.msra.mxu0 0.0
  %2632 = vmatprep.subr.mxu0 0.0
  %2633 = vmatpush1.msra.mxu0 0.0
  %2634 = vmatprep.subr.mxu0 0.0
  %2635 = vmatpush1.msra.mxu0 0.0
  %2636 = vmatprep.subr.mxu0 0.0
  %2637 = vmatpush1.msra.mxu0 0.0
  %2638 = vmatprep.subr.mxu0 0.0
  %2639 = vmatpush1.msra.mxu0 0.0
  %2640 = vmatprep.subr.mxu0 0.0
  %2641 = vmatpush1.msra.mxu0 0.0
  %2642 = vmatprep.subr.mxu0 0.0
  %2643 = vmatpush1.msra.mxu0 0.0
  %2644 = vmatprep.subr.mxu0 0.0
  %2645 = vmatpush1.msra.mxu0 0.0
  %2646 = vmatprep.subr.mxu0 0.0
  %2647 = vmatpush1.msra.mxu0 0.0
  %2648 = vmatprep.subr.mxu0 0.0
  %2649 = vmatpush1.msra.mxu0 0.0
  %2650 = vmatprep.subr.mxu0 0.0
  %2651 = vmatpush1.msra.mxu0 0.0
  %2652 = vmatprep.subr.mxu0 0.0
  %2653 = vmatpush1.msra.mxu0 0.0
  %2654 = vmatprep.subr.mxu0 0.0
  %2655 = vmatpush1.msra.mxu0 0.0
  %2656 = vmatprep.subr.mxu0 0.0
  %2657 = vmatpush1.msra.mxu0 0.0
  %2658 = vmatprep.subr.mxu0 0.0
  %2659 = vmatpush1.msra.mxu0 %v2626
  %2660 = vmatprep.subr.mxu0 0.0
  %2661 = vmatpush2.msra.mxu0 0.0
  %2662 = vmatprep.subr.mxu0 0.0
  %2663 = vmatpush2.msra.mxu0 0.0
  %2664 = vmatprep.subr.mxu0 0.0
  %2665 = vmatpush2.msra.mxu0 0.0
  %2666 = vmatprep.subr.mxu0 0.0
  %2667 = vmatpush2.msra.mxu0 0.0
  %2668 = vmatprep.subr.mxu0 0.0
  %2669 = vmatpush2.msra.mxu0 0.0
  %2670 = vmatprep.subr.mxu0 0.0
  %2671 = vmatpush2.msra.mxu0 0.0
  %2672 = vmatprep.subr.mxu0 0.0
  %2673 = vmatpush2.msra.mxu0 0.0
  %2674 = vmatprep.subr.mxu0 0.0
  %2675 = vmatpush2.msra.mxu0 0.0
  %2676 = vmatprep.subr.mxu0 0.0
  %2677 = vmatpush2.msra.mxu0 0.0
  %2678 = vmatprep.subr.mxu0 0.0
  %2679 = vmatpush2.msra.mxu0 0.0
  %2680 = vmatprep.subr.mxu0 0.0
  %2681 = vmatpush2.msra.mxu0 0.0
  %2682 = vmatprep.subr.mxu0 0.0
  %2683 = vmatpush2.msra.mxu0 0.0
  %2684 = vmatprep.subr.mxu0 0.0
  %2685 = vmatpush2.msra.mxu0 0.0
  %2686 = vmatprep.subr.mxu0 0.0
  %2687 = vmatpush2.msra.mxu0 0.0
  %2688 = vmatprep.subr.mxu0 0.0
  %2689 = vmatpush2.msra.mxu0 0.0
  %2690 = vmatprep.subr.mxu0 0.0
  %2691 = vmatpush2.msra.mxu0 0.0
  %2692 = vmatprep.mubr.f32.mxu0 0.0
  %2693 = vmatmul.mubr.f32.gmra.mxu0 %v101
  %v2694 = vpop.f32.mrf.mxu0
  %v2695 = vadd.f32 0.0, %v2694
  %v2696 = vpop.f32.mrf.mxu0
  %2697 = vdwg.mxu0
  %v2699 = vsel %vm21, %v2623, 0
  %2701 = vmatprep.subr.mxu0 0.0
  %2702 = vmatpush1.msra.mxu0 0.0
  %2703 = vmatprep.subr.mxu0 0.0
  %2704 = vmatpush1.msra.mxu0 0.0
  %2705 = vmatprep.subr.mxu0 0.0
  %2706 = vmatpush1.msra.mxu0 0.0
  %2707 = vmatprep.subr.mxu0 0.0
  %2708 = vmatpush1.msra.mxu0 0.0
  %2709 = vmatprep.subr.mxu0 0.0
  %2710 = vmatpush1.msra.mxu0 0.0
  %2711 = vmatprep.subr.mxu0 0.0
  %2712 = vmatpush1.msra.mxu0 0.0
  %2713 = vmatprep.subr.mxu0 0.0
  %2714 = vmatpush1.msra.mxu0 0.0
  %2715 = vmatprep.subr.mxu0 0.0
  %2716 = vmatpush1.msra.mxu0 0.0
  %2717 = vmatprep.subr.mxu0 0.0
  %2718 = vmatpush1.msra.mxu0 0.0
  %2719 = vmatprep.subr.mxu0 0.0
  %2720 = vmatpush1.msra.mxu0 0.0
  %2721 = vmatprep.subr.mxu0 0.0
  %2722 = vmatpush1.msra.mxu0 0.0
  %2723 = vmatprep.subr.mxu0 0.0
  %2724 = vmatpush1.msra.mxu0 0.0
  %2725 = vmatprep.subr.mxu0 0.0
  %2726 = vmatpush1.msra.mxu0 0.0
  %2727 = vmatprep.subr.mxu0 0.0
  %2728 = vmatpush1.msra.mxu0 0.0
  %2729 = vmatprep.subr.mxu0 0.0
  %2730 = vmatpush1.msra.mxu0 0.0
  %2731 = vmatprep.subr.mxu0 0.0
  %2732 = vmatpush1.msra.mxu0 %v2699
  %2733 = vmatprep.subr.mxu0 0.0
  %2734 = vmatpush2.msra.mxu0 0.0
  %2735 = vmatprep.subr.mxu0 0.0
  %2736 = vmatpush2.msra.mxu0 0.0
  %2737 = vmatprep.subr.mxu0 0.0
  %2738 = vmatpush2.msra.mxu0 0.0
  %2739 = vmatprep.subr.mxu0 0.0
  %2740 = vmatpush2.msra.mxu0 0.0
  %2741 = vmatprep.subr.mxu0 0.0
  %2742 = vmatpush2.msra.mxu0 0.0
  %2743 = vmatprep.subr.mxu0 0.0
  %2744 = vmatpush2.msra.mxu0 0.0
  %2745 = vmatprep.subr.mxu0 0.0
  %2746 = vmatpush2.msra.mxu0 0.0
  %2747 = vmatprep.subr.mxu0 0.0
  %2748 = vmatpush2.msra.mxu0 0.0
  %2749 = vmatprep.subr.mxu0 0.0
  %2750 = vmatpush2.msra.mxu0 0.0
  %2751 = vmatprep.subr.mxu0 0.0
  %2752 = vmatpush2.msra.mxu0 0.0
  %2753 = vmatprep.subr.mxu0 0.0
  %2754 = vmatpush2.msra.mxu0 0.0
  %2755 = vmatprep.subr.mxu0 0.0
  %2756 = vmatpush2.msra.mxu0 0.0
  %2757 = vmatprep.subr.mxu0 0.0
  %2758 = vmatpush2.msra.mxu0 0.0
  %2759 = vmatprep.subr.mxu0 0.0
  %2760 = vmatpush2.msra.mxu0 0.0
  %2761 = vmatprep.subr.mxu0 0.0
  %2762 = vmatpush2.msra.mxu0 0.0
  %2763 = vmatprep.subr.mxu0 0.0
  %2764 = vmatpush2.msra.mxu0 0.0
  %2765 = vmatprep.mubr.f32.mxu0 0.0
  %2766 = vmatmul.mubr.f32.gmra.mxu0 %v177
  %v2767 = vpop.f32.mrf.mxu0
  %v2768 = vadd.f32 %v2695, %v2767
  %v2769 = vpop.f32.mrf.mxu0
  %2770 = vdwg.mxu0
  %v2771 = vpack.c.bf16 %v2768, %v2768
  %s2772 = scalar_lea.vmem %s2, 46
  %2773 = vst [vmem:[%s2772] sm:$0x3] %v2771
  %v2774 = vld [vmem:[%s2622] sm:$0xf]
  %v2776 = vsel %vm21, %v2774, 0
  %2778 = vmatprep.subr.mxu0 0.0
  %2779 = vmatpush1.msra.mxu0 0.0
  %2780 = vmatprep.subr.mxu0 0.0
  %2781 = vmatpush1.msra.mxu0 0.0
  %2782 = vmatprep.subr.mxu0 0.0
  %2783 = vmatpush1.msra.mxu0 0.0
  %2784 = vmatprep.subr.mxu0 0.0
  %2785 = vmatpush1.msra.mxu0 0.0
  %2786 = vmatprep.subr.mxu0 0.0
  %2787 = vmatpush1.msra.mxu0 0.0
  %2788 = vmatprep.subr.mxu0 0.0
  %2789 = vmatpush1.msra.mxu0 0.0
  %2790 = vmatprep.subr.mxu0 0.0
  %2791 = vmatpush1.msra.mxu0 0.0
  %2792 = vmatprep.subr.mxu0 0.0
  %2793 = vmatpush1.msra.mxu0 0.0
  %2794 = vmatprep.subr.mxu0 0.0
  %2795 = vmatpush1.msra.mxu0 0.0
  %2796 = vmatprep.subr.mxu0 0.0
  %2797 = vmatpush1.msra.mxu0 0.0
  %2798 = vmatprep.subr.mxu0 0.0
  %2799 = vmatpush1.msra.mxu0 0.0
  %2800 = vmatprep.subr.mxu0 0.0
  %2801 = vmatpush1.msra.mxu0 0.0
  %2802 = vmatprep.subr.mxu0 0.0
  %2803 = vmatpush1.msra.mxu0 0.0
  %2804 = vmatprep.subr.mxu0 0.0
  %2805 = vmatpush1.msra.mxu0 0.0
  %2806 = vmatprep.subr.mxu0 0.0
  %2807 = vmatpush1.msra.mxu0 0.0
  %2808 = vmatprep.subr.mxu0 0.0
  %2809 = vmatpush1.msra.mxu0 %v2776
  %2810 = vmatprep.subr.mxu0 0.0
  %2811 = vmatpush2.msra.mxu0 0.0
  %2812 = vmatprep.subr.mxu0 0.0
  %2813 = vmatpush2.msra.mxu0 0.0
  %2814 = vmatprep.subr.mxu0 0.0
  %2815 = vmatpush2.msra.mxu0 0.0
  %2816 = vmatprep.subr.mxu0 0.0
  %2817 = vmatpush2.msra.mxu0 0.0
  %2818 = vmatprep.subr.mxu0 0.0
  %2819 = vmatpush2.msra.mxu0 0.0
  %2820 = vmatprep.subr.mxu0 0.0
  %2821 = vmatpush2.msra.mxu0 0.0
  %2822 = vmatprep.subr.mxu0 0.0
  %2823 = vmatpush2.msra.mxu0 0.0
  %2824 = vmatprep.subr.mxu0 0.0
  %2825 = vmatpush2.msra.mxu0 0.0
  %2826 = vmatprep.subr.mxu0 0.0
  %2827 = vmatpush2.msra.mxu0 0.0
  %2828 = vmatprep.subr.mxu0 0.0
  %2829 = vmatpush2.msra.mxu0 0.0
  %2830 = vmatprep.subr.mxu0 0.0
  %2831 = vmatpush2.msra.mxu0 0.0
  %2832 = vmatprep.subr.mxu0 0.0
  %2833 = vmatpush2.msra.mxu0 0.0
  %2834 = vmatprep.subr.mxu0 0.0
  %2835 = vmatpush2.msra.mxu0 0.0
  %2836 = vmatprep.subr.mxu0 0.0
  %2837 = vmatpush2.msra.mxu0 0.0
  %2838 = vmatprep.subr.mxu0 0.0
  %2839 = vmatpush2.msra.mxu0 0.0
  %2840 = vmatprep.subr.mxu0 0.0
  %2841 = vmatpush2.msra.mxu0 0.0
  %2842 = vmatprep.mubr.f32.mxu0 0.0
  %2843 = vmatmul.mubr.f32.gmra.mxu0 %v19
  %v2844 = vpop.f32.mrf.mxu0
  %v2845 = vadd.f32 0.0, %v2844
  %v2846 = vpop.f32.mrf.mxu0
  %2847 = vdwg.mxu0
  %v2848 = vpack.c.bf16 %v2845, %v2845
  %s2849 = scalar_lea.vmem %s2, 48
  %2850 = vst [vmem:[%s2849] sm:$0x3] %v2848
  %s2851 = scalar_lea.vmem %s0, 52
  %v2852 = vld [vmem:[%s2851] sm:$0xf]
  %v2853 = vld [vmem:[%s2622] sm:$0xf]
  %v2855 = vsel %vm21, %v2853, 0
  %2857 = vmatprep.subr.mxu0 0.0
  %2858 = vmatpush1.msra.mxu0 0.0
  %2859 = vmatprep.subr.mxu0 0.0
  %2860 = vmatpush1.msra.mxu0 0.0
  %2861 = vmatprep.subr.mxu0 0.0
  %2862 = vmatpush1.msra.mxu0 0.0
  %2863 = vmatprep.subr.mxu0 0.0
  %2864 = vmatpush1.msra.mxu0 0.0
  %2865 = vmatprep.subr.mxu0 0.0
  %2866 = vmatpush1.msra.mxu0 0.0
  %2867 = vmatprep.subr.mxu0 0.0
  %2868 = vmatpush1.msra.mxu0 0.0
  %2869 = vmatprep.subr.mxu0 0.0
  %2870 = vmatpush1.msra.mxu0 0.0
  %2871 = vmatprep.subr.mxu0 0.0
  %2872 = vmatpush1.msra.mxu0 0.0
  %2873 = vmatprep.subr.mxu0 0.0
  %2874 = vmatpush1.msra.mxu0 0.0
  %2875 = vmatprep.subr.mxu0 0.0
  %2876 = vmatpush1.msra.mxu0 0.0
  %2877 = vmatprep.subr.mxu0 0.0
  %2878 = vmatpush1.msra.mxu0 0.0
  %2879 = vmatprep.subr.mxu0 0.0
  %2880 = vmatpush1.msra.mxu0 0.0
  %2881 = vmatprep.subr.mxu0 0.0
  %2882 = vmatpush1.msra.mxu0 0.0
  %2883 = vmatprep.subr.mxu0 0.0
  %2884 = vmatpush1.msra.mxu0 0.0
  %2885 = vmatprep.subr.mxu0 0.0
  %2886 = vmatpush1.msra.mxu0 0.0
  %2887 = vmatprep.subr.mxu0 0.0
  %2888 = vmatpush1.msra.mxu0 %v2855
  %2889 = vmatprep.subr.mxu0 0.0
  %2890 = vmatpush2.msra.mxu0 0.0
  %2891 = vmatprep.subr.mxu0 0.0
  %2892 = vmatpush2.msra.mxu0 0.0
  %2893 = vmatprep.subr.mxu0 0.0
  %2894 = vmatpush2.msra.mxu0 0.0
  %2895 = vmatprep.subr.mxu0 0.0
  %2896 = vmatpush2.msra.mxu0 0.0
  %2897 = vmatprep.subr.mxu0 0.0
  %2898 = vmatpush2.msra.mxu0 0.0
  %2899 = vmatprep.subr.mxu0 0.0
  %2900 = vmatpush2.msra.mxu0 0.0
  %2901 = vmatprep.subr.mxu0 0.0
  %2902 = vmatpush2.msra.mxu0 0.0
  %2903 = vmatprep.subr.mxu0 0.0
  %2904 = vmatpush2.msra.mxu0 0.0
  %2905 = vmatprep.subr.mxu0 0.0
  %2906 = vmatpush2.msra.mxu0 0.0
  %2907 = vmatprep.subr.mxu0 0.0
  %2908 = vmatpush2.msra.mxu0 0.0
  %2909 = vmatprep.subr.mxu0 0.0
  %2910 = vmatpush2.msra.mxu0 0.0
  %2911 = vmatprep.subr.mxu0 0.0
  %2912 = vmatpush2.msra.mxu0 0.0
  %2913 = vmatprep.subr.mxu0 0.0
  %2914 = vmatpush2.msra.mxu0 0.0
  %2915 = vmatprep.subr.mxu0 0.0
  %2916 = vmatpush2.msra.mxu0 0.0
  %2917 = vmatprep.subr.mxu0 0.0
  %2918 = vmatpush2.msra.mxu0 0.0
  %2919 = vmatprep.subr.mxu0 0.0
  %2920 = vmatpush2.msra.mxu0 0.0
  %2921 = vmatprep.mubr.f32.mxu0 0.0
  %2922 = vmatmul.mubr.f32.gmra.mxu0 %v101
  %v2923 = vpop.f32.mrf.mxu0
  %v2924 = vadd.f32 0.0, %v2923
  %v2925 = vpop.f32.mrf.mxu0
  %2926 = vdwg.mxu0
  %v2928 = vsel %vm21, %v2852, 0
  %2930 = vmatprep.subr.mxu0 0.0
  %2931 = vmatpush1.msra.mxu0 0.0
  %2932 = vmatprep.subr.mxu0 0.0
  %2933 = vmatpush1.msra.mxu0 0.0
  %2934 = vmatprep.subr.mxu0 0.0
  %2935 = vmatpush1.msra.mxu0 0.0
  %2936 = vmatprep.subr.mxu0 0.0
  %2937 = vmatpush1.msra.mxu0 0.0
  %2938 = vmatprep.subr.mxu0 0.0
  %2939 = vmatpush1.msra.mxu0 0.0
  %2940 = vmatprep.subr.mxu0 0.0
  %2941 = vmatpush1.msra.mxu0 0.0
  %2942 = vmatprep.subr.mxu0 0.0
  %2943 = vmatpush1.msra.mxu0 0.0
  %2944 = vmatprep.subr.mxu0 0.0
  %2945 = vmatpush1.msra.mxu0 0.0
  %2946 = vmatprep.subr.mxu0 0.0
  %2947 = vmatpush1.msra.mxu0 0.0
  %2948 = vmatprep.subr.mxu0 0.0
  %2949 = vmatpush1.msra.mxu0 0.0
  %2950 = vmatprep.subr.mxu0 0.0
  %2951 = vmatpush1.msra.mxu0 0.0
  %2952 = vmatprep.subr.mxu0 0.0
  %2953 = vmatpush1.msra.mxu0 0.0
  %2954 = vmatprep.subr.mxu0 0.0
  %2955 = vmatpush1.msra.mxu0 0.0
  %2956 = vmatprep.subr.mxu0 0.0
  %2957 = vmatpush1.msra.mxu0 0.0
  %2958 = vmatprep.subr.mxu0 0.0
  %2959 = vmatpush1.msra.mxu0 0.0
  %2960 = vmatprep.subr.mxu0 0.0
  %2961 = vmatpush1.msra.mxu0 %v2928
  %2962 = vmatprep.subr.mxu0 0.0
  %2963 = vmatpush2.msra.mxu0 0.0
  %2964 = vmatprep.subr.mxu0 0.0
  %2965 = vmatpush2.msra.mxu0 0.0
  %2966 = vmatprep.subr.mxu0 0.0
  %2967 = vmatpush2.msra.mxu0 0.0
  %2968 = vmatprep.subr.mxu0 0.0
  %2969 = vmatpush2.msra.mxu0 0.0
  %2970 = vmatprep.subr.mxu0 0.0
  %2971 = vmatpush2.msra.mxu0 0.0
  %2972 = vmatprep.subr.mxu0 0.0
  %2973 = vmatpush2.msra.mxu0 0.0
  %2974 = vmatprep.subr.mxu0 0.0
  %2975 = vmatpush2.msra.mxu0 0.0
  %2976 = vmatprep.subr.mxu0 0.0
  %2977 = vmatpush2.msra.mxu0 0.0
  %2978 = vmatprep.subr.mxu0 0.0
  %2979 = vmatpush2.msra.mxu0 0.0
  %2980 = vmatprep.subr.mxu0 0.0
  %2981 = vmatpush2.msra.mxu0 0.0
  %2982 = vmatprep.subr.mxu0 0.0
  %2983 = vmatpush2.msra.mxu0 0.0
  %2984 = vmatprep.subr.mxu0 0.0
  %2985 = vmatpush2.msra.mxu0 0.0
  %2986 = vmatprep.subr.mxu0 0.0
  %2987 = vmatpush2.msra.mxu0 0.0
  %2988 = vmatprep.subr.mxu0 0.0
  %2989 = vmatpush2.msra.mxu0 0.0
  %2990 = vmatprep.subr.mxu0 0.0
  %2991 = vmatpush2.msra.mxu0 0.0
  %2992 = vmatprep.subr.mxu0 0.0
  %2993 = vmatpush2.msra.mxu0 0.0
  %2994 = vmatprep.mubr.f32.mxu0 0.0
  %2995 = vmatmul.mubr.f32.gmra.mxu0 %v177
  %v2996 = vpop.f32.mrf.mxu0
  %v2997 = vadd.f32 %v2924, %v2996
  %v2998 = vpop.f32.mrf.mxu0
  %2999 = vdwg.mxu0
  %v3000 = vpack.c.bf16 %v2997, %v2997
  %s3001 = scalar_lea.vmem %s2, 50
  %3002 = vst [vmem:[%s3001] sm:$0x3] %v3000
  %v3003 = vld [vmem:[%s2851] sm:$0xf]
  %v3005 = vsel %vm21, %v3003, 0
  %3007 = vmatprep.subr.mxu0 0.0
  %3008 = vmatpush1.msra.mxu0 0.0
  %3009 = vmatprep.subr.mxu0 0.0
  %3010 = vmatpush1.msra.mxu0 0.0
  %3011 = vmatprep.subr.mxu0 0.0
  %3012 = vmatpush1.msra.mxu0 0.0
  %3013 = vmatprep.subr.mxu0 0.0
  %3014 = vmatpush1.msra.mxu0 0.0
  %3015 = vmatprep.subr.mxu0 0.0
  %3016 = vmatpush1.msra.mxu0 0.0
  %3017 = vmatprep.subr.mxu0 0.0
  %3018 = vmatpush1.msra.mxu0 0.0
  %3019 = vmatprep.subr.mxu0 0.0
  %3020 = vmatpush1.msra.mxu0 0.0
  %3021 = vmatprep.subr.mxu0 0.0
  %3022 = vmatpush1.msra.mxu0 0.0
  %3023 = vmatprep.subr.mxu0 0.0
  %3024 = vmatpush1.msra.mxu0 0.0
  %3025 = vmatprep.subr.mxu0 0.0
  %3026 = vmatpush1.msra.mxu0 0.0
  %3027 = vmatprep.subr.mxu0 0.0
  %3028 = vmatpush1.msra.mxu0 0.0
  %3029 = vmatprep.subr.mxu0 0.0
  %3030 = vmatpush1.msra.mxu0 0.0
  %3031 = vmatprep.subr.mxu0 0.0
  %3032 = vmatpush1.msra.mxu0 0.0
  %3033 = vmatprep.subr.mxu0 0.0
  %3034 = vmatpush1.msra.mxu0 0.0
  %3035 = vmatprep.subr.mxu0 0.0
  %3036 = vmatpush1.msra.mxu0 0.0
  %3037 = vmatprep.subr.mxu0 0.0
  %3038 = vmatpush1.msra.mxu0 %v3005
  %3039 = vmatprep.subr.mxu0 0.0
  %3040 = vmatpush2.msra.mxu0 0.0
  %3041 = vmatprep.subr.mxu0 0.0
  %3042 = vmatpush2.msra.mxu0 0.0
  %3043 = vmatprep.subr.mxu0 0.0
  %3044 = vmatpush2.msra.mxu0 0.0
  %3045 = vmatprep.subr.mxu0 0.0
  %3046 = vmatpush2.msra.mxu0 0.0
  %3047 = vmatprep.subr.mxu0 0.0
  %3048 = vmatpush2.msra.mxu0 0.0
  %3049 = vmatprep.subr.mxu0 0.0
  %3050 = vmatpush2.msra.mxu0 0.0
  %3051 = vmatprep.subr.mxu0 0.0
  %3052 = vmatpush2.msra.mxu0 0.0
  %3053 = vmatprep.subr.mxu0 0.0
  %3054 = vmatpush2.msra.mxu0 0.0
  %3055 = vmatprep.subr.mxu0 0.0
  %3056 = vmatpush2.msra.mxu0 0.0
  %3057 = vmatprep.subr.mxu0 0.0
  %3058 = vmatpush2.msra.mxu0 0.0
  %3059 = vmatprep.subr.mxu0 0.0
  %3060 = vmatpush2.msra.mxu0 0.0
  %3061 = vmatprep.subr.mxu0 0.0
  %3062 = vmatpush2.msra.mxu0 0.0
  %3063 = vmatprep.subr.mxu0 0.0
  %3064 = vmatpush2.msra.mxu0 0.0
  %3065 = vmatprep.subr.mxu0 0.0
  %3066 = vmatpush2.msra.mxu0 0.0
  %3067 = vmatprep.subr.mxu0 0.0
  %3068 = vmatpush2.msra.mxu0 0.0
  %3069 = vmatprep.subr.mxu0 0.0
  %3070 = vmatpush2.msra.mxu0 0.0
  %3071 = vmatprep.mubr.f32.mxu0 0.0
  %3072 = vmatmul.mubr.f32.gmra.mxu0 %v19
  %v3073 = vpop.f32.mrf.mxu0
  %v3074 = vadd.f32 0.0, %v3073
  %v3075 = vpop.f32.mrf.mxu0
  %3076 = vdwg.mxu0
  %v3077 = vpack.c.bf16 %v3074, %v3074
  %s3078 = scalar_lea.vmem %s2, 52
  %3079 = vst [vmem:[%s3078] sm:$0x3] %v3077
  %s3080 = scalar_lea.vmem %s0, 56
  %v3081 = vld [vmem:[%s3080] sm:$0xf]
  %v3082 = vld [vmem:[%s2851] sm:$0xf]
  %v3084 = vsel %vm21, %v3082, 0
  %3086 = vmatprep.subr.mxu0 0.0
  %3087 = vmatpush1.msra.mxu0 0.0
  %3088 = vmatprep.subr.mxu0 0.0
  %3089 = vmatpush1.msra.mxu0 0.0
  %3090 = vmatprep.subr.mxu0 0.0
  %3091 = vmatpush1.msra.mxu0 0.0
  %3092 = vmatprep.subr.mxu0 0.0
  %3093 = vmatpush1.msra.mxu0 0.0
  %3094 = vmatprep.subr.mxu0 0.0
  %3095 = vmatpush1.msra.mxu0 0.0
  %3096 = vmatprep.subr.mxu0 0.0
  %3097 = vmatpush1.msra.mxu0 0.0
  %3098 = vmatprep.subr.mxu0 0.0
  %3099 = vmatpush1.msra.mxu0 0.0
  %3100 = vmatprep.subr.mxu0 0.0
  %3101 = vmatpush1.msra.mxu0 0.0
  %3102 = vmatprep.subr.mxu0 0.0
  %3103 = vmatpush1.msra.mxu0 0.0
  %3104 = vmatprep.subr.mxu0 0.0
  %3105 = vmatpush1.msra.mxu0 0.0
  %3106 = vmatprep.subr.mxu0 0.0
  %3107 = vmatpush1.msra.mxu0 0.0
  %3108 = vmatprep.subr.mxu0 0.0
  %3109 = vmatpush1.msra.mxu0 0.0
  %3110 = vmatprep.subr.mxu0 0.0
  %3111 = vmatpush1.msra.mxu0 0.0
  %3112 = vmatprep.subr.mxu0 0.0
  %3113 = vmatpush1.msra.mxu0 0.0
  %3114 = vmatprep.subr.mxu0 0.0
  %3115 = vmatpush1.msra.mxu0 0.0
  %3116 = vmatprep.subr.mxu0 0.0
  %3117 = vmatpush1.msra.mxu0 %v3084
  %3118 = vmatprep.subr.mxu0 0.0
  %3119 = vmatpush2.msra.mxu0 0.0
  %3120 = vmatprep.subr.mxu0 0.0
  %3121 = vmatpush2.msra.mxu0 0.0
  %3122 = vmatprep.subr.mxu0 0.0
  %3123 = vmatpush2.msra.mxu0 0.0
  %3124 = vmatprep.subr.mxu0 0.0
  %3125 = vmatpush2.msra.mxu0 0.0
  %3126 = vmatprep.subr.mxu0 0.0
  %3127 = vmatpush2.msra.mxu0 0.0
  %3128 = vmatprep.subr.mxu0 0.0
  %3129 = vmatpush2.msra.mxu0 0.0
  %3130 = vmatprep.subr.mxu0 0.0
  %3131 = vmatpush2.msra.mxu0 0.0
  %3132 = vmatprep.subr.mxu0 0.0
  %3133 = vmatpush2.msra.mxu0 0.0
  %3134 = vmatprep.subr.mxu0 0.0
  %3135 = vmatpush2.msra.mxu0 0.0
  %3136 = vmatprep.subr.mxu0 0.0
  %3137 = vmatpush2.msra.mxu0 0.0
  %3138 = vmatprep.subr.mxu0 0.0
  %3139 = vmatpush2.msra.mxu0 0.0
  %3140 = vmatprep.subr.mxu0 0.0
  %3141 = vmatpush2.msra.mxu0 0.0
  %3142 = vmatprep.subr.mxu0 0.0
  %3143 = vmatpush2.msra.mxu0 0.0
  %3144 = vmatprep.subr.mxu0 0.0
  %3145 = vmatpush2.msra.mxu0 0.0
  %3146 = vmatprep.subr.mxu0 0.0
  %3147 = vmatpush2.msra.mxu0 0.0
  %3148 = vmatprep.subr.mxu0 0.0
  %3149 = vmatpush2.msra.mxu0 0.0
  %3150 = vmatprep.mubr.f32.mxu0 0.0
  %3151 = vmatmul.mubr.f32.gmra.mxu0 %v101
  %v3152 = vpop.f32.mrf.mxu0
  %v3153 = vadd.f32 0.0, %v3152
  %v3154 = vpop.f32.mrf.mxu0
  %3155 = vdwg.mxu0
  %v3157 = vsel %vm21, %v3081, 0
  %3159 = vmatprep.subr.mxu0 0.0
  %3160 = vmatpush1.msra.mxu0 0.0
  %3161 = vmatprep.subr.mxu0 0.0
  %3162 = vmatpush1.msra.mxu0 0.0
  %3163 = vmatprep.subr.mxu0 0.0
  %3164 = vmatpush1.msra.mxu0 0.0
  %3165 = vmatprep.subr.mxu0 0.0
  %3166 = vmatpush1.msra.mxu0 0.0
  %3167 = vmatprep.subr.mxu0 0.0
  %3168 = vmatpush1.msra.mxu0 0.0
  %3169 = vmatprep.subr.mxu0 0.0
  %3170 = vmatpush1.msra.mxu0 0.0
  %3171 = vmatprep.subr.mxu0 0.0
  %3172 = vmatpush1.msra.mxu0 0.0
  %3173 = vmatprep.subr.mxu0 0.0
  %3174 = vmatpush1.msra.mxu0 0.0
  %3175 = vmatprep.subr.mxu0 0.0
  %3176 = vmatpush1.msra.mxu0 0.0
  %3177 = vmatprep.subr.mxu0 0.0
  %3178 = vmatpush1.msra.mxu0 0.0
  %3179 = vmatprep.subr.mxu0 0.0
  %3180 = vmatpush1.msra.mxu0 0.0
  %3181 = vmatprep.subr.mxu0 0.0
  %3182 = vmatpush1.msra.mxu0 0.0
  %3183 = vmatprep.subr.mxu0 0.0
  %3184 = vmatpush1.msra.mxu0 0.0
  %3185 = vmatprep.subr.mxu0 0.0
  %3186 = vmatpush1.msra.mxu0 0.0
  %3187 = vmatprep.subr.mxu0 0.0
  %3188 = vmatpush1.msra.mxu0 0.0
  %3189 = vmatprep.subr.mxu0 0.0
  %3190 = vmatpush1.msra.mxu0 %v3157
  %3191 = vmatprep.subr.mxu0 0.0
  %3192 = vmatpush2.msra.mxu0 0.0
  %3193 = vmatprep.subr.mxu0 0.0
  %3194 = vmatpush2.msra.mxu0 0.0
  %3195 = vmatprep.subr.mxu0 0.0
  %3196 = vmatpush2.msra.mxu0 0.0
  %3197 = vmatprep.subr.mxu0 0.0
  %3198 = vmatpush2.msra.mxu0 0.0
  %3199 = vmatprep.subr.mxu0 0.0
  %3200 = vmatpush2.msra.mxu0 0.0
  %3201 = vmatprep.subr.mxu0 0.0
  %3202 = vmatpush2.msra.mxu0 0.0
  %3203 = vmatprep.subr.mxu0 0.0
  %3204 = vmatpush2.msra.mxu0 0.0
  %3205 = vmatprep.subr.mxu0 0.0
  %3206 = vmatpush2.msra.mxu0 0.0
  %3207 = vmatprep.subr.mxu0 0.0
  %3208 = vmatpush2.msra.mxu0 0.0
  %3209 = vmatprep.subr.mxu0 0.0
  %3210 = vmatpush2.msra.mxu0 0.0
  %3211 = vmatprep.subr.mxu0 0.0
  %3212 = vmatpush2.msra.mxu0 0.0
  %3213 = vmatprep.subr.mxu0 0.0
  %3214 = vmatpush2.msra.mxu0 0.0
  %3215 = vmatprep.subr.mxu0 0.0
  %3216 = vmatpush2.msra.mxu0 0.0
  %3217 = vmatprep.subr.mxu0 0.0
  %3218 = vmatpush2.msra.mxu0 0.0
  %3219 = vmatprep.subr.mxu0 0.0
  %3220 = vmatpush2.msra.mxu0 0.0
  %3221 = vmatprep.subr.mxu0 0.0
  %3222 = vmatpush2.msra.mxu0 0.0
  %3223 = vmatprep.mubr.f32.mxu0 0.0
  %3224 = vmatmul.mubr.f32.gmra.mxu0 %v177
  %v3225 = vpop.f32.mrf.mxu0
  %v3226 = vadd.f32 %v3153, %v3225
  %v3227 = vpop.f32.mrf.mxu0
  %3228 = vdwg.mxu0
  %v3229 = vpack.c.bf16 %v3226, %v3226
  %s3230 = scalar_lea.vmem %s2, 54
  %3231 = vst [vmem:[%s3230] sm:$0x3] %v3229
  %v3232 = vld [vmem:[%s3080] sm:$0xf]
  %v3234 = vsel %vm21, %v3232, 0
  %3236 = vmatprep.subr.mxu0 0.0
  %3237 = vmatpush1.msra.mxu0 0.0
  %3238 = vmatprep.subr.mxu0 0.0
  %3239 = vmatpush1.msra.mxu0 0.0
  %3240 = vmatprep.subr.mxu0 0.0
  %3241 = vmatpush1.msra.mxu0 0.0
  %3242 = vmatprep.subr.mxu0 0.0
  %3243 = vmatpush1.msra.mxu0 0.0
  %3244 = vmatprep.subr.mxu0 0.0
  %3245 = vmatpush1.msra.mxu0 0.0
  %3246 = vmatprep.subr.mxu0 0.0
  %3247 = vmatpush1.msra.mxu0 0.0
  %3248 = vmatprep.subr.mxu0 0.0
  %3249 = vmatpush1.msra.mxu0 0.0
  %3250 = vmatprep.subr.mxu0 0.0
  %3251 = vmatpush1.msra.mxu0 0.0
  %3252 = vmatprep.subr.mxu0 0.0
  %3253 = vmatpush1.msra.mxu0 0.0
  %3254 = vmatprep.subr.mxu0 0.0
  %3255 = vmatpush1.msra.mxu0 0.0
  %3256 = vmatprep.subr.mxu0 0.0
  %3257 = vmatpush1.msra.mxu0 0.0
  %3258 = vmatprep.subr.mxu0 0.0
  %3259 = vmatpush1.msra.mxu0 0.0
  %3260 = vmatprep.subr.mxu0 0.0
  %3261 = vmatpush1.msra.mxu0 0.0
  %3262 = vmatprep.subr.mxu0 0.0
  %3263 = vmatpush1.msra.mxu0 0.0
  %3264 = vmatprep.subr.mxu0 0.0
  %3265 = vmatpush1.msra.mxu0 0.0
  %3266 = vmatprep.subr.mxu0 0.0
  %3267 = vmatpush1.msra.mxu0 %v3234
  %3268 = vmatprep.subr.mxu0 0.0
  %3269 = vmatpush2.msra.mxu0 0.0
  %3270 = vmatprep.subr.mxu0 0.0
  %3271 = vmatpush2.msra.mxu0 0.0
  %3272 = vmatprep.subr.mxu0 0.0
  %3273 = vmatpush2.msra.mxu0 0.0
  %3274 = vmatprep.subr.mxu0 0.0
  %3275 = vmatpush2.msra.mxu0 0.0
  %3276 = vmatprep.subr.mxu0 0.0
  %3277 = vmatpush2.msra.mxu0 0.0
  %3278 = vmatprep.subr.mxu0 0.0
  %3279 = vmatpush2.msra.mxu0 0.0
  %3280 = vmatprep.subr.mxu0 0.0
  %3281 = vmatpush2.msra.mxu0 0.0
  %3282 = vmatprep.subr.mxu0 0.0
  %3283 = vmatpush2.msra.mxu0 0.0
  %3284 = vmatprep.subr.mxu0 0.0
  %3285 = vmatpush2.msra.mxu0 0.0
  %3286 = vmatprep.subr.mxu0 0.0
  %3287 = vmatpush2.msra.mxu0 0.0
  %3288 = vmatprep.subr.mxu0 0.0
  %3289 = vmatpush2.msra.mxu0 0.0
  %3290 = vmatprep.subr.mxu0 0.0
  %3291 = vmatpush2.msra.mxu0 0.0
  %3292 = vmatprep.subr.mxu0 0.0
  %3293 = vmatpush2.msra.mxu0 0.0
  %3294 = vmatprep.subr.mxu0 0.0
  %3295 = vmatpush2.msra.mxu0 0.0
  %3296 = vmatprep.subr.mxu0 0.0
  %3297 = vmatpush2.msra.mxu0 0.0
  %3298 = vmatprep.subr.mxu0 0.0
  %3299 = vmatpush2.msra.mxu0 0.0
  %3300 = vmatprep.mubr.f32.mxu0 0.0
  %3301 = vmatmul.mubr.f32.gmra.mxu0 %v19
  %v3302 = vpop.f32.mrf.mxu0
  %v3303 = vadd.f32 0.0, %v3302
  %v3304 = vpop.f32.mrf.mxu0
  %3305 = vdwg.mxu0
  %v3306 = vpack.c.bf16 %v3303, %v3303
  %s3307 = scalar_lea.vmem %s2, 56
  %3308 = vst [vmem:[%s3307] sm:$0x3] %v3306
  %s3309 = scalar_lea.vmem %s0, 60
  %v3310 = vld [vmem:[%s3309] sm:$0xf]
  %v3311 = vld [vmem:[%s3080] sm:$0xf]
  %v3313 = vsel %vm21, %v3311, 0
  %3315 = vmatprep.subr.mxu0 0.0
  %3316 = vmatpush1.msra.mxu0 0.0
  %3317 = vmatprep.subr.mxu0 0.0
  %3318 = vmatpush1.msra.mxu0 0.0
  %3319 = vmatprep.subr.mxu0 0.0
  %3320 = vmatpush1.msra.mxu0 0.0
  %3321 = vmatprep.subr.mxu0 0.0
  %3322 = vmatpush1.msra.mxu0 0.0
  %3323 = vmatprep.subr.mxu0 0.0
  %3324 = vmatpush1.msra.mxu0 0.0
  %3325 = vmatprep.subr.mxu0 0.0
  %3326 = vmatpush1.msra.mxu0 0.0
  %3327 = vmatprep.subr.mxu0 0.0
  %3328 = vmatpush1.msra.mxu0 0.0
  %3329 = vmatprep.subr.mxu0 0.0
  %3330 = vmatpush1.msra.mxu0 0.0
  %3331 = vmatprep.subr.mxu0 0.0
  %3332 = vmatpush1.msra.mxu0 0.0
  %3333 = vmatprep.subr.mxu0 0.0
  %3334 = vmatpush1.msra.mxu0 0.0
  %3335 = vmatprep.subr.mxu0 0.0
  %3336 = vmatpush1.msra.mxu0 0.0
  %3337 = vmatprep.subr.mxu0 0.0
  %3338 = vmatpush1.msra.mxu0 0.0
  %3339 = vmatprep.subr.mxu0 0.0
  %3340 = vmatpush1.msra.mxu0 0.0
  %3341 = vmatprep.subr.mxu0 0.0
  %3342 = vmatpush1.msra.mxu0 0.0
  %3343 = vmatprep.subr.mxu0 0.0
  %3344 = vmatpush1.msra.mxu0 0.0
  %3345 = vmatprep.subr.mxu0 0.0
  %3346 = vmatpush1.msra.mxu0 %v3313
  %3347 = vmatprep.subr.mxu0 0.0
  %3348 = vmatpush2.msra.mxu0 0.0
  %3349 = vmatprep.subr.mxu0 0.0
  %3350 = vmatpush2.msra.mxu0 0.0
  %3351 = vmatprep.subr.mxu0 0.0
  %3352 = vmatpush2.msra.mxu0 0.0
  %3353 = vmatprep.subr.mxu0 0.0
  %3354 = vmatpush2.msra.mxu0 0.0
  %3355 = vmatprep.subr.mxu0 0.0
  %3356 = vmatpush2.msra.mxu0 0.0
  %3357 = vmatprep.subr.mxu0 0.0
  %3358 = vmatpush2.msra.mxu0 0.0
  %3359 = vmatprep.subr.mxu0 0.0
  %3360 = vmatpush2.msra.mxu0 0.0
  %3361 = vmatprep.subr.mxu0 0.0
  %3362 = vmatpush2.msra.mxu0 0.0
  %3363 = vmatprep.subr.mxu0 0.0
  %3364 = vmatpush2.msra.mxu0 0.0
  %3365 = vmatprep.subr.mxu0 0.0
  %3366 = vmatpush2.msra.mxu0 0.0
  %3367 = vmatprep.subr.mxu0 0.0
  %3368 = vmatpush2.msra.mxu0 0.0
  %3369 = vmatprep.subr.mxu0 0.0
  %3370 = vmatpush2.msra.mxu0 0.0
  %3371 = vmatprep.subr.mxu0 0.0
  %3372 = vmatpush2.msra.mxu0 0.0
  %3373 = vmatprep.subr.mxu0 0.0
  %3374 = vmatpush2.msra.mxu0 0.0
  %3375 = vmatprep.subr.mxu0 0.0
  %3376 = vmatpush2.msra.mxu0 0.0
  %3377 = vmatprep.subr.mxu0 0.0
  %3378 = vmatpush2.msra.mxu0 0.0
  %3379 = vmatprep.mubr.f32.mxu0 0.0
  %3380 = vmatmul.mubr.f32.gmra.mxu0 %v101
  %v3381 = vpop.f32.mrf.mxu0
  %v3382 = vadd.f32 0.0, %v3381
  %v3383 = vpop.f32.mrf.mxu0
  %3384 = vdwg.mxu0
  %v3386 = vsel %vm21, %v3310, 0
  %3388 = vmatprep.subr.mxu0 0.0
  %3389 = vmatpush1.msra.mxu0 0.0
  %3390 = vmatprep.subr.mxu0 0.0
  %3391 = vmatpush1.msra.mxu0 0.0
  %3392 = vmatprep.subr.mxu0 0.0
  %3393 = vmatpush1.msra.mxu0 0.0
  %3394 = vmatprep.subr.mxu0 0.0
  %3395 = vmatpush1.msra.mxu0 0.0
  %3396 = vmatprep.subr.mxu0 0.0
  %3397 = vmatpush1.msra.mxu0 0.0
  %3398 = vmatprep.subr.mxu0 0.0
  %3399 = vmatpush1.msra.mxu0 0.0
  %3400 = vmatprep.subr.mxu0 0.0
  %3401 = vmatpush1.msra.mxu0 0.0
  %3402 = vmatprep.subr.mxu0 0.0
  %3403 = vmatpush1.msra.mxu0 0.0
  %3404 = vmatprep.subr.mxu0 0.0
  %3405 = vmatpush1.msra.mxu0 0.0
  %3406 = vmatprep.subr.mxu0 0.0
  %3407 = vmatpush1.msra.mxu0 0.0
  %3408 = vmatprep.subr.mxu0 0.0
  %3409 = vmatpush1.msra.mxu0 0.0
  %3410 = vmatprep.subr.mxu0 0.0
  %3411 = vmatpush1.msra.mxu0 0.0
  %3412 = vmatprep.subr.mxu0 0.0
  %3413 = vmatpush1.msra.mxu0 0.0
  %3414 = vmatprep.subr.mxu0 0.0
  %3415 = vmatpush1.msra.mxu0 0.0
  %3416 = vmatprep.subr.mxu0 0.0
  %3417 = vmatpush1.msra.mxu0 0.0
  %3418 = vmatprep.subr.mxu0 0.0
  %3419 = vmatpush1.msra.mxu0 %v3386
  %3420 = vmatprep.subr.mxu0 0.0
  %3421 = vmatpush2.msra.mxu0 0.0
  %3422 = vmatprep.subr.mxu0 0.0
  %3423 = vmatpush2.msra.mxu0 0.0
  %3424 = vmatprep.subr.mxu0 0.0
  %3425 = vmatpush2.msra.mxu0 0.0
  %3426 = vmatprep.subr.mxu0 0.0
  %3427 = vmatpush2.msra.mxu0 0.0
  %3428 = vmatprep.subr.mxu0 0.0
  %3429 = vmatpush2.msra.mxu0 0.0
  %3430 = vmatprep.subr.mxu0 0.0
  %3431 = vmatpush2.msra.mxu0 0.0
  %3432 = vmatprep.subr.mxu0 0.0
  %3433 = vmatpush2.msra.mxu0 0.0
  %3434 = vmatprep.subr.mxu0 0.0
  %3435 = vmatpush2.msra.mxu0 0.0
  %3436 = vmatprep.subr.mxu0 0.0
  %3437 = vmatpush2.msra.mxu0 0.0
  %3438 = vmatprep.subr.mxu0 0.0
  %3439 = vmatpush2.msra.mxu0 0.0
  %3440 = vmatprep.subr.mxu0 0.0
  %3441 = vmatpush2.msra.mxu0 0.0
  %3442 = vmatprep.subr.mxu0 0.0
  %3443 = vmatpush2.msra.mxu0 0.0
  %3444 = vmatprep.subr.mxu0 0.0
  %3445 = vmatpush2.msra.mxu0 0.0
  %3446 = vmatprep.subr.mxu0 0.0
  %3447 = vmatpush2.msra.mxu0 0.0
  %3448 = vmatprep.subr.mxu0 0.0
  %3449 = vmatpush2.msra.mxu0 0.0
  %3450 = vmatprep.subr.mxu0 0.0
  %3451 = vmatpush2.msra.mxu0 0.0
  %3452 = vmatprep.mubr.f32.mxu0 0.0
  %3453 = vmatmul.mubr.f32.gmra.mxu0 %v177
  %v3454 = vpop.f32.mrf.mxu0
  %v3455 = vadd.f32 %v3382, %v3454
  %v3456 = vpop.f32.mrf.mxu0
  %3457 = vdwg.mxu0
  %v3458 = vpack.c.bf16 %v3455, %v3455
  %s3459 = scalar_lea.vmem %s2, 58
  %3460 = vst [vmem:[%s3459] sm:$0x3] %v3458
  %v3461 = vld [vmem:[%s3309] sm:$0xf]
  %v3463 = vsel %vm21, %v3461, 0
  %3465 = vmatprep.subr.mxu0 0.0
  %3466 = vmatpush1.msra.mxu0 0.0
  %3467 = vmatprep.subr.mxu0 0.0
  %3468 = vmatpush1.msra.mxu0 0.0
  %3469 = vmatprep.subr.mxu0 0.0
  %3470 = vmatpush1.msra.mxu0 0.0
  %3471 = vmatprep.subr.mxu0 0.0
  %3472 = vmatpush1.msra.mxu0 0.0
  %3473 = vmatprep.subr.mxu0 0.0
  %3474 = vmatpush1.msra.mxu0 0.0
  %3475 = vmatprep.subr.mxu0 0.0
  %3476 = vmatpush1.msra.mxu0 0.0
  %3477 = vmatprep.subr.mxu0 0.0
  %3478 = vmatpush1.msra.mxu0 0.0
  %3479 = vmatprep.subr.mxu0 0.0
  %3480 = vmatpush1.msra.mxu0 0.0
  %3481 = vmatprep.subr.mxu0 0.0
  %3482 = vmatpush1.msra.mxu0 0.0
  %3483 = vmatprep.subr.mxu0 0.0
  %3484 = vmatpush1.msra.mxu0 0.0
  %3485 = vmatprep.subr.mxu0 0.0
  %3486 = vmatpush1.msra.mxu0 0.0
  %3487 = vmatprep.subr.mxu0 0.0
  %3488 = vmatpush1.msra.mxu0 0.0
  %3489 = vmatprep.subr.mxu0 0.0
  %3490 = vmatpush1.msra.mxu0 0.0
  %3491 = vmatprep.subr.mxu0 0.0
  %3492 = vmatpush1.msra.mxu0 0.0
  %3493 = vmatprep.subr.mxu0 0.0
  %3494 = vmatpush1.msra.mxu0 0.0
  %3495 = vmatprep.subr.mxu0 0.0
  %3496 = vmatpush1.msra.mxu0 %v3463
  %3497 = vmatprep.subr.mxu0 0.0
  %3498 = vmatpush2.msra.mxu0 0.0
  %3499 = vmatprep.subr.mxu0 0.0
  %3500 = vmatpush2.msra.mxu0 0.0
  %3501 = vmatprep.subr.mxu0 0.0
  %3502 = vmatpush2.msra.mxu0 0.0
  %3503 = vmatprep.subr.mxu0 0.0
  %3504 = vmatpush2.msra.mxu0 0.0
  %3505 = vmatprep.subr.mxu0 0.0
  %3506 = vmatpush2.msra.mxu0 0.0
  %3507 = vmatprep.subr.mxu0 0.0
  %3508 = vmatpush2.msra.mxu0 0.0
  %3509 = vmatprep.subr.mxu0 0.0
  %3510 = vmatpush2.msra.mxu0 0.0
  %3511 = vmatprep.subr.mxu0 0.0
  %3512 = vmatpush2.msra.mxu0 0.0
  %3513 = vmatprep.subr.mxu0 0.0
  %3514 = vmatpush2.msra.mxu0 0.0
  %3515 = vmatprep.subr.mxu0 0.0
  %3516 = vmatpush2.msra.mxu0 0.0
  %3517 = vmatprep.subr.mxu0 0.0
  %3518 = vmatpush2.msra.mxu0 0.0
  %3519 = vmatprep.subr.mxu0 0.0
  %3520 = vmatpush2.msra.mxu0 0.0
  %3521 = vmatprep.subr.mxu0 0.0
  %3522 = vmatpush2.msra.mxu0 0.0
  %3523 = vmatprep.subr.mxu0 0.0
  %3524 = vmatpush2.msra.mxu0 0.0
  %3525 = vmatprep.subr.mxu0 0.0
  %3526 = vmatpush2.msra.mxu0 0.0
  %3527 = vmatprep.subr.mxu0 0.0
  %3528 = vmatpush2.msra.mxu0 0.0
  %3529 = vmatprep.mubr.f32.mxu0 0.0
  %3530 = vmatmul.mubr.f32.gmra.mxu0 %v19
  %v3531 = vpop.f32.mrf.mxu0
  %v3532 = vadd.f32 0.0, %v3531
  %v3533 = vpop.f32.mrf.mxu0
  %3534 = vdwg.mxu0
  %v3535 = vpack.c.bf16 %v3532, %v3532
  %s3536 = scalar_lea.vmem %s2, 60
  %3537 = vst [vmem:[%s3536] sm:$0x3] %v3535
  // Predicated region
  $region10: #{a_call__.2} parent=0 // pred_check
    _
  $region11: #{a_call__.2} parent=0 // pred_check_branch
    %3539 = sbr.rel (0) target = $region13
  $region12: #{a_call__.2} parent=0 // pred_region
    _
  $region13: #{a_call__.2} parent=0 // pred_fallthru
    _
  // Predicated region
  $region14: #{a_call__.2} parent=0 // pred_check
    _
  $region15: #{a_call__.2} parent=0 // pred_check_branch
    %3541 = sbr.rel (0) target = $region17
  $region16: #{a_call__.2} parent=0 // pred_region
    _
  $region17: #{a_call__.2} parent=0 // pred_fallthru
    _

// kernel: a_call__.3
$region0: #{a_call__.3}
  #allocation0 [shape = 'u32[]', space=smem, size = 0x4, offset = 0x4, fixed_abs, tag = 'smem constant byte address 0x4 - core index']
  #allocation1 [shape = 'u32[144,128]{1,0:T(1,128)}', space=vmem, size = 0x12000, scoped, tag = 'internal scratch']
  %s0 = inlined_call_operand.vmem [shape: bf16[16,4,128], index: 0, kind: input, shape index: {}]
  %s1 = inlined_call_operand.vmem [shape: bf16[3,6,4], index: 1, kind: input, shape index: {}]
  %s2 = inlined_call_operand.vmem [shape: f32[6,1], index: 2, kind: input, shape index: {}]
  %s3 = inlined_call_operand.vmem [shape: f32[32,6,128], index: 3, kind: output, shape index: {}]
  %s4 = sld [smem:[#allocation0]]
  $region22: #{a_call__.3} parent=0
    _
  %s6 = ssub.s32 1, %s4
  %s7 = scalar_select 0, %s6, %s4
  // Predicated region
  $region2: #{a_call__.3} parent=0 // pred_check
    _
  $region3: #{a_call__.3} parent=0 // pred_check_branch
    %9 = sbr.rel (0) target = $region5
  $region4: #{a_call__.3} parent=0 // pred_region
    _
  $region5: #{a_call__.3} parent=0 // pred_fallthru
    _
  // Predicated region
  $region6: #{a_call__.3} parent=0 // pred_check
    _
  $region7: #{a_call__.3} parent=0 // pred_check_branch
    %11 = sbr.rel (0) target = $region9
  $region8: #{a_call__.3} parent=0 // pred_region
    _
  $region9: #{a_call__.3} parent=0 // pred_fallthru
    _
  // Predicated region
  $region10: #{a_call__.3} parent=0 // pred_check
    _
  $region11: #{a_call__.3} parent=0 // pred_check_branch
    %13 = sbr.rel (0) target = $region13
  $region12: #{a_call__.3} parent=0 // pred_region
    _
  $region13: #{a_call__.3} parent=0 // pred_fallthru
    _
  %v15 = vld [vmem:[%s2] sm:$0x3f]
  %17 = vset.pattern.permute.xlu0 0
  %18 = vperm.xlu0 %17, %v15
  %v19 = vpop.permute.xlu0 %18
  %v21 = vld [vmem:[%s1] sm:$0x7]
  %s22 = scalar_lea.vmem %s1, 4
  %v23 = vld [vmem:[%s22] sm:$0x7]
  %s24 = scalar_lea.vmem %s1, 8
  %v25 = vld [vmem:[%s24] sm:$0x7]
  %v26 = vld [vmem:[%s0] sm:$0x3]
  %vm27 = vcmask 31744
  %v29 = vsel %vm27, %v23, 0
  %vm31 = vcmask 1041408
  %v33 = vsel %vm31, %v26, 0
  %35 = vmatprep.subr.bf16.mxu0 0
  %36 = vmatpush1.bf16.msra.mxu0 0
  %37 = vmatprep.subr.bf16.mxu0 0
  %38 = vmatpush1.bf16.msra.mxu0 0
  %39 = vmatprep.subr.bf16.mxu0 0
  %40 = vmatpush1.bf16.msra.mxu0 0
  %41 = vmatprep.subr.bf16.mxu0 0
  %42 = vmatpush1.bf16.msra.mxu0 0
  %43 = vmatprep.subr.bf16.mxu0 0
  %44 = vmatpush1.bf16.msra.mxu0 0
  %45 = vmatprep.subr.bf16.mxu0 0
  %46 = vmatpush1.bf16.msra.mxu0 0
  %47 = vmatprep.subr.bf16.mxu0 0
  %48 = vmatpush1.bf16.msra.mxu0 0
  %49 = vmatprep.subr.bf16.mxu0 0
  %50 = vmatpush1.bf16.msra.mxu0 %v33
  %51 = vmatprep.subr.bf16.mxu0 0
  %52 = vmatpush2.bf16.msra.mxu0 0
  %53 = vmatprep.subr.bf16.mxu0 0
  %54 = vmatpush2.bf16.msra.mxu0 0
  %55 = vmatprep.subr.bf16.mxu0 0
  %56 = vmatpush2.bf16.msra.mxu0 0
  %57 = vmatprep.subr.bf16.mxu0 0
  %58 = vmatpush2.bf16.msra.mxu0 0
  %59 = vmatprep.subr.bf16.mxu0 0
  %60 = vmatpush2.bf16.msra.mxu0 0
  %61 = vmatprep.subr.bf16.mxu0 0
  %62 = vmatpush2.bf16.msra.mxu0 0
  %63 = vmatprep.subr.bf16.mxu0 0
  %64 = vmatpush2.bf16.msra.mxu0 0
  %65 = vmatprep.subr.bf16.mxu0 0
  %66 = vmatpush2.bf16.msra.mxu0 0
  %67 = vmatprep.mubr.bf16.mxu0 0
  %68 = vmatmul.mubr.bf16.gmra.mxu0 %v29
  %v69 = vpop.f32.mrf.mxu0
  %v70 = vadd.f32 %v19, %v69
  %v71 = vpop.f32.mrf.mxu0
  %v72 = vpop.f32.mrf.mxu0
  %v73 = vpop.f32.mrf.mxu0
  %74 = vdwg.mxu0
  %75 = vst [vmem:[%s3] sm:$0x3f] %v70
  %s76 = scalar_lea.vmem %s0, 2
  %v77 = vld [vmem:[%s76] sm:$0x3]
  %v78 = vld [vmem:[%s0] sm:$0x3]
  %v80 = vsel %vm27, %v25, 0
  %v83 = vsel %vm31, %v78, 0
  %85 = vmatprep.subr.bf16.mxu0 0
  %86 = vmatpush1.bf16.msra.mxu0 0
  %87 = vmatprep.subr.bf16.mxu0 0
  %88 = vmatpush1.bf16.msra.mxu0 0
  %89 = vmatprep.subr.bf16.mxu0 0
  %90 = vmatpush1.bf16.msra.mxu0 0
  %91 = vmatprep.subr.bf16.mxu0 0
  %92 = vmatpush1.bf16.msra.mxu0 0
  %93 = vmatprep.subr.bf16.mxu0 0
  %94 = vmatpush1.bf16.msra.mxu0 0
  %95 = vmatprep.subr.bf16.mxu0 0
  %96 = vmatpush1.bf16.msra.mxu0 0
  %97 = vmatprep.subr.bf16.mxu0 0
  %98 = vmatpush1.bf16.msra.mxu0 0
  %99 = vmatprep.subr.bf16.mxu0 0
  %100 = vmatpush1.bf16.msra.mxu0 %v83
  %101 = vmatprep.subr.bf16.mxu0 0
  %102 = vmatpush2.bf16.msra.mxu0 0
  %103 = vmatprep.subr.bf16.mxu0 0
  %104 = vmatpush2.bf16.msra.mxu0 0
  %105 = vmatprep.subr.bf16.mxu0 0
  %106 = vmatpush2.bf16.msra.mxu0 0
  %107 = vmatprep.subr.bf16.mxu0 0
  %108 = vmatpush2.bf16.msra.mxu0 0
  %109 = vmatprep.subr.bf16.mxu0 0
  %110 = vmatpush2.bf16.msra.mxu0 0
  %111 = vmatprep.subr.bf16.mxu0 0
  %112 = vmatpush2.bf16.msra.mxu0 0
  %113 = vmatprep.subr.bf16.mxu0 0
  %114 = vmatpush2.bf16.msra.mxu0 0
  %115 = vmatprep.subr.bf16.mxu0 0
  %116 = vmatpush2.bf16.msra.mxu0 0
  %117 = vmatprep.mubr.bf16.mxu0 0
  %118 = vmatmul.mubr.bf16.gmra.mxu0 %v80
  %v119 = vpop.f32.mrf.mxu0
  %v120 = vadd.f32 0.0, %v119
  %v121 = vpop.f32.mrf.mxu0
  %v122 = vpop.f32.mrf.mxu0
  %v123 = vpop.f32.mrf.mxu0
  %124 = vdwg.mxu0
  %v126 = vsel %vm27, %v21, 0
  %v129 = vsel %vm31, %v77, 0
  %131 = vmatprep.subr.bf16.mxu0 0
  %132 = vmatpush1.bf16.msra.mxu0 0
  %133 = vmatprep.subr.bf16.mxu0 0
  %134 = vmatpush1.bf16.msra.mxu0 0
  %135 = vmatprep.subr.bf16.mxu0 0
  %136 = vmatpush1.bf16.msra.mxu0 0
  %137 = vmatprep.subr.bf16.mxu0 0
  %138 = vmatpush1.bf16.msra.mxu0 0
  %139 = vmatprep.subr.bf16.mxu0 0
  %140 = vmatpush1.bf16.msra.mxu0 0
  %141 = vmatprep.subr.bf16.mxu0 0
  %142 = vmatpush1.bf16.msra.mxu0 0
  %143 = vmatprep.subr.bf16.mxu0 0
  %144 = vmatpush1.bf16.msra.mxu0 0
  %145 = vmatprep.subr.bf16.mxu0 0
  %146 = vmatpush1.bf16.msra.mxu0 %v129
  %147 = vmatprep.subr.bf16.mxu0 0
  %148 = vmatpush2.bf16.msra.mxu0 0
  %149 = vmatprep.subr.bf16.mxu0 0
  %150 = vmatpush2.bf16.msra.mxu0 0
  %151 = vmatprep.subr.bf16.mxu0 0
  %152 = vmatpush2.bf16.msra.mxu0 0
  %153 = vmatprep.subr.bf16.mxu0 0
  %154 = vmatpush2.bf16.msra.mxu0 0
  %155 = vmatprep.subr.bf16.mxu0 0
  %156 = vmatpush2.bf16.msra.mxu0 0
  %157 = vmatprep.subr.bf16.mxu0 0
  %158 = vmatpush2.bf16.msra.mxu0 0
  %159 = vmatprep.subr.bf16.mxu0 0
  %160 = vmatpush2.bf16.msra.mxu0 0
  %161 = vmatprep.subr.bf16.mxu0 0
  %162 = vmatpush2.bf16.msra.mxu0 0
  %163 = vmatprep.mubr.bf16.mxu0 0
  %164 = vmatmul.mubr.bf16.gmra.mxu0 %v126
  %v165 = vpop.f32.mrf.mxu0
  %v166 = vadd.f32 %v120, %v165
  %v167 = vpop.f32.mrf.mxu0
  %v168 = vpop.f32.mrf.mxu0
  %v169 = vpop.f32.mrf.mxu0
  %170 = vdwg.mxu0
  %v171 = vadd.f32 %v166, %v19
  %s172 = scalar_lea.vmem %s3, 8
  %173 = vst [vmem:[%s172] sm:$0x3f] %v171
  %v174 = vld [vmem:[%s76] sm:$0x3]
  %v176 = vsel %vm31, %v174, 0
  %178 = vmatprep.subr.bf16.mxu0 0
  %179 = vmatpush1.bf16.msra.mxu0 0
  %180 = vmatprep.subr.bf16.mxu0 0
  %181 = vmatpush1.bf16.msra.mxu0 0
  %182 = vmatprep.subr.bf16.mxu0 0
  %183 = vmatpush1.bf16.msra.mxu0 0
  %184 = vmatprep.subr.bf16.mxu0 0
  %185 = vmatpush1.bf16.msra.mxu0 0
  %186 = vmatprep.subr.bf16.mxu0 0
  %187 = vmatpush1.bf16.msra.mxu0 0
  %188 = vmatprep.subr.bf16.mxu0 0
  %189 = vmatpush1.bf16.msra.mxu0 0
  %190 = vmatprep.subr.bf16.mxu0 0
  %191 = vmatpush1.bf16.msra.mxu0 0
  %192 = vmatprep.subr.bf16.mxu0 0
  %193 = vmatpush1.bf16.msra.mxu0 %v176
  %194 = vmatprep.subr.bf16.mxu0 0
  %195 = vmatpush2.bf16.msra.mxu0 0
  %196 = vmatprep.subr.bf16.mxu0 0
  %197 = vmatpush2.bf16.msra.mxu0 0
  %198 = vmatprep.subr.bf16.mxu0 0
  %199 = vmatpush2.bf16.msra.mxu0 0
  %200 = vmatprep.subr.bf16.mxu0 0
  %201 = vmatpush2.bf16.msra.mxu0 0
  %202 = vmatprep.subr.bf16.mxu0 0
  %203 = vmatpush2.bf16.msra.mxu0 0
  %204 = vmatprep.subr.bf16.mxu0 0
  %205 = vmatpush2.bf16.msra.mxu0 0
  %206 = vmatprep.subr.bf16.mxu0 0
  %207 = vmatpush2.bf16.msra.mxu0 0
  %208 = vmatprep.subr.bf16.mxu0 0
  %209 = vmatpush2.bf16.msra.mxu0 0
  %210 = vmatprep.mubr.bf16.mxu0 0
  %211 = vmatmul.mubr.bf16.gmra.mxu0 %v29
  %v212 = vpop.f32.mrf.mxu0
  %v213 = vadd.f32 %v19, %v212
  %v214 = vpop.f32.mrf.mxu0
  %v215 = vpop.f32.mrf.mxu0
  %v216 = vpop.f32.mrf.mxu0
  %217 = vdwg.mxu0
  %s218 = scalar_lea.vmem %s3, 16
  %219 = vst [vmem:[%s218] sm:$0x3f] %v213
  %s220 = scalar_lea.vmem %s0, 4
  %v221 = vld [vmem:[%s220] sm:$0x3]
  %v222 = vld [vmem:[%s76] sm:$0x3]
  %v224 = vsel %vm31, %v222, 0
  %226 = vmatprep.subr.bf16.mxu0 0
  %227 = vmatpush1.bf16.msra.mxu0 0
  %228 = vmatprep.subr.bf16.mxu0 0
  %229 = vmatpush1.bf16.msra.mxu0 0
  %230 = vmatprep.subr.bf16.mxu0 0
  %231 = vmatpush1.bf16.msra.mxu0 0
  %232 = vmatprep.subr.bf16.mxu0 0
  %233 = vmatpush1.bf16.msra.mxu0 0
  %234 = vmatprep.subr.bf16.mxu0 0
  %235 = vmatpush1.bf16.msra.mxu0 0
  %236 = vmatprep.subr.bf16.mxu0 0
  %237 = vmatpush1.bf16.msra.mxu0 0
  %238 = vmatprep.subr.bf16.mxu0 0
  %239 = vmatpush1.bf16.msra.mxu0 0
  %240 = vmatprep.subr.bf16.mxu0 0
  %241 = vmatpush1.bf16.msra.mxu0 %v224
  %242 = vmatprep.subr.bf16.mxu0 0
  %243 = vmatpush2.bf16.msra.mxu0 0
  %244 = vmatprep.subr.bf16.mxu0 0
  %245 = vmatpush2.bf16.msra.mxu0 0
  %246 = vmatprep.subr.bf16.mxu0 0
  %247 = vmatpush2.bf16.msra.mxu0 0
  %248 = vmatprep.subr.bf16.mxu0 0
  %249 = vmatpush2.bf16.msra.mxu0 0
  %250 = vmatprep.subr.bf16.mxu0 0
  %251 = vmatpush2.bf16.msra.mxu0 0
  %252 = vmatprep.subr.bf16.mxu0 0
  %253 = vmatpush2.bf16.msra.mxu0 0
  %254 = vmatprep.subr.bf16.mxu0 0
  %255 = vmatpush2.bf16.msra.mxu0 0
  %256 = vmatprep.subr.bf16.mxu0 0
  %257 = vmatpush2.bf16.msra.mxu0 0
  %258 = vmatprep.mubr.bf16.mxu0 0
  %259 = vmatmul.mubr.bf16.gmra.mxu0 %v80
  %v260 = vpop.f32.mrf.mxu0
  %v261 = vadd.f32 0.0, %v260
  %v262 = vpop.f32.mrf.mxu0
  %v263 = vpop.f32.mrf.mxu0
  %v264 = vpop.f32.mrf.mxu0
  %265 = vdwg.mxu0
  %v267 = vsel %vm31, %v221, 0
  %269 = vmatprep.subr.bf16.mxu0 0
  %270 = vmatpush1.bf16.msra.mxu0 0
  %271 = vmatprep.subr.bf16.mxu0 0
  %272 = vmatpush1.bf16.msra.mxu0 0
  %273 = vmatprep.subr.bf16.mxu0 0
  %274 = vmatpush1.bf16.msra.mxu0 0
  %275 = vmatprep.subr.bf16.mxu0 0
  %276 = vmatpush1.bf16.msra.mxu0 0
  %277 = vmatprep.subr.bf16.mxu0 0
  %278 = vmatpush1.bf16.msra.mxu0 0
  %279 = vmatprep.subr.bf16.mxu0 0
  %280 = vmatpush1.bf16.msra.mxu0 0
  %281 = vmatprep.subr.bf16.mxu0 0
  %282 = vmatpush1.bf16.msra.mxu0 0
  %283 = vmatprep.subr.bf16.mxu0 0
  %284 = vmatpush1.bf16.msra.mxu0 %v267
  %285 = vmatprep.subr.bf16.mxu0 0
  %286 = vmatpush2.bf16.msra.mxu0 0
  %287 = vmatprep.subr.bf16.mxu0 0
  %288 = vmatpush2.bf16.msra.mxu0 0
  %289 = vmatprep.subr.bf16.mxu0 0
  %290 = vmatpush2.bf16.msra.mxu0 0
  %291 = vmatprep.subr.bf16.mxu0 0
  %292 = vmatpush2.bf16.msra.mxu0 0
  %293 = vmatprep.subr.bf16.mxu0 0
  %294 = vmatpush2.bf16.msra.mxu0 0
  %295 = vmatprep.subr.bf16.mxu0 0
  %296 = vmatpush2.bf16.msra.mxu0 0
  %297 = vmatprep.subr.bf16.mxu0 0
  %298 = vmatpush2.bf16.msra.mxu0 0
  %299 = vmatprep.subr.bf16.mxu0 0
  %300 = vmatpush2.bf16.msra.mxu0 0
  %301 = vmatprep.mubr.bf16.mxu0 0
  %302 = vmatmul.mubr.bf16.gmra.mxu0 %v126
  %v303 = vpop.f32.mrf.mxu0
  %v304 = vadd.f32 %v261, %v303
  %v305 = vpop.f32.mrf.mxu0
  %v306 = vpop.f32.mrf.mxu0
  %v307 = vpop.f32.mrf.mxu0
  %308 = vdwg.mxu0
  %v309 = vadd.f32 %v304, %v19
  %s310 = scalar_lea.vmem %s3, 24
  %311 = vst [vmem:[%s310] sm:$0x3f] %v309
  %v312 = vld [vmem:[%s220] sm:$0x3]
  %v314 = vsel %vm31, %v312, 0
  %316 = vmatprep.subr.bf16.mxu0 0
  %317 = vmatpush1.bf16.msra.mxu0 0
  %318 = vmatprep.subr.bf16.mxu0 0
  %319 = vmatpush1.bf16.msra.mxu0 0
  %320 = vmatprep.subr.bf16.mxu0 0
  %321 = vmatpush1.bf16.msra.mxu0 0
  %322 = vmatprep.subr.bf16.mxu0 0
  %323 = vmatpush1.bf16.msra.mxu0 0
  %324 = vmatprep.subr.bf16.mxu0 0
  %325 = vmatpush1.bf16.msra.mxu0 0
  %326 = vmatprep.subr.bf16.mxu0 0
  %327 = vmatpush1.bf16.msra.mxu0 0
  %328 = vmatprep.subr.bf16.mxu0 0
  %329 = vmatpush1.bf16.msra.mxu0 0
  %330 = vmatprep.subr.bf16.mxu0 0
  %331 = vmatpush1.bf16.msra.mxu0 %v314
  %332 = vmatprep.subr.bf16.mxu0 0
  %333 = vmatpush2.bf16.msra.mxu0 0
  %334 = vmatprep.subr.bf16.mxu0 0
  %335 = vmatpush2.bf16.msra.mxu0 0
  %336 = vmatprep.subr.bf16.mxu0 0
  %337 = vmatpush2.bf16.msra.mxu0 0
  %338 = vmatprep.subr.bf16.mxu0 0
  %339 = vmatpush2.bf16.msra.mxu0 0
  %340 = vmatprep.subr.bf16.mxu0 0
  %341 = vmatpush2.bf16.msra.mxu0 0
  %342 = vmatprep.subr.bf16.mxu0 0
  %343 = vmatpush2.bf16.msra.mxu0 0
  %344 = vmatprep.subr.bf16.mxu0 0
  %345 = vmatpush2.bf16.msra.mxu0 0
  %346 = vmatprep.subr.bf16.mxu0 0
  %347 = vmatpush2.bf16.msra.mxu0 0
  %348 = vmatprep.mubr.bf16.mxu0 0
  %349 = vmatmul.mubr.bf16.gmra.mxu0 %v29
  %v350 = vpop.f32.mrf.mxu0
  %v351 = vadd.f32 %v19, %v350
  %v352 = vpop.f32.mrf.mxu0
  %v353 = vpop.f32.mrf.mxu0
  %v354 = vpop.f32.mrf.mxu0
  %355 = vdwg.mxu0
  %s356 = scalar_lea.vmem %s3, 32
  %357 = vst [vmem:[%s356] sm:$0x3f] %v351
  %s358 = scalar_lea.vmem %s0, 6
  %v359 = vld [vmem:[%s358] sm:$0x3]
  %v360 = vld [vmem:[%s220] sm:$0x3]
  %v362 = vsel %vm31, %v360, 0
  %364 = vmatprep.subr.bf16.mxu0 0
  %365 = vmatpush1.bf16.msra.mxu0 0
  %366 = vmatprep.subr.bf16.mxu0 0
  %367 = vmatpush1.bf16.msra.mxu0 0
  %368 = vmatprep.subr.bf16.mxu0 0
  %369 = vmatpush1.bf16.msra.mxu0 0
  %370 = vmatprep.subr.bf16.mxu0 0
  %371 = vmatpush1.bf16.msra.mxu0 0
  %372 = vmatprep.subr.bf16.mxu0 0
  %373 = vmatpush1.bf16.msra.mxu0 0
  %374 = vmatprep.subr.bf16.mxu0 0
  %375 = vmatpush1.bf16.msra.mxu0 0
  %376 = vmatprep.subr.bf16.mxu0 0
  %377 = vmatpush1.bf16.msra.mxu0 0
  %378 = vmatprep.subr.bf16.mxu0 0
  %379 = vmatpush1.bf16.msra.mxu0 %v362
  %380 = vmatprep.subr.bf16.mxu0 0
  %381 = vmatpush2.bf16.msra.mxu0 0
  %382 = vmatprep.subr.bf16.mxu0 0
  %383 = vmatpush2.bf16.msra.mxu0 0
  %384 = vmatprep.subr.bf16.mxu0 0
  %385 = vmatpush2.bf16.msra.mxu0 0
  %386 = vmatprep.subr.bf16.mxu0 0
  %387 = vmatpush2.bf16.msra.mxu0 0
  %388 = vmatprep.subr.bf16.mxu0 0
  %389 = vmatpush2.bf16.msra.mxu0 0
  %390 = vmatprep.subr.bf16.mxu0 0
  %391 = vmatpush2.bf16.msra.mxu0 0
  %392 = vmatprep.subr.bf16.mxu0 0
  %393 = vmatpush2.bf16.msra.mxu0 0
  %394 = vmatprep.subr.bf16.mxu0 0
  %395 = vmatpush2.bf16.msra.mxu0 0
  %396 = vmatprep.mubr.bf16.mxu0 0
  %397 = vmatmul.mubr.bf16.gmra.mxu0 %v80
  %v398 = vpop.f32.mrf.mxu0
  %v399 = vadd.f32 0.0, %v398
  %v400 = vpop.f32.mrf.mxu0
  %v401 = vpop.f32.mrf.mxu0
  %v402 = vpop.f32.mrf.mxu0
  %403 = vdwg.mxu0
  %v405 = vsel %vm31, %v359, 0
  %407 = vmatprep.subr.bf16.mxu0 0
  %408 = vmatpush1.bf16.msra.mxu0 0
  %409 = vmatprep.subr.bf16.mxu0 0
  %410 = vmatpush1.bf16.msra.mxu0 0
  %411 = vmatprep.subr.bf16.mxu0 0
  %412 = vmatpush1.bf16.msra.mxu0 0
  %413 = vmatprep.subr.bf16.mxu0 0
  %414 = vmatpush1.bf16.msra.mxu0 0
  %415 = vmatprep.subr.bf16.mxu0 0
  %416 = vmatpush1.bf16.msra.mxu0 0
  %417 = vmatprep.subr.bf16.mxu0 0
  %418 = vmatpush1.bf16.msra.mxu0 0
  %419 = vmatprep.subr.bf16.mxu0 0
  %420 = vmatpush1.bf16.msra.mxu0 0
  %421 = vmatprep.subr.bf16.mxu0 0
  %422 = vmatpush1.bf16.msra.mxu0 %v405
  %423 = vmatprep.subr.bf16.mxu0 0
  %424 = vmatpush2.bf16.msra.mxu0 0
  %425 = vmatprep.subr.bf16.mxu0 0
  %426 = vmatpush2.bf16.msra.mxu0 0
  %427 = vmatprep.subr.bf16.mxu0 0
  %428 = vmatpush2.bf16.msra.mxu0 0
  %429 = vmatprep.subr.bf16.mxu0 0
  %430 = vmatpush2.bf16.msra.mxu0 0
  %431 = vmatprep.subr.bf16.mxu0 0
  %432 = vmatpush2.bf16.msra.mxu0 0
  %433 = vmatprep.subr.bf16.mxu0 0
  %434 = vmatpush2.bf16.msra.mxu0 0
  %435 = vmatprep.subr.bf16.mxu0 0
  %436 = vmatpush2.bf16.msra.mxu0 0
  %437 = vmatprep.subr.bf16.mxu0 0
  %438 = vmatpush2.bf16.msra.mxu0 0
  %439 = vmatprep.mubr.bf16.mxu0 0
  %440 = vmatmul.mubr.bf16.gmra.mxu0 %v126
  %v441 = vpop.f32.mrf.mxu0
  %v442 = vadd.f32 %v399, %v441
  %v443 = vpop.f32.mrf.mxu0
  %v444 = vpop.f32.mrf.mxu0
  %v445 = vpop.f32.mrf.mxu0
  %446 = vdwg.mxu0
  %v447 = vadd.f32 %v442, %v19
  %s448 = scalar_lea.vmem %s3, 40
  %449 = vst [vmem:[%s448] sm:$0x3f] %v447
  %v450 = vld [vmem:[%s358] sm:$0x3]
  %v452 = vsel %vm31, %v450, 0
  %454 = vmatprep.subr.bf16.mxu0 0
  %455 = vmatpush1.bf16.msra.mxu0 0
  %456 = vmatprep.subr.bf16.mxu0 0
  %457 = vmatpush1.bf16.msra.mxu0 0
  %458 = vmatprep.subr.bf16.mxu0 0
  %459 = vmatpush1.bf16.msra.mxu0 0
  %460 = vmatprep.subr.bf16.mxu0 0
  %461 = vmatpush1.bf16.msra.mxu0 0
  %462 = vmatprep.subr.bf16.mxu0 0
  %463 = vmatpush1.bf16.msra.mxu0 0
  %464 = vmatprep.subr.bf16.mxu0 0
  %465 = vmatpush1.bf16.msra.mxu0 0
  %466 = vmatprep.subr.bf16.mxu0 0
  %467 = vmatpush1.bf16.msra.mxu0 0
  %468 = vmatprep.subr.bf16.mxu0 0
  %469 = vmatpush1.bf16.msra.mxu0 %v452
  %470 = vmatprep.subr.bf16.mxu0 0
  %471 = vmatpush2.bf16.msra.mxu0 0
  %472 = vmatprep.subr.bf16.mxu0 0
  %473 = vmatpush2.bf16.msra.mxu0 0
  %474 = vmatprep.subr.bf16.mxu0 0
  %475 = vmatpush2.bf16.msra.mxu0 0
  %476 = vmatprep.subr.bf16.mxu0 0
  %477 = vmatpush2.bf16.msra.mxu0 0
  %478 = vmatprep.subr.bf16.mxu0 0
  %479 = vmatpush2.bf16.msra.mxu0 0
  %480 = vmatprep.subr.bf16.mxu0 0
  %481 = vmatpush2.bf16.msra.mxu0 0
  %482 = vmatprep.subr.bf16.mxu0 0
  %483 = vmatpush2.bf16.msra.mxu0 0
  %484 = vmatprep.subr.bf16.mxu0 0
  %485 = vmatpush2.bf16.msra.mxu0 0
  %486 = vmatprep.mubr.bf16.mxu0 0
  %487 = vmatmul.mubr.bf16.gmra.mxu0 %v29
  %v488 = vpop.f32.mrf.mxu0
  %v489 = vadd.f32 %v19, %v488
  %v490 = vpop.f32.mrf.mxu0
  %v491 = vpop.f32.mrf.mxu0
  %v492 = vpop.f32.mrf.mxu0
  %493 = vdwg.mxu0
  %s494 = scalar_lea.vmem %s3, 48
  %495 = vst [vmem:[%s494] sm:$0x3f] %v489
  %s496 = scalar_lea.vmem %s0, 8
  %v497 = vld [vmem:[%s496] sm:$0x3]
  %v498 = vld [vmem:[%s358] sm:$0x3]
  %v500 = vsel %vm31, %v498, 0
  %502 = vmatprep.subr.bf16.mxu0 0
  %503 = vmatpush1.bf16.msra.mxu0 0
  %504 = vmatprep.subr.bf16.mxu0 0
  %505 = vmatpush1.bf16.msra.mxu0 0
  %506 = vmatprep.subr.bf16.mxu0 0
  %507 = vmatpush1.bf16.msra.mxu0 0
  %508 = vmatprep.subr.bf16.mxu0 0
  %509 = vmatpush1.bf16.msra.mxu0 0
  %510 = vmatprep.subr.bf16.mxu0 0
  %511 = vmatpush1.bf16.msra.mxu0 0
  %512 = vmatprep.subr.bf16.mxu0 0
  %513 = vmatpush1.bf16.msra.mxu0 0
  %514 = vmatprep.subr.bf16.mxu0 0
  %515 = vmatpush1.bf16.msra.mxu0 0
  %516 = vmatprep.subr.bf16.mxu0 0
  %517 = vmatpush1.bf16.msra.mxu0 %v500
  %518 = vmatprep.subr.bf16.mxu0 0
  %519 = vmatpush2.bf16.msra.mxu0 0
  %520 = vmatprep.subr.bf16.mxu0 0
  %521 = vmatpush2.bf16.msra.mxu0 0
  %522 = vmatprep.subr.bf16.mxu0 0
  %523 = vmatpush2.bf16.msra.mxu0 0
  %524 = vmatprep.subr.bf16.mxu0 0
  %525 = vmatpush2.bf16.msra.mxu0 0
  %526 = vmatprep.subr.bf16.mxu0 0
  %527 = vmatpush2.bf16.msra.mxu0 0
  %528 = vmatprep.subr.bf16.mxu0 0
  %529 = vmatpush2.bf16.msra.mxu0 0
  %530 = vmatprep.subr.bf16.mxu0 0
  %531 = vmatpush2.bf16.msra.mxu0 0
  %532 = vmatprep.subr.bf16.mxu0 0
  %533 = vmatpush2.bf16.msra.mxu0 0
  %534 = vmatprep.mubr.bf16.mxu0 0
  %535 = vmatmul.mubr.bf16.gmra.mxu0 %v80
  %v536 = vpop.f32.mrf.mxu0
  %v537 = vadd.f32 0.0, %v536
  %v538 = vpop.f32.mrf.mxu0
  %v539 = vpop.f32.mrf.mxu0
  %v540 = vpop.f32.mrf.mxu0
  %541 = vdwg.mxu0
  %v543 = vsel %vm31, %v497, 0
  %545 = vmatprep.subr.bf16.mxu0 0
  %546 = vmatpush1.bf16.msra.mxu0 0
  %547 = vmatprep.subr.bf16.mxu0 0
  %548 = vmatpush1.bf16.msra.mxu0 0
  %549 = vmatprep.subr.bf16.mxu0 0
  %550 = vmatpush1.bf16.msra.mxu0 0
  %551 = vmatprep.subr.bf16.mxu0 0
  %552 = vmatpush1.bf16.msra.mxu0 0
  %553 = vmatprep.subr.bf16.mxu0 0
  %554 = vmatpush1.bf16.msra.mxu0 0
  %555 = vmatprep.subr.bf16.mxu0 0
  %556 = vmatpush1.bf16.msra.mxu0 0
  %557 = vmatprep.subr.bf16.mxu0 0
  %558 = vmatpush1.bf16.msra.mxu0 0
  %559 = vmatprep.subr.bf16.mxu0 0
  %560 = vmatpush1.bf16.msra.mxu0 %v543
  %561 = vmatprep.subr.bf16.mxu0 0
  %562 = vmatpush2.bf16.msra.mxu0 0
  %563 = vmatprep.subr.bf16.mxu0 0
  %564 = vmatpush2.bf16.msra.mxu0 0
  %565 = vmatprep.subr.bf16.mxu0 0
  %566 = vmatpush2.bf16.msra.mxu0 0
  %567 = vmatprep.subr.bf16.mxu0 0
  %568 = vmatpush2.bf16.msra.mxu0 0
  %569 = vmatprep.subr.bf16.mxu0 0
  %570 = vmatpush2.bf16.msra.mxu0 0
  %571 = vmatprep.subr.bf16.mxu0 0
  %572 = vmatpush2.bf16.msra.mxu0 0
  %573 = vmatprep.subr.bf16.mxu0 0
  %574 = vmatpush2.bf16.msra.mxu0 0
  %575 = vmatprep.subr.bf16.mxu0 0
  %576 = vmatpush2.bf16.msra.mxu0 0
  %577 = vmatprep.mubr.bf16.mxu0 0
  %578 = vmatmul.mubr.bf16.gmra.mxu0 %v126
  %v579 = vpop.f32.mrf.mxu0
  %v580 = vadd.f32 %v537, %v579
  %v581 = vpop.f32.mrf.mxu0
  %v582 = vpop.f32.mrf.mxu0
  %v583 = vpop.f32.mrf.mxu0
  %584 = vdwg.mxu0
  %v585 = vadd.f32 %v580, %v19
  %s586 = scalar_lea.vmem %s3, 56
  %587 = vst [vmem:[%s586] sm:$0x3f] %v585
  %v588 = vld [vmem:[%s496] sm:$0x3]
  %v590 = vsel %vm31, %v588, 0
  %592 = vmatprep.subr.bf16.mxu0 0
  %593 = vmatpush1.bf16.msra.mxu0 0
  %594 = vmatprep.subr.bf16.mxu0 0
  %595 = vmatpush1.bf16.msra.mxu0 0
  %596 = vmatprep.subr.bf16.mxu0 0
  %597 = vmatpush1.bf16.msra.mxu0 0
  %598 = vmatprep.subr.bf16.mxu0 0
  %599 = vmatpush1.bf16.msra.mxu0 0
  %600 = vmatprep.subr.bf16.mxu0 0
  %601 = vmatpush1.bf16.msra.mxu0 0
  %602 = vmatprep.subr.bf16.mxu0 0
  %603 = vmatpush1.bf16.msra.mxu0 0
  %604 = vmatprep.subr.bf16.mxu0 0
  %605 = vmatpush1.bf16.msra.mxu0 0
  %606 = vmatprep.subr.bf16.mxu0 0
  %607 = vmatpush1.bf16.msra.mxu0 %v590
  %608 = vmatprep.subr.bf16.mxu0 0
  %609 = vmatpush2.bf16.msra.mxu0 0
  %610 = vmatprep.subr.bf16.mxu0 0
  %611 = vmatpush2.bf16.msra.mxu0 0
  %612 = vmatprep.subr.bf16.mxu0 0
  %613 = vmatpush2.bf16.msra.mxu0 0
  %614 = vmatprep.subr.bf16.mxu0 0
  %615 = vmatpush2.bf16.msra.mxu0 0
  %616 = vmatprep.subr.bf16.mxu0 0
  %617 = vmatpush2.bf16.msra.mxu0 0
  %618 = vmatprep.subr.bf16.mxu0 0
  %619 = vmatpush2.bf16.msra.mxu0 0
  %620 = vmatprep.subr.bf16.mxu0 0
  %621 = vmatpush2.bf16.msra.mxu0 0
  %622 = vmatprep.subr.bf16.mxu0 0
  %623 = vmatpush2.bf16.msra.mxu0 0
  %624 = vmatprep.mubr.bf16.mxu0 0
  %625 = vmatmul.mubr.bf16.gmra.mxu0 %v29
  %v626 = vpop.f32.mrf.mxu0
  %v627 = vadd.f32 %v19, %v626
  %v628 = vpop.f32.mrf.mxu0
  %v629 = vpop.f32.mrf.mxu0
  %v630 = vpop.f32.mrf.mxu0
  %631 = vdwg.mxu0
  %s632 = scalar_lea.vmem %s3, 64
  %633 = vst [vmem:[%s632] sm:$0x3f] %v627
  %s634 = scalar_lea.vmem %s0, 10
  %v635 = vld [vmem:[%s634] sm:$0x3]
  %v636 = vld [vmem:[%s496] sm:$0x3]
  %v638 = vsel %vm31, %v636, 0
  %640 = vmatprep.subr.bf16.mxu0 0
  %641 = vmatpush1.bf16.msra.mxu0 0
  %642 = vmatprep.subr.bf16.mxu0 0
  %643 = vmatpush1.bf16.msra.mxu0 0
  %644 = vmatprep.subr.bf16.mxu0 0
  %645 = vmatpush1.bf16.msra.mxu0 0
  %646 = vmatprep.subr.bf16.mxu0 0
  %647 = vmatpush1.bf16.msra.mxu0 0
  %648 = vmatprep.subr.bf16.mxu0 0
  %649 = vmatpush1.bf16.msra.mxu0 0
  %650 = vmatprep.subr.bf16.mxu0 0
  %651 = vmatpush1.bf16.msra.mxu0 0
  %652 = vmatprep.subr.bf16.mxu0 0
  %653 = vmatpush1.bf16.msra.mxu0 0
  %654 = vmatprep.subr.bf16.mxu0 0
  %655 = vmatpush1.bf16.msra.mxu0 %v638
  %656 = vmatprep.subr.bf16.mxu0 0
  %657 = vmatpush2.bf16.msra.mxu0 0
  %658 = vmatprep.subr.bf16.mxu0 0
  %659 = vmatpush2.bf16.msra.mxu0 0
  %660 = vmatprep.subr.bf16.mxu0 0
  %661 = vmatpush2.bf16.msra.mxu0 0
  %662 = vmatprep.subr.bf16.mxu0 0
  %663 = vmatpush2.bf16.msra.mxu0 0
  %664 = vmatprep.subr.bf16.mxu0 0
  %665 = vmatpush2.bf16.msra.mxu0 0
  %666 = vmatprep.subr.bf16.mxu0 0
  %667 = vmatpush2.bf16.msra.mxu0 0
  %668 = vmatprep.subr.bf16.mxu0 0
  %669 = vmatpush2.bf16.msra.mxu0 0
  %670 = vmatprep.subr.bf16.mxu0 0
  %671 = vmatpush2.bf16.msra.mxu0 0
  %672 = vmatprep.mubr.bf16.mxu0 0
  %673 = vmatmul.mubr.bf16.gmra.mxu0 %v80
  %v674 = vpop.f32.mrf.mxu0
  %v675 = vadd.f32 0.0, %v674
  %v676 = vpop.f32.mrf.mxu0
  %v677 = vpop.f32.mrf.mxu0
  %v678 = vpop.f32.mrf.mxu0
  %679 = vdwg.mxu0
  %v681 = vsel %vm31, %v635, 0
  %683 = vmatprep.subr.bf16.mxu0 0
  %684 = vmatpush1.bf16.msra.mxu0 0
  %685 = vmatprep.subr.bf16.mxu0 0
  %686 = vmatpush1.bf16.msra.mxu0 0
  %687 = vmatprep.subr.bf16.mxu0 0
  %688 = vmatpush1.bf16.msra.mxu0 0
  %689 = vmatprep.subr.bf16.mxu0 0
  %690 = vmatpush1.bf16.msra.mxu0 0
  %691 = vmatprep.subr.bf16.mxu0 0
  %692 = vmatpush1.bf16.msra.mxu0 0
  %693 = vmatprep.subr.bf16.mxu0 0
  %694 = vmatpush1.bf16.msra.mxu0 0
  %695 = vmatprep.subr.bf16.mxu0 0
  %696 = vmatpush1.bf16.msra.mxu0 0
  %697 = vmatprep.subr.bf16.mxu0 0
  %698 = vmatpush1.bf16.msra.mxu0 %v681
  %699 = vmatprep.subr.bf16.mxu0 0
  %700 = vmatpush2.bf16.msra.mxu0 0
  %701 = vmatprep.subr.bf16.mxu0 0
  %702 = vmatpush2.bf16.msra.mxu0 0
  %703 = vmatprep.subr.bf16.mxu0 0
  %704 = vmatpush2.bf16.msra.mxu0 0
  %705 = vmatprep.subr.bf16.mxu0 0
  %706 = vmatpush2.bf16.msra.mxu0 0
  %707 = vmatprep.subr.bf16.mxu0 0
  %708 = vmatpush2.bf16.msra.mxu0 0
  %709 = vmatprep.subr.bf16.mxu0 0
  %710 = vmatpush2.bf16.msra.mxu0 0
  %711 = vmatprep.subr.bf16.mxu0 0
  %712 = vmatpush2.bf16.msra.mxu0 0
  %713 = vmatprep.subr.bf16.mxu0 0
  %714 = vmatpush2.bf16.msra.mxu0 0
  %715 = vmatprep.mubr.bf16.mxu0 0
  %716 = vmatmul.mubr.bf16.gmra.mxu0 %v126
  %v717 = vpop.f32.mrf.mxu0
  %v718 = vadd.f32 %v675, %v717
  %v719 = vpop.f32.mrf.mxu0
  %v720 = vpop.f32.mrf.mxu0
  %v721 = vpop.f32.mrf.mxu0
  %722 = vdwg.mxu0
  %v723 = vadd.f32 %v718, %v19
  %s724 = scalar_lea.vmem %s3, 72
  %725 = vst [vmem:[%s724] sm:$0x3f] %v723
  %v726 = vld [vmem:[%s634] sm:$0x3]
  %v728 = vsel %vm31, %v726, 0
  %730 = vmatprep.subr.bf16.mxu0 0
  %731 = vmatpush1.bf16.msra.mxu0 0
  %732 = vmatprep.subr.bf16.mxu0 0
  %733 = vmatpush1.bf16.msra.mxu0 0
  %734 = vmatprep.subr.bf16.mxu0 0
  %735 = vmatpush1.bf16.msra.mxu0 0
  %736 = vmatprep.subr.bf16.mxu0 0
  %737 = vmatpush1.bf16.msra.mxu0 0
  %738 = vmatprep.subr.bf16.mxu0 0
  %739 = vmatpush1.bf16.msra.mxu0 0
  %740 = vmatprep.subr.bf16.mxu0 0
  %741 = vmatpush1.bf16.msra.mxu0 0
  %742 = vmatprep.subr.bf16.mxu0 0
  %743 = vmatpush1.bf16.msra.mxu0 0
  %744 = vmatprep.subr.bf16.mxu0 0
  %745 = vmatpush1.bf16.msra.mxu0 %v728
  %746 = vmatprep.subr.bf16.mxu0 0
  %747 = vmatpush2.bf16.msra.mxu0 0
  %748 = vmatprep.subr.bf16.mxu0 0
  %749 = vmatpush2.bf16.msra.mxu0 0
  %750 = vmatprep.subr.bf16.mxu0 0
  %751 = vmatpush2.bf16.msra.mxu0 0
  %752 = vmatprep.subr.bf16.mxu0 0
  %753 = vmatpush2.bf16.msra.mxu0 0
  %754 = vmatprep.subr.bf16.mxu0 0
  %755 = vmatpush2.bf16.msra.mxu0 0
  %756 = vmatprep.subr.bf16.mxu0 0
  %757 = vmatpush2.bf16.msra.mxu0 0
  %758 = vmatprep.subr.bf16.mxu0 0
  %759 = vmatpush2.bf16.msra.mxu0 0
  %760 = vmatprep.subr.bf16.mxu0 0
  %761 = vmatpush2.bf16.msra.mxu0 0
  %762 = vmatprep.mubr.bf16.mxu0 0
  %763 = vmatmul.mubr.bf16.gmra.mxu0 %v29
  %v764 = vpop.f32.mrf.mxu0
  %v765 = vadd.f32 %v19, %v764
  %v766 = vpop.f32.mrf.mxu0
  %v767 = vpop.f32.mrf.mxu0
  %v768 = vpop.f32.mrf.mxu0
  %769 = vdwg.mxu0
  %s770 = scalar_lea.vmem %s3, 80
  %771 = vst [vmem:[%s770] sm:$0x3f] %v765
  %s772 = scalar_lea.vmem %s0, 12
  %v773 = vld [vmem:[%s772] sm:$0x3]
  %v774 = vld [vmem:[%s634] sm:$0x3]
  %v776 = vsel %vm31, %v774, 0
  %778 = vmatprep.subr.bf16.mxu0 0
  %779 = vmatpush1.bf16.msra.mxu0 0
  %780 = vmatprep.subr.bf16.mxu0 0
  %781 = vmatpush1.bf16.msra.mxu0 0
  %782 = vmatprep.subr.bf16.mxu0 0
  %783 = vmatpush1.bf16.msra.mxu0 0
  %784 = vmatprep.subr.bf16.mxu0 0
  %785 = vmatpush1.bf16.msra.mxu0 0
  %786 = vmatprep.subr.bf16.mxu0 0
  %787 = vmatpush1.bf16.msra.mxu0 0
  %788 = vmatprep.subr.bf16.mxu0 0
  %789 = vmatpush1.bf16.msra.mxu0 0
  %790 = vmatprep.subr.bf16.mxu0 0
  %791 = vmatpush1.bf16.msra.mxu0 0
  %792 = vmatprep.subr.bf16.mxu0 0
  %793 = vmatpush1.bf16.msra.mxu0 %v776
  %794 = vmatprep.subr.bf16.mxu0 0
  %795 = vmatpush2.bf16.msra.mxu0 0
  %796 = vmatprep.subr.bf16.mxu0 0
  %797 = vmatpush2.bf16.msra.mxu0 0
  %798 = vmatprep.subr.bf16.mxu0 0
  %799 = vmatpush2.bf16.msra.mxu0 0
  %800 = vmatprep.subr.bf16.mxu0 0
  %801 = vmatpush2.bf16.msra.mxu0 0
  %802 = vmatprep.subr.bf16.mxu0 0
  %803 = vmatpush2.bf16.msra.mxu0 0
  %804 = vmatprep.subr.bf16.mxu0 0
  %805 = vmatpush2.bf16.msra.mxu0 0
  %806 = vmatprep.subr.bf16.mxu0 0
  %807 = vmatpush2.bf16.msra.mxu0 0
  %808 = vmatprep.subr.bf16.mxu0 0
  %809 = vmatpush2.bf16.msra.mxu0 0
  %810 = vmatprep.mubr.bf16.mxu0 0
  %811 = vmatmul.mubr.bf16.gmra.mxu0 %v80
  %v812 = vpop.f32.mrf.mxu0
  %v813 = vadd.f32 0.0, %v812
  %v814 = vpop.f32.mrf.mxu0
  %v815 = vpop.f32.mrf.mxu0
  %v816 = vpop.f32.mrf.mxu0
  %817 = vdwg.mxu0
  %v819 = vsel %vm31, %v773, 0
  %821 = vmatprep.subr.bf16.mxu0 0
  %822 = vmatpush1.bf16.msra.mxu0 0
  %823 = vmatprep.subr.bf16.mxu0 0
  %824 = vmatpush1.bf16.msra.mxu0 0
  %825 = vmatprep.subr.bf16.mxu0 0
  %826 = vmatpush1.bf16.msra.mxu0 0
  %827 = vmatprep.subr.bf16.mxu0 0
  %828 = vmatpush1.bf16.msra.mxu0 0
  %829 = vmatprep.subr.bf16.mxu0 0
  %830 = vmatpush1.bf16.msra.mxu0 0
  %831 = vmatprep.subr.bf16.mxu0 0
  %832 = vmatpush1.bf16.msra.mxu0 0
  %833 = vmatprep.subr.bf16.mxu0 0
  %834 = vmatpush1.bf16.msra.mxu0 0
  %835 = vmatprep.subr.bf16.mxu0 0
  %836 = vmatpush1.bf16.msra.mxu0 %v819
  %837 = vmatprep.subr.bf16.mxu0 0
  %838 = vmatpush2.bf16.msra.mxu0 0
  %839 = vmatprep.subr.bf16.mxu0 0
  %840 = vmatpush2.bf16.msra.mxu0 0
  %841 = vmatprep.subr.bf16.mxu0 0
  %842 = vmatpush2.bf16.msra.mxu0 0
  %843 = vmatprep.subr.bf16.mxu0 0
  %844 = vmatpush2.bf16.msra.mxu0 0
  %845 = vmatprep.subr.bf16.mxu0 0
  %846 = vmatpush2.bf16.msra.mxu0 0
  %847 = vmatprep.subr.bf16.mxu0 0
  %848 = vmatpush2.bf16.msra.mxu0 0
  %849 = vmatprep.subr.bf16.mxu0 0
  %850 = vmatpush2.bf16.msra.mxu0 0
  %851 = vmatprep.subr.bf16.mxu0 0
  %852 = vmatpush2.bf16.msra.mxu0 0
  %853 = vmatprep.mubr.bf16.mxu0 0
  %854 = vmatmul.mubr.bf16.gmra.mxu0 %v126
  %v855 = vpop.f32.mrf.mxu0
  %v856 = vadd.f32 %v813, %v855
  %v857 = vpop.f32.mrf.mxu0
  %v858 = vpop.f32.mrf.mxu0
  %v859 = vpop.f32.mrf.mxu0
  %860 = vdwg.mxu0
  %v861 = vadd.f32 %v856, %v19
  %s862 = scalar_lea.vmem %s3, 88
  %863 = vst [vmem:[%s862] sm:$0x3f] %v861
  %v864 = vld [vmem:[%s772] sm:$0x3]
  %v866 = vsel %vm31, %v864, 0
  %868 = vmatprep.subr.bf16.mxu0 0
  %869 = vmatpush1.bf16.msra.mxu0 0
  %870 = vmatprep.subr.bf16.mxu0 0
  %871 = vmatpush1.bf16.msra.mxu0 0
  %872 = vmatprep.subr.bf16.mxu0 0
  %873 = vmatpush1.bf16.msra.mxu0 0
  %874 = vmatprep.subr.bf16.mxu0 0
  %875 = vmatpush1.bf16.msra.mxu0 0
  %876 = vmatprep.subr.bf16.mxu0 0
  %877 = vmatpush1.bf16.msra.mxu0 0
  %878 = vmatprep.subr.bf16.mxu0 0
  %879 = vmatpush1.bf16.msra.mxu0 0
  %880 = vmatprep.subr.bf16.mxu0 0
  %881 = vmatpush1.bf16.msra.mxu0 0
  %882 = vmatprep.subr.bf16.mxu0 0
  %883 = vmatpush1.bf16.msra.mxu0 %v866
  %884 = vmatprep.subr.bf16.mxu0 0
  %885 = vmatpush2.bf16.msra.mxu0 0
  %886 = vmatprep.subr.bf16.mxu0 0
  %887 = vmatpush2.bf16.msra.mxu0 0
  %888 = vmatprep.subr.bf16.mxu0 0
  %889 = vmatpush2.bf16.msra.mxu0 0
  %890 = vmatprep.subr.bf16.mxu0 0
  %891 = vmatpush2.bf16.msra.mxu0 0
  %892 = vmatprep.subr.bf16.mxu0 0
  %893 = vmatpush2.bf16.msra.mxu0 0
  %894 = vmatprep.subr.bf16.mxu0 0
  %895 = vmatpush2.bf16.msra.mxu0 0
  %896 = vmatprep.subr.bf16.mxu0 0
  %897 = vmatpush2.bf16.msra.mxu0 0
  %898 = vmatprep.subr.bf16.mxu0 0
  %899 = vmatpush2.bf16.msra.mxu0 0
  %900 = vmatprep.mubr.bf16.mxu0 0
  %901 = vmatmul.mubr.bf16.gmra.mxu0 %v29
  %v902 = vpop.f32.mrf.mxu0
  %v903 = vadd.f32 %v19, %v902
  %v904 = vpop.f32.mrf.mxu0
  %v905 = vpop.f32.mrf.mxu0
  %v906 = vpop.f32.mrf.mxu0
  %907 = vdwg.mxu0
  %s908 = scalar_lea.vmem %s3, 96
  %909 = vst [vmem:[%s908] sm:$0x3f] %v903
  %s910 = scalar_lea.vmem %s0, 14
  %v911 = vld [vmem:[%s910] sm:$0x3]
  %v912 = vld [vmem:[%s772] sm:$0x3]
  %v914 = vsel %vm31, %v912, 0
  %916 = vmatprep.subr.bf16.mxu0 0
  %917 = vmatpush1.bf16.msra.mxu0 0
  %918 = vmatprep.subr.bf16.mxu0 0
  %919 = vmatpush1.bf16.msra.mxu0 0
  %920 = vmatprep.subr.bf16.mxu0 0
  %921 = vmatpush1.bf16.msra.mxu0 0
  %922 = vmatprep.subr.bf16.mxu0 0
  %923 = vmatpush1.bf16.msra.mxu0 0
  %924 = vmatprep.subr.bf16.mxu0 0
  %925 = vmatpush1.bf16.msra.mxu0 0
  %926 = vmatprep.subr.bf16.mxu0 0
  %927 = vmatpush1.bf16.msra.mxu0 0
  %928 = vmatprep.subr.bf16.mxu0 0
  %929 = vmatpush1.bf16.msra.mxu0 0
  %930 = vmatprep.subr.bf16.mxu0 0
  %931 = vmatpush1.bf16.msra.mxu0 %v914
  %932 = vmatprep.subr.bf16.mxu0 0
  %933 = vmatpush2.bf16.msra.mxu0 0
  %934 = vmatprep.subr.bf16.mxu0 0
  %935 = vmatpush2.bf16.msra.mxu0 0
  %936 = vmatprep.subr.bf16.mxu0 0
  %937 = vmatpush2.bf16.msra.mxu0 0
  %938 = vmatprep.subr.bf16.mxu0 0
  %939 = vmatpush2.bf16.msra.mxu0 0
  %940 = vmatprep.subr.bf16.mxu0 0
  %941 = vmatpush2.bf16.msra.mxu0 0
  %942 = vmatprep.subr.bf16.mxu0 0
  %943 = vmatpush2.bf16.msra.mxu0 0
  %944 = vmatprep.subr.bf16.mxu0 0
  %945 = vmatpush2.bf16.msra.mxu0 0
  %946 = vmatprep.subr.bf16.mxu0 0
  %947 = vmatpush2.bf16.msra.mxu0 0
  %948 = vmatprep.mubr.bf16.mxu0 0
  %949 = vmatmul.mubr.bf16.gmra.mxu0 %v80
  %v950 = vpop.f32.mrf.mxu0
  %v951 = vadd.f32 0.0, %v950
  %v952 = vpop.f32.mrf.mxu0
  %v953 = vpop.f32.mrf.mxu0
  %v954 = vpop.f32.mrf.mxu0
  %955 = vdwg.mxu0
  %v957 = vsel %vm31, %v911, 0
  %959 = vmatprep.subr.bf16.mxu0 0
  %960 = vmatpush1.bf16.msra.mxu0 0
  %961 = vmatprep.subr.bf16.mxu0 0
  %962 = vmatpush1.bf16.msra.mxu0 0
  %963 = vmatprep.subr.bf16.mxu0 0
  %964 = vmatpush1.bf16.msra.mxu0 0
  %965 = vmatprep.subr.bf16.mxu0 0
  %966 = vmatpush1.bf16.msra.mxu0 0
  %967 = vmatprep.subr.bf16.mxu0 0
  %968 = vmatpush1.bf16.msra.mxu0 0
  %969 = vmatprep.subr.bf16.mxu0 0
  %970 = vmatpush1.bf16.msra.mxu0 0
  %971 = vmatprep.subr.bf16.mxu0 0
  %972 = vmatpush1.bf16.msra.mxu0 0
  %973 = vmatprep.subr.bf16.mxu0 0
  %974 = vmatpush1.bf16.msra.mxu0 %v957
  %975 = vmatprep.subr.bf16.mxu0 0
  %976 = vmatpush2.bf16.msra.mxu0 0
  %977 = vmatprep.subr.bf16.mxu0 0
  %978 = vmatpush2.bf16.msra.mxu0 0
  %979 = vmatprep.subr.bf16.mxu0 0
  %980 = vmatpush2.bf16.msra.mxu0 0
  %981 = vmatprep.subr.bf16.mxu0 0
  %982 = vmatpush2.bf16.msra.mxu0 0
  %983 = vmatprep.subr.bf16.mxu0 0
  %984 = vmatpush2.bf16.msra.mxu0 0
  %985 = vmatprep.subr.bf16.mxu0 0
  %986 = vmatpush2.bf16.msra.mxu0 0
  %987 = vmatprep.subr.bf16.mxu0 0
  %988 = vmatpush2.bf16.msra.mxu0 0
  %989 = vmatprep.subr.bf16.mxu0 0
  %990 = vmatpush2.bf16.msra.mxu0 0
  %991 = vmatprep.mubr.bf16.mxu0 0
  %992 = vmatmul.mubr.bf16.gmra.mxu0 %v126
  %v993 = vpop.f32.mrf.mxu0
  %v994 = vadd.f32 %v951, %v993
  %v995 = vpop.f32.mrf.mxu0
  %v996 = vpop.f32.mrf.mxu0
  %v997 = vpop.f32.mrf.mxu0
  %998 = vdwg.mxu0
  %v999 = vadd.f32 %v994, %v19
  %s1000 = scalar_lea.vmem %s3, 104
  %1001 = vst [vmem:[%s1000] sm:$0x3f] %v999
  %v1002 = vld [vmem:[%s910] sm:$0x3]
  %v1004 = vsel %vm31, %v1002, 0
  %1006 = vmatprep.subr.bf16.mxu0 0
  %1007 = vmatpush1.bf16.msra.mxu0 0
  %1008 = vmatprep.subr.bf16.mxu0 0
  %1009 = vmatpush1.bf16.msra.mxu0 0
  %1010 = vmatprep.subr.bf16.mxu0 0
  %1011 = vmatpush1.bf16.msra.mxu0 0
  %1012 = vmatprep.subr.bf16.mxu0 0
  %1013 = vmatpush1.bf16.msra.mxu0 0
  %1014 = vmatprep.subr.bf16.mxu0 0
  %1015 = vmatpush1.bf16.msra.mxu0 0
  %1016 = vmatprep.subr.bf16.mxu0 0
  %1017 = vmatpush1.bf16.msra.mxu0 0
  %1018 = vmatprep.subr.bf16.mxu0 0
  %1019 = vmatpush1.bf16.msra.mxu0 0
  %1020 = vmatprep.subr.bf16.mxu0 0
  %1021 = vmatpush1.bf16.msra.mxu0 %v1004
  %1022 = vmatprep.subr.bf16.mxu0 0
  %1023 = vmatpush2.bf16.msra.mxu0 0
  %1024 = vmatprep.subr.bf16.mxu0 0
  %1025 = vmatpush2.bf16.msra.mxu0 0
  %1026 = vmatprep.subr.bf16.mxu0 0
  %1027 = vmatpush2.bf16.msra.mxu0 0
  %1028 = vmatprep.subr.bf16.mxu0 0
  %1029 = vmatpush2.bf16.msra.mxu0 0
  %1030 = vmatprep.subr.bf16.mxu0 0
  %1031 = vmatpush2.bf16.msra.mxu0 0
  %1032 = vmatprep.subr.bf16.mxu0 0
  %1033 = vmatpush2.bf16.msra.mxu0 0
  %1034 = vmatprep.subr.bf16.mxu0 0
  %1035 = vmatpush2.bf16.msra.mxu0 0
  %1036 = vmatprep.subr.bf16.mxu0 0
  %1037 = vmatpush2.bf16.msra.mxu0 0
  %1038 = vmatprep.mubr.bf16.mxu0 0
  %1039 = vmatmul.mubr.bf16.gmra.mxu0 %v29
  %v1040 = vpop.f32.mrf.mxu0
  %v1041 = vadd.f32 %v19, %v1040
  %v1042 = vpop.f32.mrf.mxu0
  %v1043 = vpop.f32.mrf.mxu0
  %v1044 = vpop.f32.mrf.mxu0
  %1045 = vdwg.mxu0
  %s1046 = scalar_lea.vmem %s3, 112
  %1047 = vst [vmem:[%s1046] sm:$0x3f] %v1041
  %s1048 = scalar_lea.vmem %s0, 16
  %v1049 = vld [vmem:[%s1048] sm:$0x3]
  %v1050 = vld [vmem:[%s910] sm:$0x3]
  %v1052 = vsel %vm31, %v1050, 0
  %1054 = vmatprep.subr.bf16.mxu0 0
  %1055 = vmatpush1.bf16.msra.mxu0 0
  %1056 = vmatprep.subr.bf16.mxu0 0
  %1057 = vmatpush1.bf16.msra.mxu0 0
  %1058 = vmatprep.subr.bf16.mxu0 0
  %1059 = vmatpush1.bf16.msra.mxu0 0
  %1060 = vmatprep.subr.bf16.mxu0 0
  %1061 = vmatpush1.bf16.msra.mxu0 0
  %1062 = vmatprep.subr.bf16.mxu0 0
  %1063 = vmatpush1.bf16.msra.mxu0 0
  %1064 = vmatprep.subr.bf16.mxu0 0
  %1065 = vmatpush1.bf16.msra.mxu0 0
  %1066 = vmatprep.subr.bf16.mxu0 0
  %1067 = vmatpush1.bf16.msra.mxu0 0
  %1068 = vmatprep.subr.bf16.mxu0 0
  %1069 = vmatpush1.bf16.msra.mxu0 %v1052
  %1070 = vmatprep.subr.bf16.mxu0 0
  %1071 = vmatpush2.bf16.msra.mxu0 0
  %1072 = vmatprep.subr.bf16.mxu0 0
  %1073 = vmatpush2.bf16.msra.mxu0 0
  %1074 = vmatprep.subr.bf16.mxu0 0
  %1075 = vmatpush2.bf16.msra.mxu0 0
  %1076 = vmatprep.subr.bf16.mxu0 0
  %1077 = vmatpush2.bf16.msra.mxu0 0
  %1078 = vmatprep.subr.bf16.mxu0 0
  %1079 = vmatpush2.bf16.msra.mxu0 0
  %1080 = vmatprep.subr.bf16.mxu0 0
  %1081 = vmatpush2.bf16.msra.mxu0 0
  %1082 = vmatprep.subr.bf16.mxu0 0
  %1083 = vmatpush2.bf16.msra.mxu0 0
  %1084 = vmatprep.subr.bf16.mxu0 0
  %1085 = vmatpush2.bf16.msra.mxu0 0
  %1086 = vmatprep.mubr.bf16.mxu0 0
  %1087 = vmatmul.mubr.bf16.gmra.mxu0 %v80
  %v1088 = vpop.f32.mrf.mxu0
  %v1089 = vadd.f32 0.0, %v1088
  %v1090 = vpop.f32.mrf.mxu0
  %v1091 = vpop.f32.mrf.mxu0
  %v1092 = vpop.f32.mrf.mxu0
  %1093 = vdwg.mxu0
  %v1095 = vsel %vm31, %v1049, 0
  %1097 = vmatprep.subr.bf16.mxu0 0
  %1098 = vmatpush1.bf16.msra.mxu0 0
  %1099 = vmatprep.subr.bf16.mxu0 0
  %1100 = vmatpush1.bf16.msra.mxu0 0
  %1101 = vmatprep.subr.bf16.mxu0 0
  %1102 = vmatpush1.bf16.msra.mxu0 0
  %1103 = vmatprep.subr.bf16.mxu0 0
  %1104 = vmatpush1.bf16.msra.mxu0 0
  %1105 = vmatprep.subr.bf16.mxu0 0
  %1106 = vmatpush1.bf16.msra.mxu0 0
  %1107 = vmatprep.subr.bf16.mxu0 0
  %1108 = vmatpush1.bf16.msra.mxu0 0
  %1109 = vmatprep.subr.bf16.mxu0 0
  %1110 = vmatpush1.bf16.msra.mxu0 0
  %1111 = vmatprep.subr.bf16.mxu0 0
  %1112 = vmatpush1.bf16.msra.mxu0 %v1095
  %1113 = vmatprep.subr.bf16.mxu0 0
  %1114 = vmatpush2.bf16.msra.mxu0 0
  %1115 = vmatprep.subr.bf16.mxu0 0
  %1116 = vmatpush2.bf16.msra.mxu0 0
  %1117 = vmatprep.subr.bf16.mxu0 0
  %1118 = vmatpush2.bf16.msra.mxu0 0
  %1119 = vmatprep.subr.bf16.mxu0 0
  %1120 = vmatpush2.bf16.msra.mxu0 0
  %1121 = vmatprep.subr.bf16.mxu0 0
  %1122 = vmatpush2.bf16.msra.mxu0 0
  %1123 = vmatprep.subr.bf16.mxu0 0
  %1124 = vmatpush2.bf16.msra.mxu0 0
  %1125 = vmatprep.subr.bf16.mxu0 0
  %1126 = vmatpush2.bf16.msra.mxu0 0
  %1127 = vmatprep.subr.bf16.mxu0 0
  %1128 = vmatpush2.bf16.msra.mxu0 0
  %1129 = vmatprep.mubr.bf16.mxu0 0
  %1130 = vmatmul.mubr.bf16.gmra.mxu0 %v126
  %v1131 = vpop.f32.mrf.mxu0
  %v1132 = vadd.f32 %v1089, %v1131
  %v1133 = vpop.f32.mrf.mxu0
  %v1134 = vpop.f32.mrf.mxu0
  %v1135 = vpop.f32.mrf.mxu0
  %1136 = vdwg.mxu0
  %v1137 = vadd.f32 %v1132, %v19
  %s1138 = scalar_lea.vmem %s3, 120
  %1139 = vst [vmem:[%s1138] sm:$0x3f] %v1137
  %v1140 = vld [vmem:[%s1048] sm:$0x3]
  %v1142 = vsel %vm31, %v1140, 0
  %1144 = vmatprep.subr.bf16.mxu0 0
  %1145 = vmatpush1.bf16.msra.mxu0 0
  %1146 = vmatprep.subr.bf16.mxu0 0
  %1147 = vmatpush1.bf16.msra.mxu0 0
  %1148 = vmatprep.subr.bf16.mxu0 0
  %1149 = vmatpush1.bf16.msra.mxu0 0
  %1150 = vmatprep.subr.bf16.mxu0 0
  %1151 = vmatpush1.bf16.msra.mxu0 0
  %1152 = vmatprep.subr.bf16.mxu0 0
  %1153 = vmatpush1.bf16.msra.mxu0 0
  %1154 = vmatprep.subr.bf16.mxu0 0
  %1155 = vmatpush1.bf16.msra.mxu0 0
  %1156 = vmatprep.subr.bf16.mxu0 0
  %1157 = vmatpush1.bf16.msra.mxu0 0
  %1158 = vmatprep.subr.bf16.mxu0 0
  %1159 = vmatpush1.bf16.msra.mxu0 %v1142
  %1160 = vmatprep.subr.bf16.mxu0 0
  %1161 = vmatpush2.bf16.msra.mxu0 0
  %1162 = vmatprep.subr.bf16.mxu0 0
  %1163 = vmatpush2.bf16.msra.mxu0 0
  %1164 = vmatprep.subr.bf16.mxu0 0
  %1165 = vmatpush2.bf16.msra.mxu0 0
  %1166 = vmatprep.subr.bf16.mxu0 0
  %1167 = vmatpush2.bf16.msra.mxu0 0
  %1168 = vmatprep.subr.bf16.mxu0 0
  %1169 = vmatpush2.bf16.msra.mxu0 0
  %1170 = vmatprep.subr.bf16.mxu0 0
  %1171 = vmatpush2.bf16.msra.mxu0 0
  %1172 = vmatprep.subr.bf16.mxu0 0
  %1173 = vmatpush2.bf16.msra.mxu0 0
  %1174 = vmatprep.subr.bf16.mxu0 0
  %1175 = vmatpush2.bf16.msra.mxu0 0
  %1176 = vmatprep.mubr.bf16.mxu0 0
  %1177 = vmatmul.mubr.bf16.gmra.mxu0 %v29
  %v1178 = vpop.f32.mrf.mxu0
  %v1179 = vadd.f32 %v19, %v1178
  %v1180 = vpop.f32.mrf.mxu0
  %v1181 = vpop.f32.mrf.mxu0
  %v1182 = vpop.f32.mrf.mxu0
  %1183 = vdwg.mxu0
  %s1184 = scalar_lea.vmem %s3, 128
  %1185 = vst [vmem:[%s1184] sm:$0x3f] %v1179
  %s1186 = scalar_lea.vmem %s0, 18
  %v1187 = vld [vmem:[%s1186] sm:$0x3]
  %v1188 = vld [vmem:[%s1048] sm:$0x3]
  %v1190 = vsel %vm31, %v1188, 0
  %1192 = vmatprep.subr.bf16.mxu0 0
  %1193 = vmatpush1.bf16.msra.mxu0 0
  %1194 = vmatprep.subr.bf16.mxu0 0
  %1195 = vmatpush1.bf16.msra.mxu0 0
  %1196 = vmatprep.subr.bf16.mxu0 0
  %1197 = vmatpush1.bf16.msra.mxu0 0
  %1198 = vmatprep.subr.bf16.mxu0 0
  %1199 = vmatpush1.bf16.msra.mxu0 0
  %1200 = vmatprep.subr.bf16.mxu0 0
  %1201 = vmatpush1.bf16.msra.mxu0 0
  %1202 = vmatprep.subr.bf16.mxu0 0
  %1203 = vmatpush1.bf16.msra.mxu0 0
  %1204 = vmatprep.subr.bf16.mxu0 0
  %1205 = vmatpush1.bf16.msra.mxu0 0
  %1206 = vmatprep.subr.bf16.mxu0 0
  %1207 = vmatpush1.bf16.msra.mxu0 %v1190
  %1208 = vmatprep.subr.bf16.mxu0 0
  %1209 = vmatpush2.bf16.msra.mxu0 0
  %1210 = vmatprep.subr.bf16.mxu0 0
  %1211 = vmatpush2.bf16.msra.mxu0 0
  %1212 = vmatprep.subr.bf16.mxu0 0
  %1213 = vmatpush2.bf16.msra.mxu0 0
  %1214 = vmatprep.subr.bf16.mxu0 0
  %1215 = vmatpush2.bf16.msra.mxu0 0
  %1216 = vmatprep.subr.bf16.mxu0 0
  %1217 = vmatpush2.bf16.msra.mxu0 0
  %1218 = vmatprep.subr.bf16.mxu0 0
  %1219 = vmatpush2.bf16.msra.mxu0 0
  %1220 = vmatprep.subr.bf16.mxu0 0
  %1221 = vmatpush2.bf16.msra.mxu0 0
  %1222 = vmatprep.subr.bf16.mxu0 0
  %1223 = vmatpush2.bf16.msra.mxu0 0
  %1224 = vmatprep.mubr.bf16.mxu0 0
  %1225 = vmatmul.mubr.bf16.gmra.mxu0 %v80
  %v1226 = vpop.f32.mrf.mxu0
  %v1227 = vadd.f32 0.0, %v1226
  %v1228 = vpop.f32.mrf.mxu0
  %v1229 = vpop.f32.mrf.mxu0
  %v1230 = vpop.f32.mrf.mxu0
  %1231 = vdwg.mxu0
  %v1233 = vsel %vm31, %v1187, 0
  %1235 = vmatprep.subr.bf16.mxu0 0
  %1236 = vmatpush1.bf16.msra.mxu0 0
  %1237 = vmatprep.subr.bf16.mxu0 0
  %1238 = vmatpush1.bf16.msra.mxu0 0
  %1239 = vmatprep.subr.bf16.mxu0 0
  %1240 = vmatpush1.bf16.msra.mxu0 0
  %1241 = vmatprep.subr.bf16.mxu0 0
  %1242 = vmatpush1.bf16.msra.mxu0 0
  %1243 = vmatprep.subr.bf16.mxu0 0
  %1244 = vmatpush1.bf16.msra.mxu0 0
  %1245 = vmatprep.subr.bf16.mxu0 0
  %1246 = vmatpush1.bf16.msra.mxu0 0
  %1247 = vmatprep.subr.bf16.mxu0 0
  %1248 = vmatpush1.bf16.msra.mxu0 0
  %1249 = vmatprep.subr.bf16.mxu0 0
  %1250 = vmatpush1.bf16.msra.mxu0 %v1233
  %1251 = vmatprep.subr.bf16.mxu0 0
  %1252 = vmatpush2.bf16.msra.mxu0 0
  %1253 = vmatprep.subr.bf16.mxu0 0
  %1254 = vmatpush2.bf16.msra.mxu0 0
  %1255 = vmatprep.subr.bf16.mxu0 0
  %1256 = vmatpush2.bf16.msra.mxu0 0
  %1257 = vmatprep.subr.bf16.mxu0 0
  %1258 = vmatpush2.bf16.msra.mxu0 0
  %1259 = vmatprep.subr.bf16.mxu0 0
  %1260 = vmatpush2.bf16.msra.mxu0 0
  %1261 = vmatprep.subr.bf16.mxu0 0
  %1262 = vmatpush2.bf16.msra.mxu0 0
  %1263 = vmatprep.subr.bf16.mxu0 0
  %1264 = vmatpush2.bf16.msra.mxu0 0
  %1265 = vmatprep.subr.bf16.mxu0 0
  %1266 = vmatpush2.bf16.msra.mxu0 0
  %1267 = vmatprep.mubr.bf16.mxu0 0
  %1268 = vmatmul.mubr.bf16.gmra.mxu0 %v126
  %v1269 = vpop.f32.mrf.mxu0
  %v1270 = vadd.f32 %v1227, %v1269
  %v1271 = vpop.f32.mrf.mxu0
  %v1272 = vpop.f32.mrf.mxu0
  %v1273 = vpop.f32.mrf.mxu0
  %1274 = vdwg.mxu0
  %v1275 = vadd.f32 %v1270, %v19
  %s1276 = scalar_lea.vmem %s3, 136
  %1277 = vst [vmem:[%s1276] sm:$0x3f] %v1275
  %v1278 = vld [vmem:[%s1186] sm:$0x3]
  %v1280 = vsel %vm31, %v1278, 0
  %1282 = vmatprep.subr.bf16.mxu0 0
  %1283 = vmatpush1.bf16.msra.mxu0 0
  %1284 = vmatprep.subr.bf16.mxu0 0
  %1285 = vmatpush1.bf16.msra.mxu0 0
  %1286 = vmatprep.subr.bf16.mxu0 0
  %1287 = vmatpush1.bf16.msra.mxu0 0
  %1288 = vmatprep.subr.bf16.mxu0 0
  %1289 = vmatpush1.bf16.msra.mxu0 0
  %1290 = vmatprep.subr.bf16.mxu0 0
  %1291 = vmatpush1.bf16.msra.mxu0 0
  %1292 = vmatprep.subr.bf16.mxu0 0
  %1293 = vmatpush1.bf16.msra.mxu0 0
  %1294 = vmatprep.subr.bf16.mxu0 0
  %1295 = vmatpush1.bf16.msra.mxu0 0
  %1296 = vmatprep.subr.bf16.mxu0 0
  %1297 = vmatpush1.bf16.msra.mxu0 %v1280
  %1298 = vmatprep.subr.bf16.mxu0 0
  %1299 = vmatpush2.bf16.msra.mxu0 0
  %1300 = vmatprep.subr.bf16.mxu0 0
  %1301 = vmatpush2.bf16.msra.mxu0 0
  %1302 = vmatprep.subr.bf16.mxu0 0
  %1303 = vmatpush2.bf16.msra.mxu0 0
  %1304 = vmatprep.subr.bf16.mxu0 0
  %1305 = vmatpush2.bf16.msra.mxu0 0
  %1306 = vmatprep.subr.bf16.mxu0 0
  %1307 = vmatpush2.bf16.msra.mxu0 0
  %1308 = vmatprep.subr.bf16.mxu0 0
  %1309 = vmatpush2.bf16.msra.mxu0 0
  %1310 = vmatprep.subr.bf16.mxu0 0
  %1311 = vmatpush2.bf16.msra.mxu0 0
  %1312 = vmatprep.subr.bf16.mxu0 0
  %1313 = vmatpush2.bf16.msra.mxu0 0
  %1314 = vmatprep.mubr.bf16.mxu0 0
  %1315 = vmatmul.mubr.bf16.gmra.mxu0 %v29
  %v1316 = vpop.f32.mrf.mxu0
  %v1317 = vadd.f32 %v19, %v1316
  %v1318 = vpop.f32.mrf.mxu0
  %v1319 = vpop.f32.mrf.mxu0
  %v1320 = vpop.f32.mrf.mxu0
  %1321 = vdwg.mxu0
  %s1322 = scalar_lea.vmem %s3, 144
  %1323 = vst [vmem:[%s1322] sm:$0x3f] %v1317
  %s1324 = scalar_lea.vmem %s0, 20
  %v1325 = vld [vmem:[%s1324] sm:$0x3]
  %v1326 = vld [vmem:[%s1186] sm:$0x3]
  %v1328 = vsel %vm31, %v1326, 0
  %1330 = vmatprep.subr.bf16.mxu0 0
  %1331 = vmatpush1.bf16.msra.mxu0 0
  %1332 = vmatprep.subr.bf16.mxu0 0
  %1333 = vmatpush1.bf16.msra.mxu0 0
  %1334 = vmatprep.subr.bf16.mxu0 0
  %1335 = vmatpush1.bf16.msra.mxu0 0
  %1336 = vmatprep.subr.bf16.mxu0 0
  %1337 = vmatpush1.bf16.msra.mxu0 0
  %1338 = vmatprep.subr.bf16.mxu0 0
  %1339 = vmatpush1.bf16.msra.mxu0 0
  %1340 = vmatprep.subr.bf16.mxu0 0
  %1341 = vmatpush1.bf16.msra.mxu0 0
  %1342 = vmatprep.subr.bf16.mxu0 0
  %1343 = vmatpush1.bf16.msra.mxu0 0
  %1344 = vmatprep.subr.bf16.mxu0 0
  %1345 = vmatpush1.bf16.msra.mxu0 %v1328
  %1346 = vmatprep.subr.bf16.mxu0 0
  %1347 = vmatpush2.bf16.msra.mxu0 0
  %1348 = vmatprep.subr.bf16.mxu0 0
  %1349 = vmatpush2.bf16.msra.mxu0 0
  %1350 = vmatprep.subr.bf16.mxu0 0
  %1351 = vmatpush2.bf16.msra.mxu0 0
  %1352 = vmatprep.subr.bf16.mxu0 0
  %1353 = vmatpush2.bf16.msra.mxu0 0
  %1354 = vmatprep.subr.bf16.mxu0 0
  %1355 = vmatpush2.bf16.msra.mxu0 0
  %1356 = vmatprep.subr.bf16.mxu0 0
  %1357 = vmatpush2.bf16.msra.mxu0 0
  %1358 = vmatprep.subr.bf16.mxu0 0
  %1359 = vmatpush2.bf16.msra.mxu0 0
  %1360 = vmatprep.subr.bf16.mxu0 0
  %1361 = vmatpush2.bf16.msra.mxu0 0
  %1362 = vmatprep.mubr.bf16.mxu0 0
  %1363 = vmatmul.mubr.bf16.gmra.mxu0 %v80
  %v1364 = vpop.f32.mrf.mxu0
  %v1365 = vadd.f32 0.0, %v1364
  %v1366 = vpop.f32.mrf.mxu0
  %v1367 = vpop.f32.mrf.mxu0
  %v1368 = vpop.f32.mrf.mxu0
  %1369 = vdwg.mxu0
  %v1371 = vsel %vm31, %v1325, 0
  %1373 = vmatprep.subr.bf16.mxu0 0
  %1374 = vmatpush1.bf16.msra.mxu0 0
  %1375 = vmatprep.subr.bf16.mxu0 0
  %1376 = vmatpush1.bf16.msra.mxu0 0
  %1377 = vmatprep.subr.bf16.mxu0 0
  %1378 = vmatpush1.bf16.msra.mxu0 0
  %1379 = vmatprep.subr.bf16.mxu0 0
  %1380 = vmatpush1.bf16.msra.mxu0 0
  %1381 = vmatprep.subr.bf16.mxu0 0
  %1382 = vmatpush1.bf16.msra.mxu0 0
  %1383 = vmatprep.subr.bf16.mxu0 0
  %1384 = vmatpush1.bf16.msra.mxu0 0
  %1385 = vmatprep.subr.bf16.mxu0 0
  %1386 = vmatpush1.bf16.msra.mxu0 0
  %1387 = vmatprep.subr.bf16.mxu0 0
  %1388 = vmatpush1.bf16.msra.mxu0 %v1371
  %1389 = vmatprep.subr.bf16.mxu0 0
  %1390 = vmatpush2.bf16.msra.mxu0 0
  %1391 = vmatprep.subr.bf16.mxu0 0
  %1392 = vmatpush2.bf16.msra.mxu0 0
  %1393 = vmatprep.subr.bf16.mxu0 0
  %1394 = vmatpush2.bf16.msra.mxu0 0
  %1395 = vmatprep.subr.bf16.mxu0 0
  %1396 = vmatpush2.bf16.msra.mxu0 0
  %1397 = vmatprep.subr.bf16.mxu0 0
  %1398 = vmatpush2.bf16.msra.mxu0 0
  %1399 = vmatprep.subr.bf16.mxu0 0
  %1400 = vmatpush2.bf16.msra.mxu0 0
  %1401 = vmatprep.subr.bf16.mxu0 0
  %1402 = vmatpush2.bf16.msra.mxu0 0
  %1403 = vmatprep.subr.bf16.mxu0 0
  %1404 = vmatpush2.bf16.msra.mxu0 0
  %1405 = vmatprep.mubr.bf16.mxu0 0
  %1406 = vmatmul.mubr.bf16.gmra.mxu0 %v126
  %v1407 = vpop.f32.mrf.mxu0
  %v1408 = vadd.f32 %v1365, %v1407
  %v1409 = vpop.f32.mrf.mxu0
  %v1410 = vpop.f32.mrf.mxu0
  %v1411 = vpop.f32.mrf.mxu0
  %1412 = vdwg.mxu0
  %v1413 = vadd.f32 %v1408, %v19
  %s1414 = scalar_lea.vmem %s3, 152
  %1415 = vst [vmem:[%s1414] sm:$0x3f] %v1413
  %v1416 = vld [vmem:[%s1324] sm:$0x3]
  %v1418 = vsel %vm31, %v1416, 0
  %1420 = vmatprep.subr.bf16.mxu0 0
  %1421 = vmatpush1.bf16.msra.mxu0 0
  %1422 = vmatprep.subr.bf16.mxu0 0
  %1423 = vmatpush1.bf16.msra.mxu0 0
  %1424 = vmatprep.subr.bf16.mxu0 0
  %1425 = vmatpush1.bf16.msra.mxu0 0
  %1426 = vmatprep.subr.bf16.mxu0 0
  %1427 = vmatpush1.bf16.msra.mxu0 0
  %1428 = vmatprep.subr.bf16.mxu0 0
  %1429 = vmatpush1.bf16.msra.mxu0 0
  %1430 = vmatprep.subr.bf16.mxu0 0
  %1431 = vmatpush1.bf16.msra.mxu0 0
  %1432 = vmatprep.subr.bf16.mxu0 0
  %1433 = vmatpush1.bf16.msra.mxu0 0
  %1434 = vmatprep.subr.bf16.mxu0 0
  %1435 = vmatpush1.bf16.msra.mxu0 %v1418
  %1436 = vmatprep.subr.bf16.mxu0 0
  %1437 = vmatpush2.bf16.msra.mxu0 0
  %1438 = vmatprep.subr.bf16.mxu0 0
  %1439 = vmatpush2.bf16.msra.mxu0 0
  %1440 = vmatprep.subr.bf16.mxu0 0
  %1441 = vmatpush2.bf16.msra.mxu0 0
  %1442 = vmatprep.subr.bf16.mxu0 0
  %1443 = vmatpush2.bf16.msra.mxu0 0
  %1444 = vmatprep.subr.bf16.mxu0 0
  %1445 = vmatpush2.bf16.msra.mxu0 0
  %1446 = vmatprep.subr.bf16.mxu0 0
  %1447 = vmatpush2.bf16.msra.mxu0 0
  %1448 = vmatprep.subr.bf16.mxu0 0
  %1449 = vmatpush2.bf16.msra.mxu0 0
  %1450 = vmatprep.subr.bf16.mxu0 0
  %1451 = vmatpush2.bf16.msra.mxu0 0
  %1452 = vmatprep.mubr.bf16.mxu0 0
  %1453 = vmatmul.mubr.bf16.gmra.mxu0 %v29
  %v1454 = vpop.f32.mrf.mxu0
  %v1455 = vadd.f32 %v19, %v1454
  %v1456 = vpop.f32.mrf.mxu0
  %v1457 = vpop.f32.mrf.mxu0
  %v1458 = vpop.f32.mrf.mxu0
  %1459 = vdwg.mxu0
  %s1460 = scalar_lea.vmem %s3, 160
  %1461 = vst [vmem:[%s1460] sm:$0x3f] %v1455
  %s1462 = scalar_lea.vmem %s0, 22
  %v1463 = vld [vmem:[%s1462] sm:$0x3]
  %v1464 = vld [vmem:[%s1324] sm:$0x3]
  %v1466 = vsel %vm31, %v1464, 0
  %1468 = vmatprep.subr.bf16.mxu0 0
  %1469 = vmatpush1.bf16.msra.mxu0 0
  %1470 = vmatprep.subr.bf16.mxu0 0
  %1471 = vmatpush1.bf16.msra.mxu0 0
  %1472 = vmatprep.subr.bf16.mxu0 0
  %1473 = vmatpush1.bf16.msra.mxu0 0
  %1474 = vmatprep.subr.bf16.mxu0 0
  %1475 = vmatpush1.bf16.msra.mxu0 0
  %1476 = vmatprep.subr.bf16.mxu0 0
  %1477 = vmatpush1.bf16.msra.mxu0 0
  %1478 = vmatprep.subr.bf16.mxu0 0
  %1479 = vmatpush1.bf16.msra.mxu0 0
  %1480 = vmatprep.subr.bf16.mxu0 0
  %1481 = vmatpush1.bf16.msra.mxu0 0
  %1482 = vmatprep.subr.bf16.mxu0 0
  %1483 = vmatpush1.bf16.msra.mxu0 %v1466
  %1484 = vmatprep.subr.bf16.mxu0 0
  %1485 = vmatpush2.bf16.msra.mxu0 0
  %1486 = vmatprep.subr.bf16.mxu0 0
  %1487 = vmatpush2.bf16.msra.mxu0 0
  %1488 = vmatprep.subr.bf16.mxu0 0
  %1489 = vmatpush2.bf16.msra.mxu0 0
  %1490 = vmatprep.subr.bf16.mxu0 0
  %1491 = vmatpush2.bf16.msra.mxu0 0
  %1492 = vmatprep.subr.bf16.mxu0 0
  %1493 = vmatpush2.bf16.msra.mxu0 0
  %1494 = vmatprep.subr.bf16.mxu0 0
  %1495 = vmatpush2.bf16.msra.mxu0 0
  %1496 = vmatprep.subr.bf16.mxu0 0
  %1497 = vmatpush2.bf16.msra.mxu0 0
  %1498 = vmatprep.subr.bf16.mxu0 0
  %1499 = vmatpush2.bf16.msra.mxu0 0
  %1500 = vmatprep.mubr.bf16.mxu0 0
  %1501 = vmatmul.mubr.bf16.gmra.mxu0 %v80
  %v1502 = vpop.f32.mrf.mxu0
  %v1503 = vadd.f32 0.0, %v1502
  %v1504 = vpop.f32.mrf.mxu0
  %v1505 = vpop.f32.mrf.mxu0
  %v1506 = vpop.f32.mrf.mxu0
  %1507 = vdwg.mxu0
  %v1509 = vsel %vm31, %v1463, 0
  %1511 = vmatprep.subr.bf16.mxu0 0
  %1512 = vmatpush1.bf16.msra.mxu0 0
  %1513 = vmatprep.subr.bf16.mxu0 0
  %1514 = vmatpush1.bf16.msra.mxu0 0
  %1515 = vmatprep.subr.bf16.mxu0 0
  %1516 = vmatpush1.bf16.msra.mxu0 0
  %1517 = vmatprep.subr.bf16.mxu0 0
  %1518 = vmatpush1.bf16.msra.mxu0 0
  %1519 = vmatprep.subr.bf16.mxu0 0
  %1520 = vmatpush1.bf16.msra.mxu0 0
  %1521 = vmatprep.subr.bf16.mxu0 0
  %1522 = vmatpush1.bf16.msra.mxu0 0
  %1523 = vmatprep.subr.bf16.mxu0 0
  %1524 = vmatpush1.bf16.msra.mxu0 0
  %1525 = vmatprep.subr.bf16.mxu0 0
  %1526 = vmatpush1.bf16.msra.mxu0 %v1509
  %1527 = vmatprep.subr.bf16.mxu0 0
  %1528 = vmatpush2.bf16.msra.mxu0 0
  %1529 = vmatprep.subr.bf16.mxu0 0
  %1530 = vmatpush2.bf16.msra.mxu0 0
  %1531 = vmatprep.subr.bf16.mxu0 0
  %1532 = vmatpush2.bf16.msra.mxu0 0
  %1533 = vmatprep.subr.bf16.mxu0 0
  %1534 = vmatpush2.bf16.msra.mxu0 0
  %1535 = vmatprep.subr.bf16.mxu0 0
  %1536 = vmatpush2.bf16.msra.mxu0 0
  %1537 = vmatprep.subr.bf16.mxu0 0
  %1538 = vmatpush2.bf16.msra.mxu0 0
  %1539 = vmatprep.subr.bf16.mxu0 0
  %1540 = vmatpush2.bf16.msra.mxu0 0
  %1541 = vmatprep.subr.bf16.mxu0 0
  %1542 = vmatpush2.bf16.msra.mxu0 0
  %1543 = vmatprep.mubr.bf16.mxu0 0
  %1544 = vmatmul.mubr.bf16.gmra.mxu0 %v126
  %v1545 = vpop.f32.mrf.mxu0
  %v1546 = vadd.f32 %v1503, %v1545
  %v1547 = vpop.f32.mrf.mxu0
  %v1548 = vpop.f32.mrf.mxu0
  %v1549 = vpop.f32.mrf.mxu0
  %1550 = vdwg.mxu0
  %v1551 = vadd.f32 %v1546, %v19
  %s1552 = scalar_lea.vmem %s3, 168
  %1553 = vst [vmem:[%s1552] sm:$0x3f] %v1551
  %v1554 = vld [vmem:[%s1462] sm:$0x3]
  %v1556 = vsel %vm31, %v1554, 0
  %1558 = vmatprep.subr.bf16.mxu0 0
  %1559 = vmatpush1.bf16.msra.mxu0 0
  %1560 = vmatprep.subr.bf16.mxu0 0
  %1561 = vmatpush1.bf16.msra.mxu0 0
  %1562 = vmatprep.subr.bf16.mxu0 0
  %1563 = vmatpush1.bf16.msra.mxu0 0
  %1564 = vmatprep.subr.bf16.mxu0 0
  %1565 = vmatpush1.bf16.msra.mxu0 0
  %1566 = vmatprep.subr.bf16.mxu0 0
  %1567 = vmatpush1.bf16.msra.mxu0 0
  %1568 = vmatprep.subr.bf16.mxu0 0
  %1569 = vmatpush1.bf16.msra.mxu0 0
  %1570 = vmatprep.subr.bf16.mxu0 0
  %1571 = vmatpush1.bf16.msra.mxu0 0
  %1572 = vmatprep.subr.bf16.mxu0 0
  %1573 = vmatpush1.bf16.msra.mxu0 %v1556
  %1574 = vmatprep.subr.bf16.mxu0 0
  %1575 = vmatpush2.bf16.msra.mxu0 0
  %1576 = vmatprep.subr.bf16.mxu0 0
  %1577 = vmatpush2.bf16.msra.mxu0 0
  %1578 = vmatprep.subr.bf16.mxu0 0
  %1579 = vmatpush2.bf16.msra.mxu0 0
  %1580 = vmatprep.subr.bf16.mxu0 0
  %1581 = vmatpush2.bf16.msra.mxu0 0
  %1582 = vmatprep.subr.bf16.mxu0 0
  %1583 = vmatpush2.bf16.msra.mxu0 0
  %1584 = vmatprep.subr.bf16.mxu0 0
  %1585 = vmatpush2.bf16.msra.mxu0 0
  %1586 = vmatprep.subr.bf16.mxu0 0
  %1587 = vmatpush2.bf16.msra.mxu0 0
  %1588 = vmatprep.subr.bf16.mxu0 0
  %1589 = vmatpush2.bf16.msra.mxu0 0
  %1590 = vmatprep.mubr.bf16.mxu0 0
  %1591 = vmatmul.mubr.bf16.gmra.mxu0 %v29
  %v1592 = vpop.f32.mrf.mxu0
  %v1593 = vadd.f32 %v19, %v1592
  %v1594 = vpop.f32.mrf.mxu0
  %v1595 = vpop.f32.mrf.mxu0
  %v1596 = vpop.f32.mrf.mxu0
  %1597 = vdwg.mxu0
  %s1598 = scalar_lea.vmem %s3, 176
  %1599 = vst [vmem:[%s1598] sm:$0x3f] %v1593
  %s1600 = scalar_lea.vmem %s0, 24
  %v1601 = vld [vmem:[%s1600] sm:$0x3]
  %v1602 = vld [vmem:[%s1462] sm:$0x3]
  %v1604 = vsel %vm31, %v1602, 0
  %1606 = vmatprep.subr.bf16.mxu0 0
  %1607 = vmatpush1.bf16.msra.mxu0 0
  %1608 = vmatprep.subr.bf16.mxu0 0
  %1609 = vmatpush1.bf16.msra.mxu0 0
  %1610 = vmatprep.subr.bf16.mxu0 0
  %1611 = vmatpush1.bf16.msra.mxu0 0
  %1612 = vmatprep.subr.bf16.mxu0 0
  %1613 = vmatpush1.bf16.msra.mxu0 0
  %1614 = vmatprep.subr.bf16.mxu0 0
  %1615 = vmatpush1.bf16.msra.mxu0 0
  %1616 = vmatprep.subr.bf16.mxu0 0
  %1617 = vmatpush1.bf16.msra.mxu0 0
  %1618 = vmatprep.subr.bf16.mxu0 0
  %1619 = vmatpush1.bf16.msra.mxu0 0
  %1620 = vmatprep.subr.bf16.mxu0 0
  %1621 = vmatpush1.bf16.msra.mxu0 %v1604
  %1622 = vmatprep.subr.bf16.mxu0 0
  %1623 = vmatpush2.bf16.msra.mxu0 0
  %1624 = vmatprep.subr.bf16.mxu0 0
  %1625 = vmatpush2.bf16.msra.mxu0 0
  %1626 = vmatprep.subr.bf16.mxu0 0
  %1627 = vmatpush2.bf16.msra.mxu0 0
  %1628 = vmatprep.subr.bf16.mxu0 0
  %1629 = vmatpush2.bf16.msra.mxu0 0
  %1630 = vmatprep.subr.bf16.mxu0 0
  %1631 = vmatpush2.bf16.msra.mxu0 0
  %1632 = vmatprep.subr.bf16.mxu0 0
  %1633 = vmatpush2.bf16.msra.mxu0 0
  %1634 = vmatprep.subr.bf16.mxu0 0
  %1635 = vmatpush2.bf16.msra.mxu0 0
  %1636 = vmatprep.subr.bf16.mxu0 0
  %1637 = vmatpush2.bf16.msra.mxu0 0
  %1638 = vmatprep.mubr.bf16.mxu0 0
  %1639 = vmatmul.mubr.bf16.gmra.mxu0 %v80
  %v1640 = vpop.f32.mrf.mxu0
  %v1641 = vadd.f32 0.0, %v1640
  %v1642 = vpop.f32.mrf.mxu0
  %v1643 = vpop.f32.mrf.mxu0
  %v1644 = vpop.f32.mrf.mxu0
  %1645 = vdwg.mxu0
  %v1647 = vsel %vm31, %v1601, 0
  %1649 = vmatprep.subr.bf16.mxu0 0
  %1650 = vmatpush1.bf16.msra.mxu0 0
  %1651 = vmatprep.subr.bf16.mxu0 0
  %1652 = vmatpush1.bf16.msra.mxu0 0
  %1653 = vmatprep.subr.bf16.mxu0 0
  %1654 = vmatpush1.bf16.msra.mxu0 0
  %1655 = vmatprep.subr.bf16.mxu0 0
  %1656 = vmatpush1.bf16.msra.mxu0 0
  %1657 = vmatprep.subr.bf16.mxu0 0
  %1658 = vmatpush1.bf16.msra.mxu0 0
  %1659 = vmatprep.subr.bf16.mxu0 0
  %1660 = vmatpush1.bf16.msra.mxu0 0
  %1661 = vmatprep.subr.bf16.mxu0 0
  %1662 = vmatpush1.bf16.msra.mxu0 0
  %1663 = vmatprep.subr.bf16.mxu0 0
  %1664 = vmatpush1.bf16.msra.mxu0 %v1647
  %1665 = vmatprep.subr.bf16.mxu0 0
  %1666 = vmatpush2.bf16.msra.mxu0 0
  %1667 = vmatprep.subr.bf16.mxu0 0
  %1668 = vmatpush2.bf16.msra.mxu0 0
  %1669 = vmatprep.subr.bf16.mxu0 0
  %1670 = vmatpush2.bf16.msra.mxu0 0
  %1671 = vmatprep.subr.bf16.mxu0 0
  %1672 = vmatpush2.bf16.msra.mxu0 0
  %1673 = vmatprep.subr.bf16.mxu0 0
  %1674 = vmatpush2.bf16.msra.mxu0 0
  %1675 = vmatprep.subr.bf16.mxu0 0
  %1676 = vmatpush2.bf16.msra.mxu0 0
  %1677 = vmatprep.subr.bf16.mxu0 0
  %1678 = vmatpush2.bf16.msra.mxu0 0
  %1679 = vmatprep.subr.bf16.mxu0 0
  %1680 = vmatpush2.bf16.msra.mxu0 0
  %1681 = vmatprep.mubr.bf16.mxu0 0
  %1682 = vmatmul.mubr.bf16.gmra.mxu0 %v126
  %v1683 = vpop.f32.mrf.mxu0
  %v1684 = vadd.f32 %v1641, %v1683
  %v1685 = vpop.f32.mrf.mxu0
  %v1686 = vpop.f32.mrf.mxu0
  %v1687 = vpop.f32.mrf.mxu0
  %1688 = vdwg.mxu0
  %v1689 = vadd.f32 %v1684, %v19
  %s1690 = scalar_lea.vmem %s3, 184
  %1691 = vst [vmem:[%s1690] sm:$0x3f] %v1689
  %v1692 = vld [vmem:[%s1600] sm:$0x3]
  %v1694 = vsel %vm31, %v1692, 0
  %1696 = vmatprep.subr.bf16.mxu0 0
  %1697 = vmatpush1.bf16.msra.mxu0 0
  %1698 = vmatprep.subr.bf16.mxu0 0
  %1699 = vmatpush1.bf16.msra.mxu0 0
  %1700 = vmatprep.subr.bf16.mxu0 0
  %1701 = vmatpush1.bf16.msra.mxu0 0
  %1702 = vmatprep.subr.bf16.mxu0 0
  %1703 = vmatpush1.bf16.msra.mxu0 0
  %1704 = vmatprep.subr.bf16.mxu0 0
  %1705 = vmatpush1.bf16.msra.mxu0 0
  %1706 = vmatprep.subr.bf16.mxu0 0
  %1707 = vmatpush1.bf16.msra.mxu0 0
  %1708 = vmatprep.subr.bf16.mxu0 0
  %1709 = vmatpush1.bf16.msra.mxu0 0
  %1710 = vmatprep.subr.bf16.mxu0 0
  %1711 = vmatpush1.bf16.msra.mxu0 %v1694
  %1712 = vmatprep.subr.bf16.mxu0 0
  %1713 = vmatpush2.bf16.msra.mxu0 0
  %1714 = vmatprep.subr.bf16.mxu0 0
  %1715 = vmatpush2.bf16.msra.mxu0 0
  %1716 = vmatprep.subr.bf16.mxu0 0
  %1717 = vmatpush2.bf16.msra.mxu0 0
  %1718 = vmatprep.subr.bf16.mxu0 0
  %1719 = vmatpush2.bf16.msra.mxu0 0
  %1720 = vmatprep.subr.bf16.mxu0 0
  %1721 = vmatpush2.bf16.msra.mxu0 0
  %1722 = vmatprep.subr.bf16.mxu0 0
  %1723 = vmatpush2.bf16.msra.mxu0 0
  %1724 = vmatprep.subr.bf16.mxu0 0
  %1725 = vmatpush2.bf16.msra.mxu0 0
  %1726 = vmatprep.subr.bf16.mxu0 0
  %1727 = vmatpush2.bf16.msra.mxu0 0
  %1728 = vmatprep.mubr.bf16.mxu0 0
  %1729 = vmatmul.mubr.bf16.gmra.mxu0 %v29
  %v1730 = vpop.f32.mrf.mxu0
  %v1731 = vadd.f32 %v19, %v1730
  %v1732 = vpop.f32.mrf.mxu0
  %v1733 = vpop.f32.mrf.mxu0
  %v1734 = vpop.f32.mrf.mxu0
  %1735 = vdwg.mxu0
  %s1736 = scalar_lea.vmem %s3, 192
  %1737 = vst [vmem:[%s1736] sm:$0x3f] %v1731
  %s1738 = scalar_lea.vmem %s0, 26
  %v1739 = vld [vmem:[%s1738] sm:$0x3]
  %v1740 = vld [vmem:[%s1600] sm:$0x3]
  %v1742 = vsel %vm31, %v1740, 0
  %1744 = vmatprep.subr.bf16.mxu0 0
  %1745 = vmatpush1.bf16.msra.mxu0 0
  %1746 = vmatprep.subr.bf16.mxu0 0
  %1747 = vmatpush1.bf16.msra.mxu0 0
  %1748 = vmatprep.subr.bf16.mxu0 0
  %1749 = vmatpush1.bf16.msra.mxu0 0
  %1750 = vmatprep.subr.bf16.mxu0 0
  %1751 = vmatpush1.bf16.msra.mxu0 0
  %1752 = vmatprep.subr.bf16.mxu0 0
  %1753 = vmatpush1.bf16.msra.mxu0 0
  %1754 = vmatprep.subr.bf16.mxu0 0
  %1755 = vmatpush1.bf16.msra.mxu0 0
  %1756 = vmatprep.subr.bf16.mxu0 0
  %1757 = vmatpush1.bf16.msra.mxu0 0
  %1758 = vmatprep.subr.bf16.mxu0 0
  %1759 = vmatpush1.bf16.msra.mxu0 %v1742
  %1760 = vmatprep.subr.bf16.mxu0 0
  %1761 = vmatpush2.bf16.msra.mxu0 0
  %1762 = vmatprep.subr.bf16.mxu0 0
  %1763 = vmatpush2.bf16.msra.mxu0 0
  %1764 = vmatprep.subr.bf16.mxu0 0
  %1765 = vmatpush2.bf16.msra.mxu0 0
  %1766 = vmatprep.subr.bf16.mxu0 0
  %1767 = vmatpush2.bf16.msra.mxu0 0
  %1768 = vmatprep.subr.bf16.mxu0 0
  %1769 = vmatpush2.bf16.msra.mxu0 0
  %1770 = vmatprep.subr.bf16.mxu0 0
  %1771 = vmatpush2.bf16.msra.mxu0 0
  %1772 = vmatprep.subr.bf16.mxu0 0
  %1773 = vmatpush2.bf16.msra.mxu0 0
  %1774 = vmatprep.subr.bf16.mxu0 0
  %1775 = vmatpush2.bf16.msra.mxu0 0
  %1776 = vmatprep.mubr.bf16.mxu0 0
  %1777 = vmatmul.mubr.bf16.gmra.mxu0 %v80
  %v1778 = vpop.f32.mrf.mxu0
  %v1779 = vadd.f32 0.0, %v1778
  %v1780 = vpop.f32.mrf.mxu0
  %v1781 = vpop.f32.mrf.mxu0
  %v1782 = vpop.f32.mrf.mxu0
  %1783 = vdwg.mxu0
  %v1785 = vsel %vm31, %v1739, 0
  %1787 = vmatprep.subr.bf16.mxu0 0
  %1788 = vmatpush1.bf16.msra.mxu0 0
  %1789 = vmatprep.subr.bf16.mxu0 0
  %1790 = vmatpush1.bf16.msra.mxu0 0
  %1791 = vmatprep.subr.bf16.mxu0 0
  %1792 = vmatpush1.bf16.msra.mxu0 0
  %1793 = vmatprep.subr.bf16.mxu0 0
  %1794 = vmatpush1.bf16.msra.mxu0 0
  %1795 = vmatprep.subr.bf16.mxu0 0
  %1796 = vmatpush1.bf16.msra.mxu0 0
  %1797 = vmatprep.subr.bf16.mxu0 0
  %1798 = vmatpush1.bf16.msra.mxu0 0
  %1799 = vmatprep.subr.bf16.mxu0 0
  %1800 = vmatpush1.bf16.msra.mxu0 0
  %1801 = vmatprep.subr.bf16.mxu0 0
  %1802 = vmatpush1.bf16.msra.mxu0 %v1785
  %1803 = vmatprep.subr.bf16.mxu0 0
  %1804 = vmatpush2.bf16.msra.mxu0 0
  %1805 = vmatprep.subr.bf16.mxu0 0
  %1806 = vmatpush2.bf16.msra.mxu0 0
  %1807 = vmatprep.subr.bf16.mxu0 0
  %1808 = vmatpush2.bf16.msra.mxu0 0
  %1809 = vmatprep.subr.bf16.mxu0 0
  %1810 = vmatpush2.bf16.msra.mxu0 0
  %1811 = vmatprep.subr.bf16.mxu0 0
  %1812 = vmatpush2.bf16.msra.mxu0 0
  %1813 = vmatprep.subr.bf16.mxu0 0
  %1814 = vmatpush2.bf16.msra.mxu0 0
  %1815 = vmatprep.subr.bf16.mxu0 0
  %1816 = vmatpush2.bf16.msra.mxu0 0
  %1817 = vmatprep.subr.bf16.mxu0 0
  %1818 = vmatpush2.bf16.msra.mxu0 0
  %1819 = vmatprep.mubr.bf16.mxu0 0
  %1820 = vmatmul.mubr.bf16.gmra.mxu0 %v126
  %v1821 = vpop.f32.mrf.mxu0
  %v1822 = vadd.f32 %v1779, %v1821
  %v1823 = vpop.f32.mrf.mxu0
  %v1824 = vpop.f32.mrf.mxu0
  %v1825 = vpop.f32.mrf.mxu0
  %1826 = vdwg.mxu0
  %v1827 = vadd.f32 %v1822, %v19
  %s1828 = scalar_lea.vmem %s3, 200
  %1829 = vst [vmem:[%s1828] sm:$0x3f] %v1827
  %v1830 = vld [vmem:[%s1738] sm:$0x3]
  %v1832 = vsel %vm31, %v1830, 0
  %1834 = vmatprep.subr.bf16.mxu0 0
  %1835 = vmatpush1.bf16.msra.mxu0 0
  %1836 = vmatprep.subr.bf16.mxu0 0
  %1837 = vmatpush1.bf16.msra.mxu0 0
  %1838 = vmatprep.subr.bf16.mxu0 0
  %1839 = vmatpush1.bf16.msra.mxu0 0
  %1840 = vmatprep.subr.bf16.mxu0 0
  %1841 = vmatpush1.bf16.msra.mxu0 0
  %1842 = vmatprep.subr.bf16.mxu0 0
  %1843 = vmatpush1.bf16.msra.mxu0 0
  %1844 = vmatprep.subr.bf16.mxu0 0
  %1845 = vmatpush1.bf16.msra.mxu0 0
  %1846 = vmatprep.subr.bf16.mxu0 0
  %1847 = vmatpush1.bf16.msra.mxu0 0
  %1848 = vmatprep.subr.bf16.mxu0 0
  %1849 = vmatpush1.bf16.msra.mxu0 %v1832
  %1850 = vmatprep.subr.bf16.mxu0 0
  %1851 = vmatpush2.bf16.msra.mxu0 0
  %1852 = vmatprep.subr.bf16.mxu0 0
  %1853 = vmatpush2.bf16.msra.mxu0 0
  %1854 = vmatprep.subr.bf16.mxu0 0
  %1855 = vmatpush2.bf16.msra.mxu0 0
  %1856 = vmatprep.subr.bf16.mxu0 0
  %1857 = vmatpush2.bf16.msra.mxu0 0
  %1858 = vmatprep.subr.bf16.mxu0 0
  %1859 = vmatpush2.bf16.msra.mxu0 0
  %1860 = vmatprep.subr.bf16.mxu0 0
  %1861 = vmatpush2.bf16.msra.mxu0 0
  %1862 = vmatprep.subr.bf16.mxu0 0
  %1863 = vmatpush2.bf16.msra.mxu0 0
  %1864 = vmatprep.subr.bf16.mxu0 0
  %1865 = vmatpush2.bf16.msra.mxu0 0
  %1866 = vmatprep.mubr.bf16.mxu0 0
  %1867 = vmatmul.mubr.bf16.gmra.mxu0 %v29
  %v1868 = vpop.f32.mrf.mxu0
  %v1869 = vadd.f32 %v19, %v1868
  %v1870 = vpop.f32.mrf.mxu0
  %v1871 = vpop.f32.mrf.mxu0
  %v1872 = vpop.f32.mrf.mxu0
  %1873 = vdwg.mxu0
  %s1874 = scalar_lea.vmem %s3, 208
  %1875 = vst [vmem:[%s1874] sm:$0x3f] %v1869
  %s1876 = scalar_lea.vmem %s0, 28
  %v1877 = vld [vmem:[%s1876] sm:$0x3]
  %v1878 = vld [vmem:[%s1738] sm:$0x3]
  %v1880 = vsel %vm31, %v1878, 0
  %1882 = vmatprep.subr.bf16.mxu0 0
  %1883 = vmatpush1.bf16.msra.mxu0 0
  %1884 = vmatprep.subr.bf16.mxu0 0
  %1885 = vmatpush1.bf16.msra.mxu0 0
  %1886 = vmatprep.subr.bf16.mxu0 0
  %1887 = vmatpush1.bf16.msra.mxu0 0
  %1888 = vmatprep.subr.bf16.mxu0 0
  %1889 = vmatpush1.bf16.msra.mxu0 0
  %1890 = vmatprep.subr.bf16.mxu0 0
  %1891 = vmatpush1.bf16.msra.mxu0 0
  %1892 = vmatprep.subr.bf16.mxu0 0
  %1893 = vmatpush1.bf16.msra.mxu0 0
  %1894 = vmatprep.subr.bf16.mxu0 0
  %1895 = vmatpush1.bf16.msra.mxu0 0
  %1896 = vmatprep.subr.bf16.mxu0 0
  %1897 = vmatpush1.bf16.msra.mxu0 %v1880
  %1898 = vmatprep.subr.bf16.mxu0 0
  %1899 = vmatpush2.bf16.msra.mxu0 0
  %1900 = vmatprep.subr.bf16.mxu0 0
  %1901 = vmatpush2.bf16.msra.mxu0 0
  %1902 = vmatprep.subr.bf16.mxu0 0
  %1903 = vmatpush2.bf16.msra.mxu0 0
  %1904 = vmatprep.subr.bf16.mxu0 0
  %1905 = vmatpush2.bf16.msra.mxu0 0
  %1906 = vmatprep.subr.bf16.mxu0 0
  %1907 = vmatpush2.bf16.msra.mxu0 0
  %1908 = vmatprep.subr.bf16.mxu0 0
  %1909 = vmatpush2.bf16.msra.mxu0 0
  %1910 = vmatprep.subr.bf16.mxu0 0
  %1911 = vmatpush2.bf16.msra.mxu0 0
  %1912 = vmatprep.subr.bf16.mxu0 0
  %1913 = vmatpush2.bf16.msra.mxu0 0
  %1914 = vmatprep.mubr.bf16.mxu0 0
  %1915 = vmatmul.mubr.bf16.gmra.mxu0 %v80
  %v1916 = vpop.f32.mrf.mxu0
  %v1917 = vadd.f32 0.0, %v1916
  %v1918 = vpop.f32.mrf.mxu0
  %v1919 = vpop.f32.mrf.mxu0
  %v1920 = vpop.f32.mrf.mxu0
  %1921 = vdwg.mxu0
  %v1923 = vsel %vm31, %v1877, 0
  %1925 = vmatprep.subr.bf16.mxu0 0
  %1926 = vmatpush1.bf16.msra.mxu0 0
  %1927 = vmatprep.subr.bf16.mxu0 0
  %1928 = vmatpush1.bf16.msra.mxu0 0
  %1929 = vmatprep.subr.bf16.mxu0 0
  %1930 = vmatpush1.bf16.msra.mxu0 0
  %1931 = vmatprep.subr.bf16.mxu0 0
  %1932 = vmatpush1.bf16.msra.mxu0 0
  %1933 = vmatprep.subr.bf16.mxu0 0
  %1934 = vmatpush1.bf16.msra.mxu0 0
  %1935 = vmatprep.subr.bf16.mxu0 0
  %1936 = vmatpush1.bf16.msra.mxu0 0
  %1937 = vmatprep.subr.bf16.mxu0 0
  %1938 = vmatpush1.bf16.msra.mxu0 0
  %1939 = vmatprep.subr.bf16.mxu0 0
  %1940 = vmatpush1.bf16.msra.mxu0 %v1923
  %1941 = vmatprep.subr.bf16.mxu0 0
  %1942 = vmatpush2.bf16.msra.mxu0 0
  %1943 = vmatprep.subr.bf16.mxu0 0
  %1944 = vmatpush2.bf16.msra.mxu0 0
  %1945 = vmatprep.subr.bf16.mxu0 0
  %1946 = vmatpush2.bf16.msra.mxu0 0
  %1947 = vmatprep.subr.bf16.mxu0 0
  %1948 = vmatpush2.bf16.msra.mxu0 0
  %1949 = vmatprep.subr.bf16.mxu0 0
  %1950 = vmatpush2.bf16.msra.mxu0 0
  %1951 = vmatprep.subr.bf16.mxu0 0
  %1952 = vmatpush2.bf16.msra.mxu0 0
  %1953 = vmatprep.subr.bf16.mxu0 0
  %1954 = vmatpush2.bf16.msra.mxu0 0
  %1955 = vmatprep.subr.bf16.mxu0 0
  %1956 = vmatpush2.bf16.msra.mxu0 0
  %1957 = vmatprep.mubr.bf16.mxu0 0
  %1958 = vmatmul.mubr.bf16.gmra.mxu0 %v126
  %v1959 = vpop.f32.mrf.mxu0
  %v1960 = vadd.f32 %v1917, %v1959
  %v1961 = vpop.f32.mrf.mxu0
  %v1962 = vpop.f32.mrf.mxu0
  %v1963 = vpop.f32.mrf.mxu0
  %1964 = vdwg.mxu0
  %v1965 = vadd.f32 %v1960, %v19
  %s1966 = scalar_lea.vmem %s3, 216
  %1967 = vst [vmem:[%s1966] sm:$0x3f] %v1965
  %v1968 = vld [vmem:[%s1876] sm:$0x3]
  %v1970 = vsel %vm31, %v1968, 0
  %1972 = vmatprep.subr.bf16.mxu0 0
  %1973 = vmatpush1.bf16.msra.mxu0 0
  %1974 = vmatprep.subr.bf16.mxu0 0
  %1975 = vmatpush1.bf16.msra.mxu0 0
  %1976 = vmatprep.subr.bf16.mxu0 0
  %1977 = vmatpush1.bf16.msra.mxu0 0
  %1978 = vmatprep.subr.bf16.mxu0 0
  %1979 = vmatpush1.bf16.msra.mxu0 0
  %1980 = vmatprep.subr.bf16.mxu0 0
  %1981 = vmatpush1.bf16.msra.mxu0 0
  %1982 = vmatprep.subr.bf16.mxu0 0
  %1983 = vmatpush1.bf16.msra.mxu0 0
  %1984 = vmatprep.subr.bf16.mxu0 0
  %1985 = vmatpush1.bf16.msra.mxu0 0
  %1986 = vmatprep.subr.bf16.mxu0 0
  %1987 = vmatpush1.bf16.msra.mxu0 %v1970
  %1988 = vmatprep.subr.bf16.mxu0 0
  %1989 = vmatpush2.bf16.msra.mxu0 0
  %1990 = vmatprep.subr.bf16.mxu0 0
  %1991 = vmatpush2.bf16.msra.mxu0 0
  %1992 = vmatprep.subr.bf16.mxu0 0
  %1993 = vmatpush2.bf16.msra.mxu0 0
  %1994 = vmatprep.subr.bf16.mxu0 0
  %1995 = vmatpush2.bf16.msra.mxu0 0
  %1996 = vmatprep.subr.bf16.mxu0 0
  %1997 = vmatpush2.bf16.msra.mxu0 0
  %1998 = vmatprep.subr.bf16.mxu0 0
  %1999 = vmatpush2.bf16.msra.mxu0 0
  %2000 = vmatprep.subr.bf16.mxu0 0
  %2001 = vmatpush2.bf16.msra.mxu0 0
  %2002 = vmatprep.subr.bf16.mxu0 0
  %2003 = vmatpush2.bf16.msra.mxu0 0
  %2004 = vmatprep.mubr.bf16.mxu0 0
  %2005 = vmatmul.mubr.bf16.gmra.mxu0 %v29
  %v2006 = vpop.f32.mrf.mxu0
  %v2007 = vadd.f32 %v19, %v2006
  %v2008 = vpop.f32.mrf.mxu0
  %v2009 = vpop.f32.mrf.mxu0
  %v2010 = vpop.f32.mrf.mxu0
  %2011 = vdwg.mxu0
  %s2012 = scalar_lea.vmem %s3, 224
  %2013 = vst [vmem:[%s2012] sm:$0x3f] %v2007
  %s2014 = scalar_lea.vmem %s0, 30
  %v2015 = vld [vmem:[%s2014] sm:$0x3]
  %v2016 = vld [vmem:[%s1876] sm:$0x3]
  %v2018 = vsel %vm31, %v2016, 0
  %2020 = vmatprep.subr.bf16.mxu0 0
  %2021 = vmatpush1.bf16.msra.mxu0 0
  %2022 = vmatprep.subr.bf16.mxu0 0
  %2023 = vmatpush1.bf16.msra.mxu0 0
  %2024 = vmatprep.subr.bf16.mxu0 0
  %2025 = vmatpush1.bf16.msra.mxu0 0
  %2026 = vmatprep.subr.bf16.mxu0 0
  %2027 = vmatpush1.bf16.msra.mxu0 0
  %2028 = vmatprep.subr.bf16.mxu0 0
  %2029 = vmatpush1.bf16.msra.mxu0 0
  %2030 = vmatprep.subr.bf16.mxu0 0
  %2031 = vmatpush1.bf16.msra.mxu0 0
  %2032 = vmatprep.subr.bf16.mxu0 0
  %2033 = vmatpush1.bf16.msra.mxu0 0
  %2034 = vmatprep.subr.bf16.mxu0 0
  %2035 = vmatpush1.bf16.msra.mxu0 %v2018
  %2036 = vmatprep.subr.bf16.mxu0 0
  %2037 = vmatpush2.bf16.msra.mxu0 0
  %2038 = vmatprep.subr.bf16.mxu0 0
  %2039 = vmatpush2.bf16.msra.mxu0 0
  %2040 = vmatprep.subr.bf16.mxu0 0
  %2041 = vmatpush2.bf16.msra.mxu0 0
  %2042 = vmatprep.subr.bf16.mxu0 0
  %2043 = vmatpush2.bf16.msra.mxu0 0
  %2044 = vmatprep.subr.bf16.mxu0 0
  %2045 = vmatpush2.bf16.msra.mxu0 0
  %2046 = vmatprep.subr.bf16.mxu0 0
  %2047 = vmatpush2.bf16.msra.mxu0 0
  %2048 = vmatprep.subr.bf16.mxu0 0
  %2049 = vmatpush2.bf16.msra.mxu0 0
  %2050 = vmatprep.subr.bf16.mxu0 0
  %2051 = vmatpush2.bf16.msra.mxu0 0
  %2052 = vmatprep.mubr.bf16.mxu0 0
  %2053 = vmatmul.mubr.bf16.gmra.mxu0 %v80
  %v2054 = vpop.f32.mrf.mxu0
  %v2055 = vadd.f32 0.0, %v2054
  %v2056 = vpop.f32.mrf.mxu0
  %v2057 = vpop.f32.mrf.mxu0
  %v2058 = vpop.f32.mrf.mxu0
  %2059 = vdwg.mxu0
  %v2061 = vsel %vm31, %v2015, 0
  %2063 = vmatprep.subr.bf16.mxu0 0
  %2064 = vmatpush1.bf16.msra.mxu0 0
  %2065 = vmatprep.subr.bf16.mxu0 0
  %2066 = vmatpush1.bf16.msra.mxu0 0
  %2067 = vmatprep.subr.bf16.mxu0 0
  %2068 = vmatpush1.bf16.msra.mxu0 0
  %2069 = vmatprep.subr.bf16.mxu0 0
  %2070 = vmatpush1.bf16.msra.mxu0 0
  %2071 = vmatprep.subr.bf16.mxu0 0
  %2072 = vmatpush1.bf16.msra.mxu0 0
  %2073 = vmatprep.subr.bf16.mxu0 0
  %2074 = vmatpush1.bf16.msra.mxu0 0
  %2075 = vmatprep.subr.bf16.mxu0 0
  %2076 = vmatpush1.bf16.msra.mxu0 0
  %2077 = vmatprep.subr.bf16.mxu0 0
  %2078 = vmatpush1.bf16.msra.mxu0 %v2061
  %2079 = vmatprep.subr.bf16.mxu0 0
  %2080 = vmatpush2.bf16.msra.mxu0 0
  %2081 = vmatprep.subr.bf16.mxu0 0
  %2082 = vmatpush2.bf16.msra.mxu0 0
  %2083 = vmatprep.subr.bf16.mxu0 0
  %2084 = vmatpush2.bf16.msra.mxu0 0
  %2085 = vmatprep.subr.bf16.mxu0 0
  %2086 = vmatpush2.bf16.msra.mxu0 0
  %2087 = vmatprep.subr.bf16.mxu0 0
  %2088 = vmatpush2.bf16.msra.mxu0 0
  %2089 = vmatprep.subr.bf16.mxu0 0
  %2090 = vmatpush2.bf16.msra.mxu0 0
  %2091 = vmatprep.subr.bf16.mxu0 0
  %2092 = vmatpush2.bf16.msra.mxu0 0
  %2093 = vmatprep.subr.bf16.mxu0 0
  %2094 = vmatpush2.bf16.msra.mxu0 0
  %2095 = vmatprep.mubr.bf16.mxu0 0
  %2096 = vmatmul.mubr.bf16.gmra.mxu0 %v126
  %v2097 = vpop.f32.mrf.mxu0
  %v2098 = vadd.f32 %v2055, %v2097
  %v2099 = vpop.f32.mrf.mxu0
  %v2100 = vpop.f32.mrf.mxu0
  %v2101 = vpop.f32.mrf.mxu0
  %2102 = vdwg.mxu0
  %v2103 = vadd.f32 %v2098, %v19
  %s2104 = scalar_lea.vmem %s3, 232
  %2105 = vst [vmem:[%s2104] sm:$0x3f] %v2103
  %v2106 = vld [vmem:[%s2014] sm:$0x3]
  %v2108 = vsel %vm31, %v2106, 0
  %2110 = vmatprep.subr.bf16.mxu0 0
  %2111 = vmatpush1.bf16.msra.mxu0 0
  %2112 = vmatprep.subr.bf16.mxu0 0
  %2113 = vmatpush1.bf16.msra.mxu0 0
  %2114 = vmatprep.subr.bf16.mxu0 0
  %2115 = vmatpush1.bf16.msra.mxu0 0
  %2116 = vmatprep.subr.bf16.mxu0 0
  %2117 = vmatpush1.bf16.msra.mxu0 0
  %2118 = vmatprep.subr.bf16.mxu0 0
  %2119 = vmatpush1.bf16.msra.mxu0 0
  %2120 = vmatprep.subr.bf16.mxu0 0
  %2121 = vmatpush1.bf16.msra.mxu0 0
  %2122 = vmatprep.subr.bf16.mxu0 0
  %2123 = vmatpush1.bf16.msra.mxu0 0
  %2124 = vmatprep.subr.bf16.mxu0 0
  %2125 = vmatpush1.bf16.msra.mxu0 %v2108
  %2126 = vmatprep.subr.bf16.mxu0 0
  %2127 = vmatpush2.bf16.msra.mxu0 0
  %2128 = vmatprep.subr.bf16.mxu0 0
  %2129 = vmatpush2.bf16.msra.mxu0 0
  %2130 = vmatprep.subr.bf16.mxu0 0
  %2131 = vmatpush2.bf16.msra.mxu0 0
  %2132 = vmatprep.subr.bf16.mxu0 0
  %2133 = vmatpush2.bf16.msra.mxu0 0
  %2134 = vmatprep.subr.bf16.mxu0 0
  %2135 = vmatpush2.bf16.msra.mxu0 0
  %2136 = vmatprep.subr.bf16.mxu0 0
  %2137 = vmatpush2.bf16.msra.mxu0 0
  %2138 = vmatprep.subr.bf16.mxu0 0
  %2139 = vmatpush2.bf16.msra.mxu0 0
  %2140 = vmatprep.subr.bf16.mxu0 0
  %2141 = vmatpush2.bf16.msra.mxu0 0
  %2142 = vmatprep.mubr.bf16.mxu0 0
  %2143 = vmatmul.mubr.bf16.gmra.mxu0 %v29
  %v2144 = vpop.f32.mrf.mxu0
  %v2145 = vadd.f32 %v19, %v2144
  %v2146 = vpop.f32.mrf.mxu0
  %v2147 = vpop.f32.mrf.mxu0
  %v2148 = vpop.f32.mrf.mxu0
  %2149 = vdwg.mxu0
  %s2150 = scalar_lea.vmem %s3, 240
  %2151 = vst [vmem:[%s2150] sm:$0x3f] %v2145
  %v2152 = vld [vmem:[%s2014] sm:$0x3]
  %v2154 = vsel %vm31, %v2152, 0
  %2156 = vmatprep.subr.bf16.mxu0 0
  %2157 = vmatpush1.bf16.msra.mxu0 0
  %2158 = vmatprep.subr.bf16.mxu0 0
  %2159 = vmatpush1.bf16.msra.mxu0 0
  %2160 = vmatprep.subr.bf16.mxu0 0
  %2161 = vmatpush1.bf16.msra.mxu0 0
  %2162 = vmatprep.subr.bf16.mxu0 0
  %2163 = vmatpush1.bf16.msra.mxu0 0
  %2164 = vmatprep.subr.bf16.mxu0 0
  %2165 = vmatpush1.bf16.msra.mxu0 0
  %2166 = vmatprep.subr.bf16.mxu0 0
  %2167 = vmatpush1.bf16.msra.mxu0 0
  %2168 = vmatprep.subr.bf16.mxu0 0
  %2169 = vmatpush1.bf16.msra.mxu0 0
  %2170 = vmatprep.subr.bf16.mxu0 0
  %2171 = vmatpush1.bf16.msra.mxu0 %v2154
  %2172 = vmatprep.subr.bf16.mxu0 0
  %2173 = vmatpush2.bf16.msra.mxu0 0
  %2174 = vmatprep.subr.bf16.mxu0 0
  %2175 = vmatpush2.bf16.msra.mxu0 0
  %2176 = vmatprep.subr.bf16.mxu0 0
  %2177 = vmatpush2.bf16.msra.mxu0 0
  %2178 = vmatprep.subr.bf16.mxu0 0
  %2179 = vmatpush2.bf16.msra.mxu0 0
  %2180 = vmatprep.subr.bf16.mxu0 0
  %2181 = vmatpush2.bf16.msra.mxu0 0
  %2182 = vmatprep.subr.bf16.mxu0 0
  %2183 = vmatpush2.bf16.msra.mxu0 0
  %2184 = vmatprep.subr.bf16.mxu0 0
  %2185 = vmatpush2.bf16.msra.mxu0 0
  %2186 = vmatprep.subr.bf16.mxu0 0
  %2187 = vmatpush2.bf16.msra.mxu0 0
  %2188 = vmatprep.mubr.bf16.mxu0 0
  %2189 = vmatmul.mubr.bf16.gmra.mxu0 %v80
  %v2190 = vpop.f32.mrf.mxu0
  %v2191 = vadd.f32 %v19, %v2190
  %v2192 = vpop.f32.mrf.mxu0
  %v2193 = vpop.f32.mrf.mxu0
  %v2194 = vpop.f32.mrf.mxu0
  %2195 = vdwg.mxu0
  %s2196 = scalar_lea.vmem %s3, 248
  %2197 = vst [vmem:[%s2196] sm:$0x3f] %v2191
  // Predicated region
  $region14: #{a_call__.3} parent=0 // pred_check
    _
  $region15: #{a_call__.3} parent=0 // pred_check_branch
    %2199 = sbr.rel (0) target = $region17
  $region16: #{a_call__.3} parent=0 // pred_region
    _
  $region17: #{a_call__.3} parent=0 // pred_fallthru
    _
  // Predicated region
  $region18: #{a_call__.3} parent=0 // pred_check
    _
  $region19: #{a_call__.3} parent=0 // pred_check_branch
    %2201 = sbr.rel (0) target = $region21
  $region20: #{a_call__.3} parent=0 // pred_region
    _
  $region21: #{a_call__.3} parent=0 // pred_fallthru
    _

</llo_original>
